<compile_context>
chip_gen: v6e
topology: v6e:2x2x1
jax: 0.10.0
libtpu: 0.0.40
codegen_flags: <defaults>
</compile_context>

<pallas_src>
import functools

import jax
import jax.numpy as jnp
from jax.experimental import pallas as pl
from jax.experimental.pallas import tpu as pltpu


# ---------------------------------------------------------------------------
# In-kernel helpers (traced inside the fused Pallas kernel)
# ---------------------------------------------------------------------------
def _im2col_conv_relu(xpad_ref, patches_ref, w_ref, b_ref):
    """3x3 'same' conv + bias + ReLU on a zero-padded NHWC input scratch.

    xpad_ref:    (N, H+2, W+2, Cin) f32 VMEM scratch, border already zeroed.
    patches_ref: (N, H, W, 9*Cin)   f32 VMEM scratch (im2col buffer).
    w_ref:       (9*Cin, Cout)      im2col-reshaped HWIO weights.
    b_ref:       (1, Cout)
    returns      (N, H, W, Cout) f32 value.
    """
    n, hp, wp, cin = xpad_ref.shape
    h, w = hp - 2, wp - 2
    cout = w_ref.shape[-1]

    # Every patch entry is written exactly once (padding lives in xpad_ref),
    # so no zero-fill of the patch buffer is needed.  All slices are static.
    for dy in range(3):
        for dx in range(3):
            k = dy * 3 + dx
            patches_ref[:, :, :, k * cin:(k + 1) * cin] = (
                xpad_ref[:, dy:dy + h, dx:dx + w, :])

    # Single MXU matmul (K = 9*Cin), f32 accumulation, bias + ReLU on the VPU.
    patches = patches_ref[...].reshape(n * h * w, 9 * cin)   # lane dim intact
    y = jnp.dot(patches, w_ref[...], preferred_element_type=jnp.float32)
    y = jnp.maximum(y + b_ref[...], 0.0)
    return y.reshape(n, h, w, cout)                           # lane dim intact


def _pool2x2_into(y, tmp_ref, dst_ref, off_h, off_w):
    """2x2 max-pool of y (N,H,W,C); result goes to dst_ref[:, off_h:, off_w:, :].

    Two unrolled pairwise-max passes over static slices (pure VPU work, no
    reshapes / XLU reductions).  tmp_ref is (N, H//2, W, C).
    """
    n, h, w, c = y.shape
    # H pass: pairwise max of adjacent rows.
    for r in range(h // 2):
        tmp_ref[:, r, :, :] = jnp.maximum(y[:, 2 * r, :, :], y[:, 2 * r + 1, :, :])
    # W pass: pairwise max of adjacent columns, written into dst interior.
    for j in range(w // 2):
        dst_ref[:, off_h:off_h + h // 2, off_w + j, :] = jnp.maximum(
            tmp_ref[:, :, 2 * j, :], tmp_ref[:, :, 2 * j + 1, :])


# ---------------------------------------------------------------------------
# Fused Pallas kernel: conv block x2 + flatten + fc + heads
# ---------------------------------------------------------------------------
def reinforce_kernel(x_ref, w1_ref, b1_ref, w2_ref, b2_ref,
                     wfc_ref, bfc_ref, wh_ref, bh_ref,
                     mean_ref, std_ref,
                     xpad1_ref, patches1_ref, tmp1_ref,
                     xpad2_ref, patches2_ref, tmp2_ref, flat_ref,
                     *, sigmoid_std):
    n, h, w, _ = x_ref.shape
    h2, w2 = h // 2, w // 2
    h4, w4 = h // 4, w // 4
    c2 = 64

    # -- zero-pad the input ('same' padding lives inside the kernel) ---------
    xpad1_ref[...] = jnp.zeros(xpad1_ref.shape, xpad1_ref.dtype)
    xpad1_ref[:, 1:1 + h, 1:1 + w, :] = x_ref[...]

    # -- conv1 + ReLU:  (N, H, W, RGB) -> (N, H, W, 32) -----------------------
    y1 = _im2col_conv_relu(xpad1_ref, patches1_ref, w1_ref, b1_ref)

    # -- maxpool 2x2, written straight into conv2's zero-padded input --------
    xpad2_ref[...] = jnp.zeros(xpad2_ref.shape, xpad2_ref.dtype)
    _pool2x2_into(y1, tmp1_ref, xpad2_ref, 1, 1)

    # -- conv2 + ReLU:  (N, H/2, W/2, 32) -> (N, H/2, W/2, 64) ----------------
    y2 = _im2col_conv_relu(xpad2_ref, patches2_ref, w2_ref, b2_ref)

    # -- maxpool 2x2 fused with NHWC flatten into the bf16 fc input ----------
    for r in range(h4):                                   # H pass
        tmp2_ref[:, r, :, :] = jnp.maximum(y2[:, 2 * r, :, :], y2[:, 2 * r + 1, :, :])
    for yy in range(h4):                                  # W pass + flatten
        for xx in range(w4):
            v = jnp.maximum(tmp2_ref[:, yy, 2 * xx, :],
                            tmp2_ref[:, yy, 2 * xx + 1, :])
            off = (yy * w4 + xx) * c2
            flat_ref[:, off:off + c2] = v.astype(flat_ref.dtype)

    # -- fc (fc_in -> 512): bf16 operands on the MXU, f32 accumulation -------
    hfc = jnp.dot(flat_ref[...], wfc_ref[...], preferred_element_type=jnp.float32)
    hfc = jnp.maximum(hfc + bfc_ref[...], 0.0)

    # -- fused heads: one (512, 10) matmul, split into mean / logstd ---------
    out = jnp.dot(hfc, wh_ref[...], preferred_element_type=jnp.float32) + bh_ref[...]
    mean_ref[...] = out[:, :5]
    logstd = out[:, 5:]
    if sigmoid_std:          # config['classifier'] in ('yolo', 'ddq')
        std_ref[...] = 2.0 * jax.nn.sigmoid(logstd)
    else:
        std_ref[...] = jnp.exp(logstd)


# ---------------------------------------------------------------------------
# Wrapper (glue: layout transposes, weight repacking, parameter plumbing)
# ---------------------------------------------------------------------------
_VMEM_SPEC = pl.BlockSpec(memory_space=pltpu.MemorySpace.VMEM)


def reinforce_forward(x_nchw, params, classifier="simple"):
    """x_nchw: (N, RGB, H, W) float32, same layout as the PyTorch module's input."""
    x = jnp.transpose(x_nchw, (0, 2, 3, 1)).astype(jnp.float32)  # NCHW -> NHWC (glue)
    n, h, w, rgb = x.shape
    h2, w2 = h // 2, w // 2
    h4, w4 = h // 4, w // 4
    fc_in = h4 * w4 * 64

    # im2col weight layouts (glue reshape, free in XLA).
    w1 = params["w1"].reshape(9 * rgb, 32)
    w2k = params["w2"].reshape(9 * 32, 64)
    # Stream the big fc weight as bf16 (accumulation stays f32 in-kernel).
    wfc = params["wfc"].astype(jnp.bfloat16)
    # Fuse the two 512->5 heads into one 512->10 matmul.
    wh = jnp.concatenate([params["wm"], params["ws"]], axis=1)
    bh = jnp.concatenate([params["bm"], params["bs"]], axis=1)

    kernel = functools.partial(reinforce_kernel,
                               sigmoid_std=(classifier in ("yolo", "ddq")))

    mean, std = pl.pallas_call(
        kernel,
        out_shape=(jax.ShapeDtypeStruct((n, 5), jnp.float32),
                   jax.ShapeDtypeStruct((n, 5), jnp.float32)),
        in_specs=[_VMEM_SPEC] * 9,
        out_specs=(_VMEM_SPEC, _VMEM_SPEC),
        scratch_shapes=[
            pltpu.VMEM((n, h + 2, w + 2, rgb), jnp.float32),     # zero-padded input
            pltpu.VMEM((n, h, w, 9 * rgb), jnp.float32),         # conv1 im2col patches
            pltpu.VMEM((n, h2, w, 32), jnp.float32),             # pool1 H-pass tmp
            pltpu.VMEM((n, h2 + 2, w2 + 2, 32), jnp.float32),    # zero-padded conv2 input
            pltpu.VMEM((n, h2, w2, 9 * 32), jnp.float32),        # conv2 im2col patches
            pltpu.VMEM((n, h4, w2, 64), jnp.float32),            # pool2 H-pass tmp
            pltpu.VMEM((n, fc_in), jnp.bfloat16),                # NHWC-flat fc input
        ],
    )(x, w1, params["b1"], w2k, params["b2"],
      wfc, params["bfc"], wh, bh)
    return mean, std


# ---------------------------------------------------------------------------
# Deterministic parameter initialization (shapes from REINFORCE.__init__)
# ---------------------------------------------------------------------------
def init_params(key, rgb, img_h, img_w):
    ks = jax.random.split(key, 10)

    def u(k, shape, fan_in):
        bound = 1.0 / float(fan_in) ** 0.5
        return jax.random.uniform(k, shape, jnp.float32, -bound, bound)

    fc_in = (img_h // 4) * (img_w // 4) * 64

    w1 = u(ks[0], (3, 3, rgb, 32), rgb * 9)        # HWIO
    b1 = u(ks[1], (1, 32), rgb * 9)
    w2 = u(ks[2], (3, 3, 32, 64), 32 * 9)
    b2 = u(ks[3], (1, 64), 32 * 9)
    wfc_chw = u(ks[4], (fc_in, 512), fc_in)        # rows in PyTorch's (C,H,W)-flat order
    bfc = u(ks[5], (1, 512), fc_in)
    wm = u(ks[6], (512, 5), 512)
    bm = u(ks[7], (1, 5), 512)
    ws = u(ks[8], (512, 5), 512)
    bs = u(ks[9], (1, 5), 512)

    # Permute fc rows so the kernel's NHWC flatten == PyTorch's NCHW flatten.
    h4, w4, c = img_h // 4, img_w // 4, 64
    ci = jnp.arange(c)[None, None, :]
    hi = jnp.arange(h4)[:, None, None]
    wi = jnp.arange(w4)[None, :, None]
    perm = (ci * h4 * w4 + hi * w4 + wi).reshape(-1)   # nhwc_flat_idx -> chw_flat_idx
    wfc = wfc_chw[perm]

    return dict(w1=w1, b1=b1, w2=w2, b2=b2, wfc=wfc, bfc=bfc,
                wm=wm, bm=bm, ws=ws, bs=bs)


# TODO(synk): train_net() (SGD optimizer, REINFORCE loss, autograd backward) is
# training logic and is not part of the forward kernel.
# TODO(synk): for large batches on v7x, add a grid over N with
# dimension_semantics=("parallel",) so both TensorCores share the batch.

if __name__ == "__main__":
    key = jax.random.PRNGKey(0)
    kx, kp = jax.random.split(key)

    N, RGB, H, W = 2, 4, 16, 16        # config: RGB=4, img_size_x=img_size_y=16
    x = jax.random.normal(kx, (N, RGB, H, W), dtype=jnp.float32)
    params = init_params(kp, RGB, H, W)

    fwd = jax.jit(functools.partial(reinforce_forward, classifier="simple"))
    action_mean, action_std = fwd(x, params)
    jax.block_until_ready((action_mean, action_std))

    assert action_mean.shape == (N, 5) and action_std.shape == (N, 5)
    assert bool(jnp.all(jnp.isfinite(action_mean))) and bool(jnp.all(jnp.isfinite(action_std)))
    assert bool(jnp.all(action_std > 0.0))   # std = exp(logstd) must be positive
    print("KERNEL_OK")
</pallas_src>

<mosaic_0001>
module attributes {stable_mosaic.version = 11 : i64} {
  func.func @reinforce_kernel(%arg0: memref<2x16x16x4xf32, #tpu.memory_space<vmem>>, %arg1: memref<36x32xf32, #tpu.memory_space<vmem>>, %arg2: memref<1x32xf32, #tpu.memory_space<vmem>>, %arg3: memref<288x64xf32, #tpu.memory_space<vmem>>, %arg4: memref<1x64xf32, #tpu.memory_space<vmem>>, %arg5: memref<1024x512xbf16, #tpu.memory_space<vmem>>, %arg6: memref<1x512xf32, #tpu.memory_space<vmem>>, %arg7: memref<512x10xf32, #tpu.memory_space<vmem>>, %arg8: memref<1x10xf32, #tpu.memory_space<vmem>>, %arg9: memref<2x5xf32, #tpu.memory_space<vmem>>, %arg10: memref<2x5xf32, #tpu.memory_space<vmem>>, %arg11: memref<2x18x18x4xf32, #tpu.memory_space<vmem>>, %arg12: memref<2x16x16x36xf32, #tpu.memory_space<vmem>>, %arg13: memref<2x8x16x32xf32, #tpu.memory_space<vmem>>, %arg14: memref<2x10x10x32xf32, #tpu.memory_space<vmem>>, %arg15: memref<2x8x8x288xf32, #tpu.memory_space<vmem>>, %arg16: memref<2x4x8x64xf32, #tpu.memory_space<vmem>>, %arg17: memref<2x1024xbf16, #tpu.memory_space<vmem>>) attributes {dimension_semantics = [], scalar_prefetch = 0 : i64, scratch_operands = 7 : i64, tpu.core_type = #tpu.core_type<tc>} {
    %cst = arith.constant 0.000000e+00 : f32
    %0 = vector.broadcast %cst : f32 to vector<2x18x18x4xf32>
    %c0 = arith.constant 0 : index
    %c0_0 = arith.constant 0 : index
    %c0_1 = arith.constant 0 : index
    %c0_2 = arith.constant 0 : index
    %1 = vector.load %arg11[%c0, %c0_0, %c0_1, %c0_2] : memref<2x18x18x4xf32, #tpu.memory_space<vmem>>, vector<2x18x18x4xf32>
    tpu.vector_store %arg11[%c0, %c0_0, %c0_1, %c0_2], %0 {strides = array<i32>} : memref<2x18x18x4xf32, #tpu.memory_space<vmem>>, vector<2x18x18x4xf32>,
    %c0_3 = arith.constant 0 : index
    %c0_4 = arith.constant 0 : index
    %c0_5 = arith.constant 0 : index
    %c0_6 = arith.constant 0 : index
    %2 = vector.load %arg0[%c0_3, %c0_4, %c0_5, %c0_6] : memref<2x16x16x4xf32, #tpu.memory_space<vmem>>, vector<2x16x16x4xf32>
    %c0_7 = arith.constant 0 : index
    %c1 = arith.constant 1 : index
    %c1_8 = arith.constant 1 : index
    %c0_9 = arith.constant 0 : index
    %3 = vector.load %arg11[%c0_7, %c1, %c1_8, %c0_9] : memref<2x18x18x4xf32, #tpu.memory_space<vmem>>, vector<2x16x16x4xf32>
    tpu.vector_store %arg11[%c0_7, %c1, %c1_8, %c0_9], %2 {strides = array<i32>} : memref<2x18x18x4xf32, #tpu.memory_space<vmem>>, vector<2x16x16x4xf32>,
    %c0_10 = arith.constant 0 : index
    %c0_11 = arith.constant 0 : index
    %c0_12 = arith.constant 0 : index
    %c0_13 = arith.constant 0 : index
    %4 = vector.load %arg11[%c0_10, %c0_11, %c0_12, %c0_13] : memref<2x18x18x4xf32, #tpu.memory_space<vmem>>, vector<2x16x16x4xf32>
    %c0_14 = arith.constant 0 : index
    %c0_15 = arith.constant 0 : index
    %c0_16 = arith.constant 0 : index
    %c0_17 = arith.constant 0 : index
    %5 = vector.load %arg12[%c0_14, %c0_15, %c0_16, %c0_17] : memref<2x16x16x36xf32, #tpu.memory_space<vmem>>, vector<2x16x16x4xf32>
    tpu.vector_store %arg12[%c0_14, %c0_15, %c0_16, %c0_17], %4 {strides = array<i32>} : memref<2x16x16x36xf32, #tpu.memory_space<vmem>>, vector<2x16x16x4xf32>,
    %c0_18 = arith.constant 0 : index
    %c0_19 = arith.constant 0 : index
    %c1_20 = arith.constant 1 : index
    %c0_21 = arith.constant 0 : index
    %6 = vector.load %arg11[%c0_18, %c0_19, %c1_20, %c0_21] : memref<2x18x18x4xf32, #tpu.memory_space<vmem>>, vector<2x16x16x4xf32>
    %c0_22 = arith.constant 0 : index
    %c0_23 = arith.constant 0 : index
    %c0_24 = arith.constant 0 : index
    %c4 = arith.constant 4 : index
    %7 = vector.load %arg12[%c0_22, %c0_23, %c0_24, %c4] : memref<2x16x16x36xf32, #tpu.memory_space<vmem>>, vector<2x16x16x4xf32>
    tpu.vector_store %arg12[%c0_22, %c0_23, %c0_24, %c4], %6 {strides = array<i32>} : memref<2x16x16x36xf32, #tpu.memory_space<vmem>>, vector<2x16x16x4xf32>,
    %c0_25 = arith.constant 0 : index
    %c0_26 = arith.constant 0 : index
    %c2 = arith.constant 2 : index
    %c0_27 = arith.constant 0 : index
    %8 = vector.load %arg11[%c0_25, %c0_26, %c2, %c0_27] : memref<2x18x18x4xf32, #tpu.memory_space<vmem>>, vector<2x16x16x4xf32>
    %c0_28 = arith.constant 0 : index
    %c0_29 = arith.constant 0 : index
    %c0_30 = arith.constant 0 : index
    %c8 = arith.constant 8 : index
    %9 = vector.load %arg12[%c0_28, %c0_29, %c0_30, %c8] : memref<2x16x16x36xf32, #tpu.memory_space<vmem>>, vector<2x16x16x4xf32>
    tpu.vector_store %arg12[%c0_28, %c0_29, %c0_30, %c8], %8 {strides = array<i32>} : memref<2x16x16x36xf32, #tpu.memory_space<vmem>>, vector<2x16x16x4xf32>,
    %c0_31 = arith.constant 0 : index
    %c1_32 = arith.constant 1 : index
    %c0_33 = arith.constant 0 : index
    %c0_34 = arith.constant 0 : index
    %10 = vector.load %arg11[%c0_31, %c1_32, %c0_33, %c0_34] : memref<2x18x18x4xf32, #tpu.memory_space<vmem>>, vector<2x16x16x4xf32>
    %c0_35 = arith.constant 0 : index
    %c0_36 = arith.constant 0 : index
    %c0_37 = arith.constant 0 : index
    %c12 = arith.constant 12 : index
    %11 = vector.load %arg12[%c0_35, %c0_36, %c0_37, %c12] : memref<2x16x16x36xf32, #tpu.memory_space<vmem>>, vector<2x16x16x4xf32>
    tpu.vector_store %arg12[%c0_35, %c0_36, %c0_37, %c12], %10 {strides = array<i32>} : memref<2x16x16x36xf32, #tpu.memory_space<vmem>>, vector<2x16x16x4xf32>,
    %c0_38 = arith.constant 0 : index
    %c1_39 = arith.constant 1 : index
    %c1_40 = arith.constant 1 : index
    %c0_41 = arith.constant 0 : index
    %12 = vector.load %arg11[%c0_38, %c1_39, %c1_40, %c0_41] : memref<2x18x18x4xf32, #tpu.memory_space<vmem>>, vector<2x16x16x4xf32>
    %c0_42 = arith.constant 0 : index
    %c0_43 = arith.constant 0 : index
    %c0_44 = arith.constant 0 : index
    %c16 = arith.constant 16 : index
    %13 = vector.load %arg12[%c0_42, %c0_43, %c0_44, %c16] : memref<2x16x16x36xf32, #tpu.memory_space<vmem>>, vector<2x16x16x4xf32>
    tpu.vector_store %arg12[%c0_42, %c0_43, %c0_44, %c16], %12 {strides = array<i32>} : memref<2x16x16x36xf32, #tpu.memory_space<vmem>>, vector<2x16x16x4xf32>,
    %c0_45 = arith.constant 0 : index
    %c1_46 = arith.constant 1 : index
    %c2_47 = arith.constant 2 : index
    %c0_48 = arith.constant 0 : index
    %14 = vector.load %arg11[%c0_45, %c1_46, %c2_47, %c0_48] : memref<2x18x18x4xf32, #tpu.memory_space<vmem>>, vector<2x16x16x4xf32>
    %c0_49 = arith.constant 0 : index
    %c0_50 = arith.constant 0 : index
    %c0_51 = arith.constant 0 : index
    %c20 = arith.constant 20 : index
    %15 = vector.load %arg12[%c0_49, %c0_50, %c0_51, %c20] : memref<2x16x16x36xf32, #tpu.memory_space<vmem>>, vector<2x16x16x4xf32>
    tpu.vector_store %arg12[%c0_49, %c0_50, %c0_51, %c20], %14 {strides = array<i32>} : memref<2x16x16x36xf32, #tpu.memory_space<vmem>>, vector<2x16x16x4xf32>,
    %c0_52 = arith.constant 0 : index
    %c2_53 = arith.constant 2 : index
    %c0_54 = arith.constant 0 : index
    %c0_55 = arith.constant 0 : index
    %16 = vector.load %arg11[%c0_52, %c2_53, %c0_54, %c0_55] : memref<2x18x18x4xf32, #tpu.memory_space<vmem>>, vector<2x16x16x4xf32>
    %c0_56 = arith.constant 0 : index
    %c0_57 = arith.constant 0 : index
    %c0_58 = arith.constant 0 : index
    %c24 = arith.constant 24 : index
    %17 = vector.load %arg12[%c0_56, %c0_57, %c0_58, %c24] : memref<2x16x16x36xf32, #tpu.memory_space<vmem>>, vector<2x16x16x4xf32>
    tpu.vector_store %arg12[%c0_56, %c0_57, %c0_58, %c24], %16 {strides = array<i32>} : memref<2x16x16x36xf32, #tpu.memory_space<vmem>>, vector<2x16x16x4xf32>,
    %c0_59 = arith.constant 0 : index
    %c2_60 = arith.constant 2 : index
    %c1_61 = arith.constant 1 : index
    %c0_62 = arith.constant 0 : index
    %18 = vector.load %arg11[%c0_59, %c2_60, %c1_61, %c0_62] : memref<2x18x18x4xf32, #tpu.memory_space<vmem>>, vector<2x16x16x4xf32>
    %c0_63 = arith.constant 0 : index
    %c0_64 = arith.constant 0 : index
    %c0_65 = arith.constant 0 : index
    %c28 = arith.constant 28 : index
    %19 = vector.load %arg12[%c0_63, %c0_64, %c0_65, %c28] : memref<2x16x16x36xf32, #tpu.memory_space<vmem>>, vector<2x16x16x4xf32>
    tpu.vector_store %arg12[%c0_63, %c0_64, %c0_65, %c28], %18 {strides = array<i32>} : memref<2x16x16x36xf32, #tpu.memory_space<vmem>>, vector<2x16x16x4xf32>,
    %c0_66 = arith.constant 0 : index
    %c2_67 = arith.constant 2 : index
    %c2_68 = arith.constant 2 : index
    %c0_69 = arith.constant 0 : index
    %20 = vector.load %arg11[%c0_66, %c2_67, %c2_68, %c0_69] : memref<2x18x18x4xf32, #tpu.memory_space<vmem>>, vector<2x16x16x4xf32>
    %c0_70 = arith.constant 0 : index
    %c0_71 = arith.constant 0 : index
    %c0_72 = arith.constant 0 : index
    %c32 = arith.constant 32 : index
    %21 = vector.load %arg12[%c0_70, %c0_71, %c0_72, %c32] : memref<2x16x16x36xf32, #tpu.memory_space<vmem>>, vector<2x16x16x4xf32>
    tpu.vector_store %arg12[%c0_70, %c0_71, %c0_72, %c32], %20 {strides = array<i32>} : memref<2x16x16x36xf32, #tpu.memory_space<vmem>>, vector<2x16x16x4xf32>,
    %c0_73 = arith.constant 0 : index
    %c0_74 = arith.constant 0 : index
    %c0_75 = arith.constant 0 : index
    %c0_76 = arith.constant 0 : index
    %22 = vector.load %arg12[%c0_73, %c0_74, %c0_75, %c0_76] : memref<2x16x16x36xf32, #tpu.memory_space<vmem>>, vector<2x16x16x36xf32>
    %23 = vector.shape_cast %22 : vector<2x16x16x36xf32> to vector<512x36xf32>
    %c0_77 = arith.constant 0 : index
    %c0_78 = arith.constant 0 : index
    %24 = vector.load %arg1[%c0_77, %c0_78] : memref<36x32xf32, #tpu.memory_space<vmem>>, vector<36x32xf32>
    %cst_79 = arith.constant dense<0.000000e+00> : vector<512x32xf32>
    %25 = tpu.matmul %23, %24, %cst_79 {dimension_numbers = #tpu.dot_dimension_numbers<[1], [0], [0], [1], [0, 0, 1, 1], [], []>} : vector<512x36xf32>, vector<36x32xf32>, vector<512x32xf32> -> vector<512x32xf32>
    %c0_80 = arith.constant 0 : index
    %c0_81 = arith.constant 0 : index
    %26 = vector.load %arg2[%c0_80, %c0_81] : memref<1x32xf32, #tpu.memory_space<vmem>>, vector<1x32xf32>
    %27 = vector.broadcast %26 : vector<1x32xf32> to vector<512x32xf32>
    %28 = arith.addf %25, %27 : vector<512x32xf32>
    %cst_82 = arith.constant 0.000000e+00 : f32
    %29 = vector.broadcast %cst_82 : f32 to vector<512x32xf32>
    %30 = arith.maximumf %28, %29 : vector<512x32xf32>
    %31 = vector.shape_cast %30 : vector<512x32xf32> to vector<2x16x16x32xf32>
    %cst_83 = arith.constant 0.000000e+00 : f32
    %32 = vector.broadcast %cst_83 : f32 to vector<2x10x10x32xf32>
    %c0_84 = arith.constant 0 : index
    %c0_85 = arith.constant 0 : index
    %c0_86 = arith.constant 0 : index
    %c0_87 = arith.constant 0 : index
    %33 = vector.load %arg14[%c0_84, %c0_85, %c0_86, %c0_87] : memref<2x10x10x32xf32, #tpu.memory_space<vmem>>, vector<2x10x10x32xf32>
    tpu.vector_store %arg14[%c0_84, %c0_85, %c0_86, %c0_87], %32 {strides = array<i32>} : memref<2x10x10x32xf32, #tpu.memory_space<vmem>>, vector<2x10x10x32xf32>,
    %34 = vector.extract_strided_slice %31 {offsets = [0, 0, 0, 0], sizes = [2, 1, 16, 32], strides = [1, 1, 1, 1]} : vector<2x16x16x32xf32> to vector<2x1x16x32xf32>
    %35 = vector.shape_cast %34 : vector<2x1x16x32xf32> to vector<2x16x32xf32>
    %36 = vector.extract_strided_slice %31 {offsets = [0, 1, 0, 0], sizes = [2, 1, 16, 32], strides = [1, 1, 1, 1]} : vector<2x16x16x32xf32> to vector<2x1x16x32xf32>
    %37 = vector.shape_cast %36 : vector<2x1x16x32xf32> to vector<2x16x32xf32>
    %38 = arith.maximumf %35, %37 : vector<2x16x32xf32>
    %c0_88 = arith.constant 0 : index
    %c0_89 = arith.constant 0 : index
    %c0_90 = arith.constant 0 : index
    %c0_91 = arith.constant 0 : index
    %39 = vector.load %arg13[%c0_88, %c0_89, %c0_90, %c0_91] : memref<2x8x16x32xf32, #tpu.memory_space<vmem>>, vector<2x1x16x32xf32>
    %40 = vector.shape_cast %39 : vector<2x1x16x32xf32> to vector<2x16x32xf32>
    %41 = vector.shape_cast %38 : vector<2x16x32xf32> to vector<2x1x16x32xf32>
    tpu.vector_store %arg13[%c0_88, %c0_89, %c0_90, %c0_91], %41 {strides = array<i32>} : memref<2x8x16x32xf32, #tpu.memory_space<vmem>>, vector<2x1x16x32xf32>,
    %42 = vector.extract_strided_slice %31 {offsets = [0, 2, 0, 0], sizes = [2, 1, 16, 32], strides = [1, 1, 1, 1]} : vector<2x16x16x32xf32> to vector<2x1x16x32xf32>
    %43 = vector.shape_cast %42 : vector<2x1x16x32xf32> to vector<2x16x32xf32>
    %44 = vector.extract_strided_slice %31 {offsets = [0, 3, 0, 0], sizes = [2, 1, 16, 32], strides = [1, 1, 1, 1]} : vector<2x16x16x32xf32> to vector<2x1x16x32xf32>
    %45 = vector.shape_cast %44 : vector<2x1x16x32xf32> to vector<2x16x32xf32>
    %46 = arith.maximumf %43, %45 : vector<2x16x32xf32>
    %c0_92 = arith.constant 0 : index
    %c1_93 = arith.constant 1 : index
    %c0_94 = arith.constant 0 : index
    %c0_95 = arith.constant 0 : index
    %47 = vector.load %arg13[%c0_92, %c1_93, %c0_94, %c0_95] : memref<2x8x16x32xf32, #tpu.memory_space<vmem>>, vector<2x1x16x32xf32>
    %48 = vector.shape_cast %47 : vector<2x1x16x32xf32> to vector<2x16x32xf32>
    %49 = vector.shape_cast %46 : vector<2x16x32xf32> to vector<2x1x16x32xf32>
    tpu.vector_store %arg13[%c0_92, %c1_93, %c0_94, %c0_95], %49 {strides = array<i32>} : memref<2x8x16x32xf32, #tpu.memory_space<vmem>>, vector<2x1x16x32xf32>,
    %50 = vector.extract_strided_slice %31 {offsets = [0, 4, 0, 0], sizes = [2, 1, 16, 32], strides = [1, 1, 1, 1]} : vector<2x16x16x32xf32> to vector<2x1x16x32xf32>
    %51 = vector.shape_cast %50 : vector<2x1x16x32xf32> to vector<2x16x32xf32>
    %52 = vector.extract_strided_slice %31 {offsets = [0, 5, 0, 0], sizes = [2, 1, 16, 32], strides = [1, 1, 1, 1]} : vector<2x16x16x32xf32> to vector<2x1x16x32xf32>
    %53 = vector.shape_cast %52 : vector<2x1x16x32xf32> to vector<2x16x32xf32>
    %54 = arith.maximumf %51, %53 : vector<2x16x32xf32>
    %c0_96 = arith.constant 0 : index
    %c2_97 = arith.constant 2 : index
    %c0_98 = arith.constant 0 : index
    %c0_99 = arith.constant 0 : index
    %55 = vector.load %arg13[%c0_96, %c2_97, %c0_98, %c0_99] : memref<2x8x16x32xf32, #tpu.memory_space<vmem>>, vector<2x1x16x32xf32>
    %56 = vector.shape_cast %55 : vector<2x1x16x32xf32> to vector<2x16x32xf32>
    %57 = vector.shape_cast %54 : vector<2x16x32xf32> to vector<2x1x16x32xf32>
    tpu.vector_store %arg13[%c0_96, %c2_97, %c0_98, %c0_99], %57 {strides = array<i32>} : memref<2x8x16x32xf32, #tpu.memory_space<vmem>>, vector<2x1x16x32xf32>,
    %58 = vector.extract_strided_slice %31 {offsets = [0, 6, 0, 0], sizes = [2, 1, 16, 32], strides = [1, 1, 1, 1]} : vector<2x16x16x32xf32> to vector<2x1x16x32xf32>
    %59 = vector.shape_cast %58 : vector<2x1x16x32xf32> to vector<2x16x32xf32>
    %60 = vector.extract_strided_slice %31 {offsets = [0, 7, 0, 0], sizes = [2, 1, 16, 32], strides = [1, 1, 1, 1]} : vector<2x16x16x32xf32> to vector<2x1x16x32xf32>
    %61 = vector.shape_cast %60 : vector<2x1x16x32xf32> to vector<2x16x32xf32>
    %62 = arith.maximumf %59, %61 : vector<2x16x32xf32>
    %c0_100 = arith.constant 0 : index
    %c3 = arith.constant 3 : index
    %c0_101 = arith.constant 0 : index
    %c0_102 = arith.constant 0 : index
    %63 = vector.load %arg13[%c0_100, %c3, %c0_101, %c0_102] : memref<2x8x16x32xf32, #tpu.memory_space<vmem>>, vector<2x1x16x32xf32>
    %64 = vector.shape_cast %63 : vector<2x1x16x32xf32> to vector<2x16x32xf32>
    %65 = vector.shape_cast %62 : vector<2x16x32xf32> to vector<2x1x16x32xf32>
    tpu.vector_store %arg13[%c0_100, %c3, %c0_101, %c0_102], %65 {strides = array<i32>} : memref<2x8x16x32xf32, #tpu.memory_space<vmem>>, vector<2x1x16x32xf32>,
    %66 = vector.extract_strided_slice %31 {offsets = [0, 8, 0, 0], sizes = [2, 1, 16, 32], strides = [1, 1, 1, 1]} : vector<2x16x16x32xf32> to vector<2x1x16x32xf32>
    %67 = vector.shape_cast %66 : vector<2x1x16x32xf32> to vector<2x16x32xf32>
    %68 = vector.extract_strided_slice %31 {offsets = [0, 9, 0, 0], sizes = [2, 1, 16, 32], strides = [1, 1, 1, 1]} : vector<2x16x16x32xf32> to vector<2x1x16x32xf32>
    %69 = vector.shape_cast %68 : vector<2x1x16x32xf32> to vector<2x16x32xf32>
    %70 = arith.maximumf %67, %69 : vector<2x16x32xf32>
    %c0_103 = arith.constant 0 : index
    %c4_104 = arith.constant 4 : index
    %c0_105 = arith.constant 0 : index
    %c0_106 = arith.constant 0 : index
    %71 = vector.load %arg13[%c0_103, %c4_104, %c0_105, %c0_106] : memref<2x8x16x32xf32, #tpu.memory_space<vmem>>, vector<2x1x16x32xf32>
    %72 = vector.shape_cast %71 : vector<2x1x16x32xf32> to vector<2x16x32xf32>
    %73 = vector.shape_cast %70 : vector<2x16x32xf32> to vector<2x1x16x32xf32>
    tpu.vector_store %arg13[%c0_103, %c4_104, %c0_105, %c0_106], %73 {strides = array<i32>} : memref<2x8x16x32xf32, #tpu.memory_space<vmem>>, vector<2x1x16x32xf32>,
    %74 = vector.extract_strided_slice %31 {offsets = [0, 10, 0, 0], sizes = [2, 1, 16, 32], strides = [1, 1, 1, 1]} : vector<2x16x16x32xf32> to vector<2x1x16x32xf32>
    %75 = vector.shape_cast %74 : vector<2x1x16x32xf32> to vector<2x16x32xf32>
    %76 = vector.extract_strided_slice %31 {offsets = [0, 11, 0, 0], sizes = [2, 1, 16, 32], strides = [1, 1, 1, 1]} : vector<2x16x16x32xf32> to vector<2x1x16x32xf32>
    %77 = vector.shape_cast %76 : vector<2x1x16x32xf32> to vector<2x16x32xf32>
    %78 = arith.maximumf %75, %77 : vector<2x16x32xf32>
    %c0_107 = arith.constant 0 : index
    %c5 = arith.constant 5 : index
    %c0_108 = arith.constant 0 : index
    %c0_109 = arith.constant 0 : index
    %79 = vector.load %arg13[%c0_107, %c5, %c0_108, %c0_109] : memref<2x8x16x32xf32, #tpu.memory_space<vmem>>, vector<2x1x16x32xf32>
    %80 = vector.shape_cast %79 : vector<2x1x16x32xf32> to vector<2x16x32xf32>
    %81 = vector.shape_cast %78 : vector<2x16x32xf32> to vector<2x1x16x32xf32>
    tpu.vector_store %arg13[%c0_107, %c5, %c0_108, %c0_109], %81 {strides = array<i32>} : memref<2x8x16x32xf32, #tpu.memory_space<vmem>>, vector<2x1x16x32xf32>,
    %82 = vector.extract_strided_slice %31 {offsets = [0, 12, 0, 0], sizes = [2, 1, 16, 32], strides = [1, 1, 1, 1]} : vector<2x16x16x32xf32> to vector<2x1x16x32xf32>
    %83 = vector.shape_cast %82 : vector<2x1x16x32xf32> to vector<2x16x32xf32>
    %84 = vector.extract_strided_slice %31 {offsets = [0, 13, 0, 0], sizes = [2, 1, 16, 32], strides = [1, 1, 1, 1]} : vector<2x16x16x32xf32> to vector<2x1x16x32xf32>
    %85 = vector.shape_cast %84 : vector<2x1x16x32xf32> to vector<2x16x32xf32>
    %86 = arith.maximumf %83, %85 : vector<2x16x32xf32>
    %c0_110 = arith.constant 0 : index
    %c6 = arith.constant 6 : index
    %c0_111 = arith.constant 0 : index
    %c0_112 = arith.constant 0 : index
    %87 = vector.load %arg13[%c0_110, %c6, %c0_111, %c0_112] : memref<2x8x16x32xf32, #tpu.memory_space<vmem>>, vector<2x1x16x32xf32>
    %88 = vector.shape_cast %87 : vector<2x1x16x32xf32> to vector<2x16x32xf32>
    %89 = vector.shape_cast %86 : vector<2x16x32xf32> to vector<2x1x16x32xf32>
    tpu.vector_store %arg13[%c0_110, %c6, %c0_111, %c0_112], %89 {strides = array<i32>} : memref<2x8x16x32xf32, #tpu.memory_space<vmem>>, vector<2x1x16x32xf32>,
    %90 = vector.extract_strided_slice %31 {offsets = [0, 14, 0, 0], sizes = [2, 1, 16, 32], strides = [1, 1, 1, 1]} : vector<2x16x16x32xf32> to vector<2x1x16x32xf32>
    %91 = vector.shape_cast %90 : vector<2x1x16x32xf32> to vector<2x16x32xf32>
    %92 = vector.extract_strided_slice %31 {offsets = [0, 15, 0, 0], sizes = [2, 1, 16, 32], strides = [1, 1, 1, 1]} : vector<2x16x16x32xf32> to vector<2x1x16x32xf32>
    %93 = vector.shape_cast %92 : vector<2x1x16x32xf32> to vector<2x16x32xf32>
    %94 = arith.maximumf %91, %93 : vector<2x16x32xf32>
    %c0_113 = arith.constant 0 : index
    %c7 = arith.constant 7 : index
    %c0_114 = arith.constant 0 : index
    %c0_115 = arith.constant 0 : index
    %95 = vector.load %arg13[%c0_113, %c7, %c0_114, %c0_115] : memref<2x8x16x32xf32, #tpu.memory_space<vmem>>, vector<2x1x16x32xf32>
    %96 = vector.shape_cast %95 : vector<2x1x16x32xf32> to vector<2x16x32xf32>
    %97 = vector.shape_cast %94 : vector<2x16x32xf32> to vector<2x1x16x32xf32>
    tpu.vector_store %arg13[%c0_113, %c7, %c0_114, %c0_115], %97 {strides = array<i32>} : memref<2x8x16x32xf32, #tpu.memory_space<vmem>>, vector<2x1x16x32xf32>,
    %c0_116 = arith.constant 0 : index
    %c0_117 = arith.constant 0 : index
    %c0_118 = arith.constant 0 : index
    %c0_119 = arith.constant 0 : index
    %98 = vector.load %arg13[%c0_116, %c0_117, %c0_118, %c0_119] : memref<2x8x16x32xf32, #tpu.memory_space<vmem>>, vector<2x8x1x32xf32>
    %99 = vector.shape_cast %98 : vector<2x8x1x32xf32> to vector<2x8x32xf32>
    %c0_120 = arith.constant 0 : index
    %c0_121 = arith.constant 0 : index
    %c1_122 = arith.constant 1 : index
    %c0_123 = arith.constant 0 : index
    %100 = vector.load %arg13[%c0_120, %c0_121, %c1_122, %c0_123] : memref<2x8x16x32xf32, #tpu.memory_space<vmem>>, vector<2x8x1x32xf32>
    %101 = vector.shape_cast %100 : vector<2x8x1x32xf32> to vector<2x8x32xf32>
    %102 = arith.maximumf %99, %101 : vector<2x8x32xf32>
    %c0_124 = arith.constant 0 : index
    %c1_125 = arith.constant 1 : index
    %c1_126 = arith.constant 1 : index
    %c0_127 = arith.constant 0 : index
    %103 = vector.load %arg14[%c0_124, %c1_125, %c1_126, %c0_127] : memref<2x10x10x32xf32, #tpu.memory_space<vmem>>, vector<2x8x1x32xf32>
    %104 = vector.shape_cast %103 : vector<2x8x1x32xf32> to vector<2x8x32xf32>
    %105 = vector.shape_cast %102 : vector<2x8x32xf32> to vector<2x8x1x32xf32>
    tpu.vector_store %arg14[%c0_124, %c1_125, %c1_126, %c0_127], %105 {strides = array<i32>} : memref<2x10x10x32xf32, #tpu.memory_space<vmem>>, vector<2x8x1x32xf32>,
    %c0_128 = arith.constant 0 : index
    %c0_129 = arith.constant 0 : index
    %c2_130 = arith.constant 2 : index
    %c0_131 = arith.constant 0 : index
    %106 = vector.load %arg13[%c0_128, %c0_129, %c2_130, %c0_131] : memref<2x8x16x32xf32, #tpu.memory_space<vmem>>, vector<2x8x1x32xf32>
    %107 = vector.shape_cast %106 : vector<2x8x1x32xf32> to vector<2x8x32xf32>
    %c0_132 = arith.constant 0 : index
    %c0_133 = arith.constant 0 : index
    %c3_134 = arith.constant 3 : index
    %c0_135 = arith.constant 0 : index
    %108 = vector.load %arg13[%c0_132, %c0_133, %c3_134, %c0_135] : memref<2x8x16x32xf32, #tpu.memory_space<vmem>>, vector<2x8x1x32xf32>
    %109 = vector.shape_cast %108 : vector<2x8x1x32xf32> to vector<2x8x32xf32>
    %110 = arith.maximumf %107, %109 : vector<2x8x32xf32>
    %c0_136 = arith.constant 0 : index
    %c1_137 = arith.constant 1 : index
    %c2_138 = arith.constant 2 : index
    %c0_139 = arith.constant 0 : index
    %111 = vector.load %arg14[%c0_136, %c1_137, %c2_138, %c0_139] : memref<2x10x10x32xf32, #tpu.memory_space<vmem>>, vector<2x8x1x32xf32>
    %112 = vector.shape_cast %111 : vector<2x8x1x32xf32> to vector<2x8x32xf32>
    %113 = vector.shape_cast %110 : vector<2x8x32xf32> to vector<2x8x1x32xf32>
    tpu.vector_store %arg14[%c0_136, %c1_137, %c2_138, %c0_139], %113 {strides = array<i32>} : memref<2x10x10x32xf32, #tpu.memory_space<vmem>>, vector<2x8x1x32xf32>,
    %c0_140 = arith.constant 0 : index
    %c0_141 = arith.constant 0 : index
    %c4_142 = arith.constant 4 : index
    %c0_143 = arith.constant 0 : index
    %114 = vector.load %arg13[%c0_140, %c0_141, %c4_142, %c0_143] : memref<2x8x16x32xf32, #tpu.memory_space<vmem>>, vector<2x8x1x32xf32>
    %115 = vector.shape_cast %114 : vector<2x8x1x32xf32> to vector<2x8x32xf32>
    %c0_144 = arith.constant 0 : index
    %c0_145 = arith.constant 0 : index
    %c5_146 = arith.constant 5 : index
    %c0_147 = arith.constant 0 : index
    %116 = vector.load %arg13[%c0_144, %c0_145, %c5_146, %c0_147] : memref<2x8x16x32xf32, #tpu.memory_space<vmem>>, vector<2x8x1x32xf32>
    %117 = vector.shape_cast %116 : vector<2x8x1x32xf32> to vector<2x8x32xf32>
    %118 = arith.maximumf %115, %117 : vector<2x8x32xf32>
    %c0_148 = arith.constant 0 : index
    %c1_149 = arith.constant 1 : index
    %c3_150 = arith.constant 3 : index
    %c0_151 = arith.constant 0 : index
    %119 = vector.load %arg14[%c0_148, %c1_149, %c3_150, %c0_151] : memref<2x10x10x32xf32, #tpu.memory_space<vmem>>, vector<2x8x1x32xf32>
    %120 = vector.shape_cast %119 : vector<2x8x1x32xf32> to vector<2x8x32xf32>
    %121 = vector.shape_cast %118 : vector<2x8x32xf32> to vector<2x8x1x32xf32>
    tpu.vector_store %arg14[%c0_148, %c1_149, %c3_150, %c0_151], %121 {strides = array<i32>} : memref<2x10x10x32xf32, #tpu.memory_space<vmem>>, vector<2x8x1x32xf32>,
    %c0_152 = arith.constant 0 : index
    %c0_153 = arith.constant 0 : index
    %c6_154 = arith.constant 6 : index
    %c0_155 = arith.constant 0 : index
    %122 = vector.load %arg13[%c0_152, %c0_153, %c6_154, %c0_155] : memref<2x8x16x32xf32, #tpu.memory_space<vmem>>, vector<2x8x1x32xf32>
    %123 = vector.shape_cast %122 : vector<2x8x1x32xf32> to vector<2x8x32xf32>
    %c0_156 = arith.constant 0 : index
    %c0_157 = arith.constant 0 : index
    %c7_158 = arith.constant 7 : index
    %c0_159 = arith.constant 0 : index
    %124 = vector.load %arg13[%c0_156, %c0_157, %c7_158, %c0_159] : memref<2x8x16x32xf32, #tpu.memory_space<vmem>>, vector<2x8x1x32xf32>
    %125 = vector.shape_cast %124 : vector<2x8x1x32xf32> to vector<2x8x32xf32>
    %126 = arith.maximumf %123, %125 : vector<2x8x32xf32>
    %c0_160 = arith.constant 0 : index
    %c1_161 = arith.constant 1 : index
    %c4_162 = arith.constant 4 : index
    %c0_163 = arith.constant 0 : index
    %127 = vector.load %arg14[%c0_160, %c1_161, %c4_162, %c0_163] : memref<2x10x10x32xf32, #tpu.memory_space<vmem>>, vector<2x8x1x32xf32>
    %128 = vector.shape_cast %127 : vector<2x8x1x32xf32> to vector<2x8x32xf32>
    %129 = vector.shape_cast %126 : vector<2x8x32xf32> to vector<2x8x1x32xf32>
    tpu.vector_store %arg14[%c0_160, %c1_161, %c4_162, %c0_163], %129 {strides = array<i32>} : memref<2x10x10x32xf32, #tpu.memory_space<vmem>>, vector<2x8x1x32xf32>,
    %c0_164 = arith.constant 0 : index
    %c0_165 = arith.constant 0 : index
    %c8_166 = arith.constant 8 : index
    %c0_167 = arith.constant 0 : index
    %130 = vector.load %arg13[%c0_164, %c0_165, %c8_166, %c0_167] : memref<2x8x16x32xf32, #tpu.memory_space<vmem>>, vector<2x8x1x32xf32>
    %131 = vector.shape_cast %130 : vector<2x8x1x32xf32> to vector<2x8x32xf32>
    %c0_168 = arith.constant 0 : index
    %c0_169 = arith.constant 0 : index
    %c9 = arith.constant 9 : index
    %c0_170 = arith.constant 0 : index
    %132 = vector.load %arg13[%c0_168, %c0_169, %c9, %c0_170] : memref<2x8x16x32xf32, #tpu.memory_space<vmem>>, vector<2x8x1x32xf32>
    %133 = vector.shape_cast %132 : vector<2x8x1x32xf32> to vector<2x8x32xf32>
    %134 = arith.maximumf %131, %133 : vector<2x8x32xf32>
    %c0_171 = arith.constant 0 : index
    %c1_172 = arith.constant 1 : index
    %c5_173 = arith.constant 5 : index
    %c0_174 = arith.constant 0 : index
    %135 = vector.load %arg14[%c0_171, %c1_172, %c5_173, %c0_174] : memref<2x10x10x32xf32, #tpu.memory_space<vmem>>, vector<2x8x1x32xf32>
    %136 = vector.shape_cast %135 : vector<2x8x1x32xf32> to vector<2x8x32xf32>
    %137 = vector.shape_cast %134 : vector<2x8x32xf32> to vector<2x8x1x32xf32>
    tpu.vector_store %arg14[%c0_171, %c1_172, %c5_173, %c0_174], %137 {strides = array<i32>} : memref<2x10x10x32xf32, #tpu.memory_space<vmem>>, vector<2x8x1x32xf32>,
    %c0_175 = arith.constant 0 : index
    %c0_176 = arith.constant 0 : index
    %c10 = arith.constant 10 : index
    %c0_177 = arith.constant 0 : index
    %138 = vector.load %arg13[%c0_175, %c0_176, %c10, %c0_177] : memref<2x8x16x32xf32, #tpu.memory_space<vmem>>, vector<2x8x1x32xf32>
    %139 = vector.shape_cast %138 : vector<2x8x1x32xf32> to vector<2x8x32xf32>
    %c0_178 = arith.constant 0 : index
    %c0_179 = arith.constant 0 : index
    %c11 = arith.constant 11 : index
    %c0_180 = arith.constant 0 : index
    %140 = vector.load %arg13[%c0_178, %c0_179, %c11, %c0_180] : memref<2x8x16x32xf32, #tpu.memory_space<vmem>>, vector<2x8x1x32xf32>
    %141 = vector.shape_cast %140 : vector<2x8x1x32xf32> to vector<2x8x32xf32>
    %142 = arith.maximumf %139, %141 : vector<2x8x32xf32>
    %c0_181 = arith.constant 0 : index
    %c1_182 = arith.constant 1 : index
    %c6_183 = arith.constant 6 : index
    %c0_184 = arith.constant 0 : index
    %143 = vector.load %arg14[%c0_181, %c1_182, %c6_183, %c0_184] : memref<2x10x10x32xf32, #tpu.memory_space<vmem>>, vector<2x8x1x32xf32>
    %144 = vector.shape_cast %143 : vector<2x8x1x32xf32> to vector<2x8x32xf32>
    %145 = vector.shape_cast %142 : vector<2x8x32xf32> to vector<2x8x1x32xf32>
    tpu.vector_store %arg14[%c0_181, %c1_182, %c6_183, %c0_184], %145 {strides = array<i32>} : memref<2x10x10x32xf32, #tpu.memory_space<vmem>>, vector<2x8x1x32xf32>,
    %c0_185 = arith.constant 0 : index
    %c0_186 = arith.constant 0 : index
    %c12_187 = arith.constant 12 : index
    %c0_188 = arith.constant 0 : index
    %146 = vector.load %arg13[%c0_185, %c0_186, %c12_187, %c0_188] : memref<2x8x16x32xf32, #tpu.memory_space<vmem>>, vector<2x8x1x32xf32>
    %147 = vector.shape_cast %146 : vector<2x8x1x32xf32> to vector<2x8x32xf32>
    %c0_189 = arith.constant 0 : index
    %c0_190 = arith.constant 0 : index
    %c13 = arith.constant 13 : index
    %c0_191 = arith.constant 0 : index
    %148 = vector.load %arg13[%c0_189, %c0_190, %c13, %c0_191] : memref<2x8x16x32xf32, #tpu.memory_space<vmem>>, vector<2x8x1x32xf32>
    %149 = vector.shape_cast %148 : vector<2x8x1x32xf32> to vector<2x8x32xf32>
    %150 = arith.maximumf %147, %149 : vector<2x8x32xf32>
    %c0_192 = arith.constant 0 : index
    %c1_193 = arith.constant 1 : index
    %c7_194 = arith.constant 7 : index
    %c0_195 = arith.constant 0 : index
    %151 = vector.load %arg14[%c0_192, %c1_193, %c7_194, %c0_195] : memref<2x10x10x32xf32, #tpu.memory_space<vmem>>, vector<2x8x1x32xf32>
    %152 = vector.shape_cast %151 : vector<2x8x1x32xf32> to vector<2x8x32xf32>
    %153 = vector.shape_cast %150 : vector<2x8x32xf32> to vector<2x8x1x32xf32>
    tpu.vector_store %arg14[%c0_192, %c1_193, %c7_194, %c0_195], %153 {strides = array<i32>} : memref<2x10x10x32xf32, #tpu.memory_space<vmem>>, vector<2x8x1x32xf32>,
    %c0_196 = arith.constant 0 : index
    %c0_197 = arith.constant 0 : index
    %c14 = arith.constant 14 : index
    %c0_198 = arith.constant 0 : index
    %154 = vector.load %arg13[%c0_196, %c0_197, %c14, %c0_198] : memref<2x8x16x32xf32, #tpu.memory_space<vmem>>, vector<2x8x1x32xf32>
    %155 = vector.shape_cast %154 : vector<2x8x1x32xf32> to vector<2x8x32xf32>
    %c0_199 = arith.constant 0 : index
    %c0_200 = arith.constant 0 : index
    %c15 = arith.constant 15 : index
    %c0_201 = arith.constant 0 : index
    %156 = vector.load %arg13[%c0_199, %c0_200, %c15, %c0_201] : memref<2x8x16x32xf32, #tpu.memory_space<vmem>>, vector<2x8x1x32xf32>
    %157 = vector.shape_cast %156 : vector<2x8x1x32xf32> to vector<2x8x32xf32>
    %158 = arith.maximumf %155, %157 : vector<2x8x32xf32>
    %c0_202 = arith.constant 0 : index
    %c1_203 = arith.constant 1 : index
    %c8_204 = arith.constant 8 : index
    %c0_205 = arith.constant 0 : index
    %159 = vector.load %arg14[%c0_202, %c1_203, %c8_204, %c0_205] : memref<2x10x10x32xf32, #tpu.memory_space<vmem>>, vector<2x8x1x32xf32>
    %160 = vector.shape_cast %159 : vector<2x8x1x32xf32> to vector<2x8x32xf32>
    %161 = vector.shape_cast %158 : vector<2x8x32xf32> to vector<2x8x1x32xf32>
    tpu.vector_store %arg14[%c0_202, %c1_203, %c8_204, %c0_205], %161 {strides = array<i32>} : memref<2x10x10x32xf32, #tpu.memory_space<vmem>>, vector<2x8x1x32xf32>,
    %c0_206 = arith.constant 0 : index
    %c0_207 = arith.constant 0 : index
    %c0_208 = arith.constant 0 : index
    %c0_209 = arith.constant 0 : index
    %162 = vector.load %arg14[%c0_206, %c0_207, %c0_208, %c0_209] : memref<2x10x10x32xf32, #tpu.memory_space<vmem>>, vector<2x8x8x32xf32>
    %c0_210 = arith.constant 0 : index
    %c0_211 = arith.constant 0 : index
    %c0_212 = arith.constant 0 : index
    %c0_213 = arith.constant 0 : index
    %163 = vector.load %arg15[%c0_210, %c0_211, %c0_212, %c0_213] : memref<2x8x8x288xf32, #tpu.memory_space<vmem>>, vector<2x8x8x32xf32>
    tpu.vector_store %arg15[%c0_210, %c0_211, %c0_212, %c0_213], %162 {strides = array<i32>} : memref<2x8x8x288xf32, #tpu.memory_space<vmem>>, vector<2x8x8x32xf32>,
    %c0_214 = arith.constant 0 : index
    %c0_215 = arith.constant 0 : index
    %c1_216 = arith.constant 1 : index
    %c0_217 = arith.constant 0 : index
    %164 = vector.load %arg14[%c0_214, %c0_215, %c1_216, %c0_217] : memref<2x10x10x32xf32, #tpu.memory_space<vmem>>, vector<2x8x8x32xf32>
    %c0_218 = arith.constant 0 : index
    %c0_219 = arith.constant 0 : index
    %c0_220 = arith.constant 0 : index
    %c32_221 = arith.constant 32 : index
    %165 = vector.load %arg15[%c0_218, %c0_219, %c0_220, %c32_221] : memref<2x8x8x288xf32, #tpu.memory_space<vmem>>, vector<2x8x8x32xf32>
    tpu.vector_store %arg15[%c0_218, %c0_219, %c0_220, %c32_221], %164 {strides = array<i32>} : memref<2x8x8x288xf32, #tpu.memory_space<vmem>>, vector<2x8x8x32xf32>,
    %c0_222 = arith.constant 0 : index
    %c0_223 = arith.constant 0 : index
    %c2_224 = arith.constant 2 : index
    %c0_225 = arith.constant 0 : index
    %166 = vector.load %arg14[%c0_222, %c0_223, %c2_224, %c0_225] : memref<2x10x10x32xf32, #tpu.memory_space<vmem>>, vector<2x8x8x32xf32>
    %c0_226 = arith.constant 0 : index
    %c0_227 = arith.constant 0 : index
    %c0_228 = arith.constant 0 : index
    %c64 = arith.constant 64 : index
    %167 = vector.load %arg15[%c0_226, %c0_227, %c0_228, %c64] : memref<2x8x8x288xf32, #tpu.memory_space<vmem>>, vector<2x8x8x32xf32>
    tpu.vector_store %arg15[%c0_226, %c0_227, %c0_228, %c64], %166 {strides = array<i32>} : memref<2x8x8x288xf32, #tpu.memory_space<vmem>>, vector<2x8x8x32xf32>,
    %c0_229 = arith.constant 0 : index
    %c1_230 = arith.constant 1 : index
    %c0_231 = arith.constant 0 : index
    %c0_232 = arith.constant 0 : index
    %168 = vector.load %arg14[%c0_229, %c1_230, %c0_231, %c0_232] : memref<2x10x10x32xf32, #tpu.memory_space<vmem>>, vector<2x8x8x32xf32>
    %c0_233 = arith.constant 0 : index
    %c0_234 = arith.constant 0 : index
    %c0_235 = arith.constant 0 : index
    %c96 = arith.constant 96 : index
    %169 = vector.load %arg15[%c0_233, %c0_234, %c0_235, %c96] : memref<2x8x8x288xf32, #tpu.memory_space<vmem>>, vector<2x8x8x32xf32>
    tpu.vector_store %arg15[%c0_233, %c0_234, %c0_235, %c96], %168 {strides = array<i32>} : memref<2x8x8x288xf32, #tpu.memory_space<vmem>>, vector<2x8x8x32xf32>,
    %c0_236 = arith.constant 0 : index
    %c1_237 = arith.constant 1 : index
    %c1_238 = arith.constant 1 : index
    %c0_239 = arith.constant 0 : index
    %170 = vector.load %arg14[%c0_236, %c1_237, %c1_238, %c0_239] : memref<2x10x10x32xf32, #tpu.memory_space<vmem>>, vector<2x8x8x32xf32>
    %c0_240 = arith.constant 0 : index
    %c0_241 = arith.constant 0 : index
    %c0_242 = arith.constant 0 : index
    %c128 = arith.constant 128 : index
    %171 = vector.load %arg15[%c0_240, %c0_241, %c0_242, %c128] : memref<2x8x8x288xf32, #tpu.memory_space<vmem>>, vector<2x8x8x32xf32>
    tpu.vector_store %arg15[%c0_240, %c0_241, %c0_242, %c128], %170 {strides = array<i32>} : memref<2x8x8x288xf32, #tpu.memory_space<vmem>>, vector<2x8x8x32xf32>,
    %c0_243 = arith.constant 0 : index
    %c1_244 = arith.constant 1 : index
    %c2_245 = arith.constant 2 : index
    %c0_246 = arith.constant 0 : index
    %172 = vector.load %arg14[%c0_243, %c1_244, %c2_245, %c0_246] : memref<2x10x10x32xf32, #tpu.memory_space<vmem>>, vector<2x8x8x32xf32>
    %c0_247 = arith.constant 0 : index
    %c0_248 = arith.constant 0 : index
    %c0_249 = arith.constant 0 : index
    %c160 = arith.constant 160 : index
    %173 = vector.load %arg15[%c0_247, %c0_248, %c0_249, %c160] : memref<2x8x8x288xf32, #tpu.memory_space<vmem>>, vector<2x8x8x32xf32>
    tpu.vector_store %arg15[%c0_247, %c0_248, %c0_249, %c160], %172 {strides = array<i32>} : memref<2x8x8x288xf32, #tpu.memory_space<vmem>>, vector<2x8x8x32xf32>,
    %c0_250 = arith.constant 0 : index
    %c2_251 = arith.constant 2 : index
    %c0_252 = arith.constant 0 : index
    %c0_253 = arith.constant 0 : index
    %174 = vector.load %arg14[%c0_250, %c2_251, %c0_252, %c0_253] : memref<2x10x10x32xf32, #tpu.memory_space<vmem>>, vector<2x8x8x32xf32>
    %c0_254 = arith.constant 0 : index
    %c0_255 = arith.constant 0 : index
    %c0_256 = arith.constant 0 : index
    %c192 = arith.constant 192 : index
    %175 = vector.load %arg15[%c0_254, %c0_255, %c0_256, %c192] : memref<2x8x8x288xf32, #tpu.memory_space<vmem>>, vector<2x8x8x32xf32>
    tpu.vector_store %arg15[%c0_254, %c0_255, %c0_256, %c192], %174 {strides = array<i32>} : memref<2x8x8x288xf32, #tpu.memory_space<vmem>>, vector<2x8x8x32xf32>,
    %c0_257 = arith.constant 0 : index
    %c2_258 = arith.constant 2 : index
    %c1_259 = arith.constant 1 : index
    %c0_260 = arith.constant 0 : index
    %176 = vector.load %arg14[%c0_257, %c2_258, %c1_259, %c0_260] : memref<2x10x10x32xf32, #tpu.memory_space<vmem>>, vector<2x8x8x32xf32>
    %c0_261 = arith.constant 0 : index
    %c0_262 = arith.constant 0 : index
    %c0_263 = arith.constant 0 : index
    %c224 = arith.constant 224 : index
    %177 = vector.load %arg15[%c0_261, %c0_262, %c0_263, %c224] : memref<2x8x8x288xf32, #tpu.memory_space<vmem>>, vector<2x8x8x32xf32>
    tpu.vector_store %arg15[%c0_261, %c0_262, %c0_263, %c224], %176 {strides = array<i32>} : memref<2x8x8x288xf32, #tpu.memory_space<vmem>>, vector<2x8x8x32xf32>,
    %c0_264 = arith.constant 0 : index
    %c2_265 = arith.constant 2 : index
    %c2_266 = arith.constant 2 : index
    %c0_267 = arith.constant 0 : index
    %178 = vector.load %arg14[%c0_264, %c2_265, %c2_266, %c0_267] : memref<2x10x10x32xf32, #tpu.memory_space<vmem>>, vector<2x8x8x32xf32>
    %c0_268 = arith.constant 0 : index
    %c0_269 = arith.constant 0 : index
    %c0_270 = arith.constant 0 : index
    %c256 = arith.constant 256 : index
    %179 = vector.load %arg15[%c0_268, %c0_269, %c0_270, %c256] : memref<2x8x8x288xf32, #tpu.memory_space<vmem>>, vector<2x8x8x32xf32>
    tpu.vector_store %arg15[%c0_268, %c0_269, %c0_270, %c256], %178 {strides = array<i32>} : memref<2x8x8x288xf32, #tpu.memory_space<vmem>>, vector<2x8x8x32xf32>,
    %c0_271 = arith.constant 0 : index
    %c0_272 = arith.constant 0 : index
    %c0_273 = arith.constant 0 : index
    %c0_274 = arith.constant 0 : index
    %180 = vector.load %arg15[%c0_271, %c0_272, %c0_273, %c0_274] : memref<2x8x8x288xf32, #tpu.memory_space<vmem>>, vector<2x8x8x288xf32>
    %181 = vector.shape_cast %180 : vector<2x8x8x288xf32> to vector<128x288xf32>
    %c0_275 = arith.constant 0 : index
    %c0_276 = arith.constant 0 : index
    %182 = vector.load %arg3[%c0_275, %c0_276] : memref<288x64xf32, #tpu.memory_space<vmem>>, vector<288x64xf32>
    %cst_277 = arith.constant dense<0.000000e+00> : vector<128x64xf32>
    %183 = tpu.matmul %181, %182, %cst_277 {dimension_numbers = #tpu.dot_dimension_numbers<[1], [0], [0], [1], [0, 0, 1, 1], [], []>} : vector<128x288xf32>, vector<288x64xf32>, vector<128x64xf32> -> vector<128x64xf32>
    %c0_278 = arith.constant 0 : index
    %c0_279 = arith.constant 0 : index
    %184 = vector.load %arg4[%c0_278, %c0_279] : memref<1x64xf32, #tpu.memory_space<vmem>>, vector<1x64xf32>
    %185 = vector.broadcast %184 : vector<1x64xf32> to vector<128x64xf32>
    %186 = arith.addf %183, %185 : vector<128x64xf32>
    %cst_280 = arith.constant 0.000000e+00 : f32
    %187 = vector.broadcast %cst_280 : f32 to vector<128x64xf32>
    %188 = arith.maximumf %186, %187 : vector<128x64xf32>
    %189 = vector.shape_cast %188 : vector<128x64xf32> to vector<2x8x8x64xf32>
    %190 = vector.extract_strided_slice %189 {offsets = [0, 0, 0, 0], sizes = [2, 1, 8, 64], strides = [1, 1, 1, 1]} : vector<2x8x8x64xf32> to vector<2x1x8x64xf32>
    %191 = vector.shape_cast %190 : vector<2x1x8x64xf32> to vector<2x8x64xf32>
    %192 = vector.extract_strided_slice %189 {offsets = [0, 1, 0, 0], sizes = [2, 1, 8, 64], strides = [1, 1, 1, 1]} : vector<2x8x8x64xf32> to vector<2x1x8x64xf32>
    %193 = vector.shape_cast %192 : vector<2x1x8x64xf32> to vector<2x8x64xf32>
    %194 = arith.maximumf %191, %193 : vector<2x8x64xf32>
    %c0_281 = arith.constant 0 : index
    %c0_282 = arith.constant 0 : index
    %c0_283 = arith.constant 0 : index
    %c0_284 = arith.constant 0 : index
    %195 = vector.load %arg16[%c0_281, %c0_282, %c0_283, %c0_284] : memref<2x4x8x64xf32, #tpu.memory_space<vmem>>, vector<2x1x8x64xf32>
    %196 = vector.shape_cast %195 : vector<2x1x8x64xf32> to vector<2x8x64xf32>
    %197 = vector.shape_cast %194 : vector<2x8x64xf32> to vector<2x1x8x64xf32>
    tpu.vector_store %arg16[%c0_281, %c0_282, %c0_283, %c0_284], %197 {strides = array<i32>} : memref<2x4x8x64xf32, #tpu.memory_space<vmem>>, vector<2x1x8x64xf32>,
    %198 = vector.extract_strided_slice %189 {offsets = [0, 2, 0, 0], sizes = [2, 1, 8, 64], strides = [1, 1, 1, 1]} : vector<2x8x8x64xf32> to vector<2x1x8x64xf32>
    %199 = vector.shape_cast %198 : vector<2x1x8x64xf32> to vector<2x8x64xf32>
    %200 = vector.extract_strided_slice %189 {offsets = [0, 3, 0, 0], sizes = [2, 1, 8, 64], strides = [1, 1, 1, 1]} : vector<2x8x8x64xf32> to vector<2x1x8x64xf32>
    %201 = vector.shape_cast %200 : vector<2x1x8x64xf32> to vector<2x8x64xf32>
    %202 = arith.maximumf %199, %201 : vector<2x8x64xf32>
    %c0_285 = arith.constant 0 : index
    %c1_286 = arith.constant 1 : index
    %c0_287 = arith.constant 0 : index
    %c0_288 = arith.constant 0 : index
    %203 = vector.load %arg16[%c0_285, %c1_286, %c0_287, %c0_288] : memref<2x4x8x64xf32, #tpu.memory_space<vmem>>, vector<2x1x8x64xf32>
    %204 = vector.shape_cast %203 : vector<2x1x8x64xf32> to vector<2x8x64xf32>
    %205 = vector.shape_cast %202 : vector<2x8x64xf32> to vector<2x1x8x64xf32>
    tpu.vector_store %arg16[%c0_285, %c1_286, %c0_287, %c0_288], %205 {strides = array<i32>} : memref<2x4x8x64xf32, #tpu.memory_space<vmem>>, vector<2x1x8x64xf32>,
    %206 = vector.extract_strided_slice %189 {offsets = [0, 4, 0, 0], sizes = [2, 1, 8, 64], strides = [1, 1, 1, 1]} : vector<2x8x8x64xf32> to vector<2x1x8x64xf32>
    %207 = vector.shape_cast %206 : vector<2x1x8x64xf32> to vector<2x8x64xf32>
    %208 = vector.extract_strided_slice %189 {offsets = [0, 5, 0, 0], sizes = [2, 1, 8, 64], strides = [1, 1, 1, 1]} : vector<2x8x8x64xf32> to vector<2x1x8x64xf32>
    %209 = vector.shape_cast %208 : vector<2x1x8x64xf32> to vector<2x8x64xf32>
    %210 = arith.maximumf %207, %209 : vector<2x8x64xf32>
    %c0_289 = arith.constant 0 : index
    %c2_290 = arith.constant 2 : index
    %c0_291 = arith.constant 0 : index
    %c0_292 = arith.constant 0 : index
    %211 = vector.load %arg16[%c0_289, %c2_290, %c0_291, %c0_292] : memref<2x4x8x64xf32, #tpu.memory_space<vmem>>, vector<2x1x8x64xf32>
    %212 = vector.shape_cast %211 : vector<2x1x8x64xf32> to vector<2x8x64xf32>
    %213 = vector.shape_cast %210 : vector<2x8x64xf32> to vector<2x1x8x64xf32>
    tpu.vector_store %arg16[%c0_289, %c2_290, %c0_291, %c0_292], %213 {strides = array<i32>} : memref<2x4x8x64xf32, #tpu.memory_space<vmem>>, vector<2x1x8x64xf32>,
    %214 = vector.extract_strided_slice %189 {offsets = [0, 6, 0, 0], sizes = [2, 1, 8, 64], strides = [1, 1, 1, 1]} : vector<2x8x8x64xf32> to vector<2x1x8x64xf32>
    %215 = vector.shape_cast %214 : vector<2x1x8x64xf32> to vector<2x8x64xf32>
    %216 = vector.extract_strided_slice %189 {offsets = [0, 7, 0, 0], sizes = [2, 1, 8, 64], strides = [1, 1, 1, 1]} : vector<2x8x8x64xf32> to vector<2x1x8x64xf32>
    %217 = vector.shape_cast %216 : vector<2x1x8x64xf32> to vector<2x8x64xf32>
    %218 = arith.maximumf %215, %217 : vector<2x8x64xf32>
    %c0_293 = arith.constant 0 : index
    %c3_294 = arith.constant 3 : index
    %c0_295 = arith.constant 0 : index
    %c0_296 = arith.constant 0 : index
    %219 = vector.load %arg16[%c0_293, %c3_294, %c0_295, %c0_296] : memref<2x4x8x64xf32, #tpu.memory_space<vmem>>, vector<2x1x8x64xf32>
    %220 = vector.shape_cast %219 : vector<2x1x8x64xf32> to vector<2x8x64xf32>
    %221 = vector.shape_cast %218 : vector<2x8x64xf32> to vector<2x1x8x64xf32>
    tpu.vector_store %arg16[%c0_293, %c3_294, %c0_295, %c0_296], %221 {strides = array<i32>} : memref<2x4x8x64xf32, #tpu.memory_space<vmem>>, vector<2x1x8x64xf32>,
    %c0_297 = arith.constant 0 : index
    %c0_298 = arith.constant 0 : index
    %c0_299 = arith.constant 0 : index
    %c0_300 = arith.constant 0 : index
    %222 = vector.load %arg16[%c0_297, %c0_298, %c0_299, %c0_300] : memref<2x4x8x64xf32, #tpu.memory_space<vmem>>, vector<2x1x1x64xf32>
    %223 = vector.shape_cast %222 : vector<2x1x1x64xf32> to vector<2x64xf32>
    %c0_301 = arith.constant 0 : index
    %c0_302 = arith.constant 0 : index
    %c1_303 = arith.constant 1 : index
    %c0_304 = arith.constant 0 : index
    %224 = vector.load %arg16[%c0_301, %c0_302, %c1_303, %c0_304] : memref<2x4x8x64xf32, #tpu.memory_space<vmem>>, vector<2x1x1x64xf32>
    %225 = vector.shape_cast %224 : vector<2x1x1x64xf32> to vector<2x64xf32>
    %226 = arith.maximumf %223, %225 : vector<2x64xf32>
    %227 = arith.truncf %226 : vector<2x64xf32> to vector<2x64xbf16>
    %c0_305 = arith.constant 0 : index
    %c0_306 = arith.constant 0 : index
    %228 = vector.load %arg17[%c0_305, %c0_306] : memref<2x1024xbf16, #tpu.memory_space<vmem>>, vector<2x64xbf16>
    tpu.vector_store %arg17[%c0_305, %c0_306], %227 {strides = array<i32>} : memref<2x1024xbf16, #tpu.memory_space<vmem>>, vector<2x64xbf16>,
    %c0_307 = arith.constant 0 : index
    %c0_308 = arith.constant 0 : index
    %c2_309 = arith.constant 2 : index
    %c0_310 = arith.constant 0 : index
    %229 = vector.load %arg16[%c0_307, %c0_308, %c2_309, %c0_310] : memref<2x4x8x64xf32, #tpu.memory_space<vmem>>, vector<2x1x1x64xf32>
    %230 = vector.shape_cast %229 : vector<2x1x1x64xf32> to vector<2x64xf32>
    %c0_311 = arith.constant 0 : index
    %c0_312 = arith.constant 0 : index
    %c3_313 = arith.constant 3 : index
    %c0_314 = arith.constant 0 : index
    %231 = vector.load %arg16[%c0_311, %c0_312, %c3_313, %c0_314] : memref<2x4x8x64xf32, #tpu.memory_space<vmem>>, vector<2x1x1x64xf32>
    %232 = vector.shape_cast %231 : vector<2x1x1x64xf32> to vector<2x64xf32>
    %233 = arith.maximumf %230, %232 : vector<2x64xf32>
    %234 = arith.truncf %233 : vector<2x64xf32> to vector<2x64xbf16>
    %c0_315 = arith.constant 0 : index
    %c64_316 = arith.constant 64 : index
    %235 = vector.load %arg17[%c0_315, %c64_316] : memref<2x1024xbf16, #tpu.memory_space<vmem>>, vector<2x64xbf16>
    tpu.vector_store %arg17[%c0_315, %c64_316], %234 {strides = array<i32>} : memref<2x1024xbf16, #tpu.memory_space<vmem>>, vector<2x64xbf16>,
    %c0_317 = arith.constant 0 : index
    %c0_318 = arith.constant 0 : index
    %c4_319 = arith.constant 4 : index
    %c0_320 = arith.constant 0 : index
    %236 = vector.load %arg16[%c0_317, %c0_318, %c4_319, %c0_320] : memref<2x4x8x64xf32, #tpu.memory_space<vmem>>, vector<2x1x1x64xf32>
    %237 = vector.shape_cast %236 : vector<2x1x1x64xf32> to vector<2x64xf32>
    %c0_321 = arith.constant 0 : index
    %c0_322 = arith.constant 0 : index
    %c5_323 = arith.constant 5 : index
    %c0_324 = arith.constant 0 : index
    %238 = vector.load %arg16[%c0_321, %c0_322, %c5_323, %c0_324] : memref<2x4x8x64xf32, #tpu.memory_space<vmem>>, vector<2x1x1x64xf32>
    %239 = vector.shape_cast %238 : vector<2x1x1x64xf32> to vector<2x64xf32>
    %240 = arith.maximumf %237, %239 : vector<2x64xf32>
    %241 = arith.truncf %240 : vector<2x64xf32> to vector<2x64xbf16>
    %c0_325 = arith.constant 0 : index
    %c128_326 = arith.constant 128 : index
    %242 = vector.load %arg17[%c0_325, %c128_326] : memref<2x1024xbf16, #tpu.memory_space<vmem>>, vector<2x64xbf16>
    tpu.vector_store %arg17[%c0_325, %c128_326], %241 {strides = array<i32>} : memref<2x1024xbf16, #tpu.memory_space<vmem>>, vector<2x64xbf16>,
    %c0_327 = arith.constant 0 : index
    %c0_328 = arith.constant 0 : index
    %c6_329 = arith.constant 6 : index
    %c0_330 = arith.constant 0 : index
    %243 = vector.load %arg16[%c0_327, %c0_328, %c6_329, %c0_330] : memref<2x4x8x64xf32, #tpu.memory_space<vmem>>, vector<2x1x1x64xf32>
    %244 = vector.shape_cast %243 : vector<2x1x1x64xf32> to vector<2x64xf32>
    %c0_331 = arith.constant 0 : index
    %c0_332 = arith.constant 0 : index
    %c7_333 = arith.constant 7 : index
    %c0_334 = arith.constant 0 : index
    %245 = vector.load %arg16[%c0_331, %c0_332, %c7_333, %c0_334] : memref<2x4x8x64xf32, #tpu.memory_space<vmem>>, vector<2x1x1x64xf32>
    %246 = vector.shape_cast %245 : vector<2x1x1x64xf32> to vector<2x64xf32>
    %247 = arith.maximumf %244, %246 : vector<2x64xf32>
    %248 = arith.truncf %247 : vector<2x64xf32> to vector<2x64xbf16>
    %c0_335 = arith.constant 0 : index
    %c192_336 = arith.constant 192 : index
    %249 = vector.load %arg17[%c0_335, %c192_336] : memref<2x1024xbf16, #tpu.memory_space<vmem>>, vector<2x64xbf16>
    tpu.vector_store %arg17[%c0_335, %c192_336], %248 {strides = array<i32>} : memref<2x1024xbf16, #tpu.memory_space<vmem>>, vector<2x64xbf16>,
    %c0_337 = arith.constant 0 : index
    %c1_338 = arith.constant 1 : index
    %c0_339 = arith.constant 0 : index
    %c0_340 = arith.constant 0 : index
    %250 = vector.load %arg16[%c0_337, %c1_338, %c0_339, %c0_340] : memref<2x4x8x64xf32, #tpu.memory_space<vmem>>, vector<2x1x1x64xf32>
    %251 = vector.shape_cast %250 : vector<2x1x1x64xf32> to vector<2x64xf32>
    %c0_341 = arith.constant 0 : index
    %c1_342 = arith.constant 1 : index
    %c1_343 = arith.constant 1 : index
    %c0_344 = arith.constant 0 : index
    %252 = vector.load %arg16[%c0_341, %c1_342, %c1_343, %c0_344] : memref<2x4x8x64xf32, #tpu.memory_space<vmem>>, vector<2x1x1x64xf32>
    %253 = vector.shape_cast %252 : vector<2x1x1x64xf32> to vector<2x64xf32>
    %254 = arith.maximumf %251, %253 : vector<2x64xf32>
    %255 = arith.truncf %254 : vector<2x64xf32> to vector<2x64xbf16>
    %c0_345 = arith.constant 0 : index
    %c256_346 = arith.constant 256 : index
    %256 = vector.load %arg17[%c0_345, %c256_346] : memref<2x1024xbf16, #tpu.memory_space<vmem>>, vector<2x64xbf16>
    tpu.vector_store %arg17[%c0_345, %c256_346], %255 {strides = array<i32>} : memref<2x1024xbf16, #tpu.memory_space<vmem>>, vector<2x64xbf16>,
    %c0_347 = arith.constant 0 : index
    %c1_348 = arith.constant 1 : index
    %c2_349 = arith.constant 2 : index
    %c0_350 = arith.constant 0 : index
    %257 = vector.load %arg16[%c0_347, %c1_348, %c2_349, %c0_350] : memref<2x4x8x64xf32, #tpu.memory_space<vmem>>, vector<2x1x1x64xf32>
    %258 = vector.shape_cast %257 : vector<2x1x1x64xf32> to vector<2x64xf32>
    %c0_351 = arith.constant 0 : index
    %c1_352 = arith.constant 1 : index
    %c3_353 = arith.constant 3 : index
    %c0_354 = arith.constant 0 : index
    %259 = vector.load %arg16[%c0_351, %c1_352, %c3_353, %c0_354] : memref<2x4x8x64xf32, #tpu.memory_space<vmem>>, vector<2x1x1x64xf32>
    %260 = vector.shape_cast %259 : vector<2x1x1x64xf32> to vector<2x64xf32>
    %261 = arith.maximumf %258, %260 : vector<2x64xf32>
    %262 = arith.truncf %261 : vector<2x64xf32> to vector<2x64xbf16>
    %c0_355 = arith.constant 0 : index
    %c320 = arith.constant 320 : index
    %263 = vector.load %arg17[%c0_355, %c320] : memref<2x1024xbf16, #tpu.memory_space<vmem>>, vector<2x64xbf16>
    tpu.vector_store %arg17[%c0_355, %c320], %262 {strides = array<i32>} : memref<2x1024xbf16, #tpu.memory_space<vmem>>, vector<2x64xbf16>,
    %c0_356 = arith.constant 0 : index
    %c1_357 = arith.constant 1 : index
    %c4_358 = arith.constant 4 : index
    %c0_359 = arith.constant 0 : index
    %264 = vector.load %arg16[%c0_356, %c1_357, %c4_358, %c0_359] : memref<2x4x8x64xf32, #tpu.memory_space<vmem>>, vector<2x1x1x64xf32>
    %265 = vector.shape_cast %264 : vector<2x1x1x64xf32> to vector<2x64xf32>
    %c0_360 = arith.constant 0 : index
    %c1_361 = arith.constant 1 : index
    %c5_362 = arith.constant 5 : index
    %c0_363 = arith.constant 0 : index
    %266 = vector.load %arg16[%c0_360, %c1_361, %c5_362, %c0_363] : memref<2x4x8x64xf32, #tpu.memory_space<vmem>>, vector<2x1x1x64xf32>
    %267 = vector.shape_cast %266 : vector<2x1x1x64xf32> to vector<2x64xf32>
    %268 = arith.maximumf %265, %267 : vector<2x64xf32>
    %269 = arith.truncf %268 : vector<2x64xf32> to vector<2x64xbf16>
    %c0_364 = arith.constant 0 : index
    %c384 = arith.constant 384 : index
    %270 = vector.load %arg17[%c0_364, %c384] : memref<2x1024xbf16, #tpu.memory_space<vmem>>, vector<2x64xbf16>
    tpu.vector_store %arg17[%c0_364, %c384], %269 {strides = array<i32>} : memref<2x1024xbf16, #tpu.memory_space<vmem>>, vector<2x64xbf16>,
    %c0_365 = arith.constant 0 : index
    %c1_366 = arith.constant 1 : index
    %c6_367 = arith.constant 6 : index
    %c0_368 = arith.constant 0 : index
    %271 = vector.load %arg16[%c0_365, %c1_366, %c6_367, %c0_368] : memref<2x4x8x64xf32, #tpu.memory_space<vmem>>, vector<2x1x1x64xf32>
    %272 = vector.shape_cast %271 : vector<2x1x1x64xf32> to vector<2x64xf32>
    %c0_369 = arith.constant 0 : index
    %c1_370 = arith.constant 1 : index
    %c7_371 = arith.constant 7 : index
    %c0_372 = arith.constant 0 : index
    %273 = vector.load %arg16[%c0_369, %c1_370, %c7_371, %c0_372] : memref<2x4x8x64xf32, #tpu.memory_space<vmem>>, vector<2x1x1x64xf32>
    %274 = vector.shape_cast %273 : vector<2x1x1x64xf32> to vector<2x64xf32>
    %275 = arith.maximumf %272, %274 : vector<2x64xf32>
    %276 = arith.truncf %275 : vector<2x64xf32> to vector<2x64xbf16>
    %c0_373 = arith.constant 0 : index
    %c448 = arith.constant 448 : index
    %277 = vector.load %arg17[%c0_373, %c448] : memref<2x1024xbf16, #tpu.memory_space<vmem>>, vector<2x64xbf16>
    tpu.vector_store %arg17[%c0_373, %c448], %276 {strides = array<i32>} : memref<2x1024xbf16, #tpu.memory_space<vmem>>, vector<2x64xbf16>,
    %c0_374 = arith.constant 0 : index
    %c2_375 = arith.constant 2 : index
    %c0_376 = arith.constant 0 : index
    %c0_377 = arith.constant 0 : index
    %278 = vector.load %arg16[%c0_374, %c2_375, %c0_376, %c0_377] : memref<2x4x8x64xf32, #tpu.memory_space<vmem>>, vector<2x1x1x64xf32>
    %279 = vector.shape_cast %278 : vector<2x1x1x64xf32> to vector<2x64xf32>
    %c0_378 = arith.constant 0 : index
    %c2_379 = arith.constant 2 : index
    %c1_380 = arith.constant 1 : index
    %c0_381 = arith.constant 0 : index
    %280 = vector.load %arg16[%c0_378, %c2_379, %c1_380, %c0_381] : memref<2x4x8x64xf32, #tpu.memory_space<vmem>>, vector<2x1x1x64xf32>
    %281 = vector.shape_cast %280 : vector<2x1x1x64xf32> to vector<2x64xf32>
    %282 = arith.maximumf %279, %281 : vector<2x64xf32>
    %283 = arith.truncf %282 : vector<2x64xf32> to vector<2x64xbf16>
    %c0_382 = arith.constant 0 : index
    %c512 = arith.constant 512 : index
    %284 = vector.load %arg17[%c0_382, %c512] : memref<2x1024xbf16, #tpu.memory_space<vmem>>, vector<2x64xbf16>
    tpu.vector_store %arg17[%c0_382, %c512], %283 {strides = array<i32>} : memref<2x1024xbf16, #tpu.memory_space<vmem>>, vector<2x64xbf16>,
    %c0_383 = arith.constant 0 : index
    %c2_384 = arith.constant 2 : index
    %c2_385 = arith.constant 2 : index
    %c0_386 = arith.constant 0 : index
    %285 = vector.load %arg16[%c0_383, %c2_384, %c2_385, %c0_386] : memref<2x4x8x64xf32, #tpu.memory_space<vmem>>, vector<2x1x1x64xf32>
    %286 = vector.shape_cast %285 : vector<2x1x1x64xf32> to vector<2x64xf32>
    %c0_387 = arith.constant 0 : index
    %c2_388 = arith.constant 2 : index
    %c3_389 = arith.constant 3 : index
    %c0_390 = arith.constant 0 : index
    %287 = vector.load %arg16[%c0_387, %c2_388, %c3_389, %c0_390] : memref<2x4x8x64xf32, #tpu.memory_space<vmem>>, vector<2x1x1x64xf32>
    %288 = vector.shape_cast %287 : vector<2x1x1x64xf32> to vector<2x64xf32>
    %289 = arith.maximumf %286, %288 : vector<2x64xf32>
    %290 = arith.truncf %289 : vector<2x64xf32> to vector<2x64xbf16>
    %c0_391 = arith.constant 0 : index
    %c576 = arith.constant 576 : index
    %291 = vector.load %arg17[%c0_391, %c576] : memref<2x1024xbf16, #tpu.memory_space<vmem>>, vector<2x64xbf16>
    tpu.vector_store %arg17[%c0_391, %c576], %290 {strides = array<i32>} : memref<2x1024xbf16, #tpu.memory_space<vmem>>, vector<2x64xbf16>,
    %c0_392 = arith.constant 0 : index
    %c2_393 = arith.constant 2 : index
    %c4_394 = arith.constant 4 : index
    %c0_395 = arith.constant 0 : index
    %292 = vector.load %arg16[%c0_392, %c2_393, %c4_394, %c0_395] : memref<2x4x8x64xf32, #tpu.memory_space<vmem>>, vector<2x1x1x64xf32>
    %293 = vector.shape_cast %292 : vector<2x1x1x64xf32> to vector<2x64xf32>
    %c0_396 = arith.constant 0 : index
    %c2_397 = arith.constant 2 : index
    %c5_398 = arith.constant 5 : index
    %c0_399 = arith.constant 0 : index
    %294 = vector.load %arg16[%c0_396, %c2_397, %c5_398, %c0_399] : memref<2x4x8x64xf32, #tpu.memory_space<vmem>>, vector<2x1x1x64xf32>
    %295 = vector.shape_cast %294 : vector<2x1x1x64xf32> to vector<2x64xf32>
    %296 = arith.maximumf %293, %295 : vector<2x64xf32>
    %297 = arith.truncf %296 : vector<2x64xf32> to vector<2x64xbf16>
    %c0_400 = arith.constant 0 : index
    %c640 = arith.constant 640 : index
    %298 = vector.load %arg17[%c0_400, %c640] : memref<2x1024xbf16, #tpu.memory_space<vmem>>, vector<2x64xbf16>
    tpu.vector_store %arg17[%c0_400, %c640], %297 {strides = array<i32>} : memref<2x1024xbf16, #tpu.memory_space<vmem>>, vector<2x64xbf16>,
    %c0_401 = arith.constant 0 : index
    %c2_402 = arith.constant 2 : index
    %c6_403 = arith.constant 6 : index
    %c0_404 = arith.constant 0 : index
    %299 = vector.load %arg16[%c0_401, %c2_402, %c6_403, %c0_404] : memref<2x4x8x64xf32, #tpu.memory_space<vmem>>, vector<2x1x1x64xf32>
    %300 = vector.shape_cast %299 : vector<2x1x1x64xf32> to vector<2x64xf32>
    %c0_405 = arith.constant 0 : index
    %c2_406 = arith.constant 2 : index
    %c7_407 = arith.constant 7 : index
    %c0_408 = arith.constant 0 : index
    %301 = vector.load %arg16[%c0_405, %c2_406, %c7_407, %c0_408] : memref<2x4x8x64xf32, #tpu.memory_space<vmem>>, vector<2x1x1x64xf32>
    %302 = vector.shape_cast %301 : vector<2x1x1x64xf32> to vector<2x64xf32>
    %303 = arith.maximumf %300, %302 : vector<2x64xf32>
    %304 = arith.truncf %303 : vector<2x64xf32> to vector<2x64xbf16>
    %c0_409 = arith.constant 0 : index
    %c704 = arith.constant 704 : index
    %305 = vector.load %arg17[%c0_409, %c704] : memref<2x1024xbf16, #tpu.memory_space<vmem>>, vector<2x64xbf16>
    tpu.vector_store %arg17[%c0_409, %c704], %304 {strides = array<i32>} : memref<2x1024xbf16, #tpu.memory_space<vmem>>, vector<2x64xbf16>,
    %c0_410 = arith.constant 0 : index
    %c3_411 = arith.constant 3 : index
    %c0_412 = arith.constant 0 : index
    %c0_413 = arith.constant 0 : index
    %306 = vector.load %arg16[%c0_410, %c3_411, %c0_412, %c0_413] : memref<2x4x8x64xf32, #tpu.memory_space<vmem>>, vector<2x1x1x64xf32>
    %307 = vector.shape_cast %306 : vector<2x1x1x64xf32> to vector<2x64xf32>
    %c0_414 = arith.constant 0 : index
    %c3_415 = arith.constant 3 : index
    %c1_416 = arith.constant 1 : index
    %c0_417 = arith.constant 0 : index
    %308 = vector.load %arg16[%c0_414, %c3_415, %c1_416, %c0_417] : memref<2x4x8x64xf32, #tpu.memory_space<vmem>>, vector<2x1x1x64xf32>
    %309 = vector.shape_cast %308 : vector<2x1x1x64xf32> to vector<2x64xf32>
    %310 = arith.maximumf %307, %309 : vector<2x64xf32>
    %311 = arith.truncf %310 : vector<2x64xf32> to vector<2x64xbf16>
    %c0_418 = arith.constant 0 : index
    %c768 = arith.constant 768 : index
    %312 = vector.load %arg17[%c0_418, %c768] : memref<2x1024xbf16, #tpu.memory_space<vmem>>, vector<2x64xbf16>
    tpu.vector_store %arg17[%c0_418, %c768], %311 {strides = array<i32>} : memref<2x1024xbf16, #tpu.memory_space<vmem>>, vector<2x64xbf16>,
    %c0_419 = arith.constant 0 : index
    %c3_420 = arith.constant 3 : index
    %c2_421 = arith.constant 2 : index
    %c0_422 = arith.constant 0 : index
    %313 = vector.load %arg16[%c0_419, %c3_420, %c2_421, %c0_422] : memref<2x4x8x64xf32, #tpu.memory_space<vmem>>, vector<2x1x1x64xf32>
    %314 = vector.shape_cast %313 : vector<2x1x1x64xf32> to vector<2x64xf32>
    %c0_423 = arith.constant 0 : index
    %c3_424 = arith.constant 3 : index
    %c3_425 = arith.constant 3 : index
    %c0_426 = arith.constant 0 : index
    %315 = vector.load %arg16[%c0_423, %c3_424, %c3_425, %c0_426] : memref<2x4x8x64xf32, #tpu.memory_space<vmem>>, vector<2x1x1x64xf32>
    %316 = vector.shape_cast %315 : vector<2x1x1x64xf32> to vector<2x64xf32>
    %317 = arith.maximumf %314, %316 : vector<2x64xf32>
    %318 = arith.truncf %317 : vector<2x64xf32> to vector<2x64xbf16>
    %c0_427 = arith.constant 0 : index
    %c832 = arith.constant 832 : index
    %319 = vector.load %arg17[%c0_427, %c832] : memref<2x1024xbf16, #tpu.memory_space<vmem>>, vector<2x64xbf16>
    tpu.vector_store %arg17[%c0_427, %c832], %318 {strides = array<i32>} : memref<2x1024xbf16, #tpu.memory_space<vmem>>, vector<2x64xbf16>,
    %c0_428 = arith.constant 0 : index
    %c3_429 = arith.constant 3 : index
    %c4_430 = arith.constant 4 : index
    %c0_431 = arith.constant 0 : index
    %320 = vector.load %arg16[%c0_428, %c3_429, %c4_430, %c0_431] : memref<2x4x8x64xf32, #tpu.memory_space<vmem>>, vector<2x1x1x64xf32>
    %321 = vector.shape_cast %320 : vector<2x1x1x64xf32> to vector<2x64xf32>
    %c0_432 = arith.constant 0 : index
    %c3_433 = arith.constant 3 : index
    %c5_434 = arith.constant 5 : index
    %c0_435 = arith.constant 0 : index
    %322 = vector.load %arg16[%c0_432, %c3_433, %c5_434, %c0_435] : memref<2x4x8x64xf32, #tpu.memory_space<vmem>>, vector<2x1x1x64xf32>
    %323 = vector.shape_cast %322 : vector<2x1x1x64xf32> to vector<2x64xf32>
    %324 = arith.maximumf %321, %323 : vector<2x64xf32>
    %325 = arith.truncf %324 : vector<2x64xf32> to vector<2x64xbf16>
    %c0_436 = arith.constant 0 : index
    %c896 = arith.constant 896 : index
    %326 = vector.load %arg17[%c0_436, %c896] : memref<2x1024xbf16, #tpu.memory_space<vmem>>, vector<2x64xbf16>
    tpu.vector_store %arg17[%c0_436, %c896], %325 {strides = array<i32>} : memref<2x1024xbf16, #tpu.memory_space<vmem>>, vector<2x64xbf16>,
    %c0_437 = arith.constant 0 : index
    %c3_438 = arith.constant 3 : index
    %c6_439 = arith.constant 6 : index
    %c0_440 = arith.constant 0 : index
    %327 = vector.load %arg16[%c0_437, %c3_438, %c6_439, %c0_440] : memref<2x4x8x64xf32, #tpu.memory_space<vmem>>, vector<2x1x1x64xf32>
    %328 = vector.shape_cast %327 : vector<2x1x1x64xf32> to vector<2x64xf32>
    %c0_441 = arith.constant 0 : index
    %c3_442 = arith.constant 3 : index
    %c7_443 = arith.constant 7 : index
    %c0_444 = arith.constant 0 : index
    %329 = vector.load %arg16[%c0_441, %c3_442, %c7_443, %c0_444] : memref<2x4x8x64xf32, #tpu.memory_space<vmem>>, vector<2x1x1x64xf32>
    %330 = vector.shape_cast %329 : vector<2x1x1x64xf32> to vector<2x64xf32>
    %331 = arith.maximumf %328, %330 : vector<2x64xf32>
    %332 = arith.truncf %331 : vector<2x64xf32> to vector<2x64xbf16>
    %c0_445 = arith.constant 0 : index
    %c960 = arith.constant 960 : index
    %333 = vector.load %arg17[%c0_445, %c960] : memref<2x1024xbf16, #tpu.memory_space<vmem>>, vector<2x64xbf16>
    tpu.vector_store %arg17[%c0_445, %c960], %332 {strides = array<i32>} : memref<2x1024xbf16, #tpu.memory_space<vmem>>, vector<2x64xbf16>,
    %c0_446 = arith.constant 0 : index
    %c0_447 = arith.constant 0 : index
    %334 = vector.load %arg17[%c0_446, %c0_447] : memref<2x1024xbf16, #tpu.memory_space<vmem>>, vector<2x1024xbf16>
    %c0_448 = arith.constant 0 : index
    %c0_449 = arith.constant 0 : index
    %335 = vector.load %arg5[%c0_448, %c0_449] : memref<1024x512xbf16, #tpu.memory_space<vmem>>, vector<1024x512xbf16>
    %cst_450 = arith.constant dense<0.000000e+00> : vector<2x512xf32>
    %336 = tpu.matmul %334, %335, %cst_450 {dimension_numbers = #tpu.dot_dimension_numbers<[1], [0], [0], [1], [0, 0, 1, 1], [], []>} : vector<2x1024xbf16>, vector<1024x512xbf16>, vector<2x512xf32> -> vector<2x512xf32>
    %c0_451 = arith.constant 0 : index
    %c0_452 = arith.constant 0 : index
    %337 = vector.load %arg6[%c0_451, %c0_452] : memref<1x512xf32, #tpu.memory_space<vmem>>, vector<1x512xf32>
    %338 = vector.broadcast %337 : vector<1x512xf32> to vector<2x512xf32>
    %339 = arith.addf %336, %338 : vector<2x512xf32>
    %cst_453 = arith.constant 0.000000e+00 : f32
    %340 = vector.broadcast %cst_453 : f32 to vector<2x512xf32>
    %341 = arith.maximumf %339, %340 : vector<2x512xf32>
    %c0_454 = arith.constant 0 : index
    %c0_455 = arith.constant 0 : index
    %342 = vector.load %arg7[%c0_454, %c0_455] : memref<512x10xf32, #tpu.memory_space<vmem>>, vector<512x10xf32>
    %cst_456 = arith.constant dense<0.000000e+00> : vector<2x10xf32>
    %343 = tpu.matmul %341, %342, %cst_456 {dimension_numbers = #tpu.dot_dimension_numbers<[1], [0], [0], [1], [0, 0, 1, 1], [], []>} : vector<2x512xf32>, vector<512x10xf32>, vector<2x10xf32> -> vector<2x10xf32>
    %c0_457 = arith.constant 0 : index
    %c0_458 = arith.constant 0 : index
    %344 = vector.load %arg8[%c0_457, %c0_458] : memref<1x10xf32, #tpu.memory_space<vmem>>, vector<1x10xf32>
    %345 = vector.broadcast %344 : vector<1x10xf32> to vector<2x10xf32>
    %346 = arith.addf %343, %345 : vector<2x10xf32>
    %347 = vector.extract_strided_slice %346 {offsets = [0, 0], sizes = [2, 5], strides = [1, 1]} : vector<2x10xf32> to vector<2x5xf32>
    %c0_459 = arith.constant 0 : index
    %c0_460 = arith.constant 0 : index
    %348 = vector.load %arg9[%c0_459, %c0_460] : memref<2x5xf32, #tpu.memory_space<vmem>>, vector<2x5xf32>
    tpu.vector_store %arg9[%c0_459, %c0_460], %347 {strides = array<i32>} : memref<2x5xf32, #tpu.memory_space<vmem>>, vector<2x5xf32>,
    %349 = vector.extract_strided_slice %346 {offsets = [0, 5], sizes = [2, 5], strides = [1, 1]} : vector<2x10xf32> to vector<2x5xf32>
    %350 = math.exp %349 : vector<2x5xf32>
    %c0_461 = arith.constant 0 : index
    %c0_462 = arith.constant 0 : index
    %351 = vector.load %arg10[%c0_461, %c0_462] : memref<2x5xf32, #tpu.memory_space<vmem>>, vector<2x5xf32>
    tpu.vector_store %arg10[%c0_461, %c0_462], %350 {strides = array<i32>} : memref<2x5xf32, #tpu.memory_space<vmem>>, vector<2x5xf32>,
    return
  }
}

</mosaic_0001>

<llo_original>
// kernel: reinforce_forward.1
$region0: #{reinforce_forward.1}
  #allocation0 [shape = 'u32[]', space=smem, size = 0x4, offset = 0x4, fixed_abs, tag = 'smem constant byte address 0x4 - core index']
  #allocation1 [shape = 'u32[144,128]{1,0:T(1,128)}', space=vmem, size = 0x12000, scoped, tag = 'internal scratch']
  #allocation2 [shape = 'f32[2,18,18,4]{3,2,1,0:T(8,128)}', space=vmem, size = 0x6c000, scoped, tag = 'scratch operand']
  #allocation3 [shape = 'f32[2,16,16,36]{3,2,1,0:T(8,128)}', space=vmem, size = 0x40000, scoped, tag = 'scratch operand']
  #allocation4 [shape = 'f32[2,8,16,32]{3,2,1,0:T(8,128)}', space=vmem, size = 0x20000, scoped, tag = 'scratch operand']
  #allocation5 [shape = 'f32[2,10,10,32]{3,2,1,0:T(8,128)}', space=vmem, size = 0x28000, scoped, tag = 'scratch operand']
  #allocation6 [shape = 'f32[2,8,8,288]{3,2,1,0:T(8,128)}', space=vmem, size = 0x30000, scoped, tag = 'scratch operand']
  #allocation7 [shape = 'f32[2,4,8,64]{3,2,1,0:T(8,128)}', space=vmem, size = 0x8000, scoped, tag = 'scratch operand']
  #allocation8 [shape = 'bf16[2,1024]{1,0:T(2,128)(2,1)}', space=vmem, size = 0x1000, scoped, tag = 'scratch operand']
  %s0 = inlined_call_operand.vmem [shape: f32[2,16,16,4], index: 0, kind: input, shape index: {}]
  %s1 = inlined_call_operand.vmem [shape: f32[36,32], index: 1, kind: input, shape index: {}]
  %s2 = inlined_call_operand.vmem [shape: f32[1,32], index: 2, kind: input, shape index: {}]
  %s3 = inlined_call_operand.vmem [shape: f32[288,64], index: 3, kind: input, shape index: {}]
  %s4 = inlined_call_operand.vmem [shape: f32[1,64], index: 4, kind: input, shape index: {}]
  %s5 = inlined_call_operand.vmem [shape: bf16[1024,512], index: 5, kind: input, shape index: {}]
  %s6 = inlined_call_operand.vmem [shape: f32[1,512], index: 6, kind: input, shape index: {}]
  %s7 = inlined_call_operand.vmem [shape: f32[512,10], index: 7, kind: input, shape index: {}]
  %s8 = inlined_call_operand.vmem [shape: f32[1,10], index: 8, kind: input, shape index: {}]
  %s9 = inlined_call_operand.hbm [shape: f32[2,5], index: 9, kind: output, shape index: {0}]
  %s10 = inlined_call_operand.hbm [shape: f32[2,5], index: 10, kind: output, shape index: {1}]
  %11 = xla_tuple %s9, %s10
  %s12 = sld [smem:[#allocation0]]
  $region54: #{reinforce_forward.1} parent=0
    _
  %s14 = ssub.s32 1, %s12
  %s15 = scalar_select 0, %s14, %s12
  $region1: #{reinforce_forward.1} parent=0
    #allocation9 [shape = 'u8[1024]{0}', space=vmem, size = 0x400, scoped, tag = 'output window, operand 0, single buffered']
    #allocation10 [shape = 's32[1]{0}', space=sflag, size = 0x4, scoped, tag = 'scoped memory for reinforce_forward.1']
    #allocation11 [shape = 'u8[1024]{0}', space=vmem, size = 0x400, scoped, tag = 'output window, operand 1, single buffered']
    #allocation12 [shape = 's32[1]{0}', space=sflag, size = 0x4, scoped, tag = 'scoped memory for reinforce_forward.1']
    %16 = vsyncpa [#allocation10], 0
    %17 = vsyncpa [#allocation12], 0
    // Predicated region
    $region2: #{reinforce_forward.1} parent=1 // pred_check
      _
    $region3: #{reinforce_forward.1} parent=1 // pred_check_branch
      %19 = sbr.rel (0) target = $region5
    $region4: #{reinforce_forward.1} parent=1 // pred_region
      _
    $region5: #{reinforce_forward.1} parent=1 // pred_fallthru
      _
    // Predicated region
    $region6: #{reinforce_forward.1} parent=1 // pred_check
      _
    $region7: #{reinforce_forward.1} parent=1 // pred_check_branch
      %21 = sbr.rel (0) target = $region9
    $region8: #{reinforce_forward.1} parent=1 // pred_region
      _
    $region9: #{reinforce_forward.1} parent=1 // pred_fallthru
      _
    // Predicated region
    $region10: #{reinforce_forward.1} parent=1 // pred_check
      _
    $region11: #{reinforce_forward.1} parent=1 // pred_check_branch
      %23 = sbr.rel (0) target = $region13
    $region12: #{reinforce_forward.1} parent=1 // pred_region
      _
    $region13: #{reinforce_forward.1} parent=1 // pred_fallthru
      _
    // Predicated region
    $region14: #{reinforce_forward.1} parent=1 // pred_check
      _
    $region15: #{reinforce_forward.1} parent=1 // pred_check_branch
      %25 = sbr.rel (0) target = $region17
    $region16: #{reinforce_forward.1} parent=1 // pred_region
      _
    $region17: #{reinforce_forward.1} parent=1 // pred_fallthru
      _
    // Predicated region
    $region18: #{reinforce_forward.1} parent=1 // pred_check
      _
    $region19: #{reinforce_forward.1} parent=1 // pred_check_branch
      %27 = sbr.rel (0) target = $region21
    $region20: #{reinforce_forward.1} parent=1 // pred_region
      _
    $region21: #{reinforce_forward.1} parent=1 // pred_fallthru
      _
    // Predicated region
    $region22: #{reinforce_forward.1} parent=1 // pred_check
      _
    $region23: #{reinforce_forward.1} parent=1 // pred_check_branch
      %29 = sbr.rel (0) target = $region25
    $region24: #{reinforce_forward.1} parent=1 // pred_region
      _
    $region25: #{reinforce_forward.1} parent=1 // pred_fallthru
      _
    // Predicated region
    $region26: #{reinforce_forward.1} parent=1 // pred_check
      _
    $region27: #{reinforce_forward.1} parent=1 // pred_check_branch
      %31 = sbr.rel (0) target = $region29
    $region28: #{reinforce_forward.1} parent=1 // pred_region
      _
    $region29: #{reinforce_forward.1} parent=1 // pred_fallthru
      _
    // Predicated region
    $region30: #{reinforce_forward.1} parent=1 // pred_check
      _
    $region31: #{reinforce_forward.1} parent=1 // pred_check_branch
      %33 = sbr.rel (0) target = $region33
    $region32: #{reinforce_forward.1} parent=1 // pred_region
      _
    $region33: #{reinforce_forward.1} parent=1 // pred_fallthru
      _
    // Predicated region
    $region34: #{reinforce_forward.1} parent=1 // pred_check
      _
    $region35: #{reinforce_forward.1} parent=1 // pred_check_branch
      %35 = sbr.rel (0) target = $region37
    $region36: #{reinforce_forward.1} parent=1 // pred_region
      _
    $region37: #{reinforce_forward.1} parent=1 // pred_fallthru
      _
    %vm36 = vcmask 31744
    %37 = vst.msk [vmem:[#allocation2] sm:$0xff] %vm36, 0.0
    %38 = vst.msk [vmem:[#allocation2 + $0x8] sm:$0xff] %vm36, 0.0
    %vm39 = vcmask 25600
    %40 = vst.msk [vmem:[#allocation2 + $0x10] sm:$0x3] %vm39, 0.0
    %41 = vst.msk [vmem:[#allocation2 + $0x18] sm:$0xff] %vm36, 0.0
    %42 = vst.msk [vmem:[#allocation2 + $0x20] sm:$0xff] %vm36, 0.0
    %43 = vst.msk [vmem:[#allocation2 + $0x28] sm:$0x3] %vm39, 0.0
    %44 = vst.msk [vmem:[#allocation2 + $0x30] sm:$0xff] %vm36, 0.0
    %45 = vst.msk [vmem:[#allocation2 + $0x38] sm:$0xff] %vm36, 0.0
    %46 = vst.msk [vmem:[#allocation2 + $0x40] sm:$0x3] %vm39, 0.0
    %47 = vst.msk [vmem:[#allocation2 + $0x48] sm:$0xff] %vm36, 0.0
    %48 = vst.msk [vmem:[#allocation2 + $0x50] sm:$0xff] %vm36, 0.0
    %49 = vst.msk [vmem:[#allocation2 + $0x58] sm:$0x3] %vm39, 0.0
    %50 = vst.msk [vmem:[#allocation2 + $0x60] sm:$0xff] %vm36, 0.0
    %51 = vst.msk [vmem:[#allocation2 + $0x68] sm:$0xff] %vm36, 0.0
    %52 = vst.msk [vmem:[#allocation2 + $0x70] sm:$0x3] %vm39, 0.0
    %53 = vst.msk [vmem:[#allocation2 + $0x78] sm:$0xff] %vm36, 0.0
    %54 = vst.msk [vmem:[#allocation2 + $0x80] sm:$0xff] %vm36, 0.0
    %55 = vst.msk [vmem:[#allocation2 + $0x88] sm:$0x3] %vm39, 0.0
    %56 = vst.msk [vmem:[#allocation2 + $0x90] sm:$0xff] %vm36, 0.0
    %57 = vst.msk [vmem:[#allocation2 + $0x98] sm:$0xff] %vm36, 0.0
    %58 = vst.msk [vmem:[#allocation2 + $0xa0] sm:$0x3] %vm39, 0.0
    %59 = vst.msk [vmem:[#allocation2 + $0xa8] sm:$0xff] %vm36, 0.0
    %60 = vst.msk [vmem:[#allocation2 + $0xb0] sm:$0xff] %vm36, 0.0
    %61 = vst.msk [vmem:[#allocation2 + $0xb8] sm:$0x3] %vm39, 0.0
    %62 = vst.msk [vmem:[#allocation2 + $0xc0] sm:$0xff] %vm36, 0.0
    %63 = vst.msk [vmem:[#allocation2 + $0xc8] sm:$0xff] %vm36, 0.0
    %64 = vst.msk [vmem:[#allocation2 + $0xd0] sm:$0x3] %vm39, 0.0
    %65 = vst.msk [vmem:[#allocation2 + $0xd8] sm:$0xff] %vm36, 0.0
    %66 = vst.msk [vmem:[#allocation2 + $0xe0] sm:$0xff] %vm36, 0.0
    %67 = vst.msk [vmem:[#allocation2 + $0xe8] sm:$0x3] %vm39, 0.0
    %68 = vst.msk [vmem:[#allocation2 + $0xf0] sm:$0xff] %vm36, 0.0
    %69 = vst.msk [vmem:[#allocation2 + $0xf8] sm:$0xff] %vm36, 0.0
    %70 = vst.msk [vmem:[#allocation2 + $0x100] sm:$0x3] %vm39, 0.0
    %71 = vst.msk [vmem:[#allocation2 + $0x108] sm:$0xff] %vm36, 0.0
    %72 = vst.msk [vmem:[#allocation2 + $0x110] sm:$0xff] %vm36, 0.0
    %73 = vst.msk [vmem:[#allocation2 + $0x118] sm:$0x3] %vm39, 0.0
    %74 = vst.msk [vmem:[#allocation2 + $0x120] sm:$0xff] %vm36, 0.0
    %75 = vst.msk [vmem:[#allocation2 + $0x128] sm:$0xff] %vm36, 0.0
    %76 = vst.msk [vmem:[#allocation2 + $0x130] sm:$0x3] %vm39, 0.0
    %77 = vst.msk [vmem:[#allocation2 + $0x138] sm:$0xff] %vm36, 0.0
    %78 = vst.msk [vmem:[#allocation2 + $0x140] sm:$0xff] %vm36, 0.0
    %79 = vst.msk [vmem:[#allocation2 + $0x148] sm:$0x3] %vm39, 0.0
    %80 = vst.msk [vmem:[#allocation2 + $0x150] sm:$0xff] %vm36, 0.0
    %81 = vst.msk [vmem:[#allocation2 + $0x158] sm:$0xff] %vm36, 0.0
    %82 = vst.msk [vmem:[#allocation2 + $0x160] sm:$0x3] %vm39, 0.0
    %83 = vst.msk [vmem:[#allocation2 + $0x168] sm:$0xff] %vm36, 0.0
    %84 = vst.msk [vmem:[#allocation2 + $0x170] sm:$0xff] %vm36, 0.0
    %85 = vst.msk [vmem:[#allocation2 + $0x178] sm:$0x3] %vm39, 0.0
    %86 = vst.msk [vmem:[#allocation2 + $0x180] sm:$0xff] %vm36, 0.0
    %87 = vst.msk [vmem:[#allocation2 + $0x188] sm:$0xff] %vm36, 0.0
    %88 = vst.msk [vmem:[#allocation2 + $0x190] sm:$0x3] %vm39, 0.0
    %89 = vst.msk [vmem:[#allocation2 + $0x198] sm:$0xff] %vm36, 0.0
    %90 = vst.msk [vmem:[#allocation2 + $0x1a0] sm:$0xff] %vm36, 0.0
    %91 = vst.msk [vmem:[#allocation2 + $0x1a8] sm:$0x3] %vm39, 0.0
    %92 = vst.msk [vmem:[#allocation2 + $0x1b0] sm:$0xff] %vm36, 0.0
    %93 = vst.msk [vmem:[#allocation2 + $0x1b8] sm:$0xff] %vm36, 0.0
    %94 = vst.msk [vmem:[#allocation2 + $0x1c0] sm:$0x3] %vm39, 0.0
    %95 = vst.msk [vmem:[#allocation2 + $0x1c8] sm:$0xff] %vm36, 0.0
    %96 = vst.msk [vmem:[#allocation2 + $0x1d0] sm:$0xff] %vm36, 0.0
    %97 = vst.msk [vmem:[#allocation2 + $0x1d8] sm:$0x3] %vm39, 0.0
    %98 = vst.msk [vmem:[#allocation2 + $0x1e0] sm:$0xff] %vm36, 0.0
    %99 = vst.msk [vmem:[#allocation2 + $0x1e8] sm:$0xff] %vm36, 0.0
    %100 = vst.msk [vmem:[#allocation2 + $0x1f0] sm:$0x3] %vm39, 0.0
    %101 = vst.msk [vmem:[#allocation2 + $0x1f8] sm:$0xff] %vm36, 0.0
    %102 = vst.msk [vmem:[#allocation2 + $0x200] sm:$0xff] %vm36, 0.0
    %103 = vst.msk [vmem:[#allocation2 + $0x208] sm:$0x3] %vm39, 0.0
    %104 = vst.msk [vmem:[#allocation2 + $0x210] sm:$0xff] %vm36, 0.0
    %105 = vst.msk [vmem:[#allocation2 + $0x218] sm:$0xff] %vm36, 0.0
    %106 = vst.msk [vmem:[#allocation2 + $0x220] sm:$0x3] %vm39, 0.0
    %107 = vst.msk [vmem:[#allocation2 + $0x228] sm:$0xff] %vm36, 0.0
    %108 = vst.msk [vmem:[#allocation2 + $0x230] sm:$0xff] %vm36, 0.0
    %109 = vst.msk [vmem:[#allocation2 + $0x238] sm:$0x3] %vm39, 0.0
    %110 = vst.msk [vmem:[#allocation2 + $0x240] sm:$0xff] %vm36, 0.0
    %111 = vst.msk [vmem:[#allocation2 + $0x248] sm:$0xff] %vm36, 0.0
    %112 = vst.msk [vmem:[#allocation2 + $0x250] sm:$0x3] %vm39, 0.0
    %113 = vst.msk [vmem:[#allocation2 + $0x258] sm:$0xff] %vm36, 0.0
    %114 = vst.msk [vmem:[#allocation2 + $0x260] sm:$0xff] %vm36, 0.0
    %115 = vst.msk [vmem:[#allocation2 + $0x268] sm:$0x3] %vm39, 0.0
    %116 = vst.msk [vmem:[#allocation2 + $0x270] sm:$0xff] %vm36, 0.0
    %117 = vst.msk [vmem:[#allocation2 + $0x278] sm:$0xff] %vm36, 0.0
    %118 = vst.msk [vmem:[#allocation2 + $0x280] sm:$0x3] %vm39, 0.0
    %119 = vst.msk [vmem:[#allocation2 + $0x288] sm:$0xff] %vm36, 0.0
    %120 = vst.msk [vmem:[#allocation2 + $0x290] sm:$0xff] %vm36, 0.0
    %121 = vst.msk [vmem:[#allocation2 + $0x298] sm:$0x3] %vm39, 0.0
    %122 = vst.msk [vmem:[#allocation2 + $0x2a0] sm:$0xff] %vm36, 0.0
    %123 = vst.msk [vmem:[#allocation2 + $0x2a8] sm:$0xff] %vm36, 0.0
    %124 = vst.msk [vmem:[#allocation2 + $0x2b0] sm:$0x3] %vm39, 0.0
    %125 = vst.msk [vmem:[#allocation2 + $0x2b8] sm:$0xff] %vm36, 0.0
    %126 = vst.msk [vmem:[#allocation2 + $0x2c0] sm:$0xff] %vm36, 0.0
    %127 = vst.msk [vmem:[#allocation2 + $0x2c8] sm:$0x3] %vm39, 0.0
    %128 = vst.msk [vmem:[#allocation2 + $0x2d0] sm:$0xff] %vm36, 0.0
    %129 = vst.msk [vmem:[#allocation2 + $0x2d8] sm:$0xff] %vm36, 0.0
    %130 = vst.msk [vmem:[#allocation2 + $0x2e0] sm:$0x3] %vm39, 0.0
    %131 = vst.msk [vmem:[#allocation2 + $0x2e8] sm:$0xff] %vm36, 0.0
    %132 = vst.msk [vmem:[#allocation2 + $0x2f0] sm:$0xff] %vm36, 0.0
    %133 = vst.msk [vmem:[#allocation2 + $0x2f8] sm:$0x3] %vm39, 0.0
    %134 = vst.msk [vmem:[#allocation2 + $0x300] sm:$0xff] %vm36, 0.0
    %135 = vst.msk [vmem:[#allocation2 + $0x308] sm:$0xff] %vm36, 0.0
    %136 = vst.msk [vmem:[#allocation2 + $0x310] sm:$0x3] %vm39, 0.0
    %137 = vst.msk [vmem:[#allocation2 + $0x318] sm:$0xff] %vm36, 0.0
    %138 = vst.msk [vmem:[#allocation2 + $0x320] sm:$0xff] %vm36, 0.0
    %139 = vst.msk [vmem:[#allocation2 + $0x328] sm:$0x3] %vm39, 0.0
    %140 = vst.msk [vmem:[#allocation2 + $0x330] sm:$0xff] %vm36, 0.0
    %141 = vst.msk [vmem:[#allocation2 + $0x338] sm:$0xff] %vm36, 0.0
    %142 = vst.msk [vmem:[#allocation2 + $0x340] sm:$0x3] %vm39, 0.0
    %143 = vst.msk [vmem:[#allocation2 + $0x348] sm:$0xff] %vm36, 0.0
    %144 = vst.msk [vmem:[#allocation2 + $0x350] sm:$0xff] %vm36, 0.0
    %145 = vst.msk [vmem:[#allocation2 + $0x358] sm:$0x3] %vm39, 0.0
    %v146 = vld [vmem:[%s0] sm:$0xff]
    %v147 = vld [vmem:[%s0 + $0x8] sm:$0xff]
    %v148 = vld [vmem:[%s0 + $0x10] sm:$0xff]
    %v149 = vld [vmem:[%s0 + $0x18] sm:$0xff]
    %v150 = vld [vmem:[%s0 + $0x20] sm:$0xff]
    %v151 = vld [vmem:[%s0 + $0x28] sm:$0xff]
    %v152 = vld [vmem:[%s0 + $0x30] sm:$0xff]
    %v153 = vld [vmem:[%s0 + $0x38] sm:$0xff]
    %v154 = vld [vmem:[%s0 + $0x40] sm:$0xff]
    %v155 = vld [vmem:[%s0 + $0x48] sm:$0xff]
    %v156 = vld [vmem:[%s0 + $0x50] sm:$0xff]
    %v157 = vld [vmem:[%s0 + $0x58] sm:$0xff]
    %v158 = vld [vmem:[%s0 + $0x60] sm:$0xff]
    %v159 = vld [vmem:[%s0 + $0x68] sm:$0xff]
    %v160 = vld [vmem:[%s0 + $0x70] sm:$0xff]
    %v161 = vld [vmem:[%s0 + $0x78] sm:$0xff]
    %v162 = vld [vmem:[%s0 + $0x80] sm:$0xff]
    %v163 = vld [vmem:[%s0 + $0x88] sm:$0xff]
    %v164 = vld [vmem:[%s0 + $0x90] sm:$0xff]
    %v165 = vld [vmem:[%s0 + $0x98] sm:$0xff]
    %v166 = vld [vmem:[%s0 + $0xa0] sm:$0xff]
    %v167 = vld [vmem:[%s0 + $0xa8] sm:$0xff]
    %v168 = vld [vmem:[%s0 + $0xb0] sm:$0xff]
    %v169 = vld [vmem:[%s0 + $0xb8] sm:$0xff]
    %v170 = vld [vmem:[%s0 + $0xc0] sm:$0xff]
    %v171 = vld [vmem:[%s0 + $0xc8] sm:$0xff]
    %v172 = vld [vmem:[%s0 + $0xd0] sm:$0xff]
    %v173 = vld [vmem:[%s0 + $0xd8] sm:$0xff]
    %v174 = vld [vmem:[%s0 + $0xe0] sm:$0xff]
    %v175 = vld [vmem:[%s0 + $0xe8] sm:$0xff]
    %v176 = vld [vmem:[%s0 + $0xf0] sm:$0xff]
    %v177 = vld [vmem:[%s0 + $0xf8] sm:$0xff]
    %v178 = vld [vmem:[%s0 + $0x100] sm:$0xff]
    %v179 = vld [vmem:[%s0 + $0x108] sm:$0xff]
    %v180 = vld [vmem:[%s0 + $0x110] sm:$0xff]
    %v181 = vld [vmem:[%s0 + $0x118] sm:$0xff]
    %v182 = vld [vmem:[%s0 + $0x120] sm:$0xff]
    %v183 = vld [vmem:[%s0 + $0x128] sm:$0xff]
    %v184 = vld [vmem:[%s0 + $0x130] sm:$0xff]
    %v185 = vld [vmem:[%s0 + $0x138] sm:$0xff]
    %v186 = vld [vmem:[%s0 + $0x140] sm:$0xff]
    %v187 = vld [vmem:[%s0 + $0x148] sm:$0xff]
    %v188 = vld [vmem:[%s0 + $0x150] sm:$0xff]
    %v189 = vld [vmem:[%s0 + $0x158] sm:$0xff]
    %v190 = vld [vmem:[%s0 + $0x160] sm:$0xff]
    %v191 = vld [vmem:[%s0 + $0x168] sm:$0xff]
    %v192 = vld [vmem:[%s0 + $0x170] sm:$0xff]
    %v193 = vld [vmem:[%s0 + $0x178] sm:$0xff]
    %v194 = vld [vmem:[%s0 + $0x180] sm:$0xff]
    %v195 = vld [vmem:[%s0 + $0x188] sm:$0xff]
    %v196 = vld [vmem:[%s0 + $0x190] sm:$0xff]
    %v197 = vld [vmem:[%s0 + $0x198] sm:$0xff]
    %v198 = vld [vmem:[%s0 + $0x1a0] sm:$0xff]
    %v199 = vld [vmem:[%s0 + $0x1a8] sm:$0xff]
    %v200 = vld [vmem:[%s0 + $0x1b0] sm:$0xff]
    %v201 = vld [vmem:[%s0 + $0x1b8] sm:$0xff]
    %v202 = vld [vmem:[%s0 + $0x1c0] sm:$0xff]
    %v203 = vld [vmem:[%s0 + $0x1c8] sm:$0xff]
    %v204 = vld [vmem:[%s0 + $0x1d0] sm:$0xff]
    %v205 = vld [vmem:[%s0 + $0x1d8] sm:$0xff]
    %v206 = vld [vmem:[%s0 + $0x1e0] sm:$0xff]
    %v207 = vld [vmem:[%s0 + $0x1e8] sm:$0xff]
    %v208 = vld [vmem:[%s0 + $0x1f0] sm:$0xff]
    %v209 = vld [vmem:[%s0 + $0x1f8] sm:$0xff]
    %s210 = scalar_lea.vmem [#allocation2], 24
    %211 = vst.msk [vmem:[%s210 + $0x1] sm:$0xff] %vm36, %v146
    %212 = vst.msk [vmem:[%s210 + $0x9] sm:$0xff] %vm36, %v147
    %213 = vst.msk [vmem:[%s210 + $0x19] sm:$0xff] %vm36, %v148
    %214 = vst.msk [vmem:[%s210 + $0x21] sm:$0xff] %vm36, %v149
    %215 = vst.msk [vmem:[%s210 + $0x31] sm:$0xff] %vm36, %v150
    %216 = vst.msk [vmem:[%s210 + $0x39] sm:$0xff] %vm36, %v151
    %217 = vst.msk [vmem:[%s210 + $0x49] sm:$0xff] %vm36, %v152
    %218 = vst.msk [vmem:[%s210 + $0x51] sm:$0xff] %vm36, %v153
    %219 = vst.msk [vmem:[%s210 + $0x61] sm:$0xff] %vm36, %v154
    %220 = vst.msk [vmem:[%s210 + $0x69] sm:$0xff] %vm36, %v155
    %221 = vst.msk [vmem:[%s210 + $0x79] sm:$0xff] %vm36, %v156
    %222 = vst.msk [vmem:[%s210 + $0x81] sm:$0xff] %vm36, %v157
    %223 = vst.msk [vmem:[%s210 + $0x91] sm:$0xff] %vm36, %v158
    %224 = vst.msk [vmem:[%s210 + $0x99] sm:$0xff] %vm36, %v159
    %225 = vst.msk [vmem:[%s210 + $0xa9] sm:$0xff] %vm36, %v160
    %226 = vst.msk [vmem:[%s210 + $0xb1] sm:$0xff] %vm36, %v161
    %227 = vst.msk [vmem:[%s210 + $0xc1] sm:$0xff] %vm36, %v162
    %228 = vst.msk [vmem:[%s210 + $0xc9] sm:$0xff] %vm36, %v163
    %229 = vst.msk [vmem:[%s210 + $0xd9] sm:$0xff] %vm36, %v164
    %230 = vst.msk [vmem:[%s210 + $0xe1] sm:$0xff] %vm36, %v165
    %231 = vst.msk [vmem:[%s210 + $0xf1] sm:$0xff] %vm36, %v166
    %232 = vst.msk [vmem:[%s210 + $0xf9] sm:$0xff] %vm36, %v167
    %233 = vst.msk [vmem:[%s210 + $0x109] sm:$0xff] %vm36, %v168
    %234 = vst.msk [vmem:[%s210 + $0x111] sm:$0xff] %vm36, %v169
    %235 = vst.msk [vmem:[%s210 + $0x121] sm:$0xff] %vm36, %v170
    %236 = vst.msk [vmem:[%s210 + $0x129] sm:$0xff] %vm36, %v171
    %237 = vst.msk [vmem:[%s210 + $0x139] sm:$0xff] %vm36, %v172
    %238 = vst.msk [vmem:[%s210 + $0x141] sm:$0xff] %vm36, %v173
    %239 = vst.msk [vmem:[%s210 + $0x151] sm:$0xff] %vm36, %v174
    %240 = vst.msk [vmem:[%s210 + $0x159] sm:$0xff] %vm36, %v175
    %241 = vst.msk [vmem:[%s210 + $0x169] sm:$0xff] %vm36, %v176
    %242 = vst.msk [vmem:[%s210 + $0x171] sm:$0xff] %vm36, %v177
    %243 = vst.msk [vmem:[%s210 + $0x1b1] sm:$0xff] %vm36, %v178
    %244 = vst.msk [vmem:[%s210 + $0x1b9] sm:$0xff] %vm36, %v179
    %245 = vst.msk [vmem:[%s210 + $0x1c9] sm:$0xff] %vm36, %v180
    %246 = vst.msk [vmem:[%s210 + $0x1d1] sm:$0xff] %vm36, %v181
    %247 = vst.msk [vmem:[%s210 + $0x1e1] sm:$0xff] %vm36, %v182
    %248 = vst.msk [vmem:[%s210 + $0x1e9] sm:$0xff] %vm36, %v183
    %249 = vst.msk [vmem:[%s210 + $0x1f9] sm:$0xff] %vm36, %v184
    %250 = vst.msk [vmem:[%s210 + $0x201] sm:$0xff] %vm36, %v185
    %251 = vst.msk [vmem:[%s210 + $0x211] sm:$0xff] %vm36, %v186
    %252 = vst.msk [vmem:[%s210 + $0x219] sm:$0xff] %vm36, %v187
    %253 = vst.msk [vmem:[%s210 + $0x229] sm:$0xff] %vm36, %v188
    %254 = vst.msk [vmem:[%s210 + $0x231] sm:$0xff] %vm36, %v189
    %255 = vst.msk [vmem:[%s210 + $0x241] sm:$0xff] %vm36, %v190
    %256 = vst.msk [vmem:[%s210 + $0x249] sm:$0xff] %vm36, %v191
    %257 = vst.msk [vmem:[%s210 + $0x259] sm:$0xff] %vm36, %v192
    %258 = vst.msk [vmem:[%s210 + $0x261] sm:$0xff] %vm36, %v193
    %259 = vst.msk [vmem:[%s210 + $0x271] sm:$0xff] %vm36, %v194
    %260 = vst.msk [vmem:[%s210 + $0x279] sm:$0xff] %vm36, %v195
    %261 = vst.msk [vmem:[%s210 + $0x289] sm:$0xff] %vm36, %v196
    %262 = vst.msk [vmem:[%s210 + $0x291] sm:$0xff] %vm36, %v197
    %263 = vst.msk [vmem:[%s210 + $0x2a1] sm:$0xff] %vm36, %v198
    %264 = vst.msk [vmem:[%s210 + $0x2a9] sm:$0xff] %vm36, %v199
    %265 = vst.msk [vmem:[%s210 + $0x2b9] sm:$0xff] %vm36, %v200
    %266 = vst.msk [vmem:[%s210 + $0x2c1] sm:$0xff] %vm36, %v201
    %267 = vst.msk [vmem:[%s210 + $0x2d1] sm:$0xff] %vm36, %v202
    %268 = vst.msk [vmem:[%s210 + $0x2d9] sm:$0xff] %vm36, %v203
    %269 = vst.msk [vmem:[%s210 + $0x2e9] sm:$0xff] %vm36, %v204
    %270 = vst.msk [vmem:[%s210 + $0x2f1] sm:$0xff] %vm36, %v205
    %271 = vst.msk [vmem:[%s210 + $0x301] sm:$0xff] %vm36, %v206
    %272 = vst.msk [vmem:[%s210 + $0x309] sm:$0xff] %vm36, %v207
    %273 = vst.msk [vmem:[%s210 + $0x319] sm:$0xff] %vm36, %v208
    %274 = vst.msk [vmem:[%s210 + $0x321] sm:$0xff] %vm36, %v209
    %v275 = vld [vmem:[#allocation2] sm:$0xff]
    %v276 = vld [vmem:[#allocation2 + $0x8] sm:$0xff]
    %v277 = vld [vmem:[#allocation2 + $0x18] sm:$0xff]
    %v278 = vld [vmem:[#allocation2 + $0x20] sm:$0xff]
    %v279 = vld [vmem:[#allocation2 + $0x30] sm:$0xff]
    %v280 = vld [vmem:[#allocation2 + $0x38] sm:$0xff]
    %v281 = vld [vmem:[#allocation2 + $0x48] sm:$0xff]
    %v282 = vld [vmem:[#allocation2 + $0x50] sm:$0xff]
    %v283 = vld [vmem:[#allocation2 + $0x60] sm:$0xff]
    %v284 = vld [vmem:[#allocation2 + $0x68] sm:$0xff]
    %v285 = vld [vmem:[#allocation2 + $0x78] sm:$0xff]
    %v286 = vld [vmem:[#allocation2 + $0x80] sm:$0xff]
    %v287 = vld [vmem:[#allocation2 + $0x90] sm:$0xff]
    %v288 = vld [vmem:[#allocation2 + $0x98] sm:$0xff]
    %v289 = vld [vmem:[#allocation2 + $0xa8] sm:$0xff]
    %v290 = vld [vmem:[#allocation2 + $0xb0] sm:$0xff]
    %v291 = vld [vmem:[#allocation2 + $0xc0] sm:$0xff]
    %v292 = vld [vmem:[#allocation2 + $0xc8] sm:$0xff]
    %v293 = vld [vmem:[#allocation2 + $0xd8] sm:$0xff]
    %v294 = vld [vmem:[#allocation2 + $0xe0] sm:$0xff]
    %v295 = vld [vmem:[#allocation2 + $0xf0] sm:$0xff]
    %v296 = vld [vmem:[#allocation2 + $0xf8] sm:$0xff]
    %v297 = vld [vmem:[#allocation2 + $0x108] sm:$0xff]
    %v298 = vld [vmem:[#allocation2 + $0x110] sm:$0xff]
    %v299 = vld [vmem:[#allocation2 + $0x120] sm:$0xff]
    %v300 = vld [vmem:[#allocation2 + $0x128] sm:$0xff]
    %v301 = vld [vmem:[#allocation2 + $0x138] sm:$0xff]
    %v302 = vld [vmem:[#allocation2 + $0x140] sm:$0xff]
    %v303 = vld [vmem:[#allocation2 + $0x150] sm:$0xff]
    %v304 = vld [vmem:[#allocation2 + $0x158] sm:$0xff]
    %v305 = vld [vmem:[#allocation2 + $0x168] sm:$0xff]
    %v306 = vld [vmem:[#allocation2 + $0x170] sm:$0xff]
    %v307 = vld [vmem:[#allocation2 + $0x1b0] sm:$0xff]
    %v308 = vld [vmem:[#allocation2 + $0x1b8] sm:$0xff]
    %v309 = vld [vmem:[#allocation2 + $0x1c8] sm:$0xff]
    %v310 = vld [vmem:[#allocation2 + $0x1d0] sm:$0xff]
    %v311 = vld [vmem:[#allocation2 + $0x1e0] sm:$0xff]
    %v312 = vld [vmem:[#allocation2 + $0x1e8] sm:$0xff]
    %v313 = vld [vmem:[#allocation2 + $0x1f8] sm:$0xff]
    %v314 = vld [vmem:[#allocation2 + $0x200] sm:$0xff]
    %v315 = vld [vmem:[#allocation2 + $0x210] sm:$0xff]
    %v316 = vld [vmem:[#allocation2 + $0x218] sm:$0xff]
    %v317 = vld [vmem:[#allocation2 + $0x228] sm:$0xff]
    %v318 = vld [vmem:[#allocation2 + $0x230] sm:$0xff]
    %v319 = vld [vmem:[#allocation2 + $0x240] sm:$0xff]
    %v320 = vld [vmem:[#allocation2 + $0x248] sm:$0xff]
    %v321 = vld [vmem:[#allocation2 + $0x258] sm:$0xff]
    %v322 = vld [vmem:[#allocation2 + $0x260] sm:$0xff]
    %v323 = vld [vmem:[#allocation2 + $0x270] sm:$0xff]
    %v324 = vld [vmem:[#allocation2 + $0x278] sm:$0xff]
    %v325 = vld [vmem:[#allocation2 + $0x288] sm:$0xff]
    %v326 = vld [vmem:[#allocation2 + $0x290] sm:$0xff]
    %v327 = vld [vmem:[#allocation2 + $0x2a0] sm:$0xff]
    %v328 = vld [vmem:[#allocation2 + $0x2a8] sm:$0xff]
    %v329 = vld [vmem:[#allocation2 + $0x2b8] sm:$0xff]
    %v330 = vld [vmem:[#allocation2 + $0x2c0] sm:$0xff]
    %v331 = vld [vmem:[#allocation2 + $0x2d0] sm:$0xff]
    %v332 = vld [vmem:[#allocation2 + $0x2d8] sm:$0xff]
    %v333 = vld [vmem:[#allocation2 + $0x2e8] sm:$0xff]
    %v334 = vld [vmem:[#allocation2 + $0x2f0] sm:$0xff]
    %v335 = vld [vmem:[#allocation2 + $0x300] sm:$0xff]
    %v336 = vld [vmem:[#allocation2 + $0x308] sm:$0xff]
    %v337 = vld [vmem:[#allocation2 + $0x318] sm:$0xff]
    %v338 = vld [vmem:[#allocation2 + $0x320] sm:$0xff]
    %339 = vst.msk [vmem:[#allocation3] sm:$0xff] %vm36, %v275
    %340 = vst.msk [vmem:[#allocation3 + $0x8] sm:$0xff] %vm36, %v276
    %341 = vst.msk [vmem:[#allocation3 + $0x10] sm:$0xff] %vm36, %v277
    %342 = vst.msk [vmem:[#allocation3 + $0x18] sm:$0xff] %vm36, %v278
    %343 = vst.msk [vmem:[#allocation3 + $0x20] sm:$0xff] %vm36, %v279
    %344 = vst.msk [vmem:[#allocation3 + $0x28] sm:$0xff] %vm36, %v280
    %345 = vst.msk [vmem:[#allocation3 + $0x30] sm:$0xff] %vm36, %v281
    %346 = vst.msk [vmem:[#allocation3 + $0x38] sm:$0xff] %vm36, %v282
    %347 = vst.msk [vmem:[#allocation3 + $0x40] sm:$0xff] %vm36, %v283
    %348 = vst.msk [vmem:[#allocation3 + $0x48] sm:$0xff] %vm36, %v284
    %349 = vst.msk [vmem:[#allocation3 + $0x50] sm:$0xff] %vm36, %v285
    %350 = vst.msk [vmem:[#allocation3 + $0x58] sm:$0xff] %vm36, %v286
    %351 = vst.msk [vmem:[#allocation3 + $0x60] sm:$0xff] %vm36, %v287
    %352 = vst.msk [vmem:[#allocation3 + $0x68] sm:$0xff] %vm36, %v288
    %353 = vst.msk [vmem:[#allocation3 + $0x70] sm:$0xff] %vm36, %v289
    %354 = vst.msk [vmem:[#allocation3 + $0x78] sm:$0xff] %vm36, %v290
    %355 = vst.msk [vmem:[#allocation3 + $0x80] sm:$0xff] %vm36, %v291
    %356 = vst.msk [vmem:[#allocation3 + $0x88] sm:$0xff] %vm36, %v292
    %357 = vst.msk [vmem:[#allocation3 + $0x90] sm:$0xff] %vm36, %v293
    %358 = vst.msk [vmem:[#allocation3 + $0x98] sm:$0xff] %vm36, %v294
    %359 = vst.msk [vmem:[#allocation3 + $0xa0] sm:$0xff] %vm36, %v295
    %360 = vst.msk [vmem:[#allocation3 + $0xa8] sm:$0xff] %vm36, %v296
    %361 = vst.msk [vmem:[#allocation3 + $0xb0] sm:$0xff] %vm36, %v297
    %362 = vst.msk [vmem:[#allocation3 + $0xb8] sm:$0xff] %vm36, %v298
    %363 = vst.msk [vmem:[#allocation3 + $0xc0] sm:$0xff] %vm36, %v299
    %364 = vst.msk [vmem:[#allocation3 + $0xc8] sm:$0xff] %vm36, %v300
    %365 = vst.msk [vmem:[#allocation3 + $0xd0] sm:$0xff] %vm36, %v301
    %366 = vst.msk [vmem:[#allocation3 + $0xd8] sm:$0xff] %vm36, %v302
    %367 = vst.msk [vmem:[#allocation3 + $0xe0] sm:$0xff] %vm36, %v303
    %368 = vst.msk [vmem:[#allocation3 + $0xe8] sm:$0xff] %vm36, %v304
    %369 = vst.msk [vmem:[#allocation3 + $0xf0] sm:$0xff] %vm36, %v305
    %370 = vst.msk [vmem:[#allocation3 + $0xf8] sm:$0xff] %vm36, %v306
    %371 = vst.msk [vmem:[#allocation3 + $0x100] sm:$0xff] %vm36, %v307
    %372 = vst.msk [vmem:[#allocation3 + $0x108] sm:$0xff] %vm36, %v308
    %373 = vst.msk [vmem:[#allocation3 + $0x110] sm:$0xff] %vm36, %v309
    %374 = vst.msk [vmem:[#allocation3 + $0x118] sm:$0xff] %vm36, %v310
    %375 = vst.msk [vmem:[#allocation3 + $0x120] sm:$0xff] %vm36, %v311
    %376 = vst.msk [vmem:[#allocation3 + $0x128] sm:$0xff] %vm36, %v312
    %377 = vst.msk [vmem:[#allocation3 + $0x130] sm:$0xff] %vm36, %v313
    %378 = vst.msk [vmem:[#allocation3 + $0x138] sm:$0xff] %vm36, %v314
    %379 = vst.msk [vmem:[#allocation3 + $0x140] sm:$0xff] %vm36, %v315
    %380 = vst.msk [vmem:[#allocation3 + $0x148] sm:$0xff] %vm36, %v316
    %381 = vst.msk [vmem:[#allocation3 + $0x150] sm:$0xff] %vm36, %v317
    %382 = vst.msk [vmem:[#allocation3 + $0x158] sm:$0xff] %vm36, %v318
    %383 = vst.msk [vmem:[#allocation3 + $0x160] sm:$0xff] %vm36, %v319
    %384 = vst.msk [vmem:[#allocation3 + $0x168] sm:$0xff] %vm36, %v320
    %385 = vst.msk [vmem:[#allocation3 + $0x170] sm:$0xff] %vm36, %v321
    %386 = vst.msk [vmem:[#allocation3 + $0x178] sm:$0xff] %vm36, %v322
    %387 = vst.msk [vmem:[#allocation3 + $0x180] sm:$0xff] %vm36, %v323
    %388 = vst.msk [vmem:[#allocation3 + $0x188] sm:$0xff] %vm36, %v324
    %389 = vst.msk [vmem:[#allocation3 + $0x190] sm:$0xff] %vm36, %v325
    %390 = vst.msk [vmem:[#allocation3 + $0x198] sm:$0xff] %vm36, %v326
    %391 = vst.msk [vmem:[#allocation3 + $0x1a0] sm:$0xff] %vm36, %v327
    %392 = vst.msk [vmem:[#allocation3 + $0x1a8] sm:$0xff] %vm36, %v328
    %393 = vst.msk [vmem:[#allocation3 + $0x1b0] sm:$0xff] %vm36, %v329
    %394 = vst.msk [vmem:[#allocation3 + $0x1b8] sm:$0xff] %vm36, %v330
    %395 = vst.msk [vmem:[#allocation3 + $0x1c0] sm:$0xff] %vm36, %v331
    %396 = vst.msk [vmem:[#allocation3 + $0x1c8] sm:$0xff] %vm36, %v332
    %397 = vst.msk [vmem:[#allocation3 + $0x1d0] sm:$0xff] %vm36, %v333
    %398 = vst.msk [vmem:[#allocation3 + $0x1d8] sm:$0xff] %vm36, %v334
    %399 = vst.msk [vmem:[#allocation3 + $0x1e0] sm:$0xff] %vm36, %v335
    %400 = vst.msk [vmem:[#allocation3 + $0x1e8] sm:$0xff] %vm36, %v336
    %401 = vst.msk [vmem:[#allocation3 + $0x1f0] sm:$0xff] %vm36, %v337
    %402 = vst.msk [vmem:[#allocation3 + $0x1f8] sm:$0xff] %vm36, %v338
    %v403 = vld [vmem:[#allocation2 + $0x1] sm:$0xff]
    %v404 = vld [vmem:[#allocation2 + $0x9] sm:$0xff]
    %v405 = vld [vmem:[#allocation2 + $0x19] sm:$0xff]
    %v406 = vld [vmem:[#allocation2 + $0x21] sm:$0xff]
    %v407 = vld [vmem:[#allocation2 + $0x31] sm:$0xff]
    %v408 = vld [vmem:[#allocation2 + $0x39] sm:$0xff]
    %v409 = vld [vmem:[#allocation2 + $0x49] sm:$0xff]
    %v410 = vld [vmem:[#allocation2 + $0x51] sm:$0xff]
    %v411 = vld [vmem:[#allocation2 + $0x61] sm:$0xff]
    %v412 = vld [vmem:[#allocation2 + $0x69] sm:$0xff]
    %v413 = vld [vmem:[#allocation2 + $0x79] sm:$0xff]
    %v414 = vld [vmem:[#allocation2 + $0x81] sm:$0xff]
    %v415 = vld [vmem:[#allocation2 + $0x91] sm:$0xff]
    %v416 = vld [vmem:[#allocation2 + $0x99] sm:$0xff]
    %v417 = vld [vmem:[#allocation2 + $0xa9] sm:$0xff]
    %v418 = vld [vmem:[#allocation2 + $0xb1] sm:$0xff]
    %v419 = vld [vmem:[#allocation2 + $0xc1] sm:$0xff]
    %v420 = vld [vmem:[#allocation2 + $0xc9] sm:$0xff]
    %v421 = vld [vmem:[#allocation2 + $0xd9] sm:$0xff]
    %v422 = vld [vmem:[#allocation2 + $0xe1] sm:$0xff]
    %v423 = vld [vmem:[#allocation2 + $0xf1] sm:$0xff]
    %v424 = vld [vmem:[#allocation2 + $0xf9] sm:$0xff]
    %v425 = vld [vmem:[#allocation2 + $0x109] sm:$0xff]
    %v426 = vld [vmem:[#allocation2 + $0x111] sm:$0xff]
    %v427 = vld [vmem:[#allocation2 + $0x121] sm:$0xff]
    %v428 = vld [vmem:[#allocation2 + $0x129] sm:$0xff]
    %v429 = vld [vmem:[#allocation2 + $0x139] sm:$0xff]
    %v430 = vld [vmem:[#allocation2 + $0x141] sm:$0xff]
    %v431 = vld [vmem:[#allocation2 + $0x151] sm:$0xff]
    %v432 = vld [vmem:[#allocation2 + $0x159] sm:$0xff]
    %v433 = vld [vmem:[#allocation2 + $0x169] sm:$0xff]
    %v434 = vld [vmem:[#allocation2 + $0x171] sm:$0xff]
    %v435 = vld [vmem:[#allocation2 + $0x1b1] sm:$0xff]
    %v436 = vld [vmem:[#allocation2 + $0x1b9] sm:$0xff]
    %v437 = vld [vmem:[#allocation2 + $0x1c9] sm:$0xff]
    %v438 = vld [vmem:[#allocation2 + $0x1d1] sm:$0xff]
    %v439 = vld [vmem:[#allocation2 + $0x1e1] sm:$0xff]
    %v440 = vld [vmem:[#allocation2 + $0x1e9] sm:$0xff]
    %v441 = vld [vmem:[#allocation2 + $0x1f9] sm:$0xff]
    %v442 = vld [vmem:[#allocation2 + $0x201] sm:$0xff]
    %v443 = vld [vmem:[#allocation2 + $0x211] sm:$0xff]
    %v444 = vld [vmem:[#allocation2 + $0x219] sm:$0xff]
    %v445 = vld [vmem:[#allocation2 + $0x229] sm:$0xff]
    %v446 = vld [vmem:[#allocation2 + $0x231] sm:$0xff]
    %v447 = vld [vmem:[#allocation2 + $0x241] sm:$0xff]
    %v448 = vld [vmem:[#allocation2 + $0x249] sm:$0xff]
    %v449 = vld [vmem:[#allocation2 + $0x259] sm:$0xff]
    %v450 = vld [vmem:[#allocation2 + $0x261] sm:$0xff]
    %v451 = vld [vmem:[#allocation2 + $0x271] sm:$0xff]
    %v452 = vld [vmem:[#allocation2 + $0x279] sm:$0xff]
    %v453 = vld [vmem:[#allocation2 + $0x289] sm:$0xff]
    %v454 = vld [vmem:[#allocation2 + $0x291] sm:$0xff]
    %v455 = vld [vmem:[#allocation2 + $0x2a1] sm:$0xff]
    %v456 = vld [vmem:[#allocation2 + $0x2a9] sm:$0xff]
    %v457 = vld [vmem:[#allocation2 + $0x2b9] sm:$0xff]
    %v458 = vld [vmem:[#allocation2 + $0x2c1] sm:$0xff]
    %v459 = vld [vmem:[#allocation2 + $0x2d1] sm:$0xff]
    %v460 = vld [vmem:[#allocation2 + $0x2d9] sm:$0xff]
    %v461 = vld [vmem:[#allocation2 + $0x2e9] sm:$0xff]
    %v462 = vld [vmem:[#allocation2 + $0x2f1] sm:$0xff]
    %v463 = vld [vmem:[#allocation2 + $0x301] sm:$0xff]
    %v464 = vld [vmem:[#allocation2 + $0x309] sm:$0xff]
    %v465 = vld [vmem:[#allocation2 + $0x319] sm:$0xff]
    %v466 = vld [vmem:[#allocation2 + $0x321] sm:$0xff]
    %531 = vrot.lane.b32.xlu0 %v403, 4
    %v532 = vpop.permute.xlu0 %531
    %533 = vrot.lane.b32.xlu0 %v404, 4
    %v534 = vpop.permute.xlu0 %533
    %535 = vrot.lane.b32.xlu0 %v405, 4
    %v536 = vpop.permute.xlu0 %535
    %537 = vrot.lane.b32.xlu0 %v406, 4
    %v538 = vpop.permute.xlu0 %537
    %539 = vrot.lane.b32.xlu0 %v407, 4
    %v540 = vpop.permute.xlu0 %539
    %541 = vrot.lane.b32.xlu0 %v408, 4
    %v542 = vpop.permute.xlu0 %541
    %543 = vrot.lane.b32.xlu0 %v409, 4
    %v544 = vpop.permute.xlu0 %543
    %545 = vrot.lane.b32.xlu0 %v410, 4
    %v546 = vpop.permute.xlu0 %545
    %547 = vrot.lane.b32.xlu0 %v411, 4
    %v548 = vpop.permute.xlu0 %547
    %549 = vrot.lane.b32.xlu0 %v412, 4
    %v550 = vpop.permute.xlu0 %549
    %551 = vrot.lane.b32.xlu0 %v413, 4
    %v552 = vpop.permute.xlu0 %551
    %553 = vrot.lane.b32.xlu0 %v414, 4
    %v554 = vpop.permute.xlu0 %553
    %555 = vrot.lane.b32.xlu0 %v415, 4
    %v556 = vpop.permute.xlu0 %555
    %557 = vrot.lane.b32.xlu0 %v416, 4
    %v558 = vpop.permute.xlu0 %557
    %559 = vrot.lane.b32.xlu0 %v417, 4
    %v560 = vpop.permute.xlu0 %559
    %561 = vrot.lane.b32.xlu0 %v418, 4
    %v562 = vpop.permute.xlu0 %561
    %563 = vrot.lane.b32.xlu0 %v419, 4
    %v564 = vpop.permute.xlu0 %563
    %565 = vrot.lane.b32.xlu0 %v420, 4
    %v566 = vpop.permute.xlu0 %565
    %567 = vrot.lane.b32.xlu0 %v421, 4
    %v568 = vpop.permute.xlu0 %567
    %569 = vrot.lane.b32.xlu0 %v422, 4
    %v570 = vpop.permute.xlu0 %569
    %571 = vrot.lane.b32.xlu0 %v423, 4
    %v572 = vpop.permute.xlu0 %571
    %573 = vrot.lane.b32.xlu0 %v424, 4
    %v574 = vpop.permute.xlu0 %573
    %575 = vrot.lane.b32.xlu0 %v425, 4
    %v576 = vpop.permute.xlu0 %575
    %577 = vrot.lane.b32.xlu0 %v426, 4
    %v578 = vpop.permute.xlu0 %577
    %579 = vrot.lane.b32.xlu0 %v427, 4
    %v580 = vpop.permute.xlu0 %579
    %581 = vrot.lane.b32.xlu0 %v428, 4
    %v582 = vpop.permute.xlu0 %581
    %583 = vrot.lane.b32.xlu0 %v429, 4
    %v584 = vpop.permute.xlu0 %583
    %585 = vrot.lane.b32.xlu0 %v430, 4
    %v586 = vpop.permute.xlu0 %585
    %587 = vrot.lane.b32.xlu0 %v431, 4
    %v588 = vpop.permute.xlu0 %587
    %589 = vrot.lane.b32.xlu0 %v432, 4
    %v590 = vpop.permute.xlu0 %589
    %591 = vrot.lane.b32.xlu0 %v433, 4
    %v592 = vpop.permute.xlu0 %591
    %593 = vrot.lane.b32.xlu0 %v434, 4
    %v594 = vpop.permute.xlu0 %593
    %595 = vrot.lane.b32.xlu0 %v435, 4
    %v596 = vpop.permute.xlu0 %595
    %597 = vrot.lane.b32.xlu0 %v436, 4
    %v598 = vpop.permute.xlu0 %597
    %599 = vrot.lane.b32.xlu0 %v437, 4
    %v600 = vpop.permute.xlu0 %599
    %601 = vrot.lane.b32.xlu0 %v438, 4
    %v602 = vpop.permute.xlu0 %601
    %603 = vrot.lane.b32.xlu0 %v439, 4
    %v604 = vpop.permute.xlu0 %603
    %605 = vrot.lane.b32.xlu0 %v440, 4
    %v606 = vpop.permute.xlu0 %605
    %607 = vrot.lane.b32.xlu0 %v441, 4
    %v608 = vpop.permute.xlu0 %607
    %609 = vrot.lane.b32.xlu0 %v442, 4
    %v610 = vpop.permute.xlu0 %609
    %611 = vrot.lane.b32.xlu0 %v443, 4
    %v612 = vpop.permute.xlu0 %611
    %613 = vrot.lane.b32.xlu0 %v444, 4
    %v614 = vpop.permute.xlu0 %613
    %615 = vrot.lane.b32.xlu0 %v445, 4
    %v616 = vpop.permute.xlu0 %615
    %617 = vrot.lane.b32.xlu0 %v446, 4
    %v618 = vpop.permute.xlu0 %617
    %619 = vrot.lane.b32.xlu0 %v447, 4
    %v620 = vpop.permute.xlu0 %619
    %621 = vrot.lane.b32.xlu0 %v448, 4
    %v622 = vpop.permute.xlu0 %621
    %623 = vrot.lane.b32.xlu0 %v449, 4
    %v624 = vpop.permute.xlu0 %623
    %625 = vrot.lane.b32.xlu0 %v450, 4
    %v626 = vpop.permute.xlu0 %625
    %627 = vrot.lane.b32.xlu0 %v451, 4
    %v628 = vpop.permute.xlu0 %627
    %629 = vrot.lane.b32.xlu0 %v452, 4
    %v630 = vpop.permute.xlu0 %629
    %631 = vrot.lane.b32.xlu0 %v453, 4
    %v632 = vpop.permute.xlu0 %631
    %633 = vrot.lane.b32.xlu0 %v454, 4
    %v634 = vpop.permute.xlu0 %633
    %635 = vrot.lane.b32.xlu0 %v455, 4
    %v636 = vpop.permute.xlu0 %635
    %637 = vrot.lane.b32.xlu0 %v456, 4
    %v638 = vpop.permute.xlu0 %637
    %639 = vrot.lane.b32.xlu0 %v457, 4
    %v640 = vpop.permute.xlu0 %639
    %641 = vrot.lane.b32.xlu0 %v458, 4
    %v642 = vpop.permute.xlu0 %641
    %643 = vrot.lane.b32.xlu0 %v459, 4
    %v644 = vpop.permute.xlu0 %643
    %645 = vrot.lane.b32.xlu0 %v460, 4
    %v646 = vpop.permute.xlu0 %645
    %647 = vrot.lane.b32.xlu0 %v461, 4
    %v648 = vpop.permute.xlu0 %647
    %649 = vrot.lane.b32.xlu0 %v462, 4
    %v650 = vpop.permute.xlu0 %649
    %651 = vrot.lane.b32.xlu0 %v463, 4
    %v652 = vpop.permute.xlu0 %651
    %653 = vrot.lane.b32.xlu0 %v464, 4
    %v654 = vpop.permute.xlu0 %653
    %655 = vrot.lane.b32.xlu0 %v465, 4
    %v656 = vpop.permute.xlu0 %655
    %657 = vrot.lane.b32.xlu0 %v466, 4
    %v658 = vpop.permute.xlu0 %657
    %vm723 = vcmask 64544
    %724 = vst.msk [vmem:[#allocation3] sm:$0xff] %vm723, %v532
    %725 = vst.msk [vmem:[#allocation3 + $0x8] sm:$0xff] %vm723, %v534
    %726 = vst.msk [vmem:[#allocation3 + $0x10] sm:$0xff] %vm723, %v536
    %727 = vst.msk [vmem:[#allocation3 + $0x18] sm:$0xff] %vm723, %v538
    %728 = vst.msk [vmem:[#allocation3 + $0x20] sm:$0xff] %vm723, %v540
    %729 = vst.msk [vmem:[#allocation3 + $0x28] sm:$0xff] %vm723, %v542
    %730 = vst.msk [vmem:[#allocation3 + $0x30] sm:$0xff] %vm723, %v544
    %731 = vst.msk [vmem:[#allocation3 + $0x38] sm:$0xff] %vm723, %v546
    %732 = vst.msk [vmem:[#allocation3 + $0x40] sm:$0xff] %vm723, %v548
    %733 = vst.msk [vmem:[#allocation3 + $0x48] sm:$0xff] %vm723, %v550
    %734 = vst.msk [vmem:[#allocation3 + $0x50] sm:$0xff] %vm723, %v552
    %735 = vst.msk [vmem:[#allocation3 + $0x58] sm:$0xff] %vm723, %v554
    %736 = vst.msk [vmem:[#allocation3 + $0x60] sm:$0xff] %vm723, %v556
    %737 = vst.msk [vmem:[#allocation3 + $0x68] sm:$0xff] %vm723, %v558
    %738 = vst.msk [vmem:[#allocation3 + $0x70] sm:$0xff] %vm723, %v560
    %739 = vst.msk [vmem:[#allocation3 + $0x78] sm:$0xff] %vm723, %v562
    %740 = vst.msk [vmem:[#allocation3 + $0x80] sm:$0xff] %vm723, %v564
    %741 = vst.msk [vmem:[#allocation3 + $0x88] sm:$0xff] %vm723, %v566
    %742 = vst.msk [vmem:[#allocation3 + $0x90] sm:$0xff] %vm723, %v568
    %743 = vst.msk [vmem:[#allocation3 + $0x98] sm:$0xff] %vm723, %v570
    %744 = vst.msk [vmem:[#allocation3 + $0xa0] sm:$0xff] %vm723, %v572
    %745 = vst.msk [vmem:[#allocation3 + $0xa8] sm:$0xff] %vm723, %v574
    %746 = vst.msk [vmem:[#allocation3 + $0xb0] sm:$0xff] %vm723, %v576
    %747 = vst.msk [vmem:[#allocation3 + $0xb8] sm:$0xff] %vm723, %v578
    %748 = vst.msk [vmem:[#allocation3 + $0xc0] sm:$0xff] %vm723, %v580
    %749 = vst.msk [vmem:[#allocation3 + $0xc8] sm:$0xff] %vm723, %v582
    %750 = vst.msk [vmem:[#allocation3 + $0xd0] sm:$0xff] %vm723, %v584
    %751 = vst.msk [vmem:[#allocation3 + $0xd8] sm:$0xff] %vm723, %v586
    %752 = vst.msk [vmem:[#allocation3 + $0xe0] sm:$0xff] %vm723, %v588
    %753 = vst.msk [vmem:[#allocation3 + $0xe8] sm:$0xff] %vm723, %v590
    %754 = vst.msk [vmem:[#allocation3 + $0xf0] sm:$0xff] %vm723, %v592
    %755 = vst.msk [vmem:[#allocation3 + $0xf8] sm:$0xff] %vm723, %v594
    %756 = vst.msk [vmem:[#allocation3 + $0x100] sm:$0xff] %vm723, %v596
    %757 = vst.msk [vmem:[#allocation3 + $0x108] sm:$0xff] %vm723, %v598
    %758 = vst.msk [vmem:[#allocation3 + $0x110] sm:$0xff] %vm723, %v600
    %759 = vst.msk [vmem:[#allocation3 + $0x118] sm:$0xff] %vm723, %v602
    %760 = vst.msk [vmem:[#allocation3 + $0x120] sm:$0xff] %vm723, %v604
    %761 = vst.msk [vmem:[#allocation3 + $0x128] sm:$0xff] %vm723, %v606
    %762 = vst.msk [vmem:[#allocation3 + $0x130] sm:$0xff] %vm723, %v608
    %763 = vst.msk [vmem:[#allocation3 + $0x138] sm:$0xff] %vm723, %v610
    %764 = vst.msk [vmem:[#allocation3 + $0x140] sm:$0xff] %vm723, %v612
    %765 = vst.msk [vmem:[#allocation3 + $0x148] sm:$0xff] %vm723, %v614
    %766 = vst.msk [vmem:[#allocation3 + $0x150] sm:$0xff] %vm723, %v616
    %767 = vst.msk [vmem:[#allocation3 + $0x158] sm:$0xff] %vm723, %v618
    %768 = vst.msk [vmem:[#allocation3 + $0x160] sm:$0xff] %vm723, %v620
    %769 = vst.msk [vmem:[#allocation3 + $0x168] sm:$0xff] %vm723, %v622
    %770 = vst.msk [vmem:[#allocation3 + $0x170] sm:$0xff] %vm723, %v624
    %771 = vst.msk [vmem:[#allocation3 + $0x178] sm:$0xff] %vm723, %v626
    %772 = vst.msk [vmem:[#allocation3 + $0x180] sm:$0xff] %vm723, %v628
    %773 = vst.msk [vmem:[#allocation3 + $0x188] sm:$0xff] %vm723, %v630
    %774 = vst.msk [vmem:[#allocation3 + $0x190] sm:$0xff] %vm723, %v632
    %775 = vst.msk [vmem:[#allocation3 + $0x198] sm:$0xff] %vm723, %v634
    %776 = vst.msk [vmem:[#allocation3 + $0x1a0] sm:$0xff] %vm723, %v636
    %777 = vst.msk [vmem:[#allocation3 + $0x1a8] sm:$0xff] %vm723, %v638
    %778 = vst.msk [vmem:[#allocation3 + $0x1b0] sm:$0xff] %vm723, %v640
    %779 = vst.msk [vmem:[#allocation3 + $0x1b8] sm:$0xff] %vm723, %v642
    %780 = vst.msk [vmem:[#allocation3 + $0x1c0] sm:$0xff] %vm723, %v644
    %781 = vst.msk [vmem:[#allocation3 + $0x1c8] sm:$0xff] %vm723, %v646
    %782 = vst.msk [vmem:[#allocation3 + $0x1d0] sm:$0xff] %vm723, %v648
    %783 = vst.msk [vmem:[#allocation3 + $0x1d8] sm:$0xff] %vm723, %v650
    %784 = vst.msk [vmem:[#allocation3 + $0x1e0] sm:$0xff] %vm723, %v652
    %785 = vst.msk [vmem:[#allocation3 + $0x1e8] sm:$0xff] %vm723, %v654
    %786 = vst.msk [vmem:[#allocation3 + $0x1f0] sm:$0xff] %vm723, %v656
    %787 = vst.msk [vmem:[#allocation3 + $0x1f8] sm:$0xff] %vm723, %v658
    %v788 = vld [vmem:[#allocation2 + $0x2] sm:$0xff]
    %v789 = vld [vmem:[#allocation2 + $0xa] sm:$0xff]
    %v790 = vld [vmem:[#allocation2 + $0x1a] sm:$0xff]
    %v791 = vld [vmem:[#allocation2 + $0x22] sm:$0xff]
    %v792 = vld [vmem:[#allocation2 + $0x32] sm:$0xff]
    %v793 = vld [vmem:[#allocation2 + $0x3a] sm:$0xff]
    %v794 = vld [vmem:[#allocation2 + $0x4a] sm:$0xff]
    %v795 = vld [vmem:[#allocation2 + $0x52] sm:$0xff]
    %v796 = vld [vmem:[#allocation2 + $0x62] sm:$0xff]
    %v797 = vld [vmem:[#allocation2 + $0x6a] sm:$0xff]
    %v798 = vld [vmem:[#allocation2 + $0x7a] sm:$0xff]
    %v799 = vld [vmem:[#allocation2 + $0x82] sm:$0xff]
    %v800 = vld [vmem:[#allocation2 + $0x92] sm:$0xff]
    %v801 = vld [vmem:[#allocation2 + $0x9a] sm:$0xff]
    %v802 = vld [vmem:[#allocation2 + $0xaa] sm:$0xff]
    %v803 = vld [vmem:[#allocation2 + $0xb2] sm:$0xff]
    %v804 = vld [vmem:[#allocation2 + $0xc2] sm:$0xff]
    %v805 = vld [vmem:[#allocation2 + $0xca] sm:$0xff]
    %v806 = vld [vmem:[#allocation2 + $0xda] sm:$0xff]
    %v807 = vld [vmem:[#allocation2 + $0xe2] sm:$0xff]
    %v808 = vld [vmem:[#allocation2 + $0xf2] sm:$0xff]
    %v809 = vld [vmem:[#allocation2 + $0xfa] sm:$0xff]
    %v810 = vld [vmem:[#allocation2 + $0x10a] sm:$0xff]
    %v811 = vld [vmem:[#allocation2 + $0x112] sm:$0xff]
    %v812 = vld [vmem:[#allocation2 + $0x122] sm:$0xff]
    %v813 = vld [vmem:[#allocation2 + $0x12a] sm:$0xff]
    %v814 = vld [vmem:[#allocation2 + $0x13a] sm:$0xff]
    %v815 = vld [vmem:[#allocation2 + $0x142] sm:$0xff]
    %v816 = vld [vmem:[#allocation2 + $0x152] sm:$0xff]
    %v817 = vld [vmem:[#allocation2 + $0x15a] sm:$0xff]
    %v818 = vld [vmem:[#allocation2 + $0x16a] sm:$0xff]
    %v819 = vld [vmem:[#allocation2 + $0x172] sm:$0xff]
    %v820 = vld [vmem:[#allocation2 + $0x1b2] sm:$0xff]
    %v821 = vld [vmem:[#allocation2 + $0x1ba] sm:$0xff]
    %v822 = vld [vmem:[#allocation2 + $0x1ca] sm:$0xff]
    %v823 = vld [vmem:[#allocation2 + $0x1d2] sm:$0xff]
    %v824 = vld [vmem:[#allocation2 + $0x1e2] sm:$0xff]
    %v825 = vld [vmem:[#allocation2 + $0x1ea] sm:$0xff]
    %v826 = vld [vmem:[#allocation2 + $0x1fa] sm:$0xff]
    %v827 = vld [vmem:[#allocation2 + $0x202] sm:$0xff]
    %v828 = vld [vmem:[#allocation2 + $0x212] sm:$0xff]
    %v829 = vld [vmem:[#allocation2 + $0x21a] sm:$0xff]
    %v830 = vld [vmem:[#allocation2 + $0x22a] sm:$0xff]
    %v831 = vld [vmem:[#allocation2 + $0x232] sm:$0xff]
    %v832 = vld [vmem:[#allocation2 + $0x242] sm:$0xff]
    %v833 = vld [vmem:[#allocation2 + $0x24a] sm:$0xff]
    %v834 = vld [vmem:[#allocation2 + $0x25a] sm:$0xff]
    %v835 = vld [vmem:[#allocation2 + $0x262] sm:$0xff]
    %v836 = vld [vmem:[#allocation2 + $0x272] sm:$0xff]
    %v837 = vld [vmem:[#allocation2 + $0x27a] sm:$0xff]
    %v838 = vld [vmem:[#allocation2 + $0x28a] sm:$0xff]
    %v839 = vld [vmem:[#allocation2 + $0x292] sm:$0xff]
    %v840 = vld [vmem:[#allocation2 + $0x2a2] sm:$0xff]
    %v841 = vld [vmem:[#allocation2 + $0x2aa] sm:$0xff]
    %v842 = vld [vmem:[#allocation2 + $0x2ba] sm:$0xff]
    %v843 = vld [vmem:[#allocation2 + $0x2c2] sm:$0xff]
    %v844 = vld [vmem:[#allocation2 + $0x2d2] sm:$0xff]
    %v845 = vld [vmem:[#allocation2 + $0x2da] sm:$0xff]
    %v846 = vld [vmem:[#allocation2 + $0x2ea] sm:$0xff]
    %v847 = vld [vmem:[#allocation2 + $0x2f2] sm:$0xff]
    %v848 = vld [vmem:[#allocation2 + $0x302] sm:$0xff]
    %v849 = vld [vmem:[#allocation2 + $0x30a] sm:$0xff]
    %v850 = vld [vmem:[#allocation2 + $0x31a] sm:$0xff]
    %v851 = vld [vmem:[#allocation2 + $0x322] sm:$0xff]
    %916 = vrot.lane.b32.xlu0 %v788, 8
    %v917 = vpop.permute.xlu0 %916
    %918 = vrot.lane.b32.xlu0 %v789, 8
    %v919 = vpop.permute.xlu0 %918
    %920 = vrot.lane.b32.xlu0 %v790, 8
    %v921 = vpop.permute.xlu0 %920
    %922 = vrot.lane.b32.xlu0 %v791, 8
    %v923 = vpop.permute.xlu0 %922
    %924 = vrot.lane.b32.xlu0 %v792, 8
    %v925 = vpop.permute.xlu0 %924
    %926 = vrot.lane.b32.xlu0 %v793, 8
    %v927 = vpop.permute.xlu0 %926
    %928 = vrot.lane.b32.xlu0 %v794, 8
    %v929 = vpop.permute.xlu0 %928
    %930 = vrot.lane.b32.xlu0 %v795, 8
    %v931 = vpop.permute.xlu0 %930
    %932 = vrot.lane.b32.xlu0 %v796, 8
    %v933 = vpop.permute.xlu0 %932
    %934 = vrot.lane.b32.xlu0 %v797, 8
    %v935 = vpop.permute.xlu0 %934
    %936 = vrot.lane.b32.xlu0 %v798, 8
    %v937 = vpop.permute.xlu0 %936
    %938 = vrot.lane.b32.xlu0 %v799, 8
    %v939 = vpop.permute.xlu0 %938
    %940 = vrot.lane.b32.xlu0 %v800, 8
    %v941 = vpop.permute.xlu0 %940
    %942 = vrot.lane.b32.xlu0 %v801, 8
    %v943 = vpop.permute.xlu0 %942
    %944 = vrot.lane.b32.xlu0 %v802, 8
    %v945 = vpop.permute.xlu0 %944
    %946 = vrot.lane.b32.xlu0 %v803, 8
    %v947 = vpop.permute.xlu0 %946
    %948 = vrot.lane.b32.xlu0 %v804, 8
    %v949 = vpop.permute.xlu0 %948
    %950 = vrot.lane.b32.xlu0 %v805, 8
    %v951 = vpop.permute.xlu0 %950
    %952 = vrot.lane.b32.xlu0 %v806, 8
    %v953 = vpop.permute.xlu0 %952
    %954 = vrot.lane.b32.xlu0 %v807, 8
    %v955 = vpop.permute.xlu0 %954
    %956 = vrot.lane.b32.xlu0 %v808, 8
    %v957 = vpop.permute.xlu0 %956
    %958 = vrot.lane.b32.xlu0 %v809, 8
    %v959 = vpop.permute.xlu0 %958
    %960 = vrot.lane.b32.xlu0 %v810, 8
    %v961 = vpop.permute.xlu0 %960
    %962 = vrot.lane.b32.xlu0 %v811, 8
    %v963 = vpop.permute.xlu0 %962
    %964 = vrot.lane.b32.xlu0 %v812, 8
    %v965 = vpop.permute.xlu0 %964
    %966 = vrot.lane.b32.xlu0 %v813, 8
    %v967 = vpop.permute.xlu0 %966
    %968 = vrot.lane.b32.xlu0 %v814, 8
    %v969 = vpop.permute.xlu0 %968
    %970 = vrot.lane.b32.xlu0 %v815, 8
    %v971 = vpop.permute.xlu0 %970
    %972 = vrot.lane.b32.xlu0 %v816, 8
    %v973 = vpop.permute.xlu0 %972
    %974 = vrot.lane.b32.xlu0 %v817, 8
    %v975 = vpop.permute.xlu0 %974
    %976 = vrot.lane.b32.xlu0 %v818, 8
    %v977 = vpop.permute.xlu0 %976
    %978 = vrot.lane.b32.xlu0 %v819, 8
    %v979 = vpop.permute.xlu0 %978
    %980 = vrot.lane.b32.xlu0 %v820, 8
    %v981 = vpop.permute.xlu0 %980
    %982 = vrot.lane.b32.xlu0 %v821, 8
    %v983 = vpop.permute.xlu0 %982
    %984 = vrot.lane.b32.xlu0 %v822, 8
    %v985 = vpop.permute.xlu0 %984
    %986 = vrot.lane.b32.xlu0 %v823, 8
    %v987 = vpop.permute.xlu0 %986
    %988 = vrot.lane.b32.xlu0 %v824, 8
    %v989 = vpop.permute.xlu0 %988
    %990 = vrot.lane.b32.xlu0 %v825, 8
    %v991 = vpop.permute.xlu0 %990
    %992 = vrot.lane.b32.xlu0 %v826, 8
    %v993 = vpop.permute.xlu0 %992
    %994 = vrot.lane.b32.xlu0 %v827, 8
    %v995 = vpop.permute.xlu0 %994
    %996 = vrot.lane.b32.xlu0 %v828, 8
    %v997 = vpop.permute.xlu0 %996
    %998 = vrot.lane.b32.xlu0 %v829, 8
    %v999 = vpop.permute.xlu0 %998
    %1000 = vrot.lane.b32.xlu0 %v830, 8
    %v1001 = vpop.permute.xlu0 %1000
    %1002 = vrot.lane.b32.xlu0 %v831, 8
    %v1003 = vpop.permute.xlu0 %1002
    %1004 = vrot.lane.b32.xlu0 %v832, 8
    %v1005 = vpop.permute.xlu0 %1004
    %1006 = vrot.lane.b32.xlu0 %v833, 8
    %v1007 = vpop.permute.xlu0 %1006
    %1008 = vrot.lane.b32.xlu0 %v834, 8
    %v1009 = vpop.permute.xlu0 %1008
    %1010 = vrot.lane.b32.xlu0 %v835, 8
    %v1011 = vpop.permute.xlu0 %1010
    %1012 = vrot.lane.b32.xlu0 %v836, 8
    %v1013 = vpop.permute.xlu0 %1012
    %1014 = vrot.lane.b32.xlu0 %v837, 8
    %v1015 = vpop.permute.xlu0 %1014
    %1016 = vrot.lane.b32.xlu0 %v838, 8
    %v1017 = vpop.permute.xlu0 %1016
    %1018 = vrot.lane.b32.xlu0 %v839, 8
    %v1019 = vpop.permute.xlu0 %1018
    %1020 = vrot.lane.b32.xlu0 %v840, 8
    %v1021 = vpop.permute.xlu0 %1020
    %1022 = vrot.lane.b32.xlu0 %v841, 8
    %v1023 = vpop.permute.xlu0 %1022
    %1024 = vrot.lane.b32.xlu0 %v842, 8
    %v1025 = vpop.permute.xlu0 %1024
    %1026 = vrot.lane.b32.xlu0 %v843, 8
    %v1027 = vpop.permute.xlu0 %1026
    %1028 = vrot.lane.b32.xlu0 %v844, 8
    %v1029 = vpop.permute.xlu0 %1028
    %1030 = vrot.lane.b32.xlu0 %v845, 8
    %v1031 = vpop.permute.xlu0 %1030
    %1032 = vrot.lane.b32.xlu0 %v846, 8
    %v1033 = vpop.permute.xlu0 %1032
    %1034 = vrot.lane.b32.xlu0 %v847, 8
    %v1035 = vpop.permute.xlu0 %1034
    %1036 = vrot.lane.b32.xlu0 %v848, 8
    %v1037 = vpop.permute.xlu0 %1036
    %1038 = vrot.lane.b32.xlu0 %v849, 8
    %v1039 = vpop.permute.xlu0 %1038
    %1040 = vrot.lane.b32.xlu0 %v850, 8
    %v1041 = vpop.permute.xlu0 %1040
    %1042 = vrot.lane.b32.xlu0 %v851, 8
    %v1043 = vpop.permute.xlu0 %1042
    %vm1108 = vcmask 97344
    %1109 = vst.msk [vmem:[#allocation3] sm:$0xff] %vm1108, %v917
    %1110 = vst.msk [vmem:[#allocation3 + $0x8] sm:$0xff] %vm1108, %v919
    %1111 = vst.msk [vmem:[#allocation3 + $0x10] sm:$0xff] %vm1108, %v921
    %1112 = vst.msk [vmem:[#allocation3 + $0x18] sm:$0xff] %vm1108, %v923
    %1113 = vst.msk [vmem:[#allocation3 + $0x20] sm:$0xff] %vm1108, %v925
    %1114 = vst.msk [vmem:[#allocation3 + $0x28] sm:$0xff] %vm1108, %v927
    %1115 = vst.msk [vmem:[#allocation3 + $0x30] sm:$0xff] %vm1108, %v929
    %1116 = vst.msk [vmem:[#allocation3 + $0x38] sm:$0xff] %vm1108, %v931
    %1117 = vst.msk [vmem:[#allocation3 + $0x40] sm:$0xff] %vm1108, %v933
    %1118 = vst.msk [vmem:[#allocation3 + $0x48] sm:$0xff] %vm1108, %v935
    %1119 = vst.msk [vmem:[#allocation3 + $0x50] sm:$0xff] %vm1108, %v937
    %1120 = vst.msk [vmem:[#allocation3 + $0x58] sm:$0xff] %vm1108, %v939
    %1121 = vst.msk [vmem:[#allocation3 + $0x60] sm:$0xff] %vm1108, %v941
    %1122 = vst.msk [vmem:[#allocation3 + $0x68] sm:$0xff] %vm1108, %v943
    %1123 = vst.msk [vmem:[#allocation3 + $0x70] sm:$0xff] %vm1108, %v945
    %1124 = vst.msk [vmem:[#allocation3 + $0x78] sm:$0xff] %vm1108, %v947
    %1125 = vst.msk [vmem:[#allocation3 + $0x80] sm:$0xff] %vm1108, %v949
    %1126 = vst.msk [vmem:[#allocation3 + $0x88] sm:$0xff] %vm1108, %v951
    %1127 = vst.msk [vmem:[#allocation3 + $0x90] sm:$0xff] %vm1108, %v953
    %1128 = vst.msk [vmem:[#allocation3 + $0x98] sm:$0xff] %vm1108, %v955
    %1129 = vst.msk [vmem:[#allocation3 + $0xa0] sm:$0xff] %vm1108, %v957
    %1130 = vst.msk [vmem:[#allocation3 + $0xa8] sm:$0xff] %vm1108, %v959
    %1131 = vst.msk [vmem:[#allocation3 + $0xb0] sm:$0xff] %vm1108, %v961
    %1132 = vst.msk [vmem:[#allocation3 + $0xb8] sm:$0xff] %vm1108, %v963
    %1133 = vst.msk [vmem:[#allocation3 + $0xc0] sm:$0xff] %vm1108, %v965
    %1134 = vst.msk [vmem:[#allocation3 + $0xc8] sm:$0xff] %vm1108, %v967
    %1135 = vst.msk [vmem:[#allocation3 + $0xd0] sm:$0xff] %vm1108, %v969
    %1136 = vst.msk [vmem:[#allocation3 + $0xd8] sm:$0xff] %vm1108, %v971
    %1137 = vst.msk [vmem:[#allocation3 + $0xe0] sm:$0xff] %vm1108, %v973
    %1138 = vst.msk [vmem:[#allocation3 + $0xe8] sm:$0xff] %vm1108, %v975
    %1139 = vst.msk [vmem:[#allocation3 + $0xf0] sm:$0xff] %vm1108, %v977
    %1140 = vst.msk [vmem:[#allocation3 + $0xf8] sm:$0xff] %vm1108, %v979
    %1141 = vst.msk [vmem:[#allocation3 + $0x100] sm:$0xff] %vm1108, %v981
    %1142 = vst.msk [vmem:[#allocation3 + $0x108] sm:$0xff] %vm1108, %v983
    %1143 = vst.msk [vmem:[#allocation3 + $0x110] sm:$0xff] %vm1108, %v985
    %1144 = vst.msk [vmem:[#allocation3 + $0x118] sm:$0xff] %vm1108, %v987
    %1145 = vst.msk [vmem:[#allocation3 + $0x120] sm:$0xff] %vm1108, %v989
    %1146 = vst.msk [vmem:[#allocation3 + $0x128] sm:$0xff] %vm1108, %v991
    %1147 = vst.msk [vmem:[#allocation3 + $0x130] sm:$0xff] %vm1108, %v993
    %1148 = vst.msk [vmem:[#allocation3 + $0x138] sm:$0xff] %vm1108, %v995
    %1149 = vst.msk [vmem:[#allocation3 + $0x140] sm:$0xff] %vm1108, %v997
    %1150 = vst.msk [vmem:[#allocation3 + $0x148] sm:$0xff] %vm1108, %v999
    %1151 = vst.msk [vmem:[#allocation3 + $0x150] sm:$0xff] %vm1108, %v1001
    %1152 = vst.msk [vmem:[#allocation3 + $0x158] sm:$0xff] %vm1108, %v1003
    %1153 = vst.msk [vmem:[#allocation3 + $0x160] sm:$0xff] %vm1108, %v1005
    %1154 = vst.msk [vmem:[#allocation3 + $0x168] sm:$0xff] %vm1108, %v1007
    %1155 = vst.msk [vmem:[#allocation3 + $0x170] sm:$0xff] %vm1108, %v1009
    %1156 = vst.msk [vmem:[#allocation3 + $0x178] sm:$0xff] %vm1108, %v1011
    %1157 = vst.msk [vmem:[#allocation3 + $0x180] sm:$0xff] %vm1108, %v1013
    %1158 = vst.msk [vmem:[#allocation3 + $0x188] sm:$0xff] %vm1108, %v1015
    %1159 = vst.msk [vmem:[#allocation3 + $0x190] sm:$0xff] %vm1108, %v1017
    %1160 = vst.msk [vmem:[#allocation3 + $0x198] sm:$0xff] %vm1108, %v1019
    %1161 = vst.msk [vmem:[#allocation3 + $0x1a0] sm:$0xff] %vm1108, %v1021
    %1162 = vst.msk [vmem:[#allocation3 + $0x1a8] sm:$0xff] %vm1108, %v1023
    %1163 = vst.msk [vmem:[#allocation3 + $0x1b0] sm:$0xff] %vm1108, %v1025
    %1164 = vst.msk [vmem:[#allocation3 + $0x1b8] sm:$0xff] %vm1108, %v1027
    %1165 = vst.msk [vmem:[#allocation3 + $0x1c0] sm:$0xff] %vm1108, %v1029
    %1166 = vst.msk [vmem:[#allocation3 + $0x1c8] sm:$0xff] %vm1108, %v1031
    %1167 = vst.msk [vmem:[#allocation3 + $0x1d0] sm:$0xff] %vm1108, %v1033
    %1168 = vst.msk [vmem:[#allocation3 + $0x1d8] sm:$0xff] %vm1108, %v1035
    %1169 = vst.msk [vmem:[#allocation3 + $0x1e0] sm:$0xff] %vm1108, %v1037
    %1170 = vst.msk [vmem:[#allocation3 + $0x1e8] sm:$0xff] %vm1108, %v1039
    %1171 = vst.msk [vmem:[#allocation3 + $0x1f0] sm:$0xff] %vm1108, %v1041
    %1172 = vst.msk [vmem:[#allocation3 + $0x1f8] sm:$0xff] %vm1108, %v1043
    %v1173 = vld [vmem:[%s210] sm:$0xff]
    %v1174 = vld [vmem:[%s210 + $0x8] sm:$0xff]
    %v1175 = vld [vmem:[%s210 + $0x18] sm:$0xff]
    %v1176 = vld [vmem:[%s210 + $0x20] sm:$0xff]
    %v1177 = vld [vmem:[%s210 + $0x30] sm:$0xff]
    %v1178 = vld [vmem:[%s210 + $0x38] sm:$0xff]
    %v1179 = vld [vmem:[%s210 + $0x48] sm:$0xff]
    %v1180 = vld [vmem:[%s210 + $0x50] sm:$0xff]
    %v1181 = vld [vmem:[%s210 + $0x60] sm:$0xff]
    %v1182 = vld [vmem:[%s210 + $0x68] sm:$0xff]
    %v1183 = vld [vmem:[%s210 + $0x78] sm:$0xff]
    %v1184 = vld [vmem:[%s210 + $0x80] sm:$0xff]
    %v1185 = vld [vmem:[%s210 + $0x90] sm:$0xff]
    %v1186 = vld [vmem:[%s210 + $0x98] sm:$0xff]
    %v1187 = vld [vmem:[%s210 + $0xa8] sm:$0xff]
    %v1188 = vld [vmem:[%s210 + $0xb0] sm:$0xff]
    %v1189 = vld [vmem:[%s210 + $0xc0] sm:$0xff]
    %v1190 = vld [vmem:[%s210 + $0xc8] sm:$0xff]
    %v1191 = vld [vmem:[%s210 + $0xd8] sm:$0xff]
    %v1192 = vld [vmem:[%s210 + $0xe0] sm:$0xff]
    %v1193 = vld [vmem:[%s210 + $0xf0] sm:$0xff]
    %v1194 = vld [vmem:[%s210 + $0xf8] sm:$0xff]
    %v1195 = vld [vmem:[%s210 + $0x108] sm:$0xff]
    %v1196 = vld [vmem:[%s210 + $0x110] sm:$0xff]
    %v1197 = vld [vmem:[%s210 + $0x120] sm:$0xff]
    %v1198 = vld [vmem:[%s210 + $0x128] sm:$0xff]
    %v1199 = vld [vmem:[%s210 + $0x138] sm:$0xff]
    %v1200 = vld [vmem:[%s210 + $0x140] sm:$0xff]
    %v1201 = vld [vmem:[%s210 + $0x150] sm:$0xff]
    %v1202 = vld [vmem:[%s210 + $0x158] sm:$0xff]
    %v1203 = vld [vmem:[%s210 + $0x168] sm:$0xff]
    %v1204 = vld [vmem:[%s210 + $0x170] sm:$0xff]
    %v1205 = vld [vmem:[%s210 + $0x1b0] sm:$0xff]
    %v1206 = vld [vmem:[%s210 + $0x1b8] sm:$0xff]
    %v1207 = vld [vmem:[%s210 + $0x1c8] sm:$0xff]
    %v1208 = vld [vmem:[%s210 + $0x1d0] sm:$0xff]
    %v1209 = vld [vmem:[%s210 + $0x1e0] sm:$0xff]
    %v1210 = vld [vmem:[%s210 + $0x1e8] sm:$0xff]
    %v1211 = vld [vmem:[%s210 + $0x1f8] sm:$0xff]
    %v1212 = vld [vmem:[%s210 + $0x200] sm:$0xff]
    %v1213 = vld [vmem:[%s210 + $0x210] sm:$0xff]
    %v1214 = vld [vmem:[%s210 + $0x218] sm:$0xff]
    %v1215 = vld [vmem:[%s210 + $0x228] sm:$0xff]
    %v1216 = vld [vmem:[%s210 + $0x230] sm:$0xff]
    %v1217 = vld [vmem:[%s210 + $0x240] sm:$0xff]
    %v1218 = vld [vmem:[%s210 + $0x248] sm:$0xff]
    %v1219 = vld [vmem:[%s210 + $0x258] sm:$0xff]
    %v1220 = vld [vmem:[%s210 + $0x260] sm:$0xff]
    %v1221 = vld [vmem:[%s210 + $0x270] sm:$0xff]
    %v1222 = vld [vmem:[%s210 + $0x278] sm:$0xff]
    %v1223 = vld [vmem:[%s210 + $0x288] sm:$0xff]
    %v1224 = vld [vmem:[%s210 + $0x290] sm:$0xff]
    %v1225 = vld [vmem:[%s210 + $0x2a0] sm:$0xff]
    %v1226 = vld [vmem:[%s210 + $0x2a8] sm:$0xff]
    %v1227 = vld [vmem:[%s210 + $0x2b8] sm:$0xff]
    %v1228 = vld [vmem:[%s210 + $0x2c0] sm:$0xff]
    %v1229 = vld [vmem:[%s210 + $0x2d0] sm:$0xff]
    %v1230 = vld [vmem:[%s210 + $0x2d8] sm:$0xff]
    %v1231 = vld [vmem:[%s210 + $0x2e8] sm:$0xff]
    %v1232 = vld [vmem:[%s210 + $0x2f0] sm:$0xff]
    %v1233 = vld [vmem:[%s210 + $0x300] sm:$0xff]
    %v1234 = vld [vmem:[%s210 + $0x308] sm:$0xff]
    %v1235 = vld [vmem:[%s210 + $0x318] sm:$0xff]
    %v1236 = vld [vmem:[%s210 + $0x320] sm:$0xff]
    %1301 = vrot.lane.b32.xlu0 %v1173, 12
    %v1302 = vpop.permute.xlu0 %1301
    %1303 = vrot.lane.b32.xlu0 %v1174, 12
    %v1304 = vpop.permute.xlu0 %1303
    %1305 = vrot.lane.b32.xlu0 %v1175, 12
    %v1306 = vpop.permute.xlu0 %1305
    %1307 = vrot.lane.b32.xlu0 %v1176, 12
    %v1308 = vpop.permute.xlu0 %1307
    %1309 = vrot.lane.b32.xlu0 %v1177, 12
    %v1310 = vpop.permute.xlu0 %1309
    %1311 = vrot.lane.b32.xlu0 %v1178, 12
    %v1312 = vpop.permute.xlu0 %1311
    %1313 = vrot.lane.b32.xlu0 %v1179, 12
    %v1314 = vpop.permute.xlu0 %1313
    %1315 = vrot.lane.b32.xlu0 %v1180, 12
    %v1316 = vpop.permute.xlu0 %1315
    %1317 = vrot.lane.b32.xlu0 %v1181, 12
    %v1318 = vpop.permute.xlu0 %1317
    %1319 = vrot.lane.b32.xlu0 %v1182, 12
    %v1320 = vpop.permute.xlu0 %1319
    %1321 = vrot.lane.b32.xlu0 %v1183, 12
    %v1322 = vpop.permute.xlu0 %1321
    %1323 = vrot.lane.b32.xlu0 %v1184, 12
    %v1324 = vpop.permute.xlu0 %1323
    %1325 = vrot.lane.b32.xlu0 %v1185, 12
    %v1326 = vpop.permute.xlu0 %1325
    %1327 = vrot.lane.b32.xlu0 %v1186, 12
    %v1328 = vpop.permute.xlu0 %1327
    %1329 = vrot.lane.b32.xlu0 %v1187, 12
    %v1330 = vpop.permute.xlu0 %1329
    %1331 = vrot.lane.b32.xlu0 %v1188, 12
    %v1332 = vpop.permute.xlu0 %1331
    %1333 = vrot.lane.b32.xlu0 %v1189, 12
    %v1334 = vpop.permute.xlu0 %1333
    %1335 = vrot.lane.b32.xlu0 %v1190, 12
    %v1336 = vpop.permute.xlu0 %1335
    %1337 = vrot.lane.b32.xlu0 %v1191, 12
    %v1338 = vpop.permute.xlu0 %1337
    %1339 = vrot.lane.b32.xlu0 %v1192, 12
    %v1340 = vpop.permute.xlu0 %1339
    %1341 = vrot.lane.b32.xlu0 %v1193, 12
    %v1342 = vpop.permute.xlu0 %1341
    %1343 = vrot.lane.b32.xlu0 %v1194, 12
    %v1344 = vpop.permute.xlu0 %1343
    %1345 = vrot.lane.b32.xlu0 %v1195, 12
    %v1346 = vpop.permute.xlu0 %1345
    %1347 = vrot.lane.b32.xlu0 %v1196, 12
    %v1348 = vpop.permute.xlu0 %1347
    %1349 = vrot.lane.b32.xlu0 %v1197, 12
    %v1350 = vpop.permute.xlu0 %1349
    %1351 = vrot.lane.b32.xlu0 %v1198, 12
    %v1352 = vpop.permute.xlu0 %1351
    %1353 = vrot.lane.b32.xlu0 %v1199, 12
    %v1354 = vpop.permute.xlu0 %1353
    %1355 = vrot.lane.b32.xlu0 %v1200, 12
    %v1356 = vpop.permute.xlu0 %1355
    %1357 = vrot.lane.b32.xlu0 %v1201, 12
    %v1358 = vpop.permute.xlu0 %1357
    %1359 = vrot.lane.b32.xlu0 %v1202, 12
    %v1360 = vpop.permute.xlu0 %1359
    %1361 = vrot.lane.b32.xlu0 %v1203, 12
    %v1362 = vpop.permute.xlu0 %1361
    %1363 = vrot.lane.b32.xlu0 %v1204, 12
    %v1364 = vpop.permute.xlu0 %1363
    %1365 = vrot.lane.b32.xlu0 %v1205, 12
    %v1366 = vpop.permute.xlu0 %1365
    %1367 = vrot.lane.b32.xlu0 %v1206, 12
    %v1368 = vpop.permute.xlu0 %1367
    %1369 = vrot.lane.b32.xlu0 %v1207, 12
    %v1370 = vpop.permute.xlu0 %1369
    %1371 = vrot.lane.b32.xlu0 %v1208, 12
    %v1372 = vpop.permute.xlu0 %1371
    %1373 = vrot.lane.b32.xlu0 %v1209, 12
    %v1374 = vpop.permute.xlu0 %1373
    %1375 = vrot.lane.b32.xlu0 %v1210, 12
    %v1376 = vpop.permute.xlu0 %1375
    %1377 = vrot.lane.b32.xlu0 %v1211, 12
    %v1378 = vpop.permute.xlu0 %1377
    %1379 = vrot.lane.b32.xlu0 %v1212, 12
    %v1380 = vpop.permute.xlu0 %1379
    %1381 = vrot.lane.b32.xlu0 %v1213, 12
    %v1382 = vpop.permute.xlu0 %1381
    %1383 = vrot.lane.b32.xlu0 %v1214, 12
    %v1384 = vpop.permute.xlu0 %1383
    %1385 = vrot.lane.b32.xlu0 %v1215, 12
    %v1386 = vpop.permute.xlu0 %1385
    %1387 = vrot.lane.b32.xlu0 %v1216, 12
    %v1388 = vpop.permute.xlu0 %1387
    %1389 = vrot.lane.b32.xlu0 %v1217, 12
    %v1390 = vpop.permute.xlu0 %1389
    %1391 = vrot.lane.b32.xlu0 %v1218, 12
    %v1392 = vpop.permute.xlu0 %1391
    %1393 = vrot.lane.b32.xlu0 %v1219, 12
    %v1394 = vpop.permute.xlu0 %1393
    %1395 = vrot.lane.b32.xlu0 %v1220, 12
    %v1396 = vpop.permute.xlu0 %1395
    %1397 = vrot.lane.b32.xlu0 %v1221, 12
    %v1398 = vpop.permute.xlu0 %1397
    %1399 = vrot.lane.b32.xlu0 %v1222, 12
    %v1400 = vpop.permute.xlu0 %1399
    %1401 = vrot.lane.b32.xlu0 %v1223, 12
    %v1402 = vpop.permute.xlu0 %1401
    %1403 = vrot.lane.b32.xlu0 %v1224, 12
    %v1404 = vpop.permute.xlu0 %1403
    %1405 = vrot.lane.b32.xlu0 %v1225, 12
    %v1406 = vpop.permute.xlu0 %1405
    %1407 = vrot.lane.b32.xlu0 %v1226, 12
    %v1408 = vpop.permute.xlu0 %1407
    %1409 = vrot.lane.b32.xlu0 %v1227, 12
    %v1410 = vpop.permute.xlu0 %1409
    %1411 = vrot.lane.b32.xlu0 %v1228, 12
    %v1412 = vpop.permute.xlu0 %1411
    %1413 = vrot.lane.b32.xlu0 %v1229, 12
    %v1414 = vpop.permute.xlu0 %1413
    %1415 = vrot.lane.b32.xlu0 %v1230, 12
    %v1416 = vpop.permute.xlu0 %1415
    %1417 = vrot.lane.b32.xlu0 %v1231, 12
    %v1418 = vpop.permute.xlu0 %1417
    %1419 = vrot.lane.b32.xlu0 %v1232, 12
    %v1420 = vpop.permute.xlu0 %1419
    %1421 = vrot.lane.b32.xlu0 %v1233, 12
    %v1422 = vpop.permute.xlu0 %1421
    %1423 = vrot.lane.b32.xlu0 %v1234, 12
    %v1424 = vpop.permute.xlu0 %1423
    %1425 = vrot.lane.b32.xlu0 %v1235, 12
    %v1426 = vpop.permute.xlu0 %1425
    %1427 = vrot.lane.b32.xlu0 %v1236, 12
    %v1428 = vpop.permute.xlu0 %1427
    %vm1493 = vcmask 130144
    %1494 = vst.msk [vmem:[#allocation3] sm:$0xff] %vm1493, %v1302
    %1495 = vst.msk [vmem:[#allocation3 + $0x8] sm:$0xff] %vm1493, %v1304
    %1496 = vst.msk [vmem:[#allocation3 + $0x10] sm:$0xff] %vm1493, %v1306
    %1497 = vst.msk [vmem:[#allocation3 + $0x18] sm:$0xff] %vm1493, %v1308
    %1498 = vst.msk [vmem:[#allocation3 + $0x20] sm:$0xff] %vm1493, %v1310
    %1499 = vst.msk [vmem:[#allocation3 + $0x28] sm:$0xff] %vm1493, %v1312
    %1500 = vst.msk [vmem:[#allocation3 + $0x30] sm:$0xff] %vm1493, %v1314
    %1501 = vst.msk [vmem:[#allocation3 + $0x38] sm:$0xff] %vm1493, %v1316
    %1502 = vst.msk [vmem:[#allocation3 + $0x40] sm:$0xff] %vm1493, %v1318
    %1503 = vst.msk [vmem:[#allocation3 + $0x48] sm:$0xff] %vm1493, %v1320
    %1504 = vst.msk [vmem:[#allocation3 + $0x50] sm:$0xff] %vm1493, %v1322
    %1505 = vst.msk [vmem:[#allocation3 + $0x58] sm:$0xff] %vm1493, %v1324
    %1506 = vst.msk [vmem:[#allocation3 + $0x60] sm:$0xff] %vm1493, %v1326
    %1507 = vst.msk [vmem:[#allocation3 + $0x68] sm:$0xff] %vm1493, %v1328
    %1508 = vst.msk [vmem:[#allocation3 + $0x70] sm:$0xff] %vm1493, %v1330
    %1509 = vst.msk [vmem:[#allocation3 + $0x78] sm:$0xff] %vm1493, %v1332
    %1510 = vst.msk [vmem:[#allocation3 + $0x80] sm:$0xff] %vm1493, %v1334
    %1511 = vst.msk [vmem:[#allocation3 + $0x88] sm:$0xff] %vm1493, %v1336
    %1512 = vst.msk [vmem:[#allocation3 + $0x90] sm:$0xff] %vm1493, %v1338
    %1513 = vst.msk [vmem:[#allocation3 + $0x98] sm:$0xff] %vm1493, %v1340
    %1514 = vst.msk [vmem:[#allocation3 + $0xa0] sm:$0xff] %vm1493, %v1342
    %1515 = vst.msk [vmem:[#allocation3 + $0xa8] sm:$0xff] %vm1493, %v1344
    %1516 = vst.msk [vmem:[#allocation3 + $0xb0] sm:$0xff] %vm1493, %v1346
    %1517 = vst.msk [vmem:[#allocation3 + $0xb8] sm:$0xff] %vm1493, %v1348
    %1518 = vst.msk [vmem:[#allocation3 + $0xc0] sm:$0xff] %vm1493, %v1350
    %1519 = vst.msk [vmem:[#allocation3 + $0xc8] sm:$0xff] %vm1493, %v1352
    %1520 = vst.msk [vmem:[#allocation3 + $0xd0] sm:$0xff] %vm1493, %v1354
    %1521 = vst.msk [vmem:[#allocation3 + $0xd8] sm:$0xff] %vm1493, %v1356
    %1522 = vst.msk [vmem:[#allocation3 + $0xe0] sm:$0xff] %vm1493, %v1358
    %1523 = vst.msk [vmem:[#allocation3 + $0xe8] sm:$0xff] %vm1493, %v1360
    %1524 = vst.msk [vmem:[#allocation3 + $0xf0] sm:$0xff] %vm1493, %v1362
    %1525 = vst.msk [vmem:[#allocation3 + $0xf8] sm:$0xff] %vm1493, %v1364
    %1526 = vst.msk [vmem:[#allocation3 + $0x100] sm:$0xff] %vm1493, %v1366
    %1527 = vst.msk [vmem:[#allocation3 + $0x108] sm:$0xff] %vm1493, %v1368
    %1528 = vst.msk [vmem:[#allocation3 + $0x110] sm:$0xff] %vm1493, %v1370
    %1529 = vst.msk [vmem:[#allocation3 + $0x118] sm:$0xff] %vm1493, %v1372
    %1530 = vst.msk [vmem:[#allocation3 + $0x120] sm:$0xff] %vm1493, %v1374
    %1531 = vst.msk [vmem:[#allocation3 + $0x128] sm:$0xff] %vm1493, %v1376
    %1532 = vst.msk [vmem:[#allocation3 + $0x130] sm:$0xff] %vm1493, %v1378
    %1533 = vst.msk [vmem:[#allocation3 + $0x138] sm:$0xff] %vm1493, %v1380
    %1534 = vst.msk [vmem:[#allocation3 + $0x140] sm:$0xff] %vm1493, %v1382
    %1535 = vst.msk [vmem:[#allocation3 + $0x148] sm:$0xff] %vm1493, %v1384
    %1536 = vst.msk [vmem:[#allocation3 + $0x150] sm:$0xff] %vm1493, %v1386
    %1537 = vst.msk [vmem:[#allocation3 + $0x158] sm:$0xff] %vm1493, %v1388
    %1538 = vst.msk [vmem:[#allocation3 + $0x160] sm:$0xff] %vm1493, %v1390
    %1539 = vst.msk [vmem:[#allocation3 + $0x168] sm:$0xff] %vm1493, %v1392
    %1540 = vst.msk [vmem:[#allocation3 + $0x170] sm:$0xff] %vm1493, %v1394
    %1541 = vst.msk [vmem:[#allocation3 + $0x178] sm:$0xff] %vm1493, %v1396
    %1542 = vst.msk [vmem:[#allocation3 + $0x180] sm:$0xff] %vm1493, %v1398
    %1543 = vst.msk [vmem:[#allocation3 + $0x188] sm:$0xff] %vm1493, %v1400
    %1544 = vst.msk [vmem:[#allocation3 + $0x190] sm:$0xff] %vm1493, %v1402
    %1545 = vst.msk [vmem:[#allocation3 + $0x198] sm:$0xff] %vm1493, %v1404
    %1546 = vst.msk [vmem:[#allocation3 + $0x1a0] sm:$0xff] %vm1493, %v1406
    %1547 = vst.msk [vmem:[#allocation3 + $0x1a8] sm:$0xff] %vm1493, %v1408
    %1548 = vst.msk [vmem:[#allocation3 + $0x1b0] sm:$0xff] %vm1493, %v1410
    %1549 = vst.msk [vmem:[#allocation3 + $0x1b8] sm:$0xff] %vm1493, %v1412
    %1550 = vst.msk [vmem:[#allocation3 + $0x1c0] sm:$0xff] %vm1493, %v1414
    %1551 = vst.msk [vmem:[#allocation3 + $0x1c8] sm:$0xff] %vm1493, %v1416
    %1552 = vst.msk [vmem:[#allocation3 + $0x1d0] sm:$0xff] %vm1493, %v1418
    %1553 = vst.msk [vmem:[#allocation3 + $0x1d8] sm:$0xff] %vm1493, %v1420
    %1554 = vst.msk [vmem:[#allocation3 + $0x1e0] sm:$0xff] %vm1493, %v1422
    %1555 = vst.msk [vmem:[#allocation3 + $0x1e8] sm:$0xff] %vm1493, %v1424
    %1556 = vst.msk [vmem:[#allocation3 + $0x1f0] sm:$0xff] %vm1493, %v1426
    %1557 = vst.msk [vmem:[#allocation3 + $0x1f8] sm:$0xff] %vm1493, %v1428
    %v1558 = vld [vmem:[%s210 + $0x1] sm:$0xff]
    %v1559 = vld [vmem:[%s210 + $0x9] sm:$0xff]
    %v1560 = vld [vmem:[%s210 + $0x19] sm:$0xff]
    %v1561 = vld [vmem:[%s210 + $0x21] sm:$0xff]
    %v1562 = vld [vmem:[%s210 + $0x31] sm:$0xff]
    %v1563 = vld [vmem:[%s210 + $0x39] sm:$0xff]
    %v1564 = vld [vmem:[%s210 + $0x49] sm:$0xff]
    %v1565 = vld [vmem:[%s210 + $0x51] sm:$0xff]
    %v1566 = vld [vmem:[%s210 + $0x61] sm:$0xff]
    %v1567 = vld [vmem:[%s210 + $0x69] sm:$0xff]
    %v1568 = vld [vmem:[%s210 + $0x79] sm:$0xff]
    %v1569 = vld [vmem:[%s210 + $0x81] sm:$0xff]
    %v1570 = vld [vmem:[%s210 + $0x91] sm:$0xff]
    %v1571 = vld [vmem:[%s210 + $0x99] sm:$0xff]
    %v1572 = vld [vmem:[%s210 + $0xa9] sm:$0xff]
    %v1573 = vld [vmem:[%s210 + $0xb1] sm:$0xff]
    %v1574 = vld [vmem:[%s210 + $0xc1] sm:$0xff]
    %v1575 = vld [vmem:[%s210 + $0xc9] sm:$0xff]
    %v1576 = vld [vmem:[%s210 + $0xd9] sm:$0xff]
    %v1577 = vld [vmem:[%s210 + $0xe1] sm:$0xff]
    %v1578 = vld [vmem:[%s210 + $0xf1] sm:$0xff]
    %v1579 = vld [vmem:[%s210 + $0xf9] sm:$0xff]
    %v1580 = vld [vmem:[%s210 + $0x109] sm:$0xff]
    %v1581 = vld [vmem:[%s210 + $0x111] sm:$0xff]
    %v1582 = vld [vmem:[%s210 + $0x121] sm:$0xff]
    %v1583 = vld [vmem:[%s210 + $0x129] sm:$0xff]
    %v1584 = vld [vmem:[%s210 + $0x139] sm:$0xff]
    %v1585 = vld [vmem:[%s210 + $0x141] sm:$0xff]
    %v1586 = vld [vmem:[%s210 + $0x151] sm:$0xff]
    %v1587 = vld [vmem:[%s210 + $0x159] sm:$0xff]
    %v1588 = vld [vmem:[%s210 + $0x169] sm:$0xff]
    %v1589 = vld [vmem:[%s210 + $0x171] sm:$0xff]
    %v1590 = vld [vmem:[%s210 + $0x1b1] sm:$0xff]
    %v1591 = vld [vmem:[%s210 + $0x1b9] sm:$0xff]
    %v1592 = vld [vmem:[%s210 + $0x1c9] sm:$0xff]
    %v1593 = vld [vmem:[%s210 + $0x1d1] sm:$0xff]
    %v1594 = vld [vmem:[%s210 + $0x1e1] sm:$0xff]
    %v1595 = vld [vmem:[%s210 + $0x1e9] sm:$0xff]
    %v1596 = vld [vmem:[%s210 + $0x1f9] sm:$0xff]
    %v1597 = vld [vmem:[%s210 + $0x201] sm:$0xff]
    %v1598 = vld [vmem:[%s210 + $0x211] sm:$0xff]
    %v1599 = vld [vmem:[%s210 + $0x219] sm:$0xff]
    %v1600 = vld [vmem:[%s210 + $0x229] sm:$0xff]
    %v1601 = vld [vmem:[%s210 + $0x231] sm:$0xff]
    %v1602 = vld [vmem:[%s210 + $0x241] sm:$0xff]
    %v1603 = vld [vmem:[%s210 + $0x249] sm:$0xff]
    %v1604 = vld [vmem:[%s210 + $0x259] sm:$0xff]
    %v1605 = vld [vmem:[%s210 + $0x261] sm:$0xff]
    %v1606 = vld [vmem:[%s210 + $0x271] sm:$0xff]
    %v1607 = vld [vmem:[%s210 + $0x279] sm:$0xff]
    %v1608 = vld [vmem:[%s210 + $0x289] sm:$0xff]
    %v1609 = vld [vmem:[%s210 + $0x291] sm:$0xff]
    %v1610 = vld [vmem:[%s210 + $0x2a1] sm:$0xff]
    %v1611 = vld [vmem:[%s210 + $0x2a9] sm:$0xff]
    %v1612 = vld [vmem:[%s210 + $0x2b9] sm:$0xff]
    %v1613 = vld [vmem:[%s210 + $0x2c1] sm:$0xff]
    %v1614 = vld [vmem:[%s210 + $0x2d1] sm:$0xff]
    %v1615 = vld [vmem:[%s210 + $0x2d9] sm:$0xff]
    %v1616 = vld [vmem:[%s210 + $0x2e9] sm:$0xff]
    %v1617 = vld [vmem:[%s210 + $0x2f1] sm:$0xff]
    %v1618 = vld [vmem:[%s210 + $0x301] sm:$0xff]
    %v1619 = vld [vmem:[%s210 + $0x309] sm:$0xff]
    %v1620 = vld [vmem:[%s210 + $0x319] sm:$0xff]
    %v1621 = vld [vmem:[%s210 + $0x321] sm:$0xff]
    %1686 = vrot.lane.b32.xlu0 %v1558, 16
    %v1687 = vpop.permute.xlu0 %1686
    %1688 = vrot.lane.b32.xlu0 %v1559, 16
    %v1689 = vpop.permute.xlu0 %1688
    %1690 = vrot.lane.b32.xlu0 %v1560, 16
    %v1691 = vpop.permute.xlu0 %1690
    %1692 = vrot.lane.b32.xlu0 %v1561, 16
    %v1693 = vpop.permute.xlu0 %1692
    %1694 = vrot.lane.b32.xlu0 %v1562, 16
    %v1695 = vpop.permute.xlu0 %1694
    %1696 = vrot.lane.b32.xlu0 %v1563, 16
    %v1697 = vpop.permute.xlu0 %1696
    %1698 = vrot.lane.b32.xlu0 %v1564, 16
    %v1699 = vpop.permute.xlu0 %1698
    %1700 = vrot.lane.b32.xlu0 %v1565, 16
    %v1701 = vpop.permute.xlu0 %1700
    %1702 = vrot.lane.b32.xlu0 %v1566, 16
    %v1703 = vpop.permute.xlu0 %1702
    %1704 = vrot.lane.b32.xlu0 %v1567, 16
    %v1705 = vpop.permute.xlu0 %1704
    %1706 = vrot.lane.b32.xlu0 %v1568, 16
    %v1707 = vpop.permute.xlu0 %1706
    %1708 = vrot.lane.b32.xlu0 %v1569, 16
    %v1709 = vpop.permute.xlu0 %1708
    %1710 = vrot.lane.b32.xlu0 %v1570, 16
    %v1711 = vpop.permute.xlu0 %1710
    %1712 = vrot.lane.b32.xlu0 %v1571, 16
    %v1713 = vpop.permute.xlu0 %1712
    %1714 = vrot.lane.b32.xlu0 %v1572, 16
    %v1715 = vpop.permute.xlu0 %1714
    %1716 = vrot.lane.b32.xlu0 %v1573, 16
    %v1717 = vpop.permute.xlu0 %1716
    %1718 = vrot.lane.b32.xlu0 %v1574, 16
    %v1719 = vpop.permute.xlu0 %1718
    %1720 = vrot.lane.b32.xlu0 %v1575, 16
    %v1721 = vpop.permute.xlu0 %1720
    %1722 = vrot.lane.b32.xlu0 %v1576, 16
    %v1723 = vpop.permute.xlu0 %1722
    %1724 = vrot.lane.b32.xlu0 %v1577, 16
    %v1725 = vpop.permute.xlu0 %1724
    %1726 = vrot.lane.b32.xlu0 %v1578, 16
    %v1727 = vpop.permute.xlu0 %1726
    %1728 = vrot.lane.b32.xlu0 %v1579, 16
    %v1729 = vpop.permute.xlu0 %1728
    %1730 = vrot.lane.b32.xlu0 %v1580, 16
    %v1731 = vpop.permute.xlu0 %1730
    %1732 = vrot.lane.b32.xlu0 %v1581, 16
    %v1733 = vpop.permute.xlu0 %1732
    %1734 = vrot.lane.b32.xlu0 %v1582, 16
    %v1735 = vpop.permute.xlu0 %1734
    %1736 = vrot.lane.b32.xlu0 %v1583, 16
    %v1737 = vpop.permute.xlu0 %1736
    %1738 = vrot.lane.b32.xlu0 %v1584, 16
    %v1739 = vpop.permute.xlu0 %1738
    %1740 = vrot.lane.b32.xlu0 %v1585, 16
    %v1741 = vpop.permute.xlu0 %1740
    %1742 = vrot.lane.b32.xlu0 %v1586, 16
    %v1743 = vpop.permute.xlu0 %1742
    %1744 = vrot.lane.b32.xlu0 %v1587, 16
    %v1745 = vpop.permute.xlu0 %1744
    %1746 = vrot.lane.b32.xlu0 %v1588, 16
    %v1747 = vpop.permute.xlu0 %1746
    %1748 = vrot.lane.b32.xlu0 %v1589, 16
    %v1749 = vpop.permute.xlu0 %1748
    %1750 = vrot.lane.b32.xlu0 %v1590, 16
    %v1751 = vpop.permute.xlu0 %1750
    %1752 = vrot.lane.b32.xlu0 %v1591, 16
    %v1753 = vpop.permute.xlu0 %1752
    %1754 = vrot.lane.b32.xlu0 %v1592, 16
    %v1755 = vpop.permute.xlu0 %1754
    %1756 = vrot.lane.b32.xlu0 %v1593, 16
    %v1757 = vpop.permute.xlu0 %1756
    %1758 = vrot.lane.b32.xlu0 %v1594, 16
    %v1759 = vpop.permute.xlu0 %1758
    %1760 = vrot.lane.b32.xlu0 %v1595, 16
    %v1761 = vpop.permute.xlu0 %1760
    %1762 = vrot.lane.b32.xlu0 %v1596, 16
    %v1763 = vpop.permute.xlu0 %1762
    %1764 = vrot.lane.b32.xlu0 %v1597, 16
    %v1765 = vpop.permute.xlu0 %1764
    %1766 = vrot.lane.b32.xlu0 %v1598, 16
    %v1767 = vpop.permute.xlu0 %1766
    %1768 = vrot.lane.b32.xlu0 %v1599, 16
    %v1769 = vpop.permute.xlu0 %1768
    %1770 = vrot.lane.b32.xlu0 %v1600, 16
    %v1771 = vpop.permute.xlu0 %1770
    %1772 = vrot.lane.b32.xlu0 %v1601, 16
    %v1773 = vpop.permute.xlu0 %1772
    %1774 = vrot.lane.b32.xlu0 %v1602, 16
    %v1775 = vpop.permute.xlu0 %1774
    %1776 = vrot.lane.b32.xlu0 %v1603, 16
    %v1777 = vpop.permute.xlu0 %1776
    %1778 = vrot.lane.b32.xlu0 %v1604, 16
    %v1779 = vpop.permute.xlu0 %1778
    %1780 = vrot.lane.b32.xlu0 %v1605, 16
    %v1781 = vpop.permute.xlu0 %1780
    %1782 = vrot.lane.b32.xlu0 %v1606, 16
    %v1783 = vpop.permute.xlu0 %1782
    %1784 = vrot.lane.b32.xlu0 %v1607, 16
    %v1785 = vpop.permute.xlu0 %1784
    %1786 = vrot.lane.b32.xlu0 %v1608, 16
    %v1787 = vpop.permute.xlu0 %1786
    %1788 = vrot.lane.b32.xlu0 %v1609, 16
    %v1789 = vpop.permute.xlu0 %1788
    %1790 = vrot.lane.b32.xlu0 %v1610, 16
    %v1791 = vpop.permute.xlu0 %1790
    %1792 = vrot.lane.b32.xlu0 %v1611, 16
    %v1793 = vpop.permute.xlu0 %1792
    %1794 = vrot.lane.b32.xlu0 %v1612, 16
    %v1795 = vpop.permute.xlu0 %1794
    %1796 = vrot.lane.b32.xlu0 %v1613, 16
    %v1797 = vpop.permute.xlu0 %1796
    %1798 = vrot.lane.b32.xlu0 %v1614, 16
    %v1799 = vpop.permute.xlu0 %1798
    %1800 = vrot.lane.b32.xlu0 %v1615, 16
    %v1801 = vpop.permute.xlu0 %1800
    %1802 = vrot.lane.b32.xlu0 %v1616, 16
    %v1803 = vpop.permute.xlu0 %1802
    %1804 = vrot.lane.b32.xlu0 %v1617, 16
    %v1805 = vpop.permute.xlu0 %1804
    %1806 = vrot.lane.b32.xlu0 %v1618, 16
    %v1807 = vpop.permute.xlu0 %1806
    %1808 = vrot.lane.b32.xlu0 %v1619, 16
    %v1809 = vpop.permute.xlu0 %1808
    %1810 = vrot.lane.b32.xlu0 %v1620, 16
    %v1811 = vpop.permute.xlu0 %1810
    %1812 = vrot.lane.b32.xlu0 %v1621, 16
    %v1813 = vpop.permute.xlu0 %1812
    %vm1878 = vcmask 162944
    %1879 = vst.msk [vmem:[#allocation3] sm:$0xff] %vm1878, %v1687
    %1880 = vst.msk [vmem:[#allocation3 + $0x8] sm:$0xff] %vm1878, %v1689
    %1881 = vst.msk [vmem:[#allocation3 + $0x10] sm:$0xff] %vm1878, %v1691
    %1882 = vst.msk [vmem:[#allocation3 + $0x18] sm:$0xff] %vm1878, %v1693
    %1883 = vst.msk [vmem:[#allocation3 + $0x20] sm:$0xff] %vm1878, %v1695
    %1884 = vst.msk [vmem:[#allocation3 + $0x28] sm:$0xff] %vm1878, %v1697
    %1885 = vst.msk [vmem:[#allocation3 + $0x30] sm:$0xff] %vm1878, %v1699
    %1886 = vst.msk [vmem:[#allocation3 + $0x38] sm:$0xff] %vm1878, %v1701
    %1887 = vst.msk [vmem:[#allocation3 + $0x40] sm:$0xff] %vm1878, %v1703
    %1888 = vst.msk [vmem:[#allocation3 + $0x48] sm:$0xff] %vm1878, %v1705
    %1889 = vst.msk [vmem:[#allocation3 + $0x50] sm:$0xff] %vm1878, %v1707
    %1890 = vst.msk [vmem:[#allocation3 + $0x58] sm:$0xff] %vm1878, %v1709
    %1891 = vst.msk [vmem:[#allocation3 + $0x60] sm:$0xff] %vm1878, %v1711
    %1892 = vst.msk [vmem:[#allocation3 + $0x68] sm:$0xff] %vm1878, %v1713
    %1893 = vst.msk [vmem:[#allocation3 + $0x70] sm:$0xff] %vm1878, %v1715
    %1894 = vst.msk [vmem:[#allocation3 + $0x78] sm:$0xff] %vm1878, %v1717
    %1895 = vst.msk [vmem:[#allocation3 + $0x80] sm:$0xff] %vm1878, %v1719
    %1896 = vst.msk [vmem:[#allocation3 + $0x88] sm:$0xff] %vm1878, %v1721
    %1897 = vst.msk [vmem:[#allocation3 + $0x90] sm:$0xff] %vm1878, %v1723
    %1898 = vst.msk [vmem:[#allocation3 + $0x98] sm:$0xff] %vm1878, %v1725
    %1899 = vst.msk [vmem:[#allocation3 + $0xa0] sm:$0xff] %vm1878, %v1727
    %1900 = vst.msk [vmem:[#allocation3 + $0xa8] sm:$0xff] %vm1878, %v1729
    %1901 = vst.msk [vmem:[#allocation3 + $0xb0] sm:$0xff] %vm1878, %v1731
    %1902 = vst.msk [vmem:[#allocation3 + $0xb8] sm:$0xff] %vm1878, %v1733
    %1903 = vst.msk [vmem:[#allocation3 + $0xc0] sm:$0xff] %vm1878, %v1735
    %1904 = vst.msk [vmem:[#allocation3 + $0xc8] sm:$0xff] %vm1878, %v1737
    %1905 = vst.msk [vmem:[#allocation3 + $0xd0] sm:$0xff] %vm1878, %v1739
    %1906 = vst.msk [vmem:[#allocation3 + $0xd8] sm:$0xff] %vm1878, %v1741
    %1907 = vst.msk [vmem:[#allocation3 + $0xe0] sm:$0xff] %vm1878, %v1743
    %1908 = vst.msk [vmem:[#allocation3 + $0xe8] sm:$0xff] %vm1878, %v1745
    %1909 = vst.msk [vmem:[#allocation3 + $0xf0] sm:$0xff] %vm1878, %v1747
    %1910 = vst.msk [vmem:[#allocation3 + $0xf8] sm:$0xff] %vm1878, %v1749
    %1911 = vst.msk [vmem:[#allocation3 + $0x100] sm:$0xff] %vm1878, %v1751
    %1912 = vst.msk [vmem:[#allocation3 + $0x108] sm:$0xff] %vm1878, %v1753
    %1913 = vst.msk [vmem:[#allocation3 + $0x110] sm:$0xff] %vm1878, %v1755
    %1914 = vst.msk [vmem:[#allocation3 + $0x118] sm:$0xff] %vm1878, %v1757
    %1915 = vst.msk [vmem:[#allocation3 + $0x120] sm:$0xff] %vm1878, %v1759
    %1916 = vst.msk [vmem:[#allocation3 + $0x128] sm:$0xff] %vm1878, %v1761
    %1917 = vst.msk [vmem:[#allocation3 + $0x130] sm:$0xff] %vm1878, %v1763
    %1918 = vst.msk [vmem:[#allocation3 + $0x138] sm:$0xff] %vm1878, %v1765
    %1919 = vst.msk [vmem:[#allocation3 + $0x140] sm:$0xff] %vm1878, %v1767
    %1920 = vst.msk [vmem:[#allocation3 + $0x148] sm:$0xff] %vm1878, %v1769
    %1921 = vst.msk [vmem:[#allocation3 + $0x150] sm:$0xff] %vm1878, %v1771
    %1922 = vst.msk [vmem:[#allocation3 + $0x158] sm:$0xff] %vm1878, %v1773
    %1923 = vst.msk [vmem:[#allocation3 + $0x160] sm:$0xff] %vm1878, %v1775
    %1924 = vst.msk [vmem:[#allocation3 + $0x168] sm:$0xff] %vm1878, %v1777
    %1925 = vst.msk [vmem:[#allocation3 + $0x170] sm:$0xff] %vm1878, %v1779
    %1926 = vst.msk [vmem:[#allocation3 + $0x178] sm:$0xff] %vm1878, %v1781
    %1927 = vst.msk [vmem:[#allocation3 + $0x180] sm:$0xff] %vm1878, %v1783
    %1928 = vst.msk [vmem:[#allocation3 + $0x188] sm:$0xff] %vm1878, %v1785
    %1929 = vst.msk [vmem:[#allocation3 + $0x190] sm:$0xff] %vm1878, %v1787
    %1930 = vst.msk [vmem:[#allocation3 + $0x198] sm:$0xff] %vm1878, %v1789
    %1931 = vst.msk [vmem:[#allocation3 + $0x1a0] sm:$0xff] %vm1878, %v1791
    %1932 = vst.msk [vmem:[#allocation3 + $0x1a8] sm:$0xff] %vm1878, %v1793
    %1933 = vst.msk [vmem:[#allocation3 + $0x1b0] sm:$0xff] %vm1878, %v1795
    %1934 = vst.msk [vmem:[#allocation3 + $0x1b8] sm:$0xff] %vm1878, %v1797
    %1935 = vst.msk [vmem:[#allocation3 + $0x1c0] sm:$0xff] %vm1878, %v1799
    %1936 = vst.msk [vmem:[#allocation3 + $0x1c8] sm:$0xff] %vm1878, %v1801
    %1937 = vst.msk [vmem:[#allocation3 + $0x1d0] sm:$0xff] %vm1878, %v1803
    %1938 = vst.msk [vmem:[#allocation3 + $0x1d8] sm:$0xff] %vm1878, %v1805
    %1939 = vst.msk [vmem:[#allocation3 + $0x1e0] sm:$0xff] %vm1878, %v1807
    %1940 = vst.msk [vmem:[#allocation3 + $0x1e8] sm:$0xff] %vm1878, %v1809
    %1941 = vst.msk [vmem:[#allocation3 + $0x1f0] sm:$0xff] %vm1878, %v1811
    %1942 = vst.msk [vmem:[#allocation3 + $0x1f8] sm:$0xff] %vm1878, %v1813
    %v1943 = vld [vmem:[%s210 + $0x2] sm:$0xff]
    %v1944 = vld [vmem:[%s210 + $0xa] sm:$0xff]
    %v1945 = vld [vmem:[%s210 + $0x1a] sm:$0xff]
    %v1946 = vld [vmem:[%s210 + $0x22] sm:$0xff]
    %v1947 = vld [vmem:[%s210 + $0x32] sm:$0xff]
    %v1948 = vld [vmem:[%s210 + $0x3a] sm:$0xff]
    %v1949 = vld [vmem:[%s210 + $0x4a] sm:$0xff]
    %v1950 = vld [vmem:[%s210 + $0x52] sm:$0xff]
    %v1951 = vld [vmem:[%s210 + $0x62] sm:$0xff]
    %v1952 = vld [vmem:[%s210 + $0x6a] sm:$0xff]
    %v1953 = vld [vmem:[%s210 + $0x7a] sm:$0xff]
    %v1954 = vld [vmem:[%s210 + $0x82] sm:$0xff]
    %v1955 = vld [vmem:[%s210 + $0x92] sm:$0xff]
    %v1956 = vld [vmem:[%s210 + $0x9a] sm:$0xff]
    %v1957 = vld [vmem:[%s210 + $0xaa] sm:$0xff]
    %v1958 = vld [vmem:[%s210 + $0xb2] sm:$0xff]
    %v1959 = vld [vmem:[%s210 + $0xc2] sm:$0xff]
    %v1960 = vld [vmem:[%s210 + $0xca] sm:$0xff]
    %v1961 = vld [vmem:[%s210 + $0xda] sm:$0xff]
    %v1962 = vld [vmem:[%s210 + $0xe2] sm:$0xff]
    %v1963 = vld [vmem:[%s210 + $0xf2] sm:$0xff]
    %v1964 = vld [vmem:[%s210 + $0xfa] sm:$0xff]
    %v1965 = vld [vmem:[%s210 + $0x10a] sm:$0xff]
    %v1966 = vld [vmem:[%s210 + $0x112] sm:$0xff]
    %v1967 = vld [vmem:[%s210 + $0x122] sm:$0xff]
    %v1968 = vld [vmem:[%s210 + $0x12a] sm:$0xff]
    %v1969 = vld [vmem:[%s210 + $0x13a] sm:$0xff]
    %v1970 = vld [vmem:[%s210 + $0x142] sm:$0xff]
    %v1971 = vld [vmem:[%s210 + $0x152] sm:$0xff]
    %v1972 = vld [vmem:[%s210 + $0x15a] sm:$0xff]
    %v1973 = vld [vmem:[%s210 + $0x16a] sm:$0xff]
    %v1974 = vld [vmem:[%s210 + $0x172] sm:$0xff]
    %v1975 = vld [vmem:[%s210 + $0x1b2] sm:$0xff]
    %v1976 = vld [vmem:[%s210 + $0x1ba] sm:$0xff]
    %v1977 = vld [vmem:[%s210 + $0x1ca] sm:$0xff]
    %v1978 = vld [vmem:[%s210 + $0x1d2] sm:$0xff]
    %v1979 = vld [vmem:[%s210 + $0x1e2] sm:$0xff]
    %v1980 = vld [vmem:[%s210 + $0x1ea] sm:$0xff]
    %v1981 = vld [vmem:[%s210 + $0x1fa] sm:$0xff]
    %v1982 = vld [vmem:[%s210 + $0x202] sm:$0xff]
    %v1983 = vld [vmem:[%s210 + $0x212] sm:$0xff]
    %v1984 = vld [vmem:[%s210 + $0x21a] sm:$0xff]
    %v1985 = vld [vmem:[%s210 + $0x22a] sm:$0xff]
    %v1986 = vld [vmem:[%s210 + $0x232] sm:$0xff]
    %v1987 = vld [vmem:[%s210 + $0x242] sm:$0xff]
    %v1988 = vld [vmem:[%s210 + $0x24a] sm:$0xff]
    %v1989 = vld [vmem:[%s210 + $0x25a] sm:$0xff]
    %v1990 = vld [vmem:[%s210 + $0x262] sm:$0xff]
    %v1991 = vld [vmem:[%s210 + $0x272] sm:$0xff]
    %v1992 = vld [vmem:[%s210 + $0x27a] sm:$0xff]
    %v1993 = vld [vmem:[%s210 + $0x28a] sm:$0xff]
    %v1994 = vld [vmem:[%s210 + $0x292] sm:$0xff]
    %v1995 = vld [vmem:[%s210 + $0x2a2] sm:$0xff]
    %v1996 = vld [vmem:[%s210 + $0x2aa] sm:$0xff]
    %v1997 = vld [vmem:[%s210 + $0x2ba] sm:$0xff]
    %v1998 = vld [vmem:[%s210 + $0x2c2] sm:$0xff]
    %v1999 = vld [vmem:[%s210 + $0x2d2] sm:$0xff]
    %v2000 = vld [vmem:[%s210 + $0x2da] sm:$0xff]
    %v2001 = vld [vmem:[%s210 + $0x2ea] sm:$0xff]
    %v2002 = vld [vmem:[%s210 + $0x2f2] sm:$0xff]
    %v2003 = vld [vmem:[%s210 + $0x302] sm:$0xff]
    %v2004 = vld [vmem:[%s210 + $0x30a] sm:$0xff]
    %v2005 = vld [vmem:[%s210 + $0x31a] sm:$0xff]
    %v2006 = vld [vmem:[%s210 + $0x322] sm:$0xff]
    %2071 = vrot.lane.b32.xlu0 %v1943, 20
    %v2072 = vpop.permute.xlu0 %2071
    %2073 = vrot.lane.b32.xlu0 %v1944, 20
    %v2074 = vpop.permute.xlu0 %2073
    %2075 = vrot.lane.b32.xlu0 %v1945, 20
    %v2076 = vpop.permute.xlu0 %2075
    %2077 = vrot.lane.b32.xlu0 %v1946, 20
    %v2078 = vpop.permute.xlu0 %2077
    %2079 = vrot.lane.b32.xlu0 %v1947, 20
    %v2080 = vpop.permute.xlu0 %2079
    %2081 = vrot.lane.b32.xlu0 %v1948, 20
    %v2082 = vpop.permute.xlu0 %2081
    %2083 = vrot.lane.b32.xlu0 %v1949, 20
    %v2084 = vpop.permute.xlu0 %2083
    %2085 = vrot.lane.b32.xlu0 %v1950, 20
    %v2086 = vpop.permute.xlu0 %2085
    %2087 = vrot.lane.b32.xlu0 %v1951, 20
    %v2088 = vpop.permute.xlu0 %2087
    %2089 = vrot.lane.b32.xlu0 %v1952, 20
    %v2090 = vpop.permute.xlu0 %2089
    %2091 = vrot.lane.b32.xlu0 %v1953, 20
    %v2092 = vpop.permute.xlu0 %2091
    %2093 = vrot.lane.b32.xlu0 %v1954, 20
    %v2094 = vpop.permute.xlu0 %2093
    %2095 = vrot.lane.b32.xlu0 %v1955, 20
    %v2096 = vpop.permute.xlu0 %2095
    %2097 = vrot.lane.b32.xlu0 %v1956, 20
    %v2098 = vpop.permute.xlu0 %2097
    %2099 = vrot.lane.b32.xlu0 %v1957, 20
    %v2100 = vpop.permute.xlu0 %2099
    %2101 = vrot.lane.b32.xlu0 %v1958, 20
    %v2102 = vpop.permute.xlu0 %2101
    %2103 = vrot.lane.b32.xlu0 %v1959, 20
    %v2104 = vpop.permute.xlu0 %2103
    %2105 = vrot.lane.b32.xlu0 %v1960, 20
    %v2106 = vpop.permute.xlu0 %2105
    %2107 = vrot.lane.b32.xlu0 %v1961, 20
    %v2108 = vpop.permute.xlu0 %2107
    %2109 = vrot.lane.b32.xlu0 %v1962, 20
    %v2110 = vpop.permute.xlu0 %2109
    %2111 = vrot.lane.b32.xlu0 %v1963, 20
    %v2112 = vpop.permute.xlu0 %2111
    %2113 = vrot.lane.b32.xlu0 %v1964, 20
    %v2114 = vpop.permute.xlu0 %2113
    %2115 = vrot.lane.b32.xlu0 %v1965, 20
    %v2116 = vpop.permute.xlu0 %2115
    %2117 = vrot.lane.b32.xlu0 %v1966, 20
    %v2118 = vpop.permute.xlu0 %2117
    %2119 = vrot.lane.b32.xlu0 %v1967, 20
    %v2120 = vpop.permute.xlu0 %2119
    %2121 = vrot.lane.b32.xlu0 %v1968, 20
    %v2122 = vpop.permute.xlu0 %2121
    %2123 = vrot.lane.b32.xlu0 %v1969, 20
    %v2124 = vpop.permute.xlu0 %2123
    %2125 = vrot.lane.b32.xlu0 %v1970, 20
    %v2126 = vpop.permute.xlu0 %2125
    %2127 = vrot.lane.b32.xlu0 %v1971, 20
    %v2128 = vpop.permute.xlu0 %2127
    %2129 = vrot.lane.b32.xlu0 %v1972, 20
    %v2130 = vpop.permute.xlu0 %2129
    %2131 = vrot.lane.b32.xlu0 %v1973, 20
    %v2132 = vpop.permute.xlu0 %2131
    %2133 = vrot.lane.b32.xlu0 %v1974, 20
    %v2134 = vpop.permute.xlu0 %2133
    %2135 = vrot.lane.b32.xlu0 %v1975, 20
    %v2136 = vpop.permute.xlu0 %2135
    %2137 = vrot.lane.b32.xlu0 %v1976, 20
    %v2138 = vpop.permute.xlu0 %2137
    %2139 = vrot.lane.b32.xlu0 %v1977, 20
    %v2140 = vpop.permute.xlu0 %2139
    %2141 = vrot.lane.b32.xlu0 %v1978, 20
    %v2142 = vpop.permute.xlu0 %2141
    %2143 = vrot.lane.b32.xlu0 %v1979, 20
    %v2144 = vpop.permute.xlu0 %2143
    %2145 = vrot.lane.b32.xlu0 %v1980, 20
    %v2146 = vpop.permute.xlu0 %2145
    %2147 = vrot.lane.b32.xlu0 %v1981, 20
    %v2148 = vpop.permute.xlu0 %2147
    %2149 = vrot.lane.b32.xlu0 %v1982, 20
    %v2150 = vpop.permute.xlu0 %2149
    %2151 = vrot.lane.b32.xlu0 %v1983, 20
    %v2152 = vpop.permute.xlu0 %2151
    %2153 = vrot.lane.b32.xlu0 %v1984, 20
    %v2154 = vpop.permute.xlu0 %2153
    %2155 = vrot.lane.b32.xlu0 %v1985, 20
    %v2156 = vpop.permute.xlu0 %2155
    %2157 = vrot.lane.b32.xlu0 %v1986, 20
    %v2158 = vpop.permute.xlu0 %2157
    %2159 = vrot.lane.b32.xlu0 %v1987, 20
    %v2160 = vpop.permute.xlu0 %2159
    %2161 = vrot.lane.b32.xlu0 %v1988, 20
    %v2162 = vpop.permute.xlu0 %2161
    %2163 = vrot.lane.b32.xlu0 %v1989, 20
    %v2164 = vpop.permute.xlu0 %2163
    %2165 = vrot.lane.b32.xlu0 %v1990, 20
    %v2166 = vpop.permute.xlu0 %2165
    %2167 = vrot.lane.b32.xlu0 %v1991, 20
    %v2168 = vpop.permute.xlu0 %2167
    %2169 = vrot.lane.b32.xlu0 %v1992, 20
    %v2170 = vpop.permute.xlu0 %2169
    %2171 = vrot.lane.b32.xlu0 %v1993, 20
    %v2172 = vpop.permute.xlu0 %2171
    %2173 = vrot.lane.b32.xlu0 %v1994, 20
    %v2174 = vpop.permute.xlu0 %2173
    %2175 = vrot.lane.b32.xlu0 %v1995, 20
    %v2176 = vpop.permute.xlu0 %2175
    %2177 = vrot.lane.b32.xlu0 %v1996, 20
    %v2178 = vpop.permute.xlu0 %2177
    %2179 = vrot.lane.b32.xlu0 %v1997, 20
    %v2180 = vpop.permute.xlu0 %2179
    %2181 = vrot.lane.b32.xlu0 %v1998, 20
    %v2182 = vpop.permute.xlu0 %2181
    %2183 = vrot.lane.b32.xlu0 %v1999, 20
    %v2184 = vpop.permute.xlu0 %2183
    %2185 = vrot.lane.b32.xlu0 %v2000, 20
    %v2186 = vpop.permute.xlu0 %2185
    %2187 = vrot.lane.b32.xlu0 %v2001, 20
    %v2188 = vpop.permute.xlu0 %2187
    %2189 = vrot.lane.b32.xlu0 %v2002, 20
    %v2190 = vpop.permute.xlu0 %2189
    %2191 = vrot.lane.b32.xlu0 %v2003, 20
    %v2192 = vpop.permute.xlu0 %2191
    %2193 = vrot.lane.b32.xlu0 %v2004, 20
    %v2194 = vpop.permute.xlu0 %2193
    %2195 = vrot.lane.b32.xlu0 %v2005, 20
    %v2196 = vpop.permute.xlu0 %2195
    %2197 = vrot.lane.b32.xlu0 %v2006, 20
    %v2198 = vpop.permute.xlu0 %2197
    %vm2263 = vcmask 195744
    %2264 = vst.msk [vmem:[#allocation3] sm:$0xff] %vm2263, %v2072
    %2265 = vst.msk [vmem:[#allocation3 + $0x8] sm:$0xff] %vm2263, %v2074
    %2266 = vst.msk [vmem:[#allocation3 + $0x10] sm:$0xff] %vm2263, %v2076
    %2267 = vst.msk [vmem:[#allocation3 + $0x18] sm:$0xff] %vm2263, %v2078
    %2268 = vst.msk [vmem:[#allocation3 + $0x20] sm:$0xff] %vm2263, %v2080
    %2269 = vst.msk [vmem:[#allocation3 + $0x28] sm:$0xff] %vm2263, %v2082
    %2270 = vst.msk [vmem:[#allocation3 + $0x30] sm:$0xff] %vm2263, %v2084
    %2271 = vst.msk [vmem:[#allocation3 + $0x38] sm:$0xff] %vm2263, %v2086
    %2272 = vst.msk [vmem:[#allocation3 + $0x40] sm:$0xff] %vm2263, %v2088
    %2273 = vst.msk [vmem:[#allocation3 + $0x48] sm:$0xff] %vm2263, %v2090
    %2274 = vst.msk [vmem:[#allocation3 + $0x50] sm:$0xff] %vm2263, %v2092
    %2275 = vst.msk [vmem:[#allocation3 + $0x58] sm:$0xff] %vm2263, %v2094
    %2276 = vst.msk [vmem:[#allocation3 + $0x60] sm:$0xff] %vm2263, %v2096
    %2277 = vst.msk [vmem:[#allocation3 + $0x68] sm:$0xff] %vm2263, %v2098
    %2278 = vst.msk [vmem:[#allocation3 + $0x70] sm:$0xff] %vm2263, %v2100
    %2279 = vst.msk [vmem:[#allocation3 + $0x78] sm:$0xff] %vm2263, %v2102
    %2280 = vst.msk [vmem:[#allocation3 + $0x80] sm:$0xff] %vm2263, %v2104
    %2281 = vst.msk [vmem:[#allocation3 + $0x88] sm:$0xff] %vm2263, %v2106
    %2282 = vst.msk [vmem:[#allocation3 + $0x90] sm:$0xff] %vm2263, %v2108
    %2283 = vst.msk [vmem:[#allocation3 + $0x98] sm:$0xff] %vm2263, %v2110
    %2284 = vst.msk [vmem:[#allocation3 + $0xa0] sm:$0xff] %vm2263, %v2112
    %2285 = vst.msk [vmem:[#allocation3 + $0xa8] sm:$0xff] %vm2263, %v2114
    %2286 = vst.msk [vmem:[#allocation3 + $0xb0] sm:$0xff] %vm2263, %v2116
    %2287 = vst.msk [vmem:[#allocation3 + $0xb8] sm:$0xff] %vm2263, %v2118
    %2288 = vst.msk [vmem:[#allocation3 + $0xc0] sm:$0xff] %vm2263, %v2120
    %2289 = vst.msk [vmem:[#allocation3 + $0xc8] sm:$0xff] %vm2263, %v2122
    %2290 = vst.msk [vmem:[#allocation3 + $0xd0] sm:$0xff] %vm2263, %v2124
    %2291 = vst.msk [vmem:[#allocation3 + $0xd8] sm:$0xff] %vm2263, %v2126
    %2292 = vst.msk [vmem:[#allocation3 + $0xe0] sm:$0xff] %vm2263, %v2128
    %2293 = vst.msk [vmem:[#allocation3 + $0xe8] sm:$0xff] %vm2263, %v2130
    %2294 = vst.msk [vmem:[#allocation3 + $0xf0] sm:$0xff] %vm2263, %v2132
    %2295 = vst.msk [vmem:[#allocation3 + $0xf8] sm:$0xff] %vm2263, %v2134
    %2296 = vst.msk [vmem:[#allocation3 + $0x100] sm:$0xff] %vm2263, %v2136
    %2297 = vst.msk [vmem:[#allocation3 + $0x108] sm:$0xff] %vm2263, %v2138
    %2298 = vst.msk [vmem:[#allocation3 + $0x110] sm:$0xff] %vm2263, %v2140
    %2299 = vst.msk [vmem:[#allocation3 + $0x118] sm:$0xff] %vm2263, %v2142
    %2300 = vst.msk [vmem:[#allocation3 + $0x120] sm:$0xff] %vm2263, %v2144
    %2301 = vst.msk [vmem:[#allocation3 + $0x128] sm:$0xff] %vm2263, %v2146
    %2302 = vst.msk [vmem:[#allocation3 + $0x130] sm:$0xff] %vm2263, %v2148
    %2303 = vst.msk [vmem:[#allocation3 + $0x138] sm:$0xff] %vm2263, %v2150
    %2304 = vst.msk [vmem:[#allocation3 + $0x140] sm:$0xff] %vm2263, %v2152
    %2305 = vst.msk [vmem:[#allocation3 + $0x148] sm:$0xff] %vm2263, %v2154
    %2306 = vst.msk [vmem:[#allocation3 + $0x150] sm:$0xff] %vm2263, %v2156
    %2307 = vst.msk [vmem:[#allocation3 + $0x158] sm:$0xff] %vm2263, %v2158
    %2308 = vst.msk [vmem:[#allocation3 + $0x160] sm:$0xff] %vm2263, %v2160
    %2309 = vst.msk [vmem:[#allocation3 + $0x168] sm:$0xff] %vm2263, %v2162
    %2310 = vst.msk [vmem:[#allocation3 + $0x170] sm:$0xff] %vm2263, %v2164
    %2311 = vst.msk [vmem:[#allocation3 + $0x178] sm:$0xff] %vm2263, %v2166
    %2312 = vst.msk [vmem:[#allocation3 + $0x180] sm:$0xff] %vm2263, %v2168
    %2313 = vst.msk [vmem:[#allocation3 + $0x188] sm:$0xff] %vm2263, %v2170
    %2314 = vst.msk [vmem:[#allocation3 + $0x190] sm:$0xff] %vm2263, %v2172
    %2315 = vst.msk [vmem:[#allocation3 + $0x198] sm:$0xff] %vm2263, %v2174
    %2316 = vst.msk [vmem:[#allocation3 + $0x1a0] sm:$0xff] %vm2263, %v2176
    %2317 = vst.msk [vmem:[#allocation3 + $0x1a8] sm:$0xff] %vm2263, %v2178
    %2318 = vst.msk [vmem:[#allocation3 + $0x1b0] sm:$0xff] %vm2263, %v2180
    %2319 = vst.msk [vmem:[#allocation3 + $0x1b8] sm:$0xff] %vm2263, %v2182
    %2320 = vst.msk [vmem:[#allocation3 + $0x1c0] sm:$0xff] %vm2263, %v2184
    %2321 = vst.msk [vmem:[#allocation3 + $0x1c8] sm:$0xff] %vm2263, %v2186
    %2322 = vst.msk [vmem:[#allocation3 + $0x1d0] sm:$0xff] %vm2263, %v2188
    %2323 = vst.msk [vmem:[#allocation3 + $0x1d8] sm:$0xff] %vm2263, %v2190
    %2324 = vst.msk [vmem:[#allocation3 + $0x1e0] sm:$0xff] %vm2263, %v2192
    %2325 = vst.msk [vmem:[#allocation3 + $0x1e8] sm:$0xff] %vm2263, %v2194
    %2326 = vst.msk [vmem:[#allocation3 + $0x1f0] sm:$0xff] %vm2263, %v2196
    %2327 = vst.msk [vmem:[#allocation3 + $0x1f8] sm:$0xff] %vm2263, %v2198
    %s2328 = scalar_lea.vmem [#allocation2], 48
    %v2329 = vld [vmem:[%s2328] sm:$0xff]
    %v2330 = vld [vmem:[%s2328 + $0x8] sm:$0xff]
    %v2331 = vld [vmem:[%s2328 + $0x18] sm:$0xff]
    %v2332 = vld [vmem:[%s2328 + $0x20] sm:$0xff]
    %v2333 = vld [vmem:[%s2328 + $0x30] sm:$0xff]
    %v2334 = vld [vmem:[%s2328 + $0x38] sm:$0xff]
    %v2335 = vld [vmem:[%s2328 + $0x48] sm:$0xff]
    %v2336 = vld [vmem:[%s2328 + $0x50] sm:$0xff]
    %v2337 = vld [vmem:[%s2328 + $0x60] sm:$0xff]
    %v2338 = vld [vmem:[%s2328 + $0x68] sm:$0xff]
    %v2339 = vld [vmem:[%s2328 + $0x78] sm:$0xff]
    %v2340 = vld [vmem:[%s2328 + $0x80] sm:$0xff]
    %v2341 = vld [vmem:[%s2328 + $0x90] sm:$0xff]
    %v2342 = vld [vmem:[%s2328 + $0x98] sm:$0xff]
    %v2343 = vld [vmem:[%s2328 + $0xa8] sm:$0xff]
    %v2344 = vld [vmem:[%s2328 + $0xb0] sm:$0xff]
    %v2345 = vld [vmem:[%s2328 + $0xc0] sm:$0xff]
    %v2346 = vld [vmem:[%s2328 + $0xc8] sm:$0xff]
    %v2347 = vld [vmem:[%s2328 + $0xd8] sm:$0xff]
    %v2348 = vld [vmem:[%s2328 + $0xe0] sm:$0xff]
    %v2349 = vld [vmem:[%s2328 + $0xf0] sm:$0xff]
    %v2350 = vld [vmem:[%s2328 + $0xf8] sm:$0xff]
    %v2351 = vld [vmem:[%s2328 + $0x108] sm:$0xff]
    %v2352 = vld [vmem:[%s2328 + $0x110] sm:$0xff]
    %v2353 = vld [vmem:[%s2328 + $0x120] sm:$0xff]
    %v2354 = vld [vmem:[%s2328 + $0x128] sm:$0xff]
    %v2355 = vld [vmem:[%s2328 + $0x138] sm:$0xff]
    %v2356 = vld [vmem:[%s2328 + $0x140] sm:$0xff]
    %v2357 = vld [vmem:[%s2328 + $0x150] sm:$0xff]
    %v2358 = vld [vmem:[%s2328 + $0x158] sm:$0xff]
    %v2359 = vld [vmem:[%s2328 + $0x168] sm:$0xff]
    %v2360 = vld [vmem:[%s2328 + $0x170] sm:$0xff]
    %v2361 = vld [vmem:[%s2328 + $0x1b0] sm:$0xff]
    %v2362 = vld [vmem:[%s2328 + $0x1b8] sm:$0xff]
    %v2363 = vld [vmem:[%s2328 + $0x1c8] sm:$0xff]
    %v2364 = vld [vmem:[%s2328 + $0x1d0] sm:$0xff]
    %v2365 = vld [vmem:[%s2328 + $0x1e0] sm:$0xff]
    %v2366 = vld [vmem:[%s2328 + $0x1e8] sm:$0xff]
    %v2367 = vld [vmem:[%s2328 + $0x1f8] sm:$0xff]
    %v2368 = vld [vmem:[%s2328 + $0x200] sm:$0xff]
    %v2369 = vld [vmem:[%s2328 + $0x210] sm:$0xff]
    %v2370 = vld [vmem:[%s2328 + $0x218] sm:$0xff]
    %v2371 = vld [vmem:[%s2328 + $0x228] sm:$0xff]
    %v2372 = vld [vmem:[%s2328 + $0x230] sm:$0xff]
    %v2373 = vld [vmem:[%s2328 + $0x240] sm:$0xff]
    %v2374 = vld [vmem:[%s2328 + $0x248] sm:$0xff]
    %v2375 = vld [vmem:[%s2328 + $0x258] sm:$0xff]
    %v2376 = vld [vmem:[%s2328 + $0x260] sm:$0xff]
    %v2377 = vld [vmem:[%s2328 + $0x270] sm:$0xff]
    %v2378 = vld [vmem:[%s2328 + $0x278] sm:$0xff]
    %v2379 = vld [vmem:[%s2328 + $0x288] sm:$0xff]
    %v2380 = vld [vmem:[%s2328 + $0x290] sm:$0xff]
    %v2381 = vld [vmem:[%s2328 + $0x2a0] sm:$0xff]
    %v2382 = vld [vmem:[%s2328 + $0x2a8] sm:$0xff]
    %v2383 = vld [vmem:[%s2328 + $0x2b8] sm:$0xff]
    %v2384 = vld [vmem:[%s2328 + $0x2c0] sm:$0xff]
    %v2385 = vld [vmem:[%s2328 + $0x2d0] sm:$0xff]
    %v2386 = vld [vmem:[%s2328 + $0x2d8] sm:$0xff]
    %v2387 = vld [vmem:[%s2328 + $0x2e8] sm:$0xff]
    %v2388 = vld [vmem:[%s2328 + $0x2f0] sm:$0xff]
    %v2389 = vld [vmem:[%s2328 + $0x300] sm:$0xff]
    %v2390 = vld [vmem:[%s2328 + $0x308] sm:$0xff]
    %v2391 = vld [vmem:[%s2328 + $0x318] sm:$0xff]
    %v2392 = vld [vmem:[%s2328 + $0x320] sm:$0xff]
    %2457 = vrot.lane.b32.xlu0 %v2329, 24
    %v2458 = vpop.permute.xlu0 %2457
    %2459 = vrot.lane.b32.xlu0 %v2330, 24
    %v2460 = vpop.permute.xlu0 %2459
    %2461 = vrot.lane.b32.xlu0 %v2331, 24
    %v2462 = vpop.permute.xlu0 %2461
    %2463 = vrot.lane.b32.xlu0 %v2332, 24
    %v2464 = vpop.permute.xlu0 %2463
    %2465 = vrot.lane.b32.xlu0 %v2333, 24
    %v2466 = vpop.permute.xlu0 %2465
    %2467 = vrot.lane.b32.xlu0 %v2334, 24
    %v2468 = vpop.permute.xlu0 %2467
    %2469 = vrot.lane.b32.xlu0 %v2335, 24
    %v2470 = vpop.permute.xlu0 %2469
    %2471 = vrot.lane.b32.xlu0 %v2336, 24
    %v2472 = vpop.permute.xlu0 %2471
    %2473 = vrot.lane.b32.xlu0 %v2337, 24
    %v2474 = vpop.permute.xlu0 %2473
    %2475 = vrot.lane.b32.xlu0 %v2338, 24
    %v2476 = vpop.permute.xlu0 %2475
    %2477 = vrot.lane.b32.xlu0 %v2339, 24
    %v2478 = vpop.permute.xlu0 %2477
    %2479 = vrot.lane.b32.xlu0 %v2340, 24
    %v2480 = vpop.permute.xlu0 %2479
    %2481 = vrot.lane.b32.xlu0 %v2341, 24
    %v2482 = vpop.permute.xlu0 %2481
    %2483 = vrot.lane.b32.xlu0 %v2342, 24
    %v2484 = vpop.permute.xlu0 %2483
    %2485 = vrot.lane.b32.xlu0 %v2343, 24
    %v2486 = vpop.permute.xlu0 %2485
    %2487 = vrot.lane.b32.xlu0 %v2344, 24
    %v2488 = vpop.permute.xlu0 %2487
    %2489 = vrot.lane.b32.xlu0 %v2345, 24
    %v2490 = vpop.permute.xlu0 %2489
    %2491 = vrot.lane.b32.xlu0 %v2346, 24
    %v2492 = vpop.permute.xlu0 %2491
    %2493 = vrot.lane.b32.xlu0 %v2347, 24
    %v2494 = vpop.permute.xlu0 %2493
    %2495 = vrot.lane.b32.xlu0 %v2348, 24
    %v2496 = vpop.permute.xlu0 %2495
    %2497 = vrot.lane.b32.xlu0 %v2349, 24
    %v2498 = vpop.permute.xlu0 %2497
    %2499 = vrot.lane.b32.xlu0 %v2350, 24
    %v2500 = vpop.permute.xlu0 %2499
    %2501 = vrot.lane.b32.xlu0 %v2351, 24
    %v2502 = vpop.permute.xlu0 %2501
    %2503 = vrot.lane.b32.xlu0 %v2352, 24
    %v2504 = vpop.permute.xlu0 %2503
    %2505 = vrot.lane.b32.xlu0 %v2353, 24
    %v2506 = vpop.permute.xlu0 %2505
    %2507 = vrot.lane.b32.xlu0 %v2354, 24
    %v2508 = vpop.permute.xlu0 %2507
    %2509 = vrot.lane.b32.xlu0 %v2355, 24
    %v2510 = vpop.permute.xlu0 %2509
    %2511 = vrot.lane.b32.xlu0 %v2356, 24
    %v2512 = vpop.permute.xlu0 %2511
    %2513 = vrot.lane.b32.xlu0 %v2357, 24
    %v2514 = vpop.permute.xlu0 %2513
    %2515 = vrot.lane.b32.xlu0 %v2358, 24
    %v2516 = vpop.permute.xlu0 %2515
    %2517 = vrot.lane.b32.xlu0 %v2359, 24
    %v2518 = vpop.permute.xlu0 %2517
    %2519 = vrot.lane.b32.xlu0 %v2360, 24
    %v2520 = vpop.permute.xlu0 %2519
    %2521 = vrot.lane.b32.xlu0 %v2361, 24
    %v2522 = vpop.permute.xlu0 %2521
    %2523 = vrot.lane.b32.xlu0 %v2362, 24
    %v2524 = vpop.permute.xlu0 %2523
    %2525 = vrot.lane.b32.xlu0 %v2363, 24
    %v2526 = vpop.permute.xlu0 %2525
    %2527 = vrot.lane.b32.xlu0 %v2364, 24
    %v2528 = vpop.permute.xlu0 %2527
    %2529 = vrot.lane.b32.xlu0 %v2365, 24
    %v2530 = vpop.permute.xlu0 %2529
    %2531 = vrot.lane.b32.xlu0 %v2366, 24
    %v2532 = vpop.permute.xlu0 %2531
    %2533 = vrot.lane.b32.xlu0 %v2367, 24
    %v2534 = vpop.permute.xlu0 %2533
    %2535 = vrot.lane.b32.xlu0 %v2368, 24
    %v2536 = vpop.permute.xlu0 %2535
    %2537 = vrot.lane.b32.xlu0 %v2369, 24
    %v2538 = vpop.permute.xlu0 %2537
    %2539 = vrot.lane.b32.xlu0 %v2370, 24
    %v2540 = vpop.permute.xlu0 %2539
    %2541 = vrot.lane.b32.xlu0 %v2371, 24
    %v2542 = vpop.permute.xlu0 %2541
    %2543 = vrot.lane.b32.xlu0 %v2372, 24
    %v2544 = vpop.permute.xlu0 %2543
    %2545 = vrot.lane.b32.xlu0 %v2373, 24
    %v2546 = vpop.permute.xlu0 %2545
    %2547 = vrot.lane.b32.xlu0 %v2374, 24
    %v2548 = vpop.permute.xlu0 %2547
    %2549 = vrot.lane.b32.xlu0 %v2375, 24
    %v2550 = vpop.permute.xlu0 %2549
    %2551 = vrot.lane.b32.xlu0 %v2376, 24
    %v2552 = vpop.permute.xlu0 %2551
    %2553 = vrot.lane.b32.xlu0 %v2377, 24
    %v2554 = vpop.permute.xlu0 %2553
    %2555 = vrot.lane.b32.xlu0 %v2378, 24
    %v2556 = vpop.permute.xlu0 %2555
    %2557 = vrot.lane.b32.xlu0 %v2379, 24
    %v2558 = vpop.permute.xlu0 %2557
    %2559 = vrot.lane.b32.xlu0 %v2380, 24
    %v2560 = vpop.permute.xlu0 %2559
    %2561 = vrot.lane.b32.xlu0 %v2381, 24
    %v2562 = vpop.permute.xlu0 %2561
    %2563 = vrot.lane.b32.xlu0 %v2382, 24
    %v2564 = vpop.permute.xlu0 %2563
    %2565 = vrot.lane.b32.xlu0 %v2383, 24
    %v2566 = vpop.permute.xlu0 %2565
    %2567 = vrot.lane.b32.xlu0 %v2384, 24
    %v2568 = vpop.permute.xlu0 %2567
    %2569 = vrot.lane.b32.xlu0 %v2385, 24
    %v2570 = vpop.permute.xlu0 %2569
    %2571 = vrot.lane.b32.xlu0 %v2386, 24
    %v2572 = vpop.permute.xlu0 %2571
    %2573 = vrot.lane.b32.xlu0 %v2387, 24
    %v2574 = vpop.permute.xlu0 %2573
    %2575 = vrot.lane.b32.xlu0 %v2388, 24
    %v2576 = vpop.permute.xlu0 %2575
    %2577 = vrot.lane.b32.xlu0 %v2389, 24
    %v2578 = vpop.permute.xlu0 %2577
    %2579 = vrot.lane.b32.xlu0 %v2390, 24
    %v2580 = vpop.permute.xlu0 %2579
    %2581 = vrot.lane.b32.xlu0 %v2391, 24
    %v2582 = vpop.permute.xlu0 %2581
    %2583 = vrot.lane.b32.xlu0 %v2392, 24
    %v2584 = vpop.permute.xlu0 %2583
    %vm2649 = vcmask 228544
    %2650 = vst.msk [vmem:[#allocation3] sm:$0xff] %vm2649, %v2458
    %2651 = vst.msk [vmem:[#allocation3 + $0x8] sm:$0xff] %vm2649, %v2460
    %2652 = vst.msk [vmem:[#allocation3 + $0x10] sm:$0xff] %vm2649, %v2462
    %2653 = vst.msk [vmem:[#allocation3 + $0x18] sm:$0xff] %vm2649, %v2464
    %2654 = vst.msk [vmem:[#allocation3 + $0x20] sm:$0xff] %vm2649, %v2466
    %2655 = vst.msk [vmem:[#allocation3 + $0x28] sm:$0xff] %vm2649, %v2468
    %2656 = vst.msk [vmem:[#allocation3 + $0x30] sm:$0xff] %vm2649, %v2470
    %2657 = vst.msk [vmem:[#allocation3 + $0x38] sm:$0xff] %vm2649, %v2472
    %2658 = vst.msk [vmem:[#allocation3 + $0x40] sm:$0xff] %vm2649, %v2474
    %2659 = vst.msk [vmem:[#allocation3 + $0x48] sm:$0xff] %vm2649, %v2476
    %2660 = vst.msk [vmem:[#allocation3 + $0x50] sm:$0xff] %vm2649, %v2478
    %2661 = vst.msk [vmem:[#allocation3 + $0x58] sm:$0xff] %vm2649, %v2480
    %2662 = vst.msk [vmem:[#allocation3 + $0x60] sm:$0xff] %vm2649, %v2482
    %2663 = vst.msk [vmem:[#allocation3 + $0x68] sm:$0xff] %vm2649, %v2484
    %2664 = vst.msk [vmem:[#allocation3 + $0x70] sm:$0xff] %vm2649, %v2486
    %2665 = vst.msk [vmem:[#allocation3 + $0x78] sm:$0xff] %vm2649, %v2488
    %2666 = vst.msk [vmem:[#allocation3 + $0x80] sm:$0xff] %vm2649, %v2490
    %2667 = vst.msk [vmem:[#allocation3 + $0x88] sm:$0xff] %vm2649, %v2492
    %2668 = vst.msk [vmem:[#allocation3 + $0x90] sm:$0xff] %vm2649, %v2494
    %2669 = vst.msk [vmem:[#allocation3 + $0x98] sm:$0xff] %vm2649, %v2496
    %2670 = vst.msk [vmem:[#allocation3 + $0xa0] sm:$0xff] %vm2649, %v2498
    %2671 = vst.msk [vmem:[#allocation3 + $0xa8] sm:$0xff] %vm2649, %v2500
    %2672 = vst.msk [vmem:[#allocation3 + $0xb0] sm:$0xff] %vm2649, %v2502
    %2673 = vst.msk [vmem:[#allocation3 + $0xb8] sm:$0xff] %vm2649, %v2504
    %2674 = vst.msk [vmem:[#allocation3 + $0xc0] sm:$0xff] %vm2649, %v2506
    %2675 = vst.msk [vmem:[#allocation3 + $0xc8] sm:$0xff] %vm2649, %v2508
    %2676 = vst.msk [vmem:[#allocation3 + $0xd0] sm:$0xff] %vm2649, %v2510
    %2677 = vst.msk [vmem:[#allocation3 + $0xd8] sm:$0xff] %vm2649, %v2512
    %2678 = vst.msk [vmem:[#allocation3 + $0xe0] sm:$0xff] %vm2649, %v2514
    %2679 = vst.msk [vmem:[#allocation3 + $0xe8] sm:$0xff] %vm2649, %v2516
    %2680 = vst.msk [vmem:[#allocation3 + $0xf0] sm:$0xff] %vm2649, %v2518
    %2681 = vst.msk [vmem:[#allocation3 + $0xf8] sm:$0xff] %vm2649, %v2520
    %2682 = vst.msk [vmem:[#allocation3 + $0x100] sm:$0xff] %vm2649, %v2522
    %2683 = vst.msk [vmem:[#allocation3 + $0x108] sm:$0xff] %vm2649, %v2524
    %2684 = vst.msk [vmem:[#allocation3 + $0x110] sm:$0xff] %vm2649, %v2526
    %2685 = vst.msk [vmem:[#allocation3 + $0x118] sm:$0xff] %vm2649, %v2528
    %2686 = vst.msk [vmem:[#allocation3 + $0x120] sm:$0xff] %vm2649, %v2530
    %2687 = vst.msk [vmem:[#allocation3 + $0x128] sm:$0xff] %vm2649, %v2532
    %2688 = vst.msk [vmem:[#allocation3 + $0x130] sm:$0xff] %vm2649, %v2534
    %2689 = vst.msk [vmem:[#allocation3 + $0x138] sm:$0xff] %vm2649, %v2536
    %2690 = vst.msk [vmem:[#allocation3 + $0x140] sm:$0xff] %vm2649, %v2538
    %2691 = vst.msk [vmem:[#allocation3 + $0x148] sm:$0xff] %vm2649, %v2540
    %2692 = vst.msk [vmem:[#allocation3 + $0x150] sm:$0xff] %vm2649, %v2542
    %2693 = vst.msk [vmem:[#allocation3 + $0x158] sm:$0xff] %vm2649, %v2544
    %2694 = vst.msk [vmem:[#allocation3 + $0x160] sm:$0xff] %vm2649, %v2546
    %2695 = vst.msk [vmem:[#allocation3 + $0x168] sm:$0xff] %vm2649, %v2548
    %2696 = vst.msk [vmem:[#allocation3 + $0x170] sm:$0xff] %vm2649, %v2550
    %2697 = vst.msk [vmem:[#allocation3 + $0x178] sm:$0xff] %vm2649, %v2552
    %2698 = vst.msk [vmem:[#allocation3 + $0x180] sm:$0xff] %vm2649, %v2554
    %2699 = vst.msk [vmem:[#allocation3 + $0x188] sm:$0xff] %vm2649, %v2556
    %2700 = vst.msk [vmem:[#allocation3 + $0x190] sm:$0xff] %vm2649, %v2558
    %2701 = vst.msk [vmem:[#allocation3 + $0x198] sm:$0xff] %vm2649, %v2560
    %2702 = vst.msk [vmem:[#allocation3 + $0x1a0] sm:$0xff] %vm2649, %v2562
    %2703 = vst.msk [vmem:[#allocation3 + $0x1a8] sm:$0xff] %vm2649, %v2564
    %2704 = vst.msk [vmem:[#allocation3 + $0x1b0] sm:$0xff] %vm2649, %v2566
    %2705 = vst.msk [vmem:[#allocation3 + $0x1b8] sm:$0xff] %vm2649, %v2568
    %2706 = vst.msk [vmem:[#allocation3 + $0x1c0] sm:$0xff] %vm2649, %v2570
    %2707 = vst.msk [vmem:[#allocation3 + $0x1c8] sm:$0xff] %vm2649, %v2572
    %2708 = vst.msk [vmem:[#allocation3 + $0x1d0] sm:$0xff] %vm2649, %v2574
    %2709 = vst.msk [vmem:[#allocation3 + $0x1d8] sm:$0xff] %vm2649, %v2576
    %2710 = vst.msk [vmem:[#allocation3 + $0x1e0] sm:$0xff] %vm2649, %v2578
    %2711 = vst.msk [vmem:[#allocation3 + $0x1e8] sm:$0xff] %vm2649, %v2580
    %2712 = vst.msk [vmem:[#allocation3 + $0x1f0] sm:$0xff] %vm2649, %v2582
    %2713 = vst.msk [vmem:[#allocation3 + $0x1f8] sm:$0xff] %vm2649, %v2584
    %v2714 = vld [vmem:[%s2328 + $0x1] sm:$0xff]
    %v2715 = vld [vmem:[%s2328 + $0x9] sm:$0xff]
    %v2716 = vld [vmem:[%s2328 + $0x19] sm:$0xff]
    %v2717 = vld [vmem:[%s2328 + $0x21] sm:$0xff]
    %v2718 = vld [vmem:[%s2328 + $0x31] sm:$0xff]
    %v2719 = vld [vmem:[%s2328 + $0x39] sm:$0xff]
    %v2720 = vld [vmem:[%s2328 + $0x49] sm:$0xff]
    %v2721 = vld [vmem:[%s2328 + $0x51] sm:$0xff]
    %v2722 = vld [vmem:[%s2328 + $0x61] sm:$0xff]
    %v2723 = vld [vmem:[%s2328 + $0x69] sm:$0xff]
    %v2724 = vld [vmem:[%s2328 + $0x79] sm:$0xff]
    %v2725 = vld [vmem:[%s2328 + $0x81] sm:$0xff]
    %v2726 = vld [vmem:[%s2328 + $0x91] sm:$0xff]
    %v2727 = vld [vmem:[%s2328 + $0x99] sm:$0xff]
    %v2728 = vld [vmem:[%s2328 + $0xa9] sm:$0xff]
    %v2729 = vld [vmem:[%s2328 + $0xb1] sm:$0xff]
    %v2730 = vld [vmem:[%s2328 + $0xc1] sm:$0xff]
    %v2731 = vld [vmem:[%s2328 + $0xc9] sm:$0xff]
    %v2732 = vld [vmem:[%s2328 + $0xd9] sm:$0xff]
    %v2733 = vld [vmem:[%s2328 + $0xe1] sm:$0xff]
    %v2734 = vld [vmem:[%s2328 + $0xf1] sm:$0xff]
    %v2735 = vld [vmem:[%s2328 + $0xf9] sm:$0xff]
    %v2736 = vld [vmem:[%s2328 + $0x109] sm:$0xff]
    %v2737 = vld [vmem:[%s2328 + $0x111] sm:$0xff]
    %v2738 = vld [vmem:[%s2328 + $0x121] sm:$0xff]
    %v2739 = vld [vmem:[%s2328 + $0x129] sm:$0xff]
    %v2740 = vld [vmem:[%s2328 + $0x139] sm:$0xff]
    %v2741 = vld [vmem:[%s2328 + $0x141] sm:$0xff]
    %v2742 = vld [vmem:[%s2328 + $0x151] sm:$0xff]
    %v2743 = vld [vmem:[%s2328 + $0x159] sm:$0xff]
    %v2744 = vld [vmem:[%s2328 + $0x169] sm:$0xff]
    %v2745 = vld [vmem:[%s2328 + $0x171] sm:$0xff]
    %v2746 = vld [vmem:[%s2328 + $0x1b1] sm:$0xff]
    %v2747 = vld [vmem:[%s2328 + $0x1b9] sm:$0xff]
    %v2748 = vld [vmem:[%s2328 + $0x1c9] sm:$0xff]
    %v2749 = vld [vmem:[%s2328 + $0x1d1] sm:$0xff]
    %v2750 = vld [vmem:[%s2328 + $0x1e1] sm:$0xff]
    %v2751 = vld [vmem:[%s2328 + $0x1e9] sm:$0xff]
    %v2752 = vld [vmem:[%s2328 + $0x1f9] sm:$0xff]
    %v2753 = vld [vmem:[%s2328 + $0x201] sm:$0xff]
    %v2754 = vld [vmem:[%s2328 + $0x211] sm:$0xff]
    %v2755 = vld [vmem:[%s2328 + $0x219] sm:$0xff]
    %v2756 = vld [vmem:[%s2328 + $0x229] sm:$0xff]
    %v2757 = vld [vmem:[%s2328 + $0x231] sm:$0xff]
    %v2758 = vld [vmem:[%s2328 + $0x241] sm:$0xff]
    %v2759 = vld [vmem:[%s2328 + $0x249] sm:$0xff]
    %v2760 = vld [vmem:[%s2328 + $0x259] sm:$0xff]
    %v2761 = vld [vmem:[%s2328 + $0x261] sm:$0xff]
    %v2762 = vld [vmem:[%s2328 + $0x271] sm:$0xff]
    %v2763 = vld [vmem:[%s2328 + $0x279] sm:$0xff]
    %v2764 = vld [vmem:[%s2328 + $0x289] sm:$0xff]
    %v2765 = vld [vmem:[%s2328 + $0x291] sm:$0xff]
    %v2766 = vld [vmem:[%s2328 + $0x2a1] sm:$0xff]
    %v2767 = vld [vmem:[%s2328 + $0x2a9] sm:$0xff]
    %v2768 = vld [vmem:[%s2328 + $0x2b9] sm:$0xff]
    %v2769 = vld [vmem:[%s2328 + $0x2c1] sm:$0xff]
    %v2770 = vld [vmem:[%s2328 + $0x2d1] sm:$0xff]
    %v2771 = vld [vmem:[%s2328 + $0x2d9] sm:$0xff]
    %v2772 = vld [vmem:[%s2328 + $0x2e9] sm:$0xff]
    %v2773 = vld [vmem:[%s2328 + $0x2f1] sm:$0xff]
    %v2774 = vld [vmem:[%s2328 + $0x301] sm:$0xff]
    %v2775 = vld [vmem:[%s2328 + $0x309] sm:$0xff]
    %v2776 = vld [vmem:[%s2328 + $0x319] sm:$0xff]
    %v2777 = vld [vmem:[%s2328 + $0x321] sm:$0xff]
    %2842 = vrot.lane.b32.xlu0 %v2714, 28
    %v2843 = vpop.permute.xlu0 %2842
    %2844 = vrot.lane.b32.xlu0 %v2715, 28
    %v2845 = vpop.permute.xlu0 %2844
    %2846 = vrot.lane.b32.xlu0 %v2716, 28
    %v2847 = vpop.permute.xlu0 %2846
    %2848 = vrot.lane.b32.xlu0 %v2717, 28
    %v2849 = vpop.permute.xlu0 %2848
    %2850 = vrot.lane.b32.xlu0 %v2718, 28
    %v2851 = vpop.permute.xlu0 %2850
    %2852 = vrot.lane.b32.xlu0 %v2719, 28
    %v2853 = vpop.permute.xlu0 %2852
    %2854 = vrot.lane.b32.xlu0 %v2720, 28
    %v2855 = vpop.permute.xlu0 %2854
    %2856 = vrot.lane.b32.xlu0 %v2721, 28
    %v2857 = vpop.permute.xlu0 %2856
    %2858 = vrot.lane.b32.xlu0 %v2722, 28
    %v2859 = vpop.permute.xlu0 %2858
    %2860 = vrot.lane.b32.xlu0 %v2723, 28
    %v2861 = vpop.permute.xlu0 %2860
    %2862 = vrot.lane.b32.xlu0 %v2724, 28
    %v2863 = vpop.permute.xlu0 %2862
    %2864 = vrot.lane.b32.xlu0 %v2725, 28
    %v2865 = vpop.permute.xlu0 %2864
    %2866 = vrot.lane.b32.xlu0 %v2726, 28
    %v2867 = vpop.permute.xlu0 %2866
    %2868 = vrot.lane.b32.xlu0 %v2727, 28
    %v2869 = vpop.permute.xlu0 %2868
    %2870 = vrot.lane.b32.xlu0 %v2728, 28
    %v2871 = vpop.permute.xlu0 %2870
    %2872 = vrot.lane.b32.xlu0 %v2729, 28
    %v2873 = vpop.permute.xlu0 %2872
    %2874 = vrot.lane.b32.xlu0 %v2730, 28
    %v2875 = vpop.permute.xlu0 %2874
    %2876 = vrot.lane.b32.xlu0 %v2731, 28
    %v2877 = vpop.permute.xlu0 %2876
    %2878 = vrot.lane.b32.xlu0 %v2732, 28
    %v2879 = vpop.permute.xlu0 %2878
    %2880 = vrot.lane.b32.xlu0 %v2733, 28
    %v2881 = vpop.permute.xlu0 %2880
    %2882 = vrot.lane.b32.xlu0 %v2734, 28
    %v2883 = vpop.permute.xlu0 %2882
    %2884 = vrot.lane.b32.xlu0 %v2735, 28
    %v2885 = vpop.permute.xlu0 %2884
    %2886 = vrot.lane.b32.xlu0 %v2736, 28
    %v2887 = vpop.permute.xlu0 %2886
    %2888 = vrot.lane.b32.xlu0 %v2737, 28
    %v2889 = vpop.permute.xlu0 %2888
    %2890 = vrot.lane.b32.xlu0 %v2738, 28
    %v2891 = vpop.permute.xlu0 %2890
    %2892 = vrot.lane.b32.xlu0 %v2739, 28
    %v2893 = vpop.permute.xlu0 %2892
    %2894 = vrot.lane.b32.xlu0 %v2740, 28
    %v2895 = vpop.permute.xlu0 %2894
    %2896 = vrot.lane.b32.xlu0 %v2741, 28
    %v2897 = vpop.permute.xlu0 %2896
    %2898 = vrot.lane.b32.xlu0 %v2742, 28
    %v2899 = vpop.permute.xlu0 %2898
    %2900 = vrot.lane.b32.xlu0 %v2743, 28
    %v2901 = vpop.permute.xlu0 %2900
    %2902 = vrot.lane.b32.xlu0 %v2744, 28
    %v2903 = vpop.permute.xlu0 %2902
    %2904 = vrot.lane.b32.xlu0 %v2745, 28
    %v2905 = vpop.permute.xlu0 %2904
    %2906 = vrot.lane.b32.xlu0 %v2746, 28
    %v2907 = vpop.permute.xlu0 %2906
    %2908 = vrot.lane.b32.xlu0 %v2747, 28
    %v2909 = vpop.permute.xlu0 %2908
    %2910 = vrot.lane.b32.xlu0 %v2748, 28
    %v2911 = vpop.permute.xlu0 %2910
    %2912 = vrot.lane.b32.xlu0 %v2749, 28
    %v2913 = vpop.permute.xlu0 %2912
    %2914 = vrot.lane.b32.xlu0 %v2750, 28
    %v2915 = vpop.permute.xlu0 %2914
    %2916 = vrot.lane.b32.xlu0 %v2751, 28
    %v2917 = vpop.permute.xlu0 %2916
    %2918 = vrot.lane.b32.xlu0 %v2752, 28
    %v2919 = vpop.permute.xlu0 %2918
    %2920 = vrot.lane.b32.xlu0 %v2753, 28
    %v2921 = vpop.permute.xlu0 %2920
    %2922 = vrot.lane.b32.xlu0 %v2754, 28
    %v2923 = vpop.permute.xlu0 %2922
    %2924 = vrot.lane.b32.xlu0 %v2755, 28
    %v2925 = vpop.permute.xlu0 %2924
    %2926 = vrot.lane.b32.xlu0 %v2756, 28
    %v2927 = vpop.permute.xlu0 %2926
    %2928 = vrot.lane.b32.xlu0 %v2757, 28
    %v2929 = vpop.permute.xlu0 %2928
    %2930 = vrot.lane.b32.xlu0 %v2758, 28
    %v2931 = vpop.permute.xlu0 %2930
    %2932 = vrot.lane.b32.xlu0 %v2759, 28
    %v2933 = vpop.permute.xlu0 %2932
    %2934 = vrot.lane.b32.xlu0 %v2760, 28
    %v2935 = vpop.permute.xlu0 %2934
    %2936 = vrot.lane.b32.xlu0 %v2761, 28
    %v2937 = vpop.permute.xlu0 %2936
    %2938 = vrot.lane.b32.xlu0 %v2762, 28
    %v2939 = vpop.permute.xlu0 %2938
    %2940 = vrot.lane.b32.xlu0 %v2763, 28
    %v2941 = vpop.permute.xlu0 %2940
    %2942 = vrot.lane.b32.xlu0 %v2764, 28
    %v2943 = vpop.permute.xlu0 %2942
    %2944 = vrot.lane.b32.xlu0 %v2765, 28
    %v2945 = vpop.permute.xlu0 %2944
    %2946 = vrot.lane.b32.xlu0 %v2766, 28
    %v2947 = vpop.permute.xlu0 %2946
    %2948 = vrot.lane.b32.xlu0 %v2767, 28
    %v2949 = vpop.permute.xlu0 %2948
    %2950 = vrot.lane.b32.xlu0 %v2768, 28
    %v2951 = vpop.permute.xlu0 %2950
    %2952 = vrot.lane.b32.xlu0 %v2769, 28
    %v2953 = vpop.permute.xlu0 %2952
    %2954 = vrot.lane.b32.xlu0 %v2770, 28
    %v2955 = vpop.permute.xlu0 %2954
    %2956 = vrot.lane.b32.xlu0 %v2771, 28
    %v2957 = vpop.permute.xlu0 %2956
    %2958 = vrot.lane.b32.xlu0 %v2772, 28
    %v2959 = vpop.permute.xlu0 %2958
    %2960 = vrot.lane.b32.xlu0 %v2773, 28
    %v2961 = vpop.permute.xlu0 %2960
    %2962 = vrot.lane.b32.xlu0 %v2774, 28
    %v2963 = vpop.permute.xlu0 %2962
    %2964 = vrot.lane.b32.xlu0 %v2775, 28
    %v2965 = vpop.permute.xlu0 %2964
    %2966 = vrot.lane.b32.xlu0 %v2776, 28
    %v2967 = vpop.permute.xlu0 %2966
    %2968 = vrot.lane.b32.xlu0 %v2777, 28
    %v2969 = vpop.permute.xlu0 %2968
    %vm3034 = vcmask 261344
    %3035 = vst.msk [vmem:[#allocation3] sm:$0xff] %vm3034, %v2843
    %3036 = vst.msk [vmem:[#allocation3 + $0x8] sm:$0xff] %vm3034, %v2845
    %3037 = vst.msk [vmem:[#allocation3 + $0x10] sm:$0xff] %vm3034, %v2847
    %3038 = vst.msk [vmem:[#allocation3 + $0x18] sm:$0xff] %vm3034, %v2849
    %3039 = vst.msk [vmem:[#allocation3 + $0x20] sm:$0xff] %vm3034, %v2851
    %3040 = vst.msk [vmem:[#allocation3 + $0x28] sm:$0xff] %vm3034, %v2853
    %3041 = vst.msk [vmem:[#allocation3 + $0x30] sm:$0xff] %vm3034, %v2855
    %3042 = vst.msk [vmem:[#allocation3 + $0x38] sm:$0xff] %vm3034, %v2857
    %3043 = vst.msk [vmem:[#allocation3 + $0x40] sm:$0xff] %vm3034, %v2859
    %3044 = vst.msk [vmem:[#allocation3 + $0x48] sm:$0xff] %vm3034, %v2861
    %3045 = vst.msk [vmem:[#allocation3 + $0x50] sm:$0xff] %vm3034, %v2863
    %3046 = vst.msk [vmem:[#allocation3 + $0x58] sm:$0xff] %vm3034, %v2865
    %3047 = vst.msk [vmem:[#allocation3 + $0x60] sm:$0xff] %vm3034, %v2867
    %3048 = vst.msk [vmem:[#allocation3 + $0x68] sm:$0xff] %vm3034, %v2869
    %3049 = vst.msk [vmem:[#allocation3 + $0x70] sm:$0xff] %vm3034, %v2871
    %3050 = vst.msk [vmem:[#allocation3 + $0x78] sm:$0xff] %vm3034, %v2873
    %3051 = vst.msk [vmem:[#allocation3 + $0x80] sm:$0xff] %vm3034, %v2875
    %3052 = vst.msk [vmem:[#allocation3 + $0x88] sm:$0xff] %vm3034, %v2877
    %3053 = vst.msk [vmem:[#allocation3 + $0x90] sm:$0xff] %vm3034, %v2879
    %3054 = vst.msk [vmem:[#allocation3 + $0x98] sm:$0xff] %vm3034, %v2881
    %3055 = vst.msk [vmem:[#allocation3 + $0xa0] sm:$0xff] %vm3034, %v2883
    %3056 = vst.msk [vmem:[#allocation3 + $0xa8] sm:$0xff] %vm3034, %v2885
    %3057 = vst.msk [vmem:[#allocation3 + $0xb0] sm:$0xff] %vm3034, %v2887
    %3058 = vst.msk [vmem:[#allocation3 + $0xb8] sm:$0xff] %vm3034, %v2889
    %3059 = vst.msk [vmem:[#allocation3 + $0xc0] sm:$0xff] %vm3034, %v2891
    %3060 = vst.msk [vmem:[#allocation3 + $0xc8] sm:$0xff] %vm3034, %v2893
    %3061 = vst.msk [vmem:[#allocation3 + $0xd0] sm:$0xff] %vm3034, %v2895
    %3062 = vst.msk [vmem:[#allocation3 + $0xd8] sm:$0xff] %vm3034, %v2897
    %3063 = vst.msk [vmem:[#allocation3 + $0xe0] sm:$0xff] %vm3034, %v2899
    %3064 = vst.msk [vmem:[#allocation3 + $0xe8] sm:$0xff] %vm3034, %v2901
    %3065 = vst.msk [vmem:[#allocation3 + $0xf0] sm:$0xff] %vm3034, %v2903
    %3066 = vst.msk [vmem:[#allocation3 + $0xf8] sm:$0xff] %vm3034, %v2905
    %3067 = vst.msk [vmem:[#allocation3 + $0x100] sm:$0xff] %vm3034, %v2907
    %3068 = vst.msk [vmem:[#allocation3 + $0x108] sm:$0xff] %vm3034, %v2909
    %3069 = vst.msk [vmem:[#allocation3 + $0x110] sm:$0xff] %vm3034, %v2911
    %3070 = vst.msk [vmem:[#allocation3 + $0x118] sm:$0xff] %vm3034, %v2913
    %3071 = vst.msk [vmem:[#allocation3 + $0x120] sm:$0xff] %vm3034, %v2915
    %3072 = vst.msk [vmem:[#allocation3 + $0x128] sm:$0xff] %vm3034, %v2917
    %3073 = vst.msk [vmem:[#allocation3 + $0x130] sm:$0xff] %vm3034, %v2919
    %3074 = vst.msk [vmem:[#allocation3 + $0x138] sm:$0xff] %vm3034, %v2921
    %3075 = vst.msk [vmem:[#allocation3 + $0x140] sm:$0xff] %vm3034, %v2923
    %3076 = vst.msk [vmem:[#allocation3 + $0x148] sm:$0xff] %vm3034, %v2925
    %3077 = vst.msk [vmem:[#allocation3 + $0x150] sm:$0xff] %vm3034, %v2927
    %3078 = vst.msk [vmem:[#allocation3 + $0x158] sm:$0xff] %vm3034, %v2929
    %3079 = vst.msk [vmem:[#allocation3 + $0x160] sm:$0xff] %vm3034, %v2931
    %3080 = vst.msk [vmem:[#allocation3 + $0x168] sm:$0xff] %vm3034, %v2933
    %3081 = vst.msk [vmem:[#allocation3 + $0x170] sm:$0xff] %vm3034, %v2935
    %3082 = vst.msk [vmem:[#allocation3 + $0x178] sm:$0xff] %vm3034, %v2937
    %3083 = vst.msk [vmem:[#allocation3 + $0x180] sm:$0xff] %vm3034, %v2939
    %3084 = vst.msk [vmem:[#allocation3 + $0x188] sm:$0xff] %vm3034, %v2941
    %3085 = vst.msk [vmem:[#allocation3 + $0x190] sm:$0xff] %vm3034, %v2943
    %3086 = vst.msk [vmem:[#allocation3 + $0x198] sm:$0xff] %vm3034, %v2945
    %3087 = vst.msk [vmem:[#allocation3 + $0x1a0] sm:$0xff] %vm3034, %v2947
    %3088 = vst.msk [vmem:[#allocation3 + $0x1a8] sm:$0xff] %vm3034, %v2949
    %3089 = vst.msk [vmem:[#allocation3 + $0x1b0] sm:$0xff] %vm3034, %v2951
    %3090 = vst.msk [vmem:[#allocation3 + $0x1b8] sm:$0xff] %vm3034, %v2953
    %3091 = vst.msk [vmem:[#allocation3 + $0x1c0] sm:$0xff] %vm3034, %v2955
    %3092 = vst.msk [vmem:[#allocation3 + $0x1c8] sm:$0xff] %vm3034, %v2957
    %3093 = vst.msk [vmem:[#allocation3 + $0x1d0] sm:$0xff] %vm3034, %v2959
    %3094 = vst.msk [vmem:[#allocation3 + $0x1d8] sm:$0xff] %vm3034, %v2961
    %3095 = vst.msk [vmem:[#allocation3 + $0x1e0] sm:$0xff] %vm3034, %v2963
    %3096 = vst.msk [vmem:[#allocation3 + $0x1e8] sm:$0xff] %vm3034, %v2965
    %3097 = vst.msk [vmem:[#allocation3 + $0x1f0] sm:$0xff] %vm3034, %v2967
    %3098 = vst.msk [vmem:[#allocation3 + $0x1f8] sm:$0xff] %vm3034, %v2969
    %v3099 = vld [vmem:[%s2328 + $0x2] sm:$0xff]
    %v3100 = vld [vmem:[%s2328 + $0xa] sm:$0xff]
    %v3101 = vld [vmem:[%s2328 + $0x1a] sm:$0xff]
    %v3102 = vld [vmem:[%s2328 + $0x22] sm:$0xff]
    %v3103 = vld [vmem:[%s2328 + $0x32] sm:$0xff]
    %v3104 = vld [vmem:[%s2328 + $0x3a] sm:$0xff]
    %v3105 = vld [vmem:[%s2328 + $0x4a] sm:$0xff]
    %v3106 = vld [vmem:[%s2328 + $0x52] sm:$0xff]
    %v3107 = vld [vmem:[%s2328 + $0x62] sm:$0xff]
    %v3108 = vld [vmem:[%s2328 + $0x6a] sm:$0xff]
    %v3109 = vld [vmem:[%s2328 + $0x7a] sm:$0xff]
    %v3110 = vld [vmem:[%s2328 + $0x82] sm:$0xff]
    %v3111 = vld [vmem:[%s2328 + $0x92] sm:$0xff]
    %v3112 = vld [vmem:[%s2328 + $0x9a] sm:$0xff]
    %v3113 = vld [vmem:[%s2328 + $0xaa] sm:$0xff]
    %v3114 = vld [vmem:[%s2328 + $0xb2] sm:$0xff]
    %v3115 = vld [vmem:[%s2328 + $0xc2] sm:$0xff]
    %v3116 = vld [vmem:[%s2328 + $0xca] sm:$0xff]
    %v3117 = vld [vmem:[%s2328 + $0xda] sm:$0xff]
    %v3118 = vld [vmem:[%s2328 + $0xe2] sm:$0xff]
    %v3119 = vld [vmem:[%s2328 + $0xf2] sm:$0xff]
    %v3120 = vld [vmem:[%s2328 + $0xfa] sm:$0xff]
    %v3121 = vld [vmem:[%s2328 + $0x10a] sm:$0xff]
    %v3122 = vld [vmem:[%s2328 + $0x112] sm:$0xff]
    %v3123 = vld [vmem:[%s2328 + $0x122] sm:$0xff]
    %v3124 = vld [vmem:[%s2328 + $0x12a] sm:$0xff]
    %v3125 = vld [vmem:[%s2328 + $0x13a] sm:$0xff]
    %v3126 = vld [vmem:[%s2328 + $0x142] sm:$0xff]
    %v3127 = vld [vmem:[%s2328 + $0x152] sm:$0xff]
    %v3128 = vld [vmem:[%s2328 + $0x15a] sm:$0xff]
    %v3129 = vld [vmem:[%s2328 + $0x16a] sm:$0xff]
    %v3130 = vld [vmem:[%s2328 + $0x172] sm:$0xff]
    %v3131 = vld [vmem:[%s2328 + $0x1b2] sm:$0xff]
    %v3132 = vld [vmem:[%s2328 + $0x1ba] sm:$0xff]
    %v3133 = vld [vmem:[%s2328 + $0x1ca] sm:$0xff]
    %v3134 = vld [vmem:[%s2328 + $0x1d2] sm:$0xff]
    %v3135 = vld [vmem:[%s2328 + $0x1e2] sm:$0xff]
    %v3136 = vld [vmem:[%s2328 + $0x1ea] sm:$0xff]
    %v3137 = vld [vmem:[%s2328 + $0x1fa] sm:$0xff]
    %v3138 = vld [vmem:[%s2328 + $0x202] sm:$0xff]
    %v3139 = vld [vmem:[%s2328 + $0x212] sm:$0xff]
    %v3140 = vld [vmem:[%s2328 + $0x21a] sm:$0xff]
    %v3141 = vld [vmem:[%s2328 + $0x22a] sm:$0xff]
    %v3142 = vld [vmem:[%s2328 + $0x232] sm:$0xff]
    %v3143 = vld [vmem:[%s2328 + $0x242] sm:$0xff]
    %v3144 = vld [vmem:[%s2328 + $0x24a] sm:$0xff]
    %v3145 = vld [vmem:[%s2328 + $0x25a] sm:$0xff]
    %v3146 = vld [vmem:[%s2328 + $0x262] sm:$0xff]
    %v3147 = vld [vmem:[%s2328 + $0x272] sm:$0xff]
    %v3148 = vld [vmem:[%s2328 + $0x27a] sm:$0xff]
    %v3149 = vld [vmem:[%s2328 + $0x28a] sm:$0xff]
    %v3150 = vld [vmem:[%s2328 + $0x292] sm:$0xff]
    %v3151 = vld [vmem:[%s2328 + $0x2a2] sm:$0xff]
    %v3152 = vld [vmem:[%s2328 + $0x2aa] sm:$0xff]
    %v3153 = vld [vmem:[%s2328 + $0x2ba] sm:$0xff]
    %v3154 = vld [vmem:[%s2328 + $0x2c2] sm:$0xff]
    %v3155 = vld [vmem:[%s2328 + $0x2d2] sm:$0xff]
    %v3156 = vld [vmem:[%s2328 + $0x2da] sm:$0xff]
    %v3157 = vld [vmem:[%s2328 + $0x2ea] sm:$0xff]
    %v3158 = vld [vmem:[%s2328 + $0x2f2] sm:$0xff]
    %v3159 = vld [vmem:[%s2328 + $0x302] sm:$0xff]
    %v3160 = vld [vmem:[%s2328 + $0x30a] sm:$0xff]
    %v3161 = vld [vmem:[%s2328 + $0x31a] sm:$0xff]
    %v3162 = vld [vmem:[%s2328 + $0x322] sm:$0xff]
    %3227 = vrot.lane.b32.xlu0 %v3099, 32
    %v3228 = vpop.permute.xlu0 %3227
    %3229 = vrot.lane.b32.xlu0 %v3100, 32
    %v3230 = vpop.permute.xlu0 %3229
    %3231 = vrot.lane.b32.xlu0 %v3101, 32
    %v3232 = vpop.permute.xlu0 %3231
    %3233 = vrot.lane.b32.xlu0 %v3102, 32
    %v3234 = vpop.permute.xlu0 %3233
    %3235 = vrot.lane.b32.xlu0 %v3103, 32
    %v3236 = vpop.permute.xlu0 %3235
    %3237 = vrot.lane.b32.xlu0 %v3104, 32
    %v3238 = vpop.permute.xlu0 %3237
    %3239 = vrot.lane.b32.xlu0 %v3105, 32
    %v3240 = vpop.permute.xlu0 %3239
    %3241 = vrot.lane.b32.xlu0 %v3106, 32
    %v3242 = vpop.permute.xlu0 %3241
    %3243 = vrot.lane.b32.xlu0 %v3107, 32
    %v3244 = vpop.permute.xlu0 %3243
    %3245 = vrot.lane.b32.xlu0 %v3108, 32
    %v3246 = vpop.permute.xlu0 %3245
    %3247 = vrot.lane.b32.xlu0 %v3109, 32
    %v3248 = vpop.permute.xlu0 %3247
    %3249 = vrot.lane.b32.xlu0 %v3110, 32
    %v3250 = vpop.permute.xlu0 %3249
    %3251 = vrot.lane.b32.xlu0 %v3111, 32
    %v3252 = vpop.permute.xlu0 %3251
    %3253 = vrot.lane.b32.xlu0 %v3112, 32
    %v3254 = vpop.permute.xlu0 %3253
    %3255 = vrot.lane.b32.xlu0 %v3113, 32
    %v3256 = vpop.permute.xlu0 %3255
    %3257 = vrot.lane.b32.xlu0 %v3114, 32
    %v3258 = vpop.permute.xlu0 %3257
    %3259 = vrot.lane.b32.xlu0 %v3115, 32
    %v3260 = vpop.permute.xlu0 %3259
    %3261 = vrot.lane.b32.xlu0 %v3116, 32
    %v3262 = vpop.permute.xlu0 %3261
    %3263 = vrot.lane.b32.xlu0 %v3117, 32
    %v3264 = vpop.permute.xlu0 %3263
    %3265 = vrot.lane.b32.xlu0 %v3118, 32
    %v3266 = vpop.permute.xlu0 %3265
    %3267 = vrot.lane.b32.xlu0 %v3119, 32
    %v3268 = vpop.permute.xlu0 %3267
    %3269 = vrot.lane.b32.xlu0 %v3120, 32
    %v3270 = vpop.permute.xlu0 %3269
    %3271 = vrot.lane.b32.xlu0 %v3121, 32
    %v3272 = vpop.permute.xlu0 %3271
    %3273 = vrot.lane.b32.xlu0 %v3122, 32
    %v3274 = vpop.permute.xlu0 %3273
    %3275 = vrot.lane.b32.xlu0 %v3123, 32
    %v3276 = vpop.permute.xlu0 %3275
    %3277 = vrot.lane.b32.xlu0 %v3124, 32
    %v3278 = vpop.permute.xlu0 %3277
    %3279 = vrot.lane.b32.xlu0 %v3125, 32
    %v3280 = vpop.permute.xlu0 %3279
    %3281 = vrot.lane.b32.xlu0 %v3126, 32
    %v3282 = vpop.permute.xlu0 %3281
    %3283 = vrot.lane.b32.xlu0 %v3127, 32
    %v3284 = vpop.permute.xlu0 %3283
    %3285 = vrot.lane.b32.xlu0 %v3128, 32
    %v3286 = vpop.permute.xlu0 %3285
    %3287 = vrot.lane.b32.xlu0 %v3129, 32
    %v3288 = vpop.permute.xlu0 %3287
    %3289 = vrot.lane.b32.xlu0 %v3130, 32
    %v3290 = vpop.permute.xlu0 %3289
    %3291 = vrot.lane.b32.xlu0 %v3131, 32
    %v3292 = vpop.permute.xlu0 %3291
    %3293 = vrot.lane.b32.xlu0 %v3132, 32
    %v3294 = vpop.permute.xlu0 %3293
    %3295 = vrot.lane.b32.xlu0 %v3133, 32
    %v3296 = vpop.permute.xlu0 %3295
    %3297 = vrot.lane.b32.xlu0 %v3134, 32
    %v3298 = vpop.permute.xlu0 %3297
    %3299 = vrot.lane.b32.xlu0 %v3135, 32
    %v3300 = vpop.permute.xlu0 %3299
    %3301 = vrot.lane.b32.xlu0 %v3136, 32
    %v3302 = vpop.permute.xlu0 %3301
    %3303 = vrot.lane.b32.xlu0 %v3137, 32
    %v3304 = vpop.permute.xlu0 %3303
    %3305 = vrot.lane.b32.xlu0 %v3138, 32
    %v3306 = vpop.permute.xlu0 %3305
    %3307 = vrot.lane.b32.xlu0 %v3139, 32
    %v3308 = vpop.permute.xlu0 %3307
    %3309 = vrot.lane.b32.xlu0 %v3140, 32
    %v3310 = vpop.permute.xlu0 %3309
    %3311 = vrot.lane.b32.xlu0 %v3141, 32
    %v3312 = vpop.permute.xlu0 %3311
    %3313 = vrot.lane.b32.xlu0 %v3142, 32
    %v3314 = vpop.permute.xlu0 %3313
    %3315 = vrot.lane.b32.xlu0 %v3143, 32
    %v3316 = vpop.permute.xlu0 %3315
    %3317 = vrot.lane.b32.xlu0 %v3144, 32
    %v3318 = vpop.permute.xlu0 %3317
    %3319 = vrot.lane.b32.xlu0 %v3145, 32
    %v3320 = vpop.permute.xlu0 %3319
    %3321 = vrot.lane.b32.xlu0 %v3146, 32
    %v3322 = vpop.permute.xlu0 %3321
    %3323 = vrot.lane.b32.xlu0 %v3147, 32
    %v3324 = vpop.permute.xlu0 %3323
    %3325 = vrot.lane.b32.xlu0 %v3148, 32
    %v3326 = vpop.permute.xlu0 %3325
    %3327 = vrot.lane.b32.xlu0 %v3149, 32
    %v3328 = vpop.permute.xlu0 %3327
    %3329 = vrot.lane.b32.xlu0 %v3150, 32
    %v3330 = vpop.permute.xlu0 %3329
    %3331 = vrot.lane.b32.xlu0 %v3151, 32
    %v3332 = vpop.permute.xlu0 %3331
    %3333 = vrot.lane.b32.xlu0 %v3152, 32
    %v3334 = vpop.permute.xlu0 %3333
    %3335 = vrot.lane.b32.xlu0 %v3153, 32
    %v3336 = vpop.permute.xlu0 %3335
    %3337 = vrot.lane.b32.xlu0 %v3154, 32
    %v3338 = vpop.permute.xlu0 %3337
    %3339 = vrot.lane.b32.xlu0 %v3155, 32
    %v3340 = vpop.permute.xlu0 %3339
    %3341 = vrot.lane.b32.xlu0 %v3156, 32
    %v3342 = vpop.permute.xlu0 %3341
    %3343 = vrot.lane.b32.xlu0 %v3157, 32
    %v3344 = vpop.permute.xlu0 %3343
    %3345 = vrot.lane.b32.xlu0 %v3158, 32
    %v3346 = vpop.permute.xlu0 %3345
    %3347 = vrot.lane.b32.xlu0 %v3159, 32
    %v3348 = vpop.permute.xlu0 %3347
    %3349 = vrot.lane.b32.xlu0 %v3160, 32
    %v3350 = vpop.permute.xlu0 %3349
    %3351 = vrot.lane.b32.xlu0 %v3161, 32
    %v3352 = vpop.permute.xlu0 %3351
    %3353 = vrot.lane.b32.xlu0 %v3162, 32
    %v3354 = vpop.permute.xlu0 %3353
    %vm3419 = vcmask 294144
    %3420 = vst.msk [vmem:[#allocation3] sm:$0xff] %vm3419, %v3228
    %3421 = vst.msk [vmem:[#allocation3 + $0x8] sm:$0xff] %vm3419, %v3230
    %3422 = vst.msk [vmem:[#allocation3 + $0x10] sm:$0xff] %vm3419, %v3232
    %3423 = vst.msk [vmem:[#allocation3 + $0x18] sm:$0xff] %vm3419, %v3234
    %3424 = vst.msk [vmem:[#allocation3 + $0x20] sm:$0xff] %vm3419, %v3236
    %3425 = vst.msk [vmem:[#allocation3 + $0x28] sm:$0xff] %vm3419, %v3238
    %3426 = vst.msk [vmem:[#allocation3 + $0x30] sm:$0xff] %vm3419, %v3240
    %3427 = vst.msk [vmem:[#allocation3 + $0x38] sm:$0xff] %vm3419, %v3242
    %3428 = vst.msk [vmem:[#allocation3 + $0x40] sm:$0xff] %vm3419, %v3244
    %3429 = vst.msk [vmem:[#allocation3 + $0x48] sm:$0xff] %vm3419, %v3246
    %3430 = vst.msk [vmem:[#allocation3 + $0x50] sm:$0xff] %vm3419, %v3248
    %3431 = vst.msk [vmem:[#allocation3 + $0x58] sm:$0xff] %vm3419, %v3250
    %3432 = vst.msk [vmem:[#allocation3 + $0x60] sm:$0xff] %vm3419, %v3252
    %3433 = vst.msk [vmem:[#allocation3 + $0x68] sm:$0xff] %vm3419, %v3254
    %3434 = vst.msk [vmem:[#allocation3 + $0x70] sm:$0xff] %vm3419, %v3256
    %3435 = vst.msk [vmem:[#allocation3 + $0x78] sm:$0xff] %vm3419, %v3258
    %3436 = vst.msk [vmem:[#allocation3 + $0x80] sm:$0xff] %vm3419, %v3260
    %3437 = vst.msk [vmem:[#allocation3 + $0x88] sm:$0xff] %vm3419, %v3262
    %3438 = vst.msk [vmem:[#allocation3 + $0x90] sm:$0xff] %vm3419, %v3264
    %3439 = vst.msk [vmem:[#allocation3 + $0x98] sm:$0xff] %vm3419, %v3266
    %3440 = vst.msk [vmem:[#allocation3 + $0xa0] sm:$0xff] %vm3419, %v3268
    %3441 = vst.msk [vmem:[#allocation3 + $0xa8] sm:$0xff] %vm3419, %v3270
    %3442 = vst.msk [vmem:[#allocation3 + $0xb0] sm:$0xff] %vm3419, %v3272
    %3443 = vst.msk [vmem:[#allocation3 + $0xb8] sm:$0xff] %vm3419, %v3274
    %3444 = vst.msk [vmem:[#allocation3 + $0xc0] sm:$0xff] %vm3419, %v3276
    %3445 = vst.msk [vmem:[#allocation3 + $0xc8] sm:$0xff] %vm3419, %v3278
    %3446 = vst.msk [vmem:[#allocation3 + $0xd0] sm:$0xff] %vm3419, %v3280
    %3447 = vst.msk [vmem:[#allocation3 + $0xd8] sm:$0xff] %vm3419, %v3282
    %3448 = vst.msk [vmem:[#allocation3 + $0xe0] sm:$0xff] %vm3419, %v3284
    %3449 = vst.msk [vmem:[#allocation3 + $0xe8] sm:$0xff] %vm3419, %v3286
    %3450 = vst.msk [vmem:[#allocation3 + $0xf0] sm:$0xff] %vm3419, %v3288
    %3451 = vst.msk [vmem:[#allocation3 + $0xf8] sm:$0xff] %vm3419, %v3290
    %3452 = vst.msk [vmem:[#allocation3 + $0x100] sm:$0xff] %vm3419, %v3292
    %3453 = vst.msk [vmem:[#allocation3 + $0x108] sm:$0xff] %vm3419, %v3294
    %3454 = vst.msk [vmem:[#allocation3 + $0x110] sm:$0xff] %vm3419, %v3296
    %3455 = vst.msk [vmem:[#allocation3 + $0x118] sm:$0xff] %vm3419, %v3298
    %3456 = vst.msk [vmem:[#allocation3 + $0x120] sm:$0xff] %vm3419, %v3300
    %3457 = vst.msk [vmem:[#allocation3 + $0x128] sm:$0xff] %vm3419, %v3302
    %3458 = vst.msk [vmem:[#allocation3 + $0x130] sm:$0xff] %vm3419, %v3304
    %3459 = vst.msk [vmem:[#allocation3 + $0x138] sm:$0xff] %vm3419, %v3306
    %3460 = vst.msk [vmem:[#allocation3 + $0x140] sm:$0xff] %vm3419, %v3308
    %3461 = vst.msk [vmem:[#allocation3 + $0x148] sm:$0xff] %vm3419, %v3310
    %3462 = vst.msk [vmem:[#allocation3 + $0x150] sm:$0xff] %vm3419, %v3312
    %3463 = vst.msk [vmem:[#allocation3 + $0x158] sm:$0xff] %vm3419, %v3314
    %3464 = vst.msk [vmem:[#allocation3 + $0x160] sm:$0xff] %vm3419, %v3316
    %3465 = vst.msk [vmem:[#allocation3 + $0x168] sm:$0xff] %vm3419, %v3318
    %3466 = vst.msk [vmem:[#allocation3 + $0x170] sm:$0xff] %vm3419, %v3320
    %3467 = vst.msk [vmem:[#allocation3 + $0x178] sm:$0xff] %vm3419, %v3322
    %3468 = vst.msk [vmem:[#allocation3 + $0x180] sm:$0xff] %vm3419, %v3324
    %3469 = vst.msk [vmem:[#allocation3 + $0x188] sm:$0xff] %vm3419, %v3326
    %3470 = vst.msk [vmem:[#allocation3 + $0x190] sm:$0xff] %vm3419, %v3328
    %3471 = vst.msk [vmem:[#allocation3 + $0x198] sm:$0xff] %vm3419, %v3330
    %3472 = vst.msk [vmem:[#allocation3 + $0x1a0] sm:$0xff] %vm3419, %v3332
    %3473 = vst.msk [vmem:[#allocation3 + $0x1a8] sm:$0xff] %vm3419, %v3334
    %3474 = vst.msk [vmem:[#allocation3 + $0x1b0] sm:$0xff] %vm3419, %v3336
    %3475 = vst.msk [vmem:[#allocation3 + $0x1b8] sm:$0xff] %vm3419, %v3338
    %3476 = vst.msk [vmem:[#allocation3 + $0x1c0] sm:$0xff] %vm3419, %v3340
    %3477 = vst.msk [vmem:[#allocation3 + $0x1c8] sm:$0xff] %vm3419, %v3342
    %3478 = vst.msk [vmem:[#allocation3 + $0x1d0] sm:$0xff] %vm3419, %v3344
    %3479 = vst.msk [vmem:[#allocation3 + $0x1d8] sm:$0xff] %vm3419, %v3346
    %3480 = vst.msk [vmem:[#allocation3 + $0x1e0] sm:$0xff] %vm3419, %v3348
    %3481 = vst.msk [vmem:[#allocation3 + $0x1e8] sm:$0xff] %vm3419, %v3350
    %3482 = vst.msk [vmem:[#allocation3 + $0x1f0] sm:$0xff] %vm3419, %v3352
    %3483 = vst.msk [vmem:[#allocation3 + $0x1f8] sm:$0xff] %vm3419, %v3354
    %v3484 = vld [vmem:[#allocation3] sm:$0xff]
    %v3485 = vld [vmem:[#allocation3 + $0x8] sm:$0xff]
    %v3486 = vld [vmem:[#allocation3 + $0x10] sm:$0xff]
    %v3487 = vld [vmem:[#allocation3 + $0x18] sm:$0xff]
    %v3488 = vld [vmem:[#allocation3 + $0x20] sm:$0xff]
    %v3489 = vld [vmem:[#allocation3 + $0x28] sm:$0xff]
    %v3490 = vld [vmem:[#allocation3 + $0x30] sm:$0xff]
    %v3491 = vld [vmem:[#allocation3 + $0x38] sm:$0xff]
    %v3492 = vld [vmem:[#allocation3 + $0x40] sm:$0xff]
    %v3493 = vld [vmem:[#allocation3 + $0x48] sm:$0xff]
    %v3494 = vld [vmem:[#allocation3 + $0x50] sm:$0xff]
    %v3495 = vld [vmem:[#allocation3 + $0x58] sm:$0xff]
    %v3496 = vld [vmem:[#allocation3 + $0x60] sm:$0xff]
    %v3497 = vld [vmem:[#allocation3 + $0x68] sm:$0xff]
    %v3498 = vld [vmem:[#allocation3 + $0x70] sm:$0xff]
    %v3499 = vld [vmem:[#allocation3 + $0x78] sm:$0xff]
    %v3500 = vld [vmem:[#allocation3 + $0x80] sm:$0xff]
    %v3501 = vld [vmem:[#allocation3 + $0x88] sm:$0xff]
    %v3502 = vld [vmem:[#allocation3 + $0x90] sm:$0xff]
    %v3503 = vld [vmem:[#allocation3 + $0x98] sm:$0xff]
    %v3504 = vld [vmem:[#allocation3 + $0xa0] sm:$0xff]
    %v3505 = vld [vmem:[#allocation3 + $0xa8] sm:$0xff]
    %v3506 = vld [vmem:[#allocation3 + $0xb0] sm:$0xff]
    %v3507 = vld [vmem:[#allocation3 + $0xb8] sm:$0xff]
    %v3508 = vld [vmem:[#allocation3 + $0xc0] sm:$0xff]
    %v3509 = vld [vmem:[#allocation3 + $0xc8] sm:$0xff]
    %v3510 = vld [vmem:[#allocation3 + $0xd0] sm:$0xff]
    %v3511 = vld [vmem:[#allocation3 + $0xd8] sm:$0xff]
    %v3512 = vld [vmem:[#allocation3 + $0xe0] sm:$0xff]
    %v3513 = vld [vmem:[#allocation3 + $0xe8] sm:$0xff]
    %v3514 = vld [vmem:[#allocation3 + $0xf0] sm:$0xff]
    %v3515 = vld [vmem:[#allocation3 + $0xf8] sm:$0xff]
    %v3516 = vld [vmem:[#allocation3 + $0x100] sm:$0xff]
    %v3517 = vld [vmem:[#allocation3 + $0x108] sm:$0xff]
    %v3518 = vld [vmem:[#allocation3 + $0x110] sm:$0xff]
    %v3519 = vld [vmem:[#allocation3 + $0x118] sm:$0xff]
    %v3520 = vld [vmem:[#allocation3 + $0x120] sm:$0xff]
    %v3521 = vld [vmem:[#allocation3 + $0x128] sm:$0xff]
    %v3522 = vld [vmem:[#allocation3 + $0x130] sm:$0xff]
    %v3523 = vld [vmem:[#allocation3 + $0x138] sm:$0xff]
    %v3524 = vld [vmem:[#allocation3 + $0x140] sm:$0xff]
    %v3525 = vld [vmem:[#allocation3 + $0x148] sm:$0xff]
    %v3526 = vld [vmem:[#allocation3 + $0x150] sm:$0xff]
    %v3527 = vld [vmem:[#allocation3 + $0x158] sm:$0xff]
    %v3528 = vld [vmem:[#allocation3 + $0x160] sm:$0xff]
    %v3529 = vld [vmem:[#allocation3 + $0x168] sm:$0xff]
    %v3530 = vld [vmem:[#allocation3 + $0x170] sm:$0xff]
    %v3531 = vld [vmem:[#allocation3 + $0x178] sm:$0xff]
    %v3532 = vld [vmem:[#allocation3 + $0x180] sm:$0xff]
    %v3533 = vld [vmem:[#allocation3 + $0x188] sm:$0xff]
    %v3534 = vld [vmem:[#allocation3 + $0x190] sm:$0xff]
    %v3535 = vld [vmem:[#allocation3 + $0x198] sm:$0xff]
    %v3536 = vld [vmem:[#allocation3 + $0x1a0] sm:$0xff]
    %v3537 = vld [vmem:[#allocation3 + $0x1a8] sm:$0xff]
    %v3538 = vld [vmem:[#allocation3 + $0x1b0] sm:$0xff]
    %v3539 = vld [vmem:[#allocation3 + $0x1b8] sm:$0xff]
    %v3540 = vld [vmem:[#allocation3 + $0x1c0] sm:$0xff]
    %v3541 = vld [vmem:[#allocation3 + $0x1c8] sm:$0xff]
    %v3542 = vld [vmem:[#allocation3 + $0x1d0] sm:$0xff]
    %v3543 = vld [vmem:[#allocation3 + $0x1d8] sm:$0xff]
    %v3544 = vld [vmem:[#allocation3 + $0x1e0] sm:$0xff]
    %v3545 = vld [vmem:[#allocation3 + $0x1e8] sm:$0xff]
    %v3546 = vld [vmem:[#allocation3 + $0x1f0] sm:$0xff]
    %v3547 = vld [vmem:[#allocation3 + $0x1f8] sm:$0xff]
    %v3548 = vld [vmem:[%s1] sm:$0xff]
    %v3549 = vld [vmem:[%s1 + $0x8] sm:$0xff]
    %v3550 = vld [vmem:[%s1 + $0x10] sm:$0xff]
    %v3551 = vld [vmem:[%s1 + $0x18] sm:$0xff]
    %v3552 = vld [vmem:[%s1 + $0x20] sm:$0xf]
    %v3553 = vld [vmem:[%s2] sm:$0x1]
    %v3555 = vlaneseq
    %v3556 = vshrl.u32 %v3555, 7
    %v3557 = vsub.s32 0, %v3556
    %v3558 = vrot.slane %v3553, %v3557
    %vm3560 = vcmask 293888
    %v3562 = vsel %vm3560, %v3484, 0
    %v3565 = vsel %vm3560, %v3485, 0
    %v3568 = vsel %vm3560, %v3486, 0
    %v3571 = vsel %vm3560, %v3487, 0
    %v3574 = vsel %vm3560, %v3488, 0
    %v3577 = vsel %vm3560, %v3489, 0
    %v3580 = vsel %vm3560, %v3490, 0
    %v3583 = vsel %vm3560, %v3491, 0
    %v3586 = vsel %vm3560, %v3492, 0
    %v3589 = vsel %vm3560, %v3493, 0
    %v3592 = vsel %vm3560, %v3494, 0
    %v3595 = vsel %vm3560, %v3495, 0
    %v3598 = vsel %vm3560, %v3496, 0
    %v3601 = vsel %vm3560, %v3497, 0
    %v3604 = vsel %vm3560, %v3498, 0
    %v3607 = vsel %vm3560, %v3499, 0
    %v3610 = vsel %vm3560, %v3500, 0
    %v3613 = vsel %vm3560, %v3501, 0
    %v3616 = vsel %vm3560, %v3502, 0
    %v3619 = vsel %vm3560, %v3503, 0
    %v3622 = vsel %vm3560, %v3504, 0
    %v3625 = vsel %vm3560, %v3505, 0
    %v3628 = vsel %vm3560, %v3506, 0
    %v3631 = vsel %vm3560, %v3507, 0
    %v3634 = vsel %vm3560, %v3508, 0
    %v3637 = vsel %vm3560, %v3509, 0
    %v3640 = vsel %vm3560, %v3510, 0
    %v3643 = vsel %vm3560, %v3511, 0
    %v3646 = vsel %vm3560, %v3512, 0
    %v3649 = vsel %vm3560, %v3513, 0
    %v3652 = vsel %vm3560, %v3514, 0
    %v3655 = vsel %vm3560, %v3515, 0
    %v3658 = vsel %vm3560, %v3516, 0
    %v3661 = vsel %vm3560, %v3517, 0
    %v3664 = vsel %vm3560, %v3518, 0
    %v3667 = vsel %vm3560, %v3519, 0
    %v3670 = vsel %vm3560, %v3520, 0
    %v3673 = vsel %vm3560, %v3521, 0
    %v3676 = vsel %vm3560, %v3522, 0
    %v3679 = vsel %vm3560, %v3523, 0
    %v3682 = vsel %vm3560, %v3524, 0
    %v3685 = vsel %vm3560, %v3525, 0
    %v3688 = vsel %vm3560, %v3526, 0
    %v3691 = vsel %vm3560, %v3527, 0
    %v3694 = vsel %vm3560, %v3528, 0
    %v3697 = vsel %vm3560, %v3529, 0
    %v3700 = vsel %vm3560, %v3530, 0
    %v3703 = vsel %vm3560, %v3531, 0
    %v3706 = vsel %vm3560, %v3532, 0
    %v3709 = vsel %vm3560, %v3533, 0
    %v3712 = vsel %vm3560, %v3534, 0
    %v3715 = vsel %vm3560, %v3535, 0
    %v3718 = vsel %vm3560, %v3536, 0
    %v3721 = vsel %vm3560, %v3537, 0
    %v3724 = vsel %vm3560, %v3538, 0
    %v3727 = vsel %vm3560, %v3539, 0
    %v3730 = vsel %vm3560, %v3540, 0
    %v3733 = vsel %vm3560, %v3541, 0
    %v3736 = vsel %vm3560, %v3542, 0
    %v3739 = vsel %vm3560, %v3543, 0
    %v3742 = vsel %vm3560, %v3544, 0
    %v3745 = vsel %vm3560, %v3545, 0
    %v3748 = vsel %vm3560, %v3546, 0
    %v3751 = vsel %vm3560, %v3547, 0
    %vm3753 = vcmask 1043456
    %v3755 = vsel %vm3753, %v3552, 0
    %3757 = vmatprep.subr.mxu0 0.0
    %3758 = vmatpush1.msra.mxu0 0.0
    %3759 = vmatprep.subr.mxu0 0.0
    %3760 = vmatpush1.msra.mxu0 0.0
    %3761 = vmatprep.subr.mxu0 0.0
    %3762 = vmatpush1.msra.mxu0 0.0
    %3763 = vmatprep.subr.mxu0 0.0
    %3764 = vmatpush1.msra.mxu0 0.0
    %3765 = vmatprep.subr.mxu0 0.0
    %3766 = vmatpush1.msra.mxu0 0.0
    %3767 = vmatprep.subr.mxu0 0.0
    %3768 = vmatpush1.msra.mxu0 0.0
    %3769 = vmatprep.subr.mxu0 0.0
    %3770 = vmatpush1.msra.mxu0 0.0
    %3771 = vmatprep.subr.mxu0 0.0
    %3772 = vmatpush1.msra.mxu0 0.0
    %3773 = vmatprep.subr.mxu0 0.0
    %3774 = vmatpush1.msra.mxu0 0.0
    %3775 = vmatprep.subr.mxu0 0.0
    %3776 = vmatpush1.msra.mxu0 0.0
    %3777 = vmatprep.subr.mxu0 0.0
    %3778 = vmatpush1.msra.mxu0 0.0
    %3779 = vmatprep.subr.mxu0 0.0
    %3780 = vmatpush1.msra.mxu0 %v3755
    %3781 = vmatprep.subr.mxu0 0.0
    %3782 = vmatpush1.msra.mxu0 %v3551
    %3783 = vmatprep.subr.mxu0 0.0
    %3784 = vmatpush1.msra.mxu0 %v3550
    %3785 = vmatprep.subr.mxu0 0.0
    %3786 = vmatpush1.msra.mxu0 %v3549
    %3787 = vmatprep.subr.mxu0 0.0
    %3788 = vmatpush1.msra.mxu0 %v3548
    %3789 = vmatprep.subr.mxu0 0.0
    %3790 = vmatpush2.msra.mxu0 0.0
    %3791 = vmatprep.subr.mxu0 0.0
    %3792 = vmatpush2.msra.mxu0 0.0
    %3793 = vmatprep.subr.mxu0 0.0
    %3794 = vmatpush2.msra.mxu0 0.0
    %3795 = vmatprep.subr.mxu0 0.0
    %3796 = vmatpush2.msra.mxu0 0.0
    %3797 = vmatprep.subr.mxu0 0.0
    %3798 = vmatpush2.msra.mxu0 0.0
    %3799 = vmatprep.subr.mxu0 0.0
    %3800 = vmatpush2.msra.mxu0 0.0
    %3801 = vmatprep.subr.mxu0 0.0
    %3802 = vmatpush2.msra.mxu0 0.0
    %3803 = vmatprep.subr.mxu0 0.0
    %3804 = vmatpush2.msra.mxu0 0.0
    %3805 = vmatprep.subr.mxu0 0.0
    %3806 = vmatpush2.msra.mxu0 0.0
    %3807 = vmatprep.subr.mxu0 0.0
    %3808 = vmatpush2.msra.mxu0 0.0
    %3809 = vmatprep.subr.mxu0 0.0
    %3810 = vmatpush2.msra.mxu0 0.0
    %3811 = vmatprep.subr.mxu0 0.0
    %3812 = vmatpush2.msra.mxu0 0.0
    %3813 = vmatprep.subr.mxu0 0.0
    %3814 = vmatpush2.msra.mxu0 0.0
    %3815 = vmatprep.subr.mxu0 0.0
    %3816 = vmatpush2.msra.mxu0 0.0
    %3817 = vmatprep.subr.mxu0 0.0
    %3818 = vmatpush2.msra.mxu0 0.0
    %3819 = vmatprep.subr.mxu0 0.0
    %3820 = vmatpush2.msra.mxu0 0.0
    %3821 = vmatprep.mubr.f32.mxu0 0.0
    %3822 = vmatmul.mubr.f32.gmra.mxu0 %v3562
    %v3823 = vpop.f32.mrf.mxu0
    %v3824 = vadd.f32 %v3558, %v3823
    %v3825 = vpop.f32.mrf.mxu0
    %3826 = vmatprep.mubr.f32.mxu0 0.0
    %3827 = vmatmul.mubr.f32.gmra.mxu0 %v3565
    %v3828 = vpop.f32.mrf.mxu0
    %v3829 = vadd.f32 %v3558, %v3828
    %v3830 = vpop.f32.mrf.mxu0
    %3831 = vmatprep.mubr.f32.mxu0 0.0
    %3832 = vmatmul.mubr.f32.gmra.mxu0 %v3568
    %v3833 = vpop.f32.mrf.mxu0
    %v3834 = vadd.f32 %v3558, %v3833
    %v3835 = vpop.f32.mrf.mxu0
    %3836 = vmatprep.mubr.f32.mxu0 0.0
    %3837 = vmatmul.mubr.f32.gmra.mxu0 %v3571
    %v3838 = vpop.f32.mrf.mxu0
    %v3839 = vadd.f32 %v3558, %v3838
    %v3840 = vpop.f32.mrf.mxu0
    %3841 = vmatprep.mubr.f32.mxu0 0.0
    %3842 = vmatmul.mubr.f32.gmra.mxu0 %v3574
    %v3843 = vpop.f32.mrf.mxu0
    %v3844 = vadd.f32 %v3558, %v3843
    %v3845 = vpop.f32.mrf.mxu0
    %3846 = vmatprep.mubr.f32.mxu0 0.0
    %3847 = vmatmul.mubr.f32.gmra.mxu0 %v3577
    %v3848 = vpop.f32.mrf.mxu0
    %v3849 = vadd.f32 %v3558, %v3848
    %v3850 = vpop.f32.mrf.mxu0
    %3851 = vmatprep.mubr.f32.mxu0 0.0
    %3852 = vmatmul.mubr.f32.gmra.mxu0 %v3580
    %v3853 = vpop.f32.mrf.mxu0
    %v3854 = vadd.f32 %v3558, %v3853
    %v3855 = vpop.f32.mrf.mxu0
    %3856 = vmatprep.mubr.f32.mxu0 0.0
    %3857 = vmatmul.mubr.f32.gmra.mxu0 %v3583
    %v3858 = vpop.f32.mrf.mxu0
    %v3859 = vadd.f32 %v3558, %v3858
    %v3860 = vpop.f32.mrf.mxu0
    %3861 = vmatprep.mubr.f32.mxu0 0.0
    %3862 = vmatmul.mubr.f32.gmra.mxu0 %v3586
    %v3863 = vpop.f32.mrf.mxu0
    %v3864 = vadd.f32 %v3558, %v3863
    %v3865 = vpop.f32.mrf.mxu0
    %3866 = vmatprep.mubr.f32.mxu0 0.0
    %3867 = vmatmul.mubr.f32.gmra.mxu0 %v3589
    %v3868 = vpop.f32.mrf.mxu0
    %v3869 = vadd.f32 %v3558, %v3868
    %v3870 = vpop.f32.mrf.mxu0
    %3871 = vmatprep.mubr.f32.mxu0 0.0
    %3872 = vmatmul.mubr.f32.gmra.mxu0 %v3592
    %v3873 = vpop.f32.mrf.mxu0
    %v3874 = vadd.f32 %v3558, %v3873
    %v3875 = vpop.f32.mrf.mxu0
    %3876 = vmatprep.mubr.f32.mxu0 0.0
    %3877 = vmatmul.mubr.f32.gmra.mxu0 %v3595
    %v3878 = vpop.f32.mrf.mxu0
    %v3879 = vadd.f32 %v3558, %v3878
    %v3880 = vpop.f32.mrf.mxu0
    %3881 = vmatprep.mubr.f32.mxu0 0.0
    %3882 = vmatmul.mubr.f32.gmra.mxu0 %v3598
    %v3883 = vpop.f32.mrf.mxu0
    %v3884 = vadd.f32 %v3558, %v3883
    %v3885 = vpop.f32.mrf.mxu0
    %3886 = vmatprep.mubr.f32.mxu0 0.0
    %3887 = vmatmul.mubr.f32.gmra.mxu0 %v3601
    %v3888 = vpop.f32.mrf.mxu0
    %v3889 = vadd.f32 %v3558, %v3888
    %v3890 = vpop.f32.mrf.mxu0
    %3891 = vmatprep.mubr.f32.mxu0 0.0
    %3892 = vmatmul.mubr.f32.gmra.mxu0 %v3604
    %v3893 = vpop.f32.mrf.mxu0
    %v3894 = vadd.f32 %v3558, %v3893
    %v3895 = vpop.f32.mrf.mxu0
    %3896 = vmatprep.mubr.f32.mxu0 0.0
    %3897 = vmatmul.mubr.f32.gmra.mxu0 %v3607
    %v3898 = vpop.f32.mrf.mxu0
    %v3899 = vadd.f32 %v3558, %v3898
    %v3900 = vpop.f32.mrf.mxu0
    %3901 = vmatprep.mubr.f32.mxu0 0.0
    %3902 = vmatmul.mubr.f32.gmra.mxu0 %v3610
    %v3903 = vpop.f32.mrf.mxu0
    %v3904 = vadd.f32 %v3558, %v3903
    %v3905 = vpop.f32.mrf.mxu0
    %3906 = vmatprep.mubr.f32.mxu0 0.0
    %3907 = vmatmul.mubr.f32.gmra.mxu0 %v3613
    %v3908 = vpop.f32.mrf.mxu0
    %v3909 = vadd.f32 %v3558, %v3908
    %v3910 = vpop.f32.mrf.mxu0
    %3911 = vmatprep.mubr.f32.mxu0 0.0
    %3912 = vmatmul.mubr.f32.gmra.mxu0 %v3616
    %v3913 = vpop.f32.mrf.mxu0
    %v3914 = vadd.f32 %v3558, %v3913
    %v3915 = vpop.f32.mrf.mxu0
    %3916 = vmatprep.mubr.f32.mxu0 0.0
    %3917 = vmatmul.mubr.f32.gmra.mxu0 %v3619
    %v3918 = vpop.f32.mrf.mxu0
    %v3919 = vadd.f32 %v3558, %v3918
    %v3920 = vpop.f32.mrf.mxu0
    %3921 = vmatprep.mubr.f32.mxu0 0.0
    %3922 = vmatmul.mubr.f32.gmra.mxu0 %v3622
    %v3923 = vpop.f32.mrf.mxu0
    %v3924 = vadd.f32 %v3558, %v3923
    %v3925 = vpop.f32.mrf.mxu0
    %3926 = vmatprep.mubr.f32.mxu0 0.0
    %3927 = vmatmul.mubr.f32.gmra.mxu0 %v3625
    %v3928 = vpop.f32.mrf.mxu0
    %v3929 = vadd.f32 %v3558, %v3928
    %v3930 = vpop.f32.mrf.mxu0
    %3931 = vmatprep.mubr.f32.mxu0 0.0
    %3932 = vmatmul.mubr.f32.gmra.mxu0 %v3628
    %v3933 = vpop.f32.mrf.mxu0
    %v3934 = vadd.f32 %v3558, %v3933
    %v3935 = vpop.f32.mrf.mxu0
    %3936 = vmatprep.mubr.f32.mxu0 0.0
    %3937 = vmatmul.mubr.f32.gmra.mxu0 %v3631
    %v3938 = vpop.f32.mrf.mxu0
    %v3939 = vadd.f32 %v3558, %v3938
    %v3940 = vpop.f32.mrf.mxu0
    %3941 = vmatprep.mubr.f32.mxu0 0.0
    %3942 = vmatmul.mubr.f32.gmra.mxu0 %v3634
    %v3943 = vpop.f32.mrf.mxu0
    %v3944 = vadd.f32 %v3558, %v3943
    %v3945 = vpop.f32.mrf.mxu0
    %3946 = vmatprep.mubr.f32.mxu0 0.0
    %3947 = vmatmul.mubr.f32.gmra.mxu0 %v3637
    %v3948 = vpop.f32.mrf.mxu0
    %v3949 = vadd.f32 %v3558, %v3948
    %v3950 = vpop.f32.mrf.mxu0
    %3951 = vmatprep.mubr.f32.mxu0 0.0
    %3952 = vmatmul.mubr.f32.gmra.mxu0 %v3640
    %v3953 = vpop.f32.mrf.mxu0
    %v3954 = vadd.f32 %v3558, %v3953
    %v3955 = vpop.f32.mrf.mxu0
    %3956 = vmatprep.mubr.f32.mxu0 0.0
    %3957 = vmatmul.mubr.f32.gmra.mxu0 %v3643
    %v3958 = vpop.f32.mrf.mxu0
    %v3959 = vadd.f32 %v3558, %v3958
    %v3960 = vpop.f32.mrf.mxu0
    %3961 = vmatprep.mubr.f32.mxu0 0.0
    %3962 = vmatmul.mubr.f32.gmra.mxu0 %v3646
    %v3963 = vpop.f32.mrf.mxu0
    %v3964 = vadd.f32 %v3558, %v3963
    %v3965 = vpop.f32.mrf.mxu0
    %3966 = vmatprep.mubr.f32.mxu0 0.0
    %3967 = vmatmul.mubr.f32.gmra.mxu0 %v3649
    %v3968 = vpop.f32.mrf.mxu0
    %v3969 = vadd.f32 %v3558, %v3968
    %v3970 = vpop.f32.mrf.mxu0
    %3971 = vmatprep.mubr.f32.mxu0 0.0
    %3972 = vmatmul.mubr.f32.gmra.mxu0 %v3652
    %v3973 = vpop.f32.mrf.mxu0
    %v3974 = vadd.f32 %v3558, %v3973
    %v3975 = vpop.f32.mrf.mxu0
    %3976 = vmatprep.mubr.f32.mxu0 0.0
    %3977 = vmatmul.mubr.f32.gmra.mxu0 %v3655
    %v3978 = vpop.f32.mrf.mxu0
    %v3979 = vadd.f32 %v3558, %v3978
    %v3980 = vpop.f32.mrf.mxu0
    %3981 = vmatprep.mubr.f32.mxu0 0.0
    %3982 = vmatmul.mubr.f32.gmra.mxu0 %v3658
    %v3983 = vpop.f32.mrf.mxu0
    %v3984 = vadd.f32 %v3558, %v3983
    %v3985 = vpop.f32.mrf.mxu0
    %3986 = vmatprep.mubr.f32.mxu0 0.0
    %3987 = vmatmul.mubr.f32.gmra.mxu0 %v3661
    %v3988 = vpop.f32.mrf.mxu0
    %v3989 = vadd.f32 %v3558, %v3988
    %v3990 = vpop.f32.mrf.mxu0
    %3991 = vmatprep.mubr.f32.mxu0 0.0
    %3992 = vmatmul.mubr.f32.gmra.mxu0 %v3664
    %v3993 = vpop.f32.mrf.mxu0
    %v3994 = vadd.f32 %v3558, %v3993
    %v3995 = vpop.f32.mrf.mxu0
    %3996 = vmatprep.mubr.f32.mxu0 0.0
    %3997 = vmatmul.mubr.f32.gmra.mxu0 %v3667
    %v3998 = vpop.f32.mrf.mxu0
    %v3999 = vadd.f32 %v3558, %v3998
    %v4000 = vpop.f32.mrf.mxu0
    %4001 = vmatprep.mubr.f32.mxu0 0.0
    %4002 = vmatmul.mubr.f32.gmra.mxu0 %v3670
    %v4003 = vpop.f32.mrf.mxu0
    %v4004 = vadd.f32 %v3558, %v4003
    %v4005 = vpop.f32.mrf.mxu0
    %4006 = vmatprep.mubr.f32.mxu0 0.0
    %4007 = vmatmul.mubr.f32.gmra.mxu0 %v3673
    %v4008 = vpop.f32.mrf.mxu0
    %v4009 = vadd.f32 %v3558, %v4008
    %v4010 = vpop.f32.mrf.mxu0
    %4011 = vmatprep.mubr.f32.mxu0 0.0
    %4012 = vmatmul.mubr.f32.gmra.mxu0 %v3676
    %v4013 = vpop.f32.mrf.mxu0
    %v4014 = vadd.f32 %v3558, %v4013
    %v4015 = vpop.f32.mrf.mxu0
    %4016 = vmatprep.mubr.f32.mxu0 0.0
    %4017 = vmatmul.mubr.f32.gmra.mxu0 %v3679
    %v4018 = vpop.f32.mrf.mxu0
    %v4019 = vadd.f32 %v3558, %v4018
    %v4020 = vpop.f32.mrf.mxu0
    %4021 = vmatprep.mubr.f32.mxu0 0.0
    %4022 = vmatmul.mubr.f32.gmra.mxu0 %v3682
    %v4023 = vpop.f32.mrf.mxu0
    %v4024 = vadd.f32 %v3558, %v4023
    %v4025 = vpop.f32.mrf.mxu0
    %4026 = vmatprep.mubr.f32.mxu0 0.0
    %4027 = vmatmul.mubr.f32.gmra.mxu0 %v3685
    %v4028 = vpop.f32.mrf.mxu0
    %v4029 = vadd.f32 %v3558, %v4028
    %v4030 = vpop.f32.mrf.mxu0
    %4031 = vmatprep.mubr.f32.mxu0 0.0
    %4032 = vmatmul.mubr.f32.gmra.mxu0 %v3688
    %v4033 = vpop.f32.mrf.mxu0
    %v4034 = vadd.f32 %v3558, %v4033
    %v4035 = vpop.f32.mrf.mxu0
    %4036 = vmatprep.mubr.f32.mxu0 0.0
    %4037 = vmatmul.mubr.f32.gmra.mxu0 %v3691
    %v4038 = vpop.f32.mrf.mxu0
    %v4039 = vadd.f32 %v3558, %v4038
    %v4040 = vpop.f32.mrf.mxu0
    %4041 = vmatprep.mubr.f32.mxu0 0.0
    %4042 = vmatmul.mubr.f32.gmra.mxu0 %v3694
    %v4043 = vpop.f32.mrf.mxu0
    %v4044 = vadd.f32 %v3558, %v4043
    %v4045 = vpop.f32.mrf.mxu0
    %4046 = vmatprep.mubr.f32.mxu0 0.0
    %4047 = vmatmul.mubr.f32.gmra.mxu0 %v3697
    %v4048 = vpop.f32.mrf.mxu0
    %v4049 = vadd.f32 %v3558, %v4048
    %v4050 = vpop.f32.mrf.mxu0
    %4051 = vmatprep.mubr.f32.mxu0 0.0
    %4052 = vmatmul.mubr.f32.gmra.mxu0 %v3700
    %v4053 = vpop.f32.mrf.mxu0
    %v4054 = vadd.f32 %v3558, %v4053
    %v4055 = vpop.f32.mrf.mxu0
    %4056 = vmatprep.mubr.f32.mxu0 0.0
    %4057 = vmatmul.mubr.f32.gmra.mxu0 %v3703
    %v4058 = vpop.f32.mrf.mxu0
    %v4059 = vadd.f32 %v3558, %v4058
    %v4060 = vpop.f32.mrf.mxu0
    %4061 = vmatprep.mubr.f32.mxu0 0.0
    %4062 = vmatmul.mubr.f32.gmra.mxu0 %v3706
    %v4063 = vpop.f32.mrf.mxu0
    %v4064 = vadd.f32 %v3558, %v4063
    %v4065 = vpop.f32.mrf.mxu0
    %4066 = vmatprep.mubr.f32.mxu0 0.0
    %4067 = vmatmul.mubr.f32.gmra.mxu0 %v3709
    %v4068 = vpop.f32.mrf.mxu0
    %v4069 = vadd.f32 %v3558, %v4068
    %v4070 = vpop.f32.mrf.mxu0
    %4071 = vmatprep.mubr.f32.mxu0 0.0
    %4072 = vmatmul.mubr.f32.gmra.mxu0 %v3712
    %v4073 = vpop.f32.mrf.mxu0
    %v4074 = vadd.f32 %v3558, %v4073
    %v4075 = vpop.f32.mrf.mxu0
    %4076 = vmatprep.mubr.f32.mxu0 0.0
    %4077 = vmatmul.mubr.f32.gmra.mxu0 %v3715
    %v4078 = vpop.f32.mrf.mxu0
    %v4079 = vadd.f32 %v3558, %v4078
    %v4080 = vpop.f32.mrf.mxu0
    %4081 = vmatprep.mubr.f32.mxu0 0.0
    %4082 = vmatmul.mubr.f32.gmra.mxu0 %v3718
    %v4083 = vpop.f32.mrf.mxu0
    %v4084 = vadd.f32 %v3558, %v4083
    %v4085 = vpop.f32.mrf.mxu0
    %4086 = vmatprep.mubr.f32.mxu0 0.0
    %4087 = vmatmul.mubr.f32.gmra.mxu0 %v3721
    %v4088 = vpop.f32.mrf.mxu0
    %v4089 = vadd.f32 %v3558, %v4088
    %v4090 = vpop.f32.mrf.mxu0
    %4091 = vmatprep.mubr.f32.mxu0 0.0
    %4092 = vmatmul.mubr.f32.gmra.mxu0 %v3724
    %v4093 = vpop.f32.mrf.mxu0
    %v4094 = vadd.f32 %v3558, %v4093
    %v4095 = vpop.f32.mrf.mxu0
    %4096 = vmatprep.mubr.f32.mxu0 0.0
    %4097 = vmatmul.mubr.f32.gmra.mxu0 %v3727
    %v4098 = vpop.f32.mrf.mxu0
    %v4099 = vadd.f32 %v3558, %v4098
    %v4100 = vpop.f32.mrf.mxu0
    %4101 = vmatprep.mubr.f32.mxu0 0.0
    %4102 = vmatmul.mubr.f32.gmra.mxu0 %v3730
    %v4103 = vpop.f32.mrf.mxu0
    %v4104 = vadd.f32 %v3558, %v4103
    %v4105 = vpop.f32.mrf.mxu0
    %4106 = vmatprep.mubr.f32.mxu0 0.0
    %4107 = vmatmul.mubr.f32.gmra.mxu0 %v3733
    %v4108 = vpop.f32.mrf.mxu0
    %v4109 = vadd.f32 %v3558, %v4108
    %v4110 = vpop.f32.mrf.mxu0
    %4111 = vmatprep.mubr.f32.mxu0 0.0
    %4112 = vmatmul.mubr.f32.gmra.mxu0 %v3736
    %v4113 = vpop.f32.mrf.mxu0
    %v4114 = vadd.f32 %v3558, %v4113
    %v4115 = vpop.f32.mrf.mxu0
    %4116 = vmatprep.mubr.f32.mxu0 0.0
    %4117 = vmatmul.mubr.f32.gmra.mxu0 %v3739
    %v4118 = vpop.f32.mrf.mxu0
    %v4119 = vadd.f32 %v3558, %v4118
    %v4120 = vpop.f32.mrf.mxu0
    %4121 = vmatprep.mubr.f32.mxu0 0.0
    %4122 = vmatmul.mubr.f32.gmra.mxu0 %v3742
    %v4123 = vpop.f32.mrf.mxu0
    %v4124 = vadd.f32 %v3558, %v4123
    %v4125 = vpop.f32.mrf.mxu0
    %4126 = vmatprep.mubr.f32.mxu0 0.0
    %4127 = vmatmul.mubr.f32.gmra.mxu0 %v3745
    %v4128 = vpop.f32.mrf.mxu0
    %v4129 = vadd.f32 %v3558, %v4128
    %v4130 = vpop.f32.mrf.mxu0
    %4131 = vmatprep.mubr.f32.mxu0 0.0
    %4132 = vmatmul.mubr.f32.gmra.mxu0 %v3748
    %v4133 = vpop.f32.mrf.mxu0
    %v4134 = vadd.f32 %v3558, %v4133
    %v4135 = vpop.f32.mrf.mxu0
    %4136 = vmatprep.mubr.f32.mxu0 0.0
    %4137 = vmatmul.mubr.f32.gmra.mxu0 %v3751
    %v4138 = vpop.f32.mrf.mxu0
    %v4139 = vadd.f32 %v3558, %v4138
    %v4140 = vpop.f32.mrf.mxu0
    %4141 = vdwg.mxu0
    %v4142 = vmax.f32 %v3824, 0.0
    %v4143 = vmax.f32 %v3829, 0.0
    %v4144 = vmax.f32 %v3834, 0.0
    %v4145 = vmax.f32 %v3839, 0.0
    %v4146 = vmax.f32 %v3844, 0.0
    %v4147 = vmax.f32 %v3849, 0.0
    %v4148 = vmax.f32 %v3854, 0.0
    %v4149 = vmax.f32 %v3859, 0.0
    %v4150 = vmax.f32 %v3864, 0.0
    %v4151 = vmax.f32 %v3869, 0.0
    %v4152 = vmax.f32 %v3874, 0.0
    %v4153 = vmax.f32 %v3879, 0.0
    %v4154 = vmax.f32 %v3884, 0.0
    %v4155 = vmax.f32 %v3889, 0.0
    %v4156 = vmax.f32 %v3894, 0.0
    %v4157 = vmax.f32 %v3899, 0.0
    %v4158 = vmax.f32 %v3904, 0.0
    %v4159 = vmax.f32 %v3909, 0.0
    %v4160 = vmax.f32 %v3914, 0.0
    %v4161 = vmax.f32 %v3919, 0.0
    %v4162 = vmax.f32 %v3924, 0.0
    %v4163 = vmax.f32 %v3929, 0.0
    %v4164 = vmax.f32 %v3934, 0.0
    %v4165 = vmax.f32 %v3939, 0.0
    %v4166 = vmax.f32 %v3944, 0.0
    %v4167 = vmax.f32 %v3949, 0.0
    %v4168 = vmax.f32 %v3954, 0.0
    %v4169 = vmax.f32 %v3959, 0.0
    %v4170 = vmax.f32 %v3964, 0.0
    %v4171 = vmax.f32 %v3969, 0.0
    %v4172 = vmax.f32 %v3974, 0.0
    %v4173 = vmax.f32 %v3979, 0.0
    %v4174 = vmax.f32 %v3984, 0.0
    %v4175 = vmax.f32 %v3989, 0.0
    %v4176 = vmax.f32 %v3994, 0.0
    %v4177 = vmax.f32 %v3999, 0.0
    %v4178 = vmax.f32 %v4004, 0.0
    %v4179 = vmax.f32 %v4009, 0.0
    %v4180 = vmax.f32 %v4014, 0.0
    %v4181 = vmax.f32 %v4019, 0.0
    %v4182 = vmax.f32 %v4024, 0.0
    %v4183 = vmax.f32 %v4029, 0.0
    %v4184 = vmax.f32 %v4034, 0.0
    %v4185 = vmax.f32 %v4039, 0.0
    %v4186 = vmax.f32 %v4044, 0.0
    %v4187 = vmax.f32 %v4049, 0.0
    %v4188 = vmax.f32 %v4054, 0.0
    %v4189 = vmax.f32 %v4059, 0.0
    %v4190 = vmax.f32 %v4064, 0.0
    %v4191 = vmax.f32 %v4069, 0.0
    %v4192 = vmax.f32 %v4074, 0.0
    %v4193 = vmax.f32 %v4079, 0.0
    %v4194 = vmax.f32 %v4084, 0.0
    %v4195 = vmax.f32 %v4089, 0.0
    %v4196 = vmax.f32 %v4094, 0.0
    %v4197 = vmax.f32 %v4099, 0.0
    %v4198 = vmax.f32 %v4104, 0.0
    %v4199 = vmax.f32 %v4109, 0.0
    %v4200 = vmax.f32 %v4114, 0.0
    %v4201 = vmax.f32 %v4119, 0.0
    %v4202 = vmax.f32 %v4124, 0.0
    %v4203 = vmax.f32 %v4129, 0.0
    %v4204 = vmax.f32 %v4134, 0.0
    %v4205 = vmax.f32 %v4139, 0.0
    %vm4206 = vcmask 261120
    %4207 = vst.msk [vmem:[#allocation5] sm:$0xff] %vm4206, 0.0
    %vm4208 = vcmask 254976
    %4209 = vst.msk [vmem:[#allocation5 + $0x8] sm:$0x3] %vm4208, 0.0
    %4210 = vst.msk [vmem:[#allocation5 + $0x10] sm:$0xff] %vm4206, 0.0
    %4211 = vst.msk [vmem:[#allocation5 + $0x18] sm:$0x3] %vm4208, 0.0
    %4212 = vst.msk [vmem:[#allocation5 + $0x20] sm:$0xff] %vm4206, 0.0
    %4213 = vst.msk [vmem:[#allocation5 + $0x28] sm:$0x3] %vm4208, 0.0
    %4214 = vst.msk [vmem:[#allocation5 + $0x30] sm:$0xff] %vm4206, 0.0
    %4215 = vst.msk [vmem:[#allocation5 + $0x38] sm:$0x3] %vm4208, 0.0
    %4216 = vst.msk [vmem:[#allocation5 + $0x40] sm:$0xff] %vm4206, 0.0
    %4217 = vst.msk [vmem:[#allocation5 + $0x48] sm:$0x3] %vm4208, 0.0
    %4218 = vst.msk [vmem:[#allocation5 + $0x50] sm:$0xff] %vm4206, 0.0
    %4219 = vst.msk [vmem:[#allocation5 + $0x58] sm:$0x3] %vm4208, 0.0
    %4220 = vst.msk [vmem:[#allocation5 + $0x60] sm:$0xff] %vm4206, 0.0
    %4221 = vst.msk [vmem:[#allocation5 + $0x68] sm:$0x3] %vm4208, 0.0
    %4222 = vst.msk [vmem:[#allocation5 + $0x70] sm:$0xff] %vm4206, 0.0
    %4223 = vst.msk [vmem:[#allocation5 + $0x78] sm:$0x3] %vm4208, 0.0
    %4224 = vst.msk [vmem:[#allocation5 + $0x80] sm:$0xff] %vm4206, 0.0
    %4225 = vst.msk [vmem:[#allocation5 + $0x88] sm:$0x3] %vm4208, 0.0
    %4226 = vst.msk [vmem:[#allocation5 + $0x90] sm:$0xff] %vm4206, 0.0
    %4227 = vst.msk [vmem:[#allocation5 + $0x98] sm:$0x3] %vm4208, 0.0
    %4228 = vst.msk [vmem:[#allocation5 + $0xa0] sm:$0xff] %vm4206, 0.0
    %4229 = vst.msk [vmem:[#allocation5 + $0xa8] sm:$0x3] %vm4208, 0.0
    %4230 = vst.msk [vmem:[#allocation5 + $0xb0] sm:$0xff] %vm4206, 0.0
    %4231 = vst.msk [vmem:[#allocation5 + $0xb8] sm:$0x3] %vm4208, 0.0
    %4232 = vst.msk [vmem:[#allocation5 + $0xc0] sm:$0xff] %vm4206, 0.0
    %4233 = vst.msk [vmem:[#allocation5 + $0xc8] sm:$0x3] %vm4208, 0.0
    %4234 = vst.msk [vmem:[#allocation5 + $0xd0] sm:$0xff] %vm4206, 0.0
    %4235 = vst.msk [vmem:[#allocation5 + $0xd8] sm:$0x3] %vm4208, 0.0
    %4236 = vst.msk [vmem:[#allocation5 + $0xe0] sm:$0xff] %vm4206, 0.0
    %4237 = vst.msk [vmem:[#allocation5 + $0xe8] sm:$0x3] %vm4208, 0.0
    %4238 = vst.msk [vmem:[#allocation5 + $0xf0] sm:$0xff] %vm4206, 0.0
    %4239 = vst.msk [vmem:[#allocation5 + $0xf8] sm:$0x3] %vm4208, 0.0
    %4240 = vst.msk [vmem:[#allocation5 + $0x100] sm:$0xff] %vm4206, 0.0
    %4241 = vst.msk [vmem:[#allocation5 + $0x108] sm:$0x3] %vm4208, 0.0
    %4242 = vst.msk [vmem:[#allocation5 + $0x110] sm:$0xff] %vm4206, 0.0
    %4243 = vst.msk [vmem:[#allocation5 + $0x118] sm:$0x3] %vm4208, 0.0
    %4244 = vst.msk [vmem:[#allocation5 + $0x120] sm:$0xff] %vm4206, 0.0
    %4245 = vst.msk [vmem:[#allocation5 + $0x128] sm:$0x3] %vm4208, 0.0
    %4246 = vst.msk [vmem:[#allocation5 + $0x130] sm:$0xff] %vm4206, 0.0
    %4247 = vst.msk [vmem:[#allocation5 + $0x138] sm:$0x3] %vm4208, 0.0
    %v4248 = vmax.f32 %v4142, %v4144
    %v4249 = vmax.f32 %v4143, %v4145
    %v4250 = vmax.f32 %v4174, %v4176
    %v4251 = vmax.f32 %v4175, %v4177
    %4252 = vst.msk [vmem:[#allocation4] sm:$0xff] %vm4206, %v4248
    %4253 = vst.msk [vmem:[#allocation4 + $0x8] sm:$0xff] %vm4206, %v4249
    %4254 = vst.msk [vmem:[#allocation4 + $0x80] sm:$0xff] %vm4206, %v4250
    %4255 = vst.msk [vmem:[#allocation4 + $0x88] sm:$0xff] %vm4206, %v4251
    %v4256 = vmax.f32 %v4146, %v4148
    %v4257 = vmax.f32 %v4147, %v4149
    %v4258 = vmax.f32 %v4178, %v4180
    %v4259 = vmax.f32 %v4179, %v4181
    %s4260 = scalar_lea.vmem [#allocation4], 16
    %4261 = vst.msk [vmem:[%s4260] sm:$0xff] %vm4206, %v4256
    %4262 = vst.msk [vmem:[%s4260 + $0x8] sm:$0xff] %vm4206, %v4257
    %4263 = vst.msk [vmem:[%s4260 + $0x80] sm:$0xff] %vm4206, %v4258
    %4264 = vst.msk [vmem:[%s4260 + $0x88] sm:$0xff] %vm4206, %v4259
    %v4265 = vmax.f32 %v4150, %v4152
    %v4266 = vmax.f32 %v4151, %v4153
    %v4267 = vmax.f32 %v4182, %v4184
    %v4268 = vmax.f32 %v4183, %v4185
    %s4269 = scalar_lea.vmem [#allocation4], 32
    %4270 = vst.msk [vmem:[%s4269] sm:$0xff] %vm4206, %v4265
    %4271 = vst.msk [vmem:[%s4269 + $0x8] sm:$0xff] %vm4206, %v4266
    %4272 = vst.msk [vmem:[%s4269 + $0x80] sm:$0xff] %vm4206, %v4267
    %4273 = vst.msk [vmem:[%s4269 + $0x88] sm:$0xff] %vm4206, %v4268
    %v4274 = vmax.f32 %v4154, %v4156
    %v4275 = vmax.f32 %v4155, %v4157
    %v4276 = vmax.f32 %v4186, %v4188
    %v4277 = vmax.f32 %v4187, %v4189
    %s4278 = scalar_lea.vmem [#allocation4], 48
    %4279 = vst.msk [vmem:[%s4278] sm:$0xff] %vm4206, %v4274
    %4280 = vst.msk [vmem:[%s4278 + $0x8] sm:$0xff] %vm4206, %v4275
    %4281 = vst.msk [vmem:[%s4278 + $0x80] sm:$0xff] %vm4206, %v4276
    %4282 = vst.msk [vmem:[%s4278 + $0x88] sm:$0xff] %vm4206, %v4277
    %v4283 = vmax.f32 %v4158, %v4160
    %v4284 = vmax.f32 %v4159, %v4161
    %v4285 = vmax.f32 %v4190, %v4192
    %v4286 = vmax.f32 %v4191, %v4193
    %s4287 = scalar_lea.vmem [#allocation4], 64
    %4288 = vst.msk [vmem:[%s4287] sm:$0xff] %vm4206, %v4283
    %4289 = vst.msk [vmem:[%s4287 + $0x8] sm:$0xff] %vm4206, %v4284
    %4290 = vst.msk [vmem:[%s4287 + $0x80] sm:$0xff] %vm4206, %v4285
    %4291 = vst.msk [vmem:[%s4287 + $0x88] sm:$0xff] %vm4206, %v4286
    %v4292 = vmax.f32 %v4162, %v4164
    %v4293 = vmax.f32 %v4163, %v4165
    %v4294 = vmax.f32 %v4194, %v4196
    %v4295 = vmax.f32 %v4195, %v4197
    %s4296 = scalar_lea.vmem [#allocation4], 80
    %4297 = vst.msk [vmem:[%s4296] sm:$0xff] %vm4206, %v4292
    %4298 = vst.msk [vmem:[%s4296 + $0x8] sm:$0xff] %vm4206, %v4293
    %4299 = vst.msk [vmem:[%s4296 + $0x80] sm:$0xff] %vm4206, %v4294
    %4300 = vst.msk [vmem:[%s4296 + $0x88] sm:$0xff] %vm4206, %v4295
    %v4301 = vmax.f32 %v4166, %v4168
    %v4302 = vmax.f32 %v4167, %v4169
    %v4303 = vmax.f32 %v4198, %v4200
    %v4304 = vmax.f32 %v4199, %v4201
    %s4305 = scalar_lea.vmem [#allocation4], 96
    %4306 = vst.msk [vmem:[%s4305] sm:$0xff] %vm4206, %v4301
    %4307 = vst.msk [vmem:[%s4305 + $0x8] sm:$0xff] %vm4206, %v4302
    %4308 = vst.msk [vmem:[%s4305 + $0x80] sm:$0xff] %vm4206, %v4303
    %4309 = vst.msk [vmem:[%s4305 + $0x88] sm:$0xff] %vm4206, %v4304
    %v4310 = vmax.f32 %v4170, %v4172
    %v4311 = vmax.f32 %v4171, %v4173
    %v4312 = vmax.f32 %v4202, %v4204
    %v4313 = vmax.f32 %v4203, %v4205
    %s4314 = scalar_lea.vmem [#allocation4], 112
    %4315 = vst.msk [vmem:[%s4314] sm:$0xff] %vm4206, %v4310
    %4316 = vst.msk [vmem:[%s4314 + $0x8] sm:$0xff] %vm4206, %v4311
    %4317 = vst.msk [vmem:[%s4314 + $0x80] sm:$0xff] %vm4206, %v4312
    %4318 = vst.msk [vmem:[%s4314 + $0x88] sm:$0xff] %vm4206, %v4313
    %v4319 = vld [vmem:[#allocation4] sm:$0x1]
    %v4320 = vld [vmem:[#allocation4 + $0x10] sm:$0x1]
    %v4321 = vld [vmem:[#allocation4 + $0x20] sm:$0x1]
    %v4322 = vld [vmem:[#allocation4 + $0x30] sm:$0x1]
    %v4323 = vld [vmem:[#allocation4 + $0x40] sm:$0x1]
    %v4324 = vld [vmem:[#allocation4 + $0x50] sm:$0x1]
    %v4325 = vld [vmem:[#allocation4 + $0x60] sm:$0x1]
    %v4326 = vld [vmem:[#allocation4 + $0x70] sm:$0x1]
    %v4327 = vld [vmem:[#allocation4 + $0x80] sm:$0x1]
    %v4328 = vld [vmem:[#allocation4 + $0x90] sm:$0x1]
    %v4329 = vld [vmem:[#allocation4 + $0xa0] sm:$0x1]
    %v4330 = vld [vmem:[#allocation4 + $0xb0] sm:$0x1]
    %v4331 = vld [vmem:[#allocation4 + $0xc0] sm:$0x1]
    %v4332 = vld [vmem:[#allocation4 + $0xd0] sm:$0x1]
    %v4333 = vld [vmem:[#allocation4 + $0xe0] sm:$0x1]
    %v4334 = vld [vmem:[#allocation4 + $0xf0] sm:$0x1]
    %v4335 = vld [vmem:[#allocation4 + $0x1] sm:$0x1]
    %v4336 = vld [vmem:[#allocation4 + $0x11] sm:$0x1]
    %v4337 = vld [vmem:[#allocation4 + $0x21] sm:$0x1]
    %v4338 = vld [vmem:[#allocation4 + $0x31] sm:$0x1]
    %v4339 = vld [vmem:[#allocation4 + $0x41] sm:$0x1]
    %v4340 = vld [vmem:[#allocation4 + $0x51] sm:$0x1]
    %v4341 = vld [vmem:[#allocation4 + $0x61] sm:$0x1]
    %v4342 = vld [vmem:[#allocation4 + $0x71] sm:$0x1]
    %v4343 = vld [vmem:[#allocation4 + $0x81] sm:$0x1]
    %v4344 = vld [vmem:[#allocation4 + $0x91] sm:$0x1]
    %v4345 = vld [vmem:[#allocation4 + $0xa1] sm:$0x1]
    %v4346 = vld [vmem:[#allocation4 + $0xb1] sm:$0x1]
    %v4347 = vld [vmem:[#allocation4 + $0xc1] sm:$0x1]
    %v4348 = vld [vmem:[#allocation4 + $0xd1] sm:$0x1]
    %v4349 = vld [vmem:[#allocation4 + $0xe1] sm:$0x1]
    %v4350 = vld [vmem:[#allocation4 + $0xf1] sm:$0x1]
    %v4351 = vmax.f32 %v4319, %v4335
    %v4352 = vmax.f32 %v4320, %v4336
    %v4353 = vmax.f32 %v4321, %v4337
    %v4354 = vmax.f32 %v4322, %v4338
    %v4355 = vmax.f32 %v4323, %v4339
    %v4356 = vmax.f32 %v4324, %v4340
    %v4357 = vmax.f32 %v4325, %v4341
    %v4358 = vmax.f32 %v4326, %v4342
    %v4359 = vmax.f32 %v4327, %v4343
    %v4360 = vmax.f32 %v4328, %v4344
    %v4361 = vmax.f32 %v4329, %v4345
    %v4362 = vmax.f32 %v4330, %v4346
    %v4363 = vmax.f32 %v4331, %v4347
    %v4364 = vmax.f32 %v4332, %v4348
    %v4365 = vmax.f32 %v4333, %v4349
    %v4366 = vmax.f32 %v4334, %v4350
    %s4367 = scalar_lea.vmem [#allocation5], 16
    %vm4368 = vcmask 253952
    %4369 = vst.msk [vmem:[%s4367 + $0x1] sm:$0x1] %vm4368, %v4351
    %4370 = vst.msk [vmem:[%s4367 + $0x11] sm:$0x1] %vm4368, %v4352
    %4371 = vst.msk [vmem:[%s4367 + $0x21] sm:$0x1] %vm4368, %v4353
    %4372 = vst.msk [vmem:[%s4367 + $0x31] sm:$0x1] %vm4368, %v4354
    %4373 = vst.msk [vmem:[%s4367 + $0x41] sm:$0x1] %vm4368, %v4355
    %4374 = vst.msk [vmem:[%s4367 + $0x51] sm:$0x1] %vm4368, %v4356
    %4375 = vst.msk [vmem:[%s4367 + $0x61] sm:$0x1] %vm4368, %v4357
    %4376 = vst.msk [vmem:[%s4367 + $0x71] sm:$0x1] %vm4368, %v4358
    %4377 = vst.msk [vmem:[%s4367 + $0xa1] sm:$0x1] %vm4368, %v4359
    %4378 = vst.msk [vmem:[%s4367 + $0xb1] sm:$0x1] %vm4368, %v4360
    %4379 = vst.msk [vmem:[%s4367 + $0xc1] sm:$0x1] %vm4368, %v4361
    %4380 = vst.msk [vmem:[%s4367 + $0xd1] sm:$0x1] %vm4368, %v4362
    %4381 = vst.msk [vmem:[%s4367 + $0xe1] sm:$0x1] %vm4368, %v4363
    %4382 = vst.msk [vmem:[%s4367 + $0xf1] sm:$0x1] %vm4368, %v4364
    %4383 = vst.msk [vmem:[%s4367 + $0x101] sm:$0x1] %vm4368, %v4365
    %4384 = vst.msk [vmem:[%s4367 + $0x111] sm:$0x1] %vm4368, %v4366
    %v4385 = vld [vmem:[#allocation4 + $0x2] sm:$0x1]
    %v4386 = vld [vmem:[#allocation4 + $0x12] sm:$0x1]
    %v4387 = vld [vmem:[#allocation4 + $0x22] sm:$0x1]
    %v4388 = vld [vmem:[#allocation4 + $0x32] sm:$0x1]
    %v4389 = vld [vmem:[#allocation4 + $0x42] sm:$0x1]
    %v4390 = vld [vmem:[#allocation4 + $0x52] sm:$0x1]
    %v4391 = vld [vmem:[#allocation4 + $0x62] sm:$0x1]
    %v4392 = vld [vmem:[#allocation4 + $0x72] sm:$0x1]
    %v4393 = vld [vmem:[#allocation4 + $0x82] sm:$0x1]
    %v4394 = vld [vmem:[#allocation4 + $0x92] sm:$0x1]
    %v4395 = vld [vmem:[#allocation4 + $0xa2] sm:$0x1]
    %v4396 = vld [vmem:[#allocation4 + $0xb2] sm:$0x1]
    %v4397 = vld [vmem:[#allocation4 + $0xc2] sm:$0x1]
    %v4398 = vld [vmem:[#allocation4 + $0xd2] sm:$0x1]
    %v4399 = vld [vmem:[#allocation4 + $0xe2] sm:$0x1]
    %v4400 = vld [vmem:[#allocation4 + $0xf2] sm:$0x1]
    %v4401 = vld [vmem:[#allocation4 + $0x3] sm:$0x1]
    %v4402 = vld [vmem:[#allocation4 + $0x13] sm:$0x1]
    %v4403 = vld [vmem:[#allocation4 + $0x23] sm:$0x1]
    %v4404 = vld [vmem:[#allocation4 + $0x33] sm:$0x1]
    %v4405 = vld [vmem:[#allocation4 + $0x43] sm:$0x1]
    %v4406 = vld [vmem:[#allocation4 + $0x53] sm:$0x1]
    %v4407 = vld [vmem:[#allocation4 + $0x63] sm:$0x1]
    %v4408 = vld [vmem:[#allocation4 + $0x73] sm:$0x1]
    %v4409 = vld [vmem:[#allocation4 + $0x83] sm:$0x1]
    %v4410 = vld [vmem:[#allocation4 + $0x93] sm:$0x1]
    %v4411 = vld [vmem:[#allocation4 + $0xa3] sm:$0x1]
    %v4412 = vld [vmem:[#allocation4 + $0xb3] sm:$0x1]
    %v4413 = vld [vmem:[#allocation4 + $0xc3] sm:$0x1]
    %v4414 = vld [vmem:[#allocation4 + $0xd3] sm:$0x1]
    %v4415 = vld [vmem:[#allocation4 + $0xe3] sm:$0x1]
    %v4416 = vld [vmem:[#allocation4 + $0xf3] sm:$0x1]
    %v4417 = vmax.f32 %v4385, %v4401
    %v4418 = vmax.f32 %v4386, %v4402
    %v4419 = vmax.f32 %v4387, %v4403
    %v4420 = vmax.f32 %v4388, %v4404
    %v4421 = vmax.f32 %v4389, %v4405
    %v4422 = vmax.f32 %v4390, %v4406
    %v4423 = vmax.f32 %v4391, %v4407
    %v4424 = vmax.f32 %v4392, %v4408
    %v4425 = vmax.f32 %v4393, %v4409
    %v4426 = vmax.f32 %v4394, %v4410
    %v4427 = vmax.f32 %v4395, %v4411
    %v4428 = vmax.f32 %v4396, %v4412
    %v4429 = vmax.f32 %v4397, %v4413
    %v4430 = vmax.f32 %v4398, %v4414
    %v4431 = vmax.f32 %v4399, %v4415
    %v4432 = vmax.f32 %v4400, %v4416
    %4433 = vst.msk [vmem:[%s4367 + $0x2] sm:$0x1] %vm4368, %v4417
    %4434 = vst.msk [vmem:[%s4367 + $0x12] sm:$0x1] %vm4368, %v4418
    %4435 = vst.msk [vmem:[%s4367 + $0x22] sm:$0x1] %vm4368, %v4419
    %4436 = vst.msk [vmem:[%s4367 + $0x32] sm:$0x1] %vm4368, %v4420
    %4437 = vst.msk [vmem:[%s4367 + $0x42] sm:$0x1] %vm4368, %v4421
    %4438 = vst.msk [vmem:[%s4367 + $0x52] sm:$0x1] %vm4368, %v4422
    %4439 = vst.msk [vmem:[%s4367 + $0x62] sm:$0x1] %vm4368, %v4423
    %4440 = vst.msk [vmem:[%s4367 + $0x72] sm:$0x1] %vm4368, %v4424
    %4441 = vst.msk [vmem:[%s4367 + $0xa2] sm:$0x1] %vm4368, %v4425
    %4442 = vst.msk [vmem:[%s4367 + $0xb2] sm:$0x1] %vm4368, %v4426
    %4443 = vst.msk [vmem:[%s4367 + $0xc2] sm:$0x1] %vm4368, %v4427
    %4444 = vst.msk [vmem:[%s4367 + $0xd2] sm:$0x1] %vm4368, %v4428
    %4445 = vst.msk [vmem:[%s4367 + $0xe2] sm:$0x1] %vm4368, %v4429
    %4446 = vst.msk [vmem:[%s4367 + $0xf2] sm:$0x1] %vm4368, %v4430
    %4447 = vst.msk [vmem:[%s4367 + $0x102] sm:$0x1] %vm4368, %v4431
    %4448 = vst.msk [vmem:[%s4367 + $0x112] sm:$0x1] %vm4368, %v4432
    %v4449 = vld [vmem:[#allocation4 + $0x4] sm:$0x1]
    %v4450 = vld [vmem:[#allocation4 + $0x14] sm:$0x1]
    %v4451 = vld [vmem:[#allocation4 + $0x24] sm:$0x1]
    %v4452 = vld [vmem:[#allocation4 + $0x34] sm:$0x1]
    %v4453 = vld [vmem:[#allocation4 + $0x44] sm:$0x1]
    %v4454 = vld [vmem:[#allocation4 + $0x54] sm:$0x1]
    %v4455 = vld [vmem:[#allocation4 + $0x64] sm:$0x1]
    %v4456 = vld [vmem:[#allocation4 + $0x74] sm:$0x1]
    %v4457 = vld [vmem:[#allocation4 + $0x84] sm:$0x1]
    %v4458 = vld [vmem:[#allocation4 + $0x94] sm:$0x1]
    %v4459 = vld [vmem:[#allocation4 + $0xa4] sm:$0x1]
    %v4460 = vld [vmem:[#allocation4 + $0xb4] sm:$0x1]
    %v4461 = vld [vmem:[#allocation4 + $0xc4] sm:$0x1]
    %v4462 = vld [vmem:[#allocation4 + $0xd4] sm:$0x1]
    %v4463 = vld [vmem:[#allocation4 + $0xe4] sm:$0x1]
    %v4464 = vld [vmem:[#allocation4 + $0xf4] sm:$0x1]
    %v4465 = vld [vmem:[#allocation4 + $0x5] sm:$0x1]
    %v4466 = vld [vmem:[#allocation4 + $0x15] sm:$0x1]
    %v4467 = vld [vmem:[#allocation4 + $0x25] sm:$0x1]
    %v4468 = vld [vmem:[#allocation4 + $0x35] sm:$0x1]
    %v4469 = vld [vmem:[#allocation4 + $0x45] sm:$0x1]
    %v4470 = vld [vmem:[#allocation4 + $0x55] sm:$0x1]
    %v4471 = vld [vmem:[#allocation4 + $0x65] sm:$0x1]
    %v4472 = vld [vmem:[#allocation4 + $0x75] sm:$0x1]
    %v4473 = vld [vmem:[#allocation4 + $0x85] sm:$0x1]
    %v4474 = vld [vmem:[#allocation4 + $0x95] sm:$0x1]
    %v4475 = vld [vmem:[#allocation4 + $0xa5] sm:$0x1]
    %v4476 = vld [vmem:[#allocation4 + $0xb5] sm:$0x1]
    %v4477 = vld [vmem:[#allocation4 + $0xc5] sm:$0x1]
    %v4478 = vld [vmem:[#allocation4 + $0xd5] sm:$0x1]
    %v4479 = vld [vmem:[#allocation4 + $0xe5] sm:$0x1]
    %v4480 = vld [vmem:[#allocation4 + $0xf5] sm:$0x1]
    %v4481 = vmax.f32 %v4449, %v4465
    %v4482 = vmax.f32 %v4450, %v4466
    %v4483 = vmax.f32 %v4451, %v4467
    %v4484 = vmax.f32 %v4452, %v4468
    %v4485 = vmax.f32 %v4453, %v4469
    %v4486 = vmax.f32 %v4454, %v4470
    %v4487 = vmax.f32 %v4455, %v4471
    %v4488 = vmax.f32 %v4456, %v4472
    %v4489 = vmax.f32 %v4457, %v4473
    %v4490 = vmax.f32 %v4458, %v4474
    %v4491 = vmax.f32 %v4459, %v4475
    %v4492 = vmax.f32 %v4460, %v4476
    %v4493 = vmax.f32 %v4461, %v4477
    %v4494 = vmax.f32 %v4462, %v4478
    %v4495 = vmax.f32 %v4463, %v4479
    %v4496 = vmax.f32 %v4464, %v4480
    %4497 = vst.msk [vmem:[%s4367 + $0x3] sm:$0x1] %vm4368, %v4481
    %4498 = vst.msk [vmem:[%s4367 + $0x13] sm:$0x1] %vm4368, %v4482
    %4499 = vst.msk [vmem:[%s4367 + $0x23] sm:$0x1] %vm4368, %v4483
    %4500 = vst.msk [vmem:[%s4367 + $0x33] sm:$0x1] %vm4368, %v4484
    %4501 = vst.msk [vmem:[%s4367 + $0x43] sm:$0x1] %vm4368, %v4485
    %4502 = vst.msk [vmem:[%s4367 + $0x53] sm:$0x1] %vm4368, %v4486
    %4503 = vst.msk [vmem:[%s4367 + $0x63] sm:$0x1] %vm4368, %v4487
    %4504 = vst.msk [vmem:[%s4367 + $0x73] sm:$0x1] %vm4368, %v4488
    %4505 = vst.msk [vmem:[%s4367 + $0xa3] sm:$0x1] %vm4368, %v4489
    %4506 = vst.msk [vmem:[%s4367 + $0xb3] sm:$0x1] %vm4368, %v4490
    %4507 = vst.msk [vmem:[%s4367 + $0xc3] sm:$0x1] %vm4368, %v4491
    %4508 = vst.msk [vmem:[%s4367 + $0xd3] sm:$0x1] %vm4368, %v4492
    %4509 = vst.msk [vmem:[%s4367 + $0xe3] sm:$0x1] %vm4368, %v4493
    %4510 = vst.msk [vmem:[%s4367 + $0xf3] sm:$0x1] %vm4368, %v4494
    %4511 = vst.msk [vmem:[%s4367 + $0x103] sm:$0x1] %vm4368, %v4495
    %4512 = vst.msk [vmem:[%s4367 + $0x113] sm:$0x1] %vm4368, %v4496
    %v4513 = vld [vmem:[#allocation4 + $0x6] sm:$0x1]
    %v4514 = vld [vmem:[#allocation4 + $0x16] sm:$0x1]
    %v4515 = vld [vmem:[#allocation4 + $0x26] sm:$0x1]
    %v4516 = vld [vmem:[#allocation4 + $0x36] sm:$0x1]
    %v4517 = vld [vmem:[#allocation4 + $0x46] sm:$0x1]
    %v4518 = vld [vmem:[#allocation4 + $0x56] sm:$0x1]
    %v4519 = vld [vmem:[#allocation4 + $0x66] sm:$0x1]
    %v4520 = vld [vmem:[#allocation4 + $0x76] sm:$0x1]
    %v4521 = vld [vmem:[#allocation4 + $0x86] sm:$0x1]
    %v4522 = vld [vmem:[#allocation4 + $0x96] sm:$0x1]
    %v4523 = vld [vmem:[#allocation4 + $0xa6] sm:$0x1]
    %v4524 = vld [vmem:[#allocation4 + $0xb6] sm:$0x1]
    %v4525 = vld [vmem:[#allocation4 + $0xc6] sm:$0x1]
    %v4526 = vld [vmem:[#allocation4 + $0xd6] sm:$0x1]
    %v4527 = vld [vmem:[#allocation4 + $0xe6] sm:$0x1]
    %v4528 = vld [vmem:[#allocation4 + $0xf6] sm:$0x1]
    %v4529 = vld [vmem:[#allocation4 + $0x7] sm:$0x1]
    %v4530 = vld [vmem:[#allocation4 + $0x17] sm:$0x1]
    %v4531 = vld [vmem:[#allocation4 + $0x27] sm:$0x1]
    %v4532 = vld [vmem:[#allocation4 + $0x37] sm:$0x1]
    %v4533 = vld [vmem:[#allocation4 + $0x47] sm:$0x1]
    %v4534 = vld [vmem:[#allocation4 + $0x57] sm:$0x1]
    %v4535 = vld [vmem:[#allocation4 + $0x67] sm:$0x1]
    %v4536 = vld [vmem:[#allocation4 + $0x77] sm:$0x1]
    %v4537 = vld [vmem:[#allocation4 + $0x87] sm:$0x1]
    %v4538 = vld [vmem:[#allocation4 + $0x97] sm:$0x1]
    %v4539 = vld [vmem:[#allocation4 + $0xa7] sm:$0x1]
    %v4540 = vld [vmem:[#allocation4 + $0xb7] sm:$0x1]
    %v4541 = vld [vmem:[#allocation4 + $0xc7] sm:$0x1]
    %v4542 = vld [vmem:[#allocation4 + $0xd7] sm:$0x1]
    %v4543 = vld [vmem:[#allocation4 + $0xe7] sm:$0x1]
    %v4544 = vld [vmem:[#allocation4 + $0xf7] sm:$0x1]
    %v4545 = vmax.f32 %v4513, %v4529
    %v4546 = vmax.f32 %v4514, %v4530
    %v4547 = vmax.f32 %v4515, %v4531
    %v4548 = vmax.f32 %v4516, %v4532
    %v4549 = vmax.f32 %v4517, %v4533
    %v4550 = vmax.f32 %v4518, %v4534
    %v4551 = vmax.f32 %v4519, %v4535
    %v4552 = vmax.f32 %v4520, %v4536
    %v4553 = vmax.f32 %v4521, %v4537
    %v4554 = vmax.f32 %v4522, %v4538
    %v4555 = vmax.f32 %v4523, %v4539
    %v4556 = vmax.f32 %v4524, %v4540
    %v4557 = vmax.f32 %v4525, %v4541
    %v4558 = vmax.f32 %v4526, %v4542
    %v4559 = vmax.f32 %v4527, %v4543
    %v4560 = vmax.f32 %v4528, %v4544
    %4561 = vst.msk [vmem:[%s4367 + $0x4] sm:$0x1] %vm4368, %v4545
    %4562 = vst.msk [vmem:[%s4367 + $0x14] sm:$0x1] %vm4368, %v4546
    %4563 = vst.msk [vmem:[%s4367 + $0x24] sm:$0x1] %vm4368, %v4547
    %4564 = vst.msk [vmem:[%s4367 + $0x34] sm:$0x1] %vm4368, %v4548
    %4565 = vst.msk [vmem:[%s4367 + $0x44] sm:$0x1] %vm4368, %v4549
    %4566 = vst.msk [vmem:[%s4367 + $0x54] sm:$0x1] %vm4368, %v4550
    %4567 = vst.msk [vmem:[%s4367 + $0x64] sm:$0x1] %vm4368, %v4551
    %4568 = vst.msk [vmem:[%s4367 + $0x74] sm:$0x1] %vm4368, %v4552
    %4569 = vst.msk [vmem:[%s4367 + $0xa4] sm:$0x1] %vm4368, %v4553
    %4570 = vst.msk [vmem:[%s4367 + $0xb4] sm:$0x1] %vm4368, %v4554
    %4571 = vst.msk [vmem:[%s4367 + $0xc4] sm:$0x1] %vm4368, %v4555
    %4572 = vst.msk [vmem:[%s4367 + $0xd4] sm:$0x1] %vm4368, %v4556
    %4573 = vst.msk [vmem:[%s4367 + $0xe4] sm:$0x1] %vm4368, %v4557
    %4574 = vst.msk [vmem:[%s4367 + $0xf4] sm:$0x1] %vm4368, %v4558
    %4575 = vst.msk [vmem:[%s4367 + $0x104] sm:$0x1] %vm4368, %v4559
    %4576 = vst.msk [vmem:[%s4367 + $0x114] sm:$0x1] %vm4368, %v4560
    %v4577 = vld [vmem:[#allocation4 + $0x8] sm:$0x1]
    %v4578 = vld [vmem:[#allocation4 + $0x18] sm:$0x1]
    %v4579 = vld [vmem:[#allocation4 + $0x28] sm:$0x1]
    %v4580 = vld [vmem:[#allocation4 + $0x38] sm:$0x1]
    %v4581 = vld [vmem:[#allocation4 + $0x48] sm:$0x1]
    %v4582 = vld [vmem:[#allocation4 + $0x58] sm:$0x1]
    %v4583 = vld [vmem:[#allocation4 + $0x68] sm:$0x1]
    %v4584 = vld [vmem:[#allocation4 + $0x78] sm:$0x1]
    %v4585 = vld [vmem:[#allocation4 + $0x88] sm:$0x1]
    %v4586 = vld [vmem:[#allocation4 + $0x98] sm:$0x1]
    %v4587 = vld [vmem:[#allocation4 + $0xa8] sm:$0x1]
    %v4588 = vld [vmem:[#allocation4 + $0xb8] sm:$0x1]
    %v4589 = vld [vmem:[#allocation4 + $0xc8] sm:$0x1]
    %v4590 = vld [vmem:[#allocation4 + $0xd8] sm:$0x1]
    %v4591 = vld [vmem:[#allocation4 + $0xe8] sm:$0x1]
    %v4592 = vld [vmem:[#allocation4 + $0xf8] sm:$0x1]
    %v4593 = vld [vmem:[#allocation4 + $0x9] sm:$0x1]
    %v4594 = vld [vmem:[#allocation4 + $0x19] sm:$0x1]
    %v4595 = vld [vmem:[#allocation4 + $0x29] sm:$0x1]
    %v4596 = vld [vmem:[#allocation4 + $0x39] sm:$0x1]
    %v4597 = vld [vmem:[#allocation4 + $0x49] sm:$0x1]
    %v4598 = vld [vmem:[#allocation4 + $0x59] sm:$0x1]
    %v4599 = vld [vmem:[#allocation4 + $0x69] sm:$0x1]
    %v4600 = vld [vmem:[#allocation4 + $0x79] sm:$0x1]
    %v4601 = vld [vmem:[#allocation4 + $0x89] sm:$0x1]
    %v4602 = vld [vmem:[#allocation4 + $0x99] sm:$0x1]
    %v4603 = vld [vmem:[#allocation4 + $0xa9] sm:$0x1]
    %v4604 = vld [vmem:[#allocation4 + $0xb9] sm:$0x1]
    %v4605 = vld [vmem:[#allocation4 + $0xc9] sm:$0x1]
    %v4606 = vld [vmem:[#allocation4 + $0xd9] sm:$0x1]
    %v4607 = vld [vmem:[#allocation4 + $0xe9] sm:$0x1]
    %v4608 = vld [vmem:[#allocation4 + $0xf9] sm:$0x1]
    %v4609 = vmax.f32 %v4577, %v4593
    %v4610 = vmax.f32 %v4578, %v4594
    %v4611 = vmax.f32 %v4579, %v4595
    %v4612 = vmax.f32 %v4580, %v4596
    %v4613 = vmax.f32 %v4581, %v4597
    %v4614 = vmax.f32 %v4582, %v4598
    %v4615 = vmax.f32 %v4583, %v4599
    %v4616 = vmax.f32 %v4584, %v4600
    %v4617 = vmax.f32 %v4585, %v4601
    %v4618 = vmax.f32 %v4586, %v4602
    %v4619 = vmax.f32 %v4587, %v4603
    %v4620 = vmax.f32 %v4588, %v4604
    %v4621 = vmax.f32 %v4589, %v4605
    %v4622 = vmax.f32 %v4590, %v4606
    %v4623 = vmax.f32 %v4591, %v4607
    %v4624 = vmax.f32 %v4592, %v4608
    %4625 = vst.msk [vmem:[%s4367 + $0x5] sm:$0x1] %vm4368, %v4609
    %4626 = vst.msk [vmem:[%s4367 + $0x15] sm:$0x1] %vm4368, %v4610
    %4627 = vst.msk [vmem:[%s4367 + $0x25] sm:$0x1] %vm4368, %v4611
    %4628 = vst.msk [vmem:[%s4367 + $0x35] sm:$0x1] %vm4368, %v4612
    %4629 = vst.msk [vmem:[%s4367 + $0x45] sm:$0x1] %vm4368, %v4613
    %4630 = vst.msk [vmem:[%s4367 + $0x55] sm:$0x1] %vm4368, %v4614
    %4631 = vst.msk [vmem:[%s4367 + $0x65] sm:$0x1] %vm4368, %v4615
    %4632 = vst.msk [vmem:[%s4367 + $0x75] sm:$0x1] %vm4368, %v4616
    %4633 = vst.msk [vmem:[%s4367 + $0xa5] sm:$0x1] %vm4368, %v4617
    %4634 = vst.msk [vmem:[%s4367 + $0xb5] sm:$0x1] %vm4368, %v4618
    %4635 = vst.msk [vmem:[%s4367 + $0xc5] sm:$0x1] %vm4368, %v4619
    %4636 = vst.msk [vmem:[%s4367 + $0xd5] sm:$0x1] %vm4368, %v4620
    %4637 = vst.msk [vmem:[%s4367 + $0xe5] sm:$0x1] %vm4368, %v4621
    %4638 = vst.msk [vmem:[%s4367 + $0xf5] sm:$0x1] %vm4368, %v4622
    %4639 = vst.msk [vmem:[%s4367 + $0x105] sm:$0x1] %vm4368, %v4623
    %4640 = vst.msk [vmem:[%s4367 + $0x115] sm:$0x1] %vm4368, %v4624
    %v4641 = vld [vmem:[#allocation4 + $0xa] sm:$0x1]
    %v4642 = vld [vmem:[#allocation4 + $0x1a] sm:$0x1]
    %v4643 = vld [vmem:[#allocation4 + $0x2a] sm:$0x1]
    %v4644 = vld [vmem:[#allocation4 + $0x3a] sm:$0x1]
    %v4645 = vld [vmem:[#allocation4 + $0x4a] sm:$0x1]
    %v4646 = vld [vmem:[#allocation4 + $0x5a] sm:$0x1]
    %v4647 = vld [vmem:[#allocation4 + $0x6a] sm:$0x1]
    %v4648 = vld [vmem:[#allocation4 + $0x7a] sm:$0x1]
    %v4649 = vld [vmem:[#allocation4 + $0x8a] sm:$0x1]
    %v4650 = vld [vmem:[#allocation4 + $0x9a] sm:$0x1]
    %v4651 = vld [vmem:[#allocation4 + $0xaa] sm:$0x1]
    %v4652 = vld [vmem:[#allocation4 + $0xba] sm:$0x1]
    %v4653 = vld [vmem:[#allocation4 + $0xca] sm:$0x1]
    %v4654 = vld [vmem:[#allocation4 + $0xda] sm:$0x1]
    %v4655 = vld [vmem:[#allocation4 + $0xea] sm:$0x1]
    %v4656 = vld [vmem:[#allocation4 + $0xfa] sm:$0x1]
    %v4657 = vld [vmem:[#allocation4 + $0xb] sm:$0x1]
    %v4658 = vld [vmem:[#allocation4 + $0x1b] sm:$0x1]
    %v4659 = vld [vmem:[#allocation4 + $0x2b] sm:$0x1]
    %v4660 = vld [vmem:[#allocation4 + $0x3b] sm:$0x1]
    %v4661 = vld [vmem:[#allocation4 + $0x4b] sm:$0x1]
    %v4662 = vld [vmem:[#allocation4 + $0x5b] sm:$0x1]
    %v4663 = vld [vmem:[#allocation4 + $0x6b] sm:$0x1]
    %v4664 = vld [vmem:[#allocation4 + $0x7b] sm:$0x1]
    %v4665 = vld [vmem:[#allocation4 + $0x8b] sm:$0x1]
    %v4666 = vld [vmem:[#allocation4 + $0x9b] sm:$0x1]
    %v4667 = vld [vmem:[#allocation4 + $0xab] sm:$0x1]
    %v4668 = vld [vmem:[#allocation4 + $0xbb] sm:$0x1]
    %v4669 = vld [vmem:[#allocation4 + $0xcb] sm:$0x1]
    %v4670 = vld [vmem:[#allocation4 + $0xdb] sm:$0x1]
    %v4671 = vld [vmem:[#allocation4 + $0xeb] sm:$0x1]
    %v4672 = vld [vmem:[#allocation4 + $0xfb] sm:$0x1]
    %v4673 = vmax.f32 %v4641, %v4657
    %v4674 = vmax.f32 %v4642, %v4658
    %v4675 = vmax.f32 %v4643, %v4659
    %v4676 = vmax.f32 %v4644, %v4660
    %v4677 = vmax.f32 %v4645, %v4661
    %v4678 = vmax.f32 %v4646, %v4662
    %v4679 = vmax.f32 %v4647, %v4663
    %v4680 = vmax.f32 %v4648, %v4664
    %v4681 = vmax.f32 %v4649, %v4665
    %v4682 = vmax.f32 %v4650, %v4666
    %v4683 = vmax.f32 %v4651, %v4667
    %v4684 = vmax.f32 %v4652, %v4668
    %v4685 = vmax.f32 %v4653, %v4669
    %v4686 = vmax.f32 %v4654, %v4670
    %v4687 = vmax.f32 %v4655, %v4671
    %v4688 = vmax.f32 %v4656, %v4672
    %4689 = vst.msk [vmem:[%s4367 + $0x6] sm:$0x1] %vm4368, %v4673
    %4690 = vst.msk [vmem:[%s4367 + $0x16] sm:$0x1] %vm4368, %v4674
    %4691 = vst.msk [vmem:[%s4367 + $0x26] sm:$0x1] %vm4368, %v4675
    %4692 = vst.msk [vmem:[%s4367 + $0x36] sm:$0x1] %vm4368, %v4676
    %4693 = vst.msk [vmem:[%s4367 + $0x46] sm:$0x1] %vm4368, %v4677
    %4694 = vst.msk [vmem:[%s4367 + $0x56] sm:$0x1] %vm4368, %v4678
    %4695 = vst.msk [vmem:[%s4367 + $0x66] sm:$0x1] %vm4368, %v4679
    %4696 = vst.msk [vmem:[%s4367 + $0x76] sm:$0x1] %vm4368, %v4680
    %4697 = vst.msk [vmem:[%s4367 + $0xa6] sm:$0x1] %vm4368, %v4681
    %4698 = vst.msk [vmem:[%s4367 + $0xb6] sm:$0x1] %vm4368, %v4682
    %4699 = vst.msk [vmem:[%s4367 + $0xc6] sm:$0x1] %vm4368, %v4683
    %4700 = vst.msk [vmem:[%s4367 + $0xd6] sm:$0x1] %vm4368, %v4684
    %4701 = vst.msk [vmem:[%s4367 + $0xe6] sm:$0x1] %vm4368, %v4685
    %4702 = vst.msk [vmem:[%s4367 + $0xf6] sm:$0x1] %vm4368, %v4686
    %4703 = vst.msk [vmem:[%s4367 + $0x106] sm:$0x1] %vm4368, %v4687
    %4704 = vst.msk [vmem:[%s4367 + $0x116] sm:$0x1] %vm4368, %v4688
    %v4705 = vld [vmem:[#allocation4 + $0xc] sm:$0x1]
    %v4706 = vld [vmem:[#allocation4 + $0x1c] sm:$0x1]
    %v4707 = vld [vmem:[#allocation4 + $0x2c] sm:$0x1]
    %v4708 = vld [vmem:[#allocation4 + $0x3c] sm:$0x1]
    %v4709 = vld [vmem:[#allocation4 + $0x4c] sm:$0x1]
    %v4710 = vld [vmem:[#allocation4 + $0x5c] sm:$0x1]
    %v4711 = vld [vmem:[#allocation4 + $0x6c] sm:$0x1]
    %v4712 = vld [vmem:[#allocation4 + $0x7c] sm:$0x1]
    %v4713 = vld [vmem:[#allocation4 + $0x8c] sm:$0x1]
    %v4714 = vld [vmem:[#allocation4 + $0x9c] sm:$0x1]
    %v4715 = vld [vmem:[#allocation4 + $0xac] sm:$0x1]
    %v4716 = vld [vmem:[#allocation4 + $0xbc] sm:$0x1]
    %v4717 = vld [vmem:[#allocation4 + $0xcc] sm:$0x1]
    %v4718 = vld [vmem:[#allocation4 + $0xdc] sm:$0x1]
    %v4719 = vld [vmem:[#allocation4 + $0xec] sm:$0x1]
    %v4720 = vld [vmem:[#allocation4 + $0xfc] sm:$0x1]
    %v4721 = vld [vmem:[#allocation4 + $0xd] sm:$0x1]
    %v4722 = vld [vmem:[#allocation4 + $0x1d] sm:$0x1]
    %v4723 = vld [vmem:[#allocation4 + $0x2d] sm:$0x1]
    %v4724 = vld [vmem:[#allocation4 + $0x3d] sm:$0x1]
    %v4725 = vld [vmem:[#allocation4 + $0x4d] sm:$0x1]
    %v4726 = vld [vmem:[#allocation4 + $0x5d] sm:$0x1]
    %v4727 = vld [vmem:[#allocation4 + $0x6d] sm:$0x1]
    %v4728 = vld [vmem:[#allocation4 + $0x7d] sm:$0x1]
    %v4729 = vld [vmem:[#allocation4 + $0x8d] sm:$0x1]
    %v4730 = vld [vmem:[#allocation4 + $0x9d] sm:$0x1]
    %v4731 = vld [vmem:[#allocation4 + $0xad] sm:$0x1]
    %v4732 = vld [vmem:[#allocation4 + $0xbd] sm:$0x1]
    %v4733 = vld [vmem:[#allocation4 + $0xcd] sm:$0x1]
    %v4734 = vld [vmem:[#allocation4 + $0xdd] sm:$0x1]
    %v4735 = vld [vmem:[#allocation4 + $0xed] sm:$0x1]
    %v4736 = vld [vmem:[#allocation4 + $0xfd] sm:$0x1]
    %v4737 = vmax.f32 %v4705, %v4721
    %v4738 = vmax.f32 %v4706, %v4722
    %v4739 = vmax.f32 %v4707, %v4723
    %v4740 = vmax.f32 %v4708, %v4724
    %v4741 = vmax.f32 %v4709, %v4725
    %v4742 = vmax.f32 %v4710, %v4726
    %v4743 = vmax.f32 %v4711, %v4727
    %v4744 = vmax.f32 %v4712, %v4728
    %v4745 = vmax.f32 %v4713, %v4729
    %v4746 = vmax.f32 %v4714, %v4730
    %v4747 = vmax.f32 %v4715, %v4731
    %v4748 = vmax.f32 %v4716, %v4732
    %v4749 = vmax.f32 %v4717, %v4733
    %v4750 = vmax.f32 %v4718, %v4734
    %v4751 = vmax.f32 %v4719, %v4735
    %v4752 = vmax.f32 %v4720, %v4736
    %4753 = vst.msk [vmem:[%s4367 + $0x7] sm:$0x1] %vm4368, %v4737
    %4754 = vst.msk [vmem:[%s4367 + $0x17] sm:$0x1] %vm4368, %v4738
    %4755 = vst.msk [vmem:[%s4367 + $0x27] sm:$0x1] %vm4368, %v4739
    %4756 = vst.msk [vmem:[%s4367 + $0x37] sm:$0x1] %vm4368, %v4740
    %4757 = vst.msk [vmem:[%s4367 + $0x47] sm:$0x1] %vm4368, %v4741
    %4758 = vst.msk [vmem:[%s4367 + $0x57] sm:$0x1] %vm4368, %v4742
    %4759 = vst.msk [vmem:[%s4367 + $0x67] sm:$0x1] %vm4368, %v4743
    %4760 = vst.msk [vmem:[%s4367 + $0x77] sm:$0x1] %vm4368, %v4744
    %4761 = vst.msk [vmem:[%s4367 + $0xa7] sm:$0x1] %vm4368, %v4745
    %4762 = vst.msk [vmem:[%s4367 + $0xb7] sm:$0x1] %vm4368, %v4746
    %4763 = vst.msk [vmem:[%s4367 + $0xc7] sm:$0x1] %vm4368, %v4747
    %4764 = vst.msk [vmem:[%s4367 + $0xd7] sm:$0x1] %vm4368, %v4748
    %4765 = vst.msk [vmem:[%s4367 + $0xe7] sm:$0x1] %vm4368, %v4749
    %4766 = vst.msk [vmem:[%s4367 + $0xf7] sm:$0x1] %vm4368, %v4750
    %4767 = vst.msk [vmem:[%s4367 + $0x107] sm:$0x1] %vm4368, %v4751
    %4768 = vst.msk [vmem:[%s4367 + $0x117] sm:$0x1] %vm4368, %v4752
    %v4769 = vld [vmem:[#allocation4 + $0xe] sm:$0x1]
    %v4770 = vld [vmem:[#allocation4 + $0x1e] sm:$0x1]
    %v4771 = vld [vmem:[#allocation4 + $0x2e] sm:$0x1]
    %v4772 = vld [vmem:[#allocation4 + $0x3e] sm:$0x1]
    %v4773 = vld [vmem:[#allocation4 + $0x4e] sm:$0x1]
    %v4774 = vld [vmem:[#allocation4 + $0x5e] sm:$0x1]
    %v4775 = vld [vmem:[#allocation4 + $0x6e] sm:$0x1]
    %v4776 = vld [vmem:[#allocation4 + $0x7e] sm:$0x1]
    %v4777 = vld [vmem:[#allocation4 + $0x8e] sm:$0x1]
    %v4778 = vld [vmem:[#allocation4 + $0x9e] sm:$0x1]
    %v4779 = vld [vmem:[#allocation4 + $0xae] sm:$0x1]
    %v4780 = vld [vmem:[#allocation4 + $0xbe] sm:$0x1]
    %v4781 = vld [vmem:[#allocation4 + $0xce] sm:$0x1]
    %v4782 = vld [vmem:[#allocation4 + $0xde] sm:$0x1]
    %v4783 = vld [vmem:[#allocation4 + $0xee] sm:$0x1]
    %v4784 = vld [vmem:[#allocation4 + $0xfe] sm:$0x1]
    %v4785 = vld [vmem:[#allocation4 + $0xf] sm:$0x1]
    %v4786 = vld [vmem:[#allocation4 + $0x1f] sm:$0x1]
    %v4787 = vld [vmem:[#allocation4 + $0x2f] sm:$0x1]
    %v4788 = vld [vmem:[#allocation4 + $0x3f] sm:$0x1]
    %v4789 = vld [vmem:[#allocation4 + $0x4f] sm:$0x1]
    %v4790 = vld [vmem:[#allocation4 + $0x5f] sm:$0x1]
    %v4791 = vld [vmem:[#allocation4 + $0x6f] sm:$0x1]
    %v4792 = vld [vmem:[#allocation4 + $0x7f] sm:$0x1]
    %v4793 = vld [vmem:[#allocation4 + $0x8f] sm:$0x1]
    %v4794 = vld [vmem:[#allocation4 + $0x9f] sm:$0x1]
    %v4795 = vld [vmem:[#allocation4 + $0xaf] sm:$0x1]
    %v4796 = vld [vmem:[#allocation4 + $0xbf] sm:$0x1]
    %v4797 = vld [vmem:[#allocation4 + $0xcf] sm:$0x1]
    %v4798 = vld [vmem:[#allocation4 + $0xdf] sm:$0x1]
    %v4799 = vld [vmem:[#allocation4 + $0xef] sm:$0x1]
    %v4800 = vld [vmem:[#allocation4 + $0xff] sm:$0x1]
    %v4801 = vmax.f32 %v4769, %v4785
    %v4802 = vmax.f32 %v4770, %v4786
    %v4803 = vmax.f32 %v4771, %v4787
    %v4804 = vmax.f32 %v4772, %v4788
    %v4805 = vmax.f32 %v4773, %v4789
    %v4806 = vmax.f32 %v4774, %v4790
    %v4807 = vmax.f32 %v4775, %v4791
    %v4808 = vmax.f32 %v4776, %v4792
    %v4809 = vmax.f32 %v4777, %v4793
    %v4810 = vmax.f32 %v4778, %v4794
    %v4811 = vmax.f32 %v4779, %v4795
    %v4812 = vmax.f32 %v4780, %v4796
    %v4813 = vmax.f32 %v4781, %v4797
    %v4814 = vmax.f32 %v4782, %v4798
    %v4815 = vmax.f32 %v4783, %v4799
    %v4816 = vmax.f32 %v4784, %v4800
    %4817 = vst.msk [vmem:[%s4367 + $0x8] sm:$0x1] %vm4368, %v4801
    %4818 = vst.msk [vmem:[%s4367 + $0x18] sm:$0x1] %vm4368, %v4802
    %4819 = vst.msk [vmem:[%s4367 + $0x28] sm:$0x1] %vm4368, %v4803
    %4820 = vst.msk [vmem:[%s4367 + $0x38] sm:$0x1] %vm4368, %v4804
    %4821 = vst.msk [vmem:[%s4367 + $0x48] sm:$0x1] %vm4368, %v4805
    %4822 = vst.msk [vmem:[%s4367 + $0x58] sm:$0x1] %vm4368, %v4806
    %4823 = vst.msk [vmem:[%s4367 + $0x68] sm:$0x1] %vm4368, %v4807
    %4824 = vst.msk [vmem:[%s4367 + $0x78] sm:$0x1] %vm4368, %v4808
    %4825 = vst.msk [vmem:[%s4367 + $0xa8] sm:$0x1] %vm4368, %v4809
    %4826 = vst.msk [vmem:[%s4367 + $0xb8] sm:$0x1] %vm4368, %v4810
    %4827 = vst.msk [vmem:[%s4367 + $0xc8] sm:$0x1] %vm4368, %v4811
    %4828 = vst.msk [vmem:[%s4367 + $0xd8] sm:$0x1] %vm4368, %v4812
    %4829 = vst.msk [vmem:[%s4367 + $0xe8] sm:$0x1] %vm4368, %v4813
    %4830 = vst.msk [vmem:[%s4367 + $0xf8] sm:$0x1] %vm4368, %v4814
    %4831 = vst.msk [vmem:[%s4367 + $0x108] sm:$0x1] %vm4368, %v4815
    %4832 = vst.msk [vmem:[%s4367 + $0x118] sm:$0x1] %vm4368, %v4816
    %v4833 = vld [vmem:[#allocation5] sm:$0xff]
    %v4834 = vld [vmem:[#allocation5 + $0x10] sm:$0xff]
    %v4835 = vld [vmem:[#allocation5 + $0x20] sm:$0xff]
    %v4836 = vld [vmem:[#allocation5 + $0x30] sm:$0xff]
    %v4837 = vld [vmem:[#allocation5 + $0x40] sm:$0xff]
    %v4838 = vld [vmem:[#allocation5 + $0x50] sm:$0xff]
    %v4839 = vld [vmem:[#allocation5 + $0x60] sm:$0xff]
    %v4840 = vld [vmem:[#allocation5 + $0x70] sm:$0xff]
    %v4841 = vld [vmem:[#allocation5 + $0xa0] sm:$0xff]
    %v4842 = vld [vmem:[#allocation5 + $0xb0] sm:$0xff]
    %v4843 = vld [vmem:[#allocation5 + $0xc0] sm:$0xff]
    %v4844 = vld [vmem:[#allocation5 + $0xd0] sm:$0xff]
    %v4845 = vld [vmem:[#allocation5 + $0xe0] sm:$0xff]
    %v4846 = vld [vmem:[#allocation5 + $0xf0] sm:$0xff]
    %v4847 = vld [vmem:[#allocation5 + $0x100] sm:$0xff]
    %v4848 = vld [vmem:[#allocation5 + $0x110] sm:$0xff]
    %4849 = vst.msk [vmem:[#allocation6] sm:$0xff] %vm4206, %v4833
    %4850 = vst.msk [vmem:[#allocation6 + $0x18] sm:$0xff] %vm4206, %v4834
    %4851 = vst.msk [vmem:[#allocation6 + $0x30] sm:$0xff] %vm4206, %v4835
    %4852 = vst.msk [vmem:[#allocation6 + $0x48] sm:$0xff] %vm4206, %v4836
    %4853 = vst.msk [vmem:[#allocation6 + $0x60] sm:$0xff] %vm4206, %v4837
    %4854 = vst.msk [vmem:[#allocation6 + $0x78] sm:$0xff] %vm4206, %v4838
    %4855 = vst.msk [vmem:[#allocation6 + $0x90] sm:$0xff] %vm4206, %v4839
    %4856 = vst.msk [vmem:[#allocation6 + $0xa8] sm:$0xff] %vm4206, %v4840
    %4857 = vst.msk [vmem:[#allocation6 + $0xc0] sm:$0xff] %vm4206, %v4841
    %4858 = vst.msk [vmem:[#allocation6 + $0xd8] sm:$0xff] %vm4206, %v4842
    %4859 = vst.msk [vmem:[#allocation6 + $0xf0] sm:$0xff] %vm4206, %v4843
    %4860 = vst.msk [vmem:[#allocation6 + $0x108] sm:$0xff] %vm4206, %v4844
    %4861 = vst.msk [vmem:[#allocation6 + $0x120] sm:$0xff] %vm4206, %v4845
    %4862 = vst.msk [vmem:[#allocation6 + $0x138] sm:$0xff] %vm4206, %v4846
    %4863 = vst.msk [vmem:[#allocation6 + $0x150] sm:$0xff] %vm4206, %v4847
    %4864 = vst.msk [vmem:[#allocation6 + $0x168] sm:$0xff] %vm4206, %v4848
    %v4865 = vld [vmem:[#allocation5 + $0x1] sm:$0xff]
    %v4866 = vld [vmem:[#allocation5 + $0x11] sm:$0xff]
    %v4867 = vld [vmem:[#allocation5 + $0x21] sm:$0xff]
    %v4868 = vld [vmem:[#allocation5 + $0x31] sm:$0xff]
    %v4869 = vld [vmem:[#allocation5 + $0x41] sm:$0xff]
    %v4870 = vld [vmem:[#allocation5 + $0x51] sm:$0xff]
    %v4871 = vld [vmem:[#allocation5 + $0x61] sm:$0xff]
    %v4872 = vld [vmem:[#allocation5 + $0x71] sm:$0xff]
    %v4873 = vld [vmem:[#allocation5 + $0xa1] sm:$0xff]
    %v4874 = vld [vmem:[#allocation5 + $0xb1] sm:$0xff]
    %v4875 = vld [vmem:[#allocation5 + $0xc1] sm:$0xff]
    %v4876 = vld [vmem:[#allocation5 + $0xd1] sm:$0xff]
    %v4877 = vld [vmem:[#allocation5 + $0xe1] sm:$0xff]
    %v4878 = vld [vmem:[#allocation5 + $0xf1] sm:$0xff]
    %v4879 = vld [vmem:[#allocation5 + $0x101] sm:$0xff]
    %v4880 = vld [vmem:[#allocation5 + $0x111] sm:$0xff]
    %4897 = vrot.lane.b32.xlu0 %v4865, 32
    %v4898 = vpop.permute.xlu0 %4897
    %4899 = vrot.lane.b32.xlu0 %v4866, 32
    %v4900 = vpop.permute.xlu0 %4899
    %4901 = vrot.lane.b32.xlu0 %v4867, 32
    %v4902 = vpop.permute.xlu0 %4901
    %4903 = vrot.lane.b32.xlu0 %v4868, 32
    %v4904 = vpop.permute.xlu0 %4903
    %4905 = vrot.lane.b32.xlu0 %v4869, 32
    %v4906 = vpop.permute.xlu0 %4905
    %4907 = vrot.lane.b32.xlu0 %v4870, 32
    %v4908 = vpop.permute.xlu0 %4907
    %4909 = vrot.lane.b32.xlu0 %v4871, 32
    %v4910 = vpop.permute.xlu0 %4909
    %4911 = vrot.lane.b32.xlu0 %v4872, 32
    %v4912 = vpop.permute.xlu0 %4911
    %4913 = vrot.lane.b32.xlu0 %v4873, 32
    %v4914 = vpop.permute.xlu0 %4913
    %4915 = vrot.lane.b32.xlu0 %v4874, 32
    %v4916 = vpop.permute.xlu0 %4915
    %4917 = vrot.lane.b32.xlu0 %v4875, 32
    %v4918 = vpop.permute.xlu0 %4917
    %4919 = vrot.lane.b32.xlu0 %v4876, 32
    %v4920 = vpop.permute.xlu0 %4919
    %4921 = vrot.lane.b32.xlu0 %v4877, 32
    %v4922 = vpop.permute.xlu0 %4921
    %4923 = vrot.lane.b32.xlu0 %v4878, 32
    %v4924 = vpop.permute.xlu0 %4923
    %4925 = vrot.lane.b32.xlu0 %v4879, 32
    %v4926 = vpop.permute.xlu0 %4925
    %4927 = vrot.lane.b32.xlu0 %v4880, 32
    %v4928 = vpop.permute.xlu0 %4927
    %vm4945 = vcmask 523520
    %4946 = vst.msk [vmem:[#allocation6] sm:$0xff] %vm4945, %v4898
    %4947 = vst.msk [vmem:[#allocation6 + $0x18] sm:$0xff] %vm4945, %v4900
    %4948 = vst.msk [vmem:[#allocation6 + $0x30] sm:$0xff] %vm4945, %v4902
    %4949 = vst.msk [vmem:[#allocation6 + $0x48] sm:$0xff] %vm4945, %v4904
    %4950 = vst.msk [vmem:[#allocation6 + $0x60] sm:$0xff] %vm4945, %v4906
    %4951 = vst.msk [vmem:[#allocation6 + $0x78] sm:$0xff] %vm4945, %v4908
    %4952 = vst.msk [vmem:[#allocation6 + $0x90] sm:$0xff] %vm4945, %v4910
    %4953 = vst.msk [vmem:[#allocation6 + $0xa8] sm:$0xff] %vm4945, %v4912
    %4954 = vst.msk [vmem:[#allocation6 + $0xc0] sm:$0xff] %vm4945, %v4914
    %4955 = vst.msk [vmem:[#allocation6 + $0xd8] sm:$0xff] %vm4945, %v4916
    %4956 = vst.msk [vmem:[#allocation6 + $0xf0] sm:$0xff] %vm4945, %v4918
    %4957 = vst.msk [vmem:[#allocation6 + $0x108] sm:$0xff] %vm4945, %v4920
    %4958 = vst.msk [vmem:[#allocation6 + $0x120] sm:$0xff] %vm4945, %v4922
    %4959 = vst.msk [vmem:[#allocation6 + $0x138] sm:$0xff] %vm4945, %v4924
    %4960 = vst.msk [vmem:[#allocation6 + $0x150] sm:$0xff] %vm4945, %v4926
    %4961 = vst.msk [vmem:[#allocation6 + $0x168] sm:$0xff] %vm4945, %v4928
    %v4962 = vld [vmem:[#allocation5 + $0x2] sm:$0xff]
    %v4963 = vld [vmem:[#allocation5 + $0x12] sm:$0xff]
    %v4964 = vld [vmem:[#allocation5 + $0x22] sm:$0xff]
    %v4965 = vld [vmem:[#allocation5 + $0x32] sm:$0xff]
    %v4966 = vld [vmem:[#allocation5 + $0x42] sm:$0xff]
    %v4967 = vld [vmem:[#allocation5 + $0x52] sm:$0xff]
    %v4968 = vld [vmem:[#allocation5 + $0x62] sm:$0xff]
    %v4969 = vld [vmem:[#allocation5 + $0x72] sm:$0xff]
    %v4970 = vld [vmem:[#allocation5 + $0xa2] sm:$0xff]
    %v4971 = vld [vmem:[#allocation5 + $0xb2] sm:$0xff]
    %v4972 = vld [vmem:[#allocation5 + $0xc2] sm:$0xff]
    %v4973 = vld [vmem:[#allocation5 + $0xd2] sm:$0xff]
    %v4974 = vld [vmem:[#allocation5 + $0xe2] sm:$0xff]
    %v4975 = vld [vmem:[#allocation5 + $0xf2] sm:$0xff]
    %v4976 = vld [vmem:[#allocation5 + $0x102] sm:$0xff]
    %v4977 = vld [vmem:[#allocation5 + $0x112] sm:$0xff]
    %4994 = vrot.lane.b32.xlu0 %v4962, 64
    %v4995 = vpop.permute.xlu0 %4994
    %4996 = vrot.lane.b32.xlu0 %v4963, 64
    %v4997 = vpop.permute.xlu0 %4996
    %4998 = vrot.lane.b32.xlu0 %v4964, 64
    %v4999 = vpop.permute.xlu0 %4998
    %5000 = vrot.lane.b32.xlu0 %v4965, 64
    %v5001 = vpop.permute.xlu0 %5000
    %5002 = vrot.lane.b32.xlu0 %v4966, 64
    %v5003 = vpop.permute.xlu0 %5002
    %5004 = vrot.lane.b32.xlu0 %v4967, 64
    %v5005 = vpop.permute.xlu0 %5004
    %5006 = vrot.lane.b32.xlu0 %v4968, 64
    %v5007 = vpop.permute.xlu0 %5006
    %5008 = vrot.lane.b32.xlu0 %v4969, 64
    %v5009 = vpop.permute.xlu0 %5008
    %5010 = vrot.lane.b32.xlu0 %v4970, 64
    %v5011 = vpop.permute.xlu0 %5010
    %5012 = vrot.lane.b32.xlu0 %v4971, 64
    %v5013 = vpop.permute.xlu0 %5012
    %5014 = vrot.lane.b32.xlu0 %v4972, 64
    %v5015 = vpop.permute.xlu0 %5014
    %5016 = vrot.lane.b32.xlu0 %v4973, 64
    %v5017 = vpop.permute.xlu0 %5016
    %5018 = vrot.lane.b32.xlu0 %v4974, 64
    %v5019 = vpop.permute.xlu0 %5018
    %5020 = vrot.lane.b32.xlu0 %v4975, 64
    %v5021 = vpop.permute.xlu0 %5020
    %5022 = vrot.lane.b32.xlu0 %v4976, 64
    %v5023 = vpop.permute.xlu0 %5022
    %5024 = vrot.lane.b32.xlu0 %v4977, 64
    %v5025 = vpop.permute.xlu0 %5024
    %vm5042 = vcmask 785920
    %5043 = vst.msk [vmem:[#allocation6] sm:$0xff] %vm5042, %v4995
    %5044 = vst.msk [vmem:[#allocation6 + $0x18] sm:$0xff] %vm5042, %v4997
    %5045 = vst.msk [vmem:[#allocation6 + $0x30] sm:$0xff] %vm5042, %v4999
    %5046 = vst.msk [vmem:[#allocation6 + $0x48] sm:$0xff] %vm5042, %v5001
    %5047 = vst.msk [vmem:[#allocation6 + $0x60] sm:$0xff] %vm5042, %v5003
    %5048 = vst.msk [vmem:[#allocation6 + $0x78] sm:$0xff] %vm5042, %v5005
    %5049 = vst.msk [vmem:[#allocation6 + $0x90] sm:$0xff] %vm5042, %v5007
    %5050 = vst.msk [vmem:[#allocation6 + $0xa8] sm:$0xff] %vm5042, %v5009
    %5051 = vst.msk [vmem:[#allocation6 + $0xc0] sm:$0xff] %vm5042, %v5011
    %5052 = vst.msk [vmem:[#allocation6 + $0xd8] sm:$0xff] %vm5042, %v5013
    %5053 = vst.msk [vmem:[#allocation6 + $0xf0] sm:$0xff] %vm5042, %v5015
    %5054 = vst.msk [vmem:[#allocation6 + $0x108] sm:$0xff] %vm5042, %v5017
    %5055 = vst.msk [vmem:[#allocation6 + $0x120] sm:$0xff] %vm5042, %v5019
    %5056 = vst.msk [vmem:[#allocation6 + $0x138] sm:$0xff] %vm5042, %v5021
    %5057 = vst.msk [vmem:[#allocation6 + $0x150] sm:$0xff] %vm5042, %v5023
    %5058 = vst.msk [vmem:[#allocation6 + $0x168] sm:$0xff] %vm5042, %v5025
    %v5059 = vld [vmem:[%s4367] sm:$0xff]
    %v5060 = vld [vmem:[%s4367 + $0x10] sm:$0xff]
    %v5061 = vld [vmem:[%s4367 + $0x20] sm:$0xff]
    %v5062 = vld [vmem:[%s4367 + $0x30] sm:$0xff]
    %v5063 = vld [vmem:[%s4367 + $0x40] sm:$0xff]
    %v5064 = vld [vmem:[%s4367 + $0x50] sm:$0xff]
    %v5065 = vld [vmem:[%s4367 + $0x60] sm:$0xff]
    %v5066 = vld [vmem:[%s4367 + $0x70] sm:$0xff]
    %v5067 = vld [vmem:[%s4367 + $0xa0] sm:$0xff]
    %v5068 = vld [vmem:[%s4367 + $0xb0] sm:$0xff]
    %v5069 = vld [vmem:[%s4367 + $0xc0] sm:$0xff]
    %v5070 = vld [vmem:[%s4367 + $0xd0] sm:$0xff]
    %v5071 = vld [vmem:[%s4367 + $0xe0] sm:$0xff]
    %v5072 = vld [vmem:[%s4367 + $0xf0] sm:$0xff]
    %v5073 = vld [vmem:[%s4367 + $0x100] sm:$0xff]
    %v5074 = vld [vmem:[%s4367 + $0x110] sm:$0xff]
    %5091 = vrot.lane.b32.xlu0 %v5059, 96
    %v5092 = vpop.permute.xlu0 %5091
    %5093 = vrot.lane.b32.xlu0 %v5060, 96
    %v5094 = vpop.permute.xlu0 %5093
    %5095 = vrot.lane.b32.xlu0 %v5061, 96
    %v5096 = vpop.permute.xlu0 %5095
    %5097 = vrot.lane.b32.xlu0 %v5062, 96
    %v5098 = vpop.permute.xlu0 %5097
    %5099 = vrot.lane.b32.xlu0 %v5063, 96
    %v5100 = vpop.permute.xlu0 %5099
    %5101 = vrot.lane.b32.xlu0 %v5064, 96
    %v5102 = vpop.permute.xlu0 %5101
    %5103 = vrot.lane.b32.xlu0 %v5065, 96
    %v5104 = vpop.permute.xlu0 %5103
    %5105 = vrot.lane.b32.xlu0 %v5066, 96
    %v5106 = vpop.permute.xlu0 %5105
    %5107 = vrot.lane.b32.xlu0 %v5067, 96
    %v5108 = vpop.permute.xlu0 %5107
    %5109 = vrot.lane.b32.xlu0 %v5068, 96
    %v5110 = vpop.permute.xlu0 %5109
    %5111 = vrot.lane.b32.xlu0 %v5069, 96
    %v5112 = vpop.permute.xlu0 %5111
    %5113 = vrot.lane.b32.xlu0 %v5070, 96
    %v5114 = vpop.permute.xlu0 %5113
    %5115 = vrot.lane.b32.xlu0 %v5071, 96
    %v5116 = vpop.permute.xlu0 %5115
    %5117 = vrot.lane.b32.xlu0 %v5072, 96
    %v5118 = vpop.permute.xlu0 %5117
    %5119 = vrot.lane.b32.xlu0 %v5073, 96
    %v5120 = vpop.permute.xlu0 %5119
    %5121 = vrot.lane.b32.xlu0 %v5074, 96
    %v5122 = vpop.permute.xlu0 %5121
    %vm5139 = vcmask 1048320
    %5140 = vst.msk [vmem:[#allocation6] sm:$0xff] %vm5139, %v5092
    %5141 = vst.msk [vmem:[#allocation6 + $0x18] sm:$0xff] %vm5139, %v5094
    %5142 = vst.msk [vmem:[#allocation6 + $0x30] sm:$0xff] %vm5139, %v5096
    %5143 = vst.msk [vmem:[#allocation6 + $0x48] sm:$0xff] %vm5139, %v5098
    %5144 = vst.msk [vmem:[#allocation6 + $0x60] sm:$0xff] %vm5139, %v5100
    %5145 = vst.msk [vmem:[#allocation6 + $0x78] sm:$0xff] %vm5139, %v5102
    %5146 = vst.msk [vmem:[#allocation6 + $0x90] sm:$0xff] %vm5139, %v5104
    %5147 = vst.msk [vmem:[#allocation6 + $0xa8] sm:$0xff] %vm5139, %v5106
    %5148 = vst.msk [vmem:[#allocation6 + $0xc0] sm:$0xff] %vm5139, %v5108
    %5149 = vst.msk [vmem:[#allocation6 + $0xd8] sm:$0xff] %vm5139, %v5110
    %5150 = vst.msk [vmem:[#allocation6 + $0xf0] sm:$0xff] %vm5139, %v5112
    %5151 = vst.msk [vmem:[#allocation6 + $0x108] sm:$0xff] %vm5139, %v5114
    %5152 = vst.msk [vmem:[#allocation6 + $0x120] sm:$0xff] %vm5139, %v5116
    %5153 = vst.msk [vmem:[#allocation6 + $0x138] sm:$0xff] %vm5139, %v5118
    %5154 = vst.msk [vmem:[#allocation6 + $0x150] sm:$0xff] %vm5139, %v5120
    %5155 = vst.msk [vmem:[#allocation6 + $0x168] sm:$0xff] %vm5139, %v5122
    %v5156 = vld [vmem:[%s4367 + $0x1] sm:$0xff]
    %v5157 = vld [vmem:[%s4367 + $0x11] sm:$0xff]
    %v5158 = vld [vmem:[%s4367 + $0x21] sm:$0xff]
    %v5159 = vld [vmem:[%s4367 + $0x31] sm:$0xff]
    %v5160 = vld [vmem:[%s4367 + $0x41] sm:$0xff]
    %v5161 = vld [vmem:[%s4367 + $0x51] sm:$0xff]
    %v5162 = vld [vmem:[%s4367 + $0x61] sm:$0xff]
    %v5163 = vld [vmem:[%s4367 + $0x71] sm:$0xff]
    %v5164 = vld [vmem:[%s4367 + $0xa1] sm:$0xff]
    %v5165 = vld [vmem:[%s4367 + $0xb1] sm:$0xff]
    %v5166 = vld [vmem:[%s4367 + $0xc1] sm:$0xff]
    %v5167 = vld [vmem:[%s4367 + $0xd1] sm:$0xff]
    %v5168 = vld [vmem:[%s4367 + $0xe1] sm:$0xff]
    %v5169 = vld [vmem:[%s4367 + $0xf1] sm:$0xff]
    %v5170 = vld [vmem:[%s4367 + $0x101] sm:$0xff]
    %v5171 = vld [vmem:[%s4367 + $0x111] sm:$0xff]
    %5172 = vst.msk [vmem:[#allocation6 + $0x8] sm:$0xff] %vm4206, %v5156
    %5173 = vst.msk [vmem:[#allocation6 + $0x20] sm:$0xff] %vm4206, %v5157
    %5174 = vst.msk [vmem:[#allocation6 + $0x38] sm:$0xff] %vm4206, %v5158
    %5175 = vst.msk [vmem:[#allocation6 + $0x50] sm:$0xff] %vm4206, %v5159
    %5176 = vst.msk [vmem:[#allocation6 + $0x68] sm:$0xff] %vm4206, %v5160
    %5177 = vst.msk [vmem:[#allocation6 + $0x80] sm:$0xff] %vm4206, %v5161
    %5178 = vst.msk [vmem:[#allocation6 + $0x98] sm:$0xff] %vm4206, %v5162
    %5179 = vst.msk [vmem:[#allocation6 + $0xb0] sm:$0xff] %vm4206, %v5163
    %5180 = vst.msk [vmem:[#allocation6 + $0xc8] sm:$0xff] %vm4206, %v5164
    %5181 = vst.msk [vmem:[#allocation6 + $0xe0] sm:$0xff] %vm4206, %v5165
    %5182 = vst.msk [vmem:[#allocation6 + $0xf8] sm:$0xff] %vm4206, %v5166
    %5183 = vst.msk [vmem:[#allocation6 + $0x110] sm:$0xff] %vm4206, %v5167
    %5184 = vst.msk [vmem:[#allocation6 + $0x128] sm:$0xff] %vm4206, %v5168
    %5185 = vst.msk [vmem:[#allocation6 + $0x140] sm:$0xff] %vm4206, %v5169
    %5186 = vst.msk [vmem:[#allocation6 + $0x158] sm:$0xff] %vm4206, %v5170
    %5187 = vst.msk [vmem:[#allocation6 + $0x170] sm:$0xff] %vm4206, %v5171
    %v5188 = vld [vmem:[%s4367 + $0x2] sm:$0xff]
    %v5189 = vld [vmem:[%s4367 + $0x12] sm:$0xff]
    %v5190 = vld [vmem:[%s4367 + $0x22] sm:$0xff]
    %v5191 = vld [vmem:[%s4367 + $0x32] sm:$0xff]
    %v5192 = vld [vmem:[%s4367 + $0x42] sm:$0xff]
    %v5193 = vld [vmem:[%s4367 + $0x52] sm:$0xff]
    %v5194 = vld [vmem:[%s4367 + $0x62] sm:$0xff]
    %v5195 = vld [vmem:[%s4367 + $0x72] sm:$0xff]
    %v5196 = vld [vmem:[%s4367 + $0xa2] sm:$0xff]
    %v5197 = vld [vmem:[%s4367 + $0xb2] sm:$0xff]
    %v5198 = vld [vmem:[%s4367 + $0xc2] sm:$0xff]
    %v5199 = vld [vmem:[%s4367 + $0xd2] sm:$0xff]
    %v5200 = vld [vmem:[%s4367 + $0xe2] sm:$0xff]
    %v5201 = vld [vmem:[%s4367 + $0xf2] sm:$0xff]
    %v5202 = vld [vmem:[%s4367 + $0x102] sm:$0xff]
    %v5203 = vld [vmem:[%s4367 + $0x112] sm:$0xff]
    %5220 = vrot.lane.b32.xlu0 %v5188, 32
    %v5221 = vpop.permute.xlu0 %5220
    %5222 = vrot.lane.b32.xlu0 %v5189, 32
    %v5223 = vpop.permute.xlu0 %5222
    %5224 = vrot.lane.b32.xlu0 %v5190, 32
    %v5225 = vpop.permute.xlu0 %5224
    %5226 = vrot.lane.b32.xlu0 %v5191, 32
    %v5227 = vpop.permute.xlu0 %5226
    %5228 = vrot.lane.b32.xlu0 %v5192, 32
    %v5229 = vpop.permute.xlu0 %5228
    %5230 = vrot.lane.b32.xlu0 %v5193, 32
    %v5231 = vpop.permute.xlu0 %5230
    %5232 = vrot.lane.b32.xlu0 %v5194, 32
    %v5233 = vpop.permute.xlu0 %5232
    %5234 = vrot.lane.b32.xlu0 %v5195, 32
    %v5235 = vpop.permute.xlu0 %5234
    %5236 = vrot.lane.b32.xlu0 %v5196, 32
    %v5237 = vpop.permute.xlu0 %5236
    %5238 = vrot.lane.b32.xlu0 %v5197, 32
    %v5239 = vpop.permute.xlu0 %5238
    %5240 = vrot.lane.b32.xlu0 %v5198, 32
    %v5241 = vpop.permute.xlu0 %5240
    %5242 = vrot.lane.b32.xlu0 %v5199, 32
    %v5243 = vpop.permute.xlu0 %5242
    %5244 = vrot.lane.b32.xlu0 %v5200, 32
    %v5245 = vpop.permute.xlu0 %5244
    %5246 = vrot.lane.b32.xlu0 %v5201, 32
    %v5247 = vpop.permute.xlu0 %5246
    %5248 = vrot.lane.b32.xlu0 %v5202, 32
    %v5249 = vpop.permute.xlu0 %5248
    %5250 = vrot.lane.b32.xlu0 %v5203, 32
    %v5251 = vpop.permute.xlu0 %5250
    %5268 = vst.msk [vmem:[#allocation6 + $0x8] sm:$0xff] %vm4945, %v5221
    %5269 = vst.msk [vmem:[#allocation6 + $0x20] sm:$0xff] %vm4945, %v5223
    %5270 = vst.msk [vmem:[#allocation6 + $0x38] sm:$0xff] %vm4945, %v5225
    %5271 = vst.msk [vmem:[#allocation6 + $0x50] sm:$0xff] %vm4945, %v5227
    %5272 = vst.msk [vmem:[#allocation6 + $0x68] sm:$0xff] %vm4945, %v5229
    %5273 = vst.msk [vmem:[#allocation6 + $0x80] sm:$0xff] %vm4945, %v5231
    %5274 = vst.msk [vmem:[#allocation6 + $0x98] sm:$0xff] %vm4945, %v5233
    %5275 = vst.msk [vmem:[#allocation6 + $0xb0] sm:$0xff] %vm4945, %v5235
    %5276 = vst.msk [vmem:[#allocation6 + $0xc8] sm:$0xff] %vm4945, %v5237
    %5277 = vst.msk [vmem:[#allocation6 + $0xe0] sm:$0xff] %vm4945, %v5239
    %5278 = vst.msk [vmem:[#allocation6 + $0xf8] sm:$0xff] %vm4945, %v5241
    %5279 = vst.msk [vmem:[#allocation6 + $0x110] sm:$0xff] %vm4945, %v5243
    %5280 = vst.msk [vmem:[#allocation6 + $0x128] sm:$0xff] %vm4945, %v5245
    %5281 = vst.msk [vmem:[#allocation6 + $0x140] sm:$0xff] %vm4945, %v5247
    %5282 = vst.msk [vmem:[#allocation6 + $0x158] sm:$0xff] %vm4945, %v5249
    %5283 = vst.msk [vmem:[#allocation6 + $0x170] sm:$0xff] %vm4945, %v5251
    %s5284 = scalar_lea.vmem [#allocation5], 32
    %v5285 = vld [vmem:[%s5284] sm:$0xff]
    %v5286 = vld [vmem:[%s5284 + $0x10] sm:$0xff]
    %v5287 = vld [vmem:[%s5284 + $0x20] sm:$0xff]
    %v5288 = vld [vmem:[%s5284 + $0x30] sm:$0xff]
    %v5289 = vld [vmem:[%s5284 + $0x40] sm:$0xff]
    %v5290 = vld [vmem:[%s5284 + $0x50] sm:$0xff]
    %v5291 = vld [vmem:[%s5284 + $0x60] sm:$0xff]
    %v5292 = vld [vmem:[%s5284 + $0x70] sm:$0xff]
    %v5293 = vld [vmem:[%s5284 + $0xa0] sm:$0xff]
    %v5294 = vld [vmem:[%s5284 + $0xb0] sm:$0xff]
    %v5295 = vld [vmem:[%s5284 + $0xc0] sm:$0xff]
    %v5296 = vld [vmem:[%s5284 + $0xd0] sm:$0xff]
    %v5297 = vld [vmem:[%s5284 + $0xe0] sm:$0xff]
    %v5298 = vld [vmem:[%s5284 + $0xf0] sm:$0xff]
    %v5299 = vld [vmem:[%s5284 + $0x100] sm:$0xff]
    %v5300 = vld [vmem:[%s5284 + $0x110] sm:$0xff]
    %5317 = vrot.lane.b32.xlu0 %v5285, 64
    %v5318 = vpop.permute.xlu0 %5317
    %5319 = vrot.lane.b32.xlu0 %v5286, 64
    %v5320 = vpop.permute.xlu0 %5319
    %5321 = vrot.lane.b32.xlu0 %v5287, 64
    %v5322 = vpop.permute.xlu0 %5321
    %5323 = vrot.lane.b32.xlu0 %v5288, 64
    %v5324 = vpop.permute.xlu0 %5323
    %5325 = vrot.lane.b32.xlu0 %v5289, 64
    %v5326 = vpop.permute.xlu0 %5325
    %5327 = vrot.lane.b32.xlu0 %v5290, 64
    %v5328 = vpop.permute.xlu0 %5327
    %5329 = vrot.lane.b32.xlu0 %v5291, 64
    %v5330 = vpop.permute.xlu0 %5329
    %5331 = vrot.lane.b32.xlu0 %v5292, 64
    %v5332 = vpop.permute.xlu0 %5331
    %5333 = vrot.lane.b32.xlu0 %v5293, 64
    %v5334 = vpop.permute.xlu0 %5333
    %5335 = vrot.lane.b32.xlu0 %v5294, 64
    %v5336 = vpop.permute.xlu0 %5335
    %5337 = vrot.lane.b32.xlu0 %v5295, 64
    %v5338 = vpop.permute.xlu0 %5337
    %5339 = vrot.lane.b32.xlu0 %v5296, 64
    %v5340 = vpop.permute.xlu0 %5339
    %5341 = vrot.lane.b32.xlu0 %v5297, 64
    %v5342 = vpop.permute.xlu0 %5341
    %5343 = vrot.lane.b32.xlu0 %v5298, 64
    %v5344 = vpop.permute.xlu0 %5343
    %5345 = vrot.lane.b32.xlu0 %v5299, 64
    %v5346 = vpop.permute.xlu0 %5345
    %5347 = vrot.lane.b32.xlu0 %v5300, 64
    %v5348 = vpop.permute.xlu0 %5347
    %5365 = vst.msk [vmem:[#allocation6 + $0x8] sm:$0xff] %vm5042, %v5318
    %5366 = vst.msk [vmem:[#allocation6 + $0x20] sm:$0xff] %vm5042, %v5320
    %5367 = vst.msk [vmem:[#allocation6 + $0x38] sm:$0xff] %vm5042, %v5322
    %5368 = vst.msk [vmem:[#allocation6 + $0x50] sm:$0xff] %vm5042, %v5324
    %5369 = vst.msk [vmem:[#allocation6 + $0x68] sm:$0xff] %vm5042, %v5326
    %5370 = vst.msk [vmem:[#allocation6 + $0x80] sm:$0xff] %vm5042, %v5328
    %5371 = vst.msk [vmem:[#allocation6 + $0x98] sm:$0xff] %vm5042, %v5330
    %5372 = vst.msk [vmem:[#allocation6 + $0xb0] sm:$0xff] %vm5042, %v5332
    %5373 = vst.msk [vmem:[#allocation6 + $0xc8] sm:$0xff] %vm5042, %v5334
    %5374 = vst.msk [vmem:[#allocation6 + $0xe0] sm:$0xff] %vm5042, %v5336
    %5375 = vst.msk [vmem:[#allocation6 + $0xf8] sm:$0xff] %vm5042, %v5338
    %5376 = vst.msk [vmem:[#allocation6 + $0x110] sm:$0xff] %vm5042, %v5340
    %5377 = vst.msk [vmem:[#allocation6 + $0x128] sm:$0xff] %vm5042, %v5342
    %5378 = vst.msk [vmem:[#allocation6 + $0x140] sm:$0xff] %vm5042, %v5344
    %5379 = vst.msk [vmem:[#allocation6 + $0x158] sm:$0xff] %vm5042, %v5346
    %5380 = vst.msk [vmem:[#allocation6 + $0x170] sm:$0xff] %vm5042, %v5348
    %v5381 = vld [vmem:[%s5284 + $0x1] sm:$0xff]
    %v5382 = vld [vmem:[%s5284 + $0x11] sm:$0xff]
    %v5383 = vld [vmem:[%s5284 + $0x21] sm:$0xff]
    %v5384 = vld [vmem:[%s5284 + $0x31] sm:$0xff]
    %v5385 = vld [vmem:[%s5284 + $0x41] sm:$0xff]
    %v5386 = vld [vmem:[%s5284 + $0x51] sm:$0xff]
    %v5387 = vld [vmem:[%s5284 + $0x61] sm:$0xff]
    %v5388 = vld [vmem:[%s5284 + $0x71] sm:$0xff]
    %v5389 = vld [vmem:[%s5284 + $0xa1] sm:$0xff]
    %v5390 = vld [vmem:[%s5284 + $0xb1] sm:$0xff]
    %v5391 = vld [vmem:[%s5284 + $0xc1] sm:$0xff]
    %v5392 = vld [vmem:[%s5284 + $0xd1] sm:$0xff]
    %v5393 = vld [vmem:[%s5284 + $0xe1] sm:$0xff]
    %v5394 = vld [vmem:[%s5284 + $0xf1] sm:$0xff]
    %v5395 = vld [vmem:[%s5284 + $0x101] sm:$0xff]
    %v5396 = vld [vmem:[%s5284 + $0x111] sm:$0xff]
    %5413 = vrot.lane.b32.xlu0 %v5381, 96
    %v5414 = vpop.permute.xlu0 %5413
    %5415 = vrot.lane.b32.xlu0 %v5382, 96
    %v5416 = vpop.permute.xlu0 %5415
    %5417 = vrot.lane.b32.xlu0 %v5383, 96
    %v5418 = vpop.permute.xlu0 %5417
    %5419 = vrot.lane.b32.xlu0 %v5384, 96
    %v5420 = vpop.permute.xlu0 %5419
    %5421 = vrot.lane.b32.xlu0 %v5385, 96
    %v5422 = vpop.permute.xlu0 %5421
    %5423 = vrot.lane.b32.xlu0 %v5386, 96
    %v5424 = vpop.permute.xlu0 %5423
    %5425 = vrot.lane.b32.xlu0 %v5387, 96
    %v5426 = vpop.permute.xlu0 %5425
    %5427 = vrot.lane.b32.xlu0 %v5388, 96
    %v5428 = vpop.permute.xlu0 %5427
    %5429 = vrot.lane.b32.xlu0 %v5389, 96
    %v5430 = vpop.permute.xlu0 %5429
    %5431 = vrot.lane.b32.xlu0 %v5390, 96
    %v5432 = vpop.permute.xlu0 %5431
    %5433 = vrot.lane.b32.xlu0 %v5391, 96
    %v5434 = vpop.permute.xlu0 %5433
    %5435 = vrot.lane.b32.xlu0 %v5392, 96
    %v5436 = vpop.permute.xlu0 %5435
    %5437 = vrot.lane.b32.xlu0 %v5393, 96
    %v5438 = vpop.permute.xlu0 %5437
    %5439 = vrot.lane.b32.xlu0 %v5394, 96
    %v5440 = vpop.permute.xlu0 %5439
    %5441 = vrot.lane.b32.xlu0 %v5395, 96
    %v5442 = vpop.permute.xlu0 %5441
    %5443 = vrot.lane.b32.xlu0 %v5396, 96
    %v5444 = vpop.permute.xlu0 %5443
    %5461 = vst.msk [vmem:[#allocation6 + $0x8] sm:$0xff] %vm5139, %v5414
    %5462 = vst.msk [vmem:[#allocation6 + $0x20] sm:$0xff] %vm5139, %v5416
    %5463 = vst.msk [vmem:[#allocation6 + $0x38] sm:$0xff] %vm5139, %v5418
    %5464 = vst.msk [vmem:[#allocation6 + $0x50] sm:$0xff] %vm5139, %v5420
    %5465 = vst.msk [vmem:[#allocation6 + $0x68] sm:$0xff] %vm5139, %v5422
    %5466 = vst.msk [vmem:[#allocation6 + $0x80] sm:$0xff] %vm5139, %v5424
    %5467 = vst.msk [vmem:[#allocation6 + $0x98] sm:$0xff] %vm5139, %v5426
    %5468 = vst.msk [vmem:[#allocation6 + $0xb0] sm:$0xff] %vm5139, %v5428
    %5469 = vst.msk [vmem:[#allocation6 + $0xc8] sm:$0xff] %vm5139, %v5430
    %5470 = vst.msk [vmem:[#allocation6 + $0xe0] sm:$0xff] %vm5139, %v5432
    %5471 = vst.msk [vmem:[#allocation6 + $0xf8] sm:$0xff] %vm5139, %v5434
    %5472 = vst.msk [vmem:[#allocation6 + $0x110] sm:$0xff] %vm5139, %v5436
    %5473 = vst.msk [vmem:[#allocation6 + $0x128] sm:$0xff] %vm5139, %v5438
    %5474 = vst.msk [vmem:[#allocation6 + $0x140] sm:$0xff] %vm5139, %v5440
    %5475 = vst.msk [vmem:[#allocation6 + $0x158] sm:$0xff] %vm5139, %v5442
    %5476 = vst.msk [vmem:[#allocation6 + $0x170] sm:$0xff] %vm5139, %v5444
    %v5477 = vld [vmem:[%s5284 + $0x2] sm:$0xff]
    %v5478 = vld [vmem:[%s5284 + $0x12] sm:$0xff]
    %v5479 = vld [vmem:[%s5284 + $0x22] sm:$0xff]
    %v5480 = vld [vmem:[%s5284 + $0x32] sm:$0xff]
    %v5481 = vld [vmem:[%s5284 + $0x42] sm:$0xff]
    %v5482 = vld [vmem:[%s5284 + $0x52] sm:$0xff]
    %v5483 = vld [vmem:[%s5284 + $0x62] sm:$0xff]
    %v5484 = vld [vmem:[%s5284 + $0x72] sm:$0xff]
    %v5485 = vld [vmem:[%s5284 + $0xa2] sm:$0xff]
    %v5486 = vld [vmem:[%s5284 + $0xb2] sm:$0xff]
    %v5487 = vld [vmem:[%s5284 + $0xc2] sm:$0xff]
    %v5488 = vld [vmem:[%s5284 + $0xd2] sm:$0xff]
    %v5489 = vld [vmem:[%s5284 + $0xe2] sm:$0xff]
    %v5490 = vld [vmem:[%s5284 + $0xf2] sm:$0xff]
    %v5491 = vld [vmem:[%s5284 + $0x102] sm:$0xff]
    %v5492 = vld [vmem:[%s5284 + $0x112] sm:$0xff]
    %5493 = vst.msk [vmem:[#allocation6 + $0x10] sm:$0xff] %vm4206, %v5477
    %5494 = vst.msk [vmem:[#allocation6 + $0x28] sm:$0xff] %vm4206, %v5478
    %5495 = vst.msk [vmem:[#allocation6 + $0x40] sm:$0xff] %vm4206, %v5479
    %5496 = vst.msk [vmem:[#allocation6 + $0x58] sm:$0xff] %vm4206, %v5480
    %5497 = vst.msk [vmem:[#allocation6 + $0x70] sm:$0xff] %vm4206, %v5481
    %5498 = vst.msk [vmem:[#allocation6 + $0x88] sm:$0xff] %vm4206, %v5482
    %5499 = vst.msk [vmem:[#allocation6 + $0xa0] sm:$0xff] %vm4206, %v5483
    %5500 = vst.msk [vmem:[#allocation6 + $0xb8] sm:$0xff] %vm4206, %v5484
    %5501 = vst.msk [vmem:[#allocation6 + $0xd0] sm:$0xff] %vm4206, %v5485
    %5502 = vst.msk [vmem:[#allocation6 + $0xe8] sm:$0xff] %vm4206, %v5486
    %5503 = vst.msk [vmem:[#allocation6 + $0x100] sm:$0xff] %vm4206, %v5487
    %5504 = vst.msk [vmem:[#allocation6 + $0x118] sm:$0xff] %vm4206, %v5488
    %5505 = vst.msk [vmem:[#allocation6 + $0x130] sm:$0xff] %vm4206, %v5489
    %5506 = vst.msk [vmem:[#allocation6 + $0x148] sm:$0xff] %vm4206, %v5490
    %5507 = vst.msk [vmem:[#allocation6 + $0x160] sm:$0xff] %vm4206, %v5491
    %5508 = vst.msk [vmem:[#allocation6 + $0x178] sm:$0xff] %vm4206, %v5492
    %v5509 = vld [vmem:[#allocation6] sm:$0xff]
    %v5510 = vld [vmem:[#allocation6 + $0x8] sm:$0xff]
    %v5511 = vld [vmem:[#allocation6 + $0x10] sm:$0xff]
    %v5512 = vld [vmem:[#allocation6 + $0x18] sm:$0xff]
    %v5513 = vld [vmem:[#allocation6 + $0x20] sm:$0xff]
    %v5514 = vld [vmem:[#allocation6 + $0x28] sm:$0xff]
    %v5515 = vld [vmem:[#allocation6 + $0x30] sm:$0xff]
    %v5516 = vld [vmem:[#allocation6 + $0x38] sm:$0xff]
    %v5517 = vld [vmem:[#allocation6 + $0x40] sm:$0xff]
    %v5518 = vld [vmem:[#allocation6 + $0x48] sm:$0xff]
    %v5519 = vld [vmem:[#allocation6 + $0x50] sm:$0xff]
    %v5520 = vld [vmem:[#allocation6 + $0x58] sm:$0xff]
    %v5521 = vld [vmem:[#allocation6 + $0x60] sm:$0xff]
    %v5522 = vld [vmem:[#allocation6 + $0x68] sm:$0xff]
    %v5523 = vld [vmem:[#allocation6 + $0x70] sm:$0xff]
    %v5524 = vld [vmem:[#allocation6 + $0x78] sm:$0xff]
    %v5525 = vld [vmem:[#allocation6 + $0x80] sm:$0xff]
    %v5526 = vld [vmem:[#allocation6 + $0x88] sm:$0xff]
    %v5527 = vld [vmem:[#allocation6 + $0x90] sm:$0xff]
    %v5528 = vld [vmem:[#allocation6 + $0x98] sm:$0xff]
    %v5529 = vld [vmem:[#allocation6 + $0xa0] sm:$0xff]
    %v5530 = vld [vmem:[#allocation6 + $0xa8] sm:$0xff]
    %v5531 = vld [vmem:[#allocation6 + $0xb0] sm:$0xff]
    %v5532 = vld [vmem:[#allocation6 + $0xb8] sm:$0xff]
    %v5533 = vld [vmem:[#allocation6 + $0xc0] sm:$0xff]
    %v5534 = vld [vmem:[#allocation6 + $0xc8] sm:$0xff]
    %v5535 = vld [vmem:[#allocation6 + $0xd0] sm:$0xff]
    %v5536 = vld [vmem:[#allocation6 + $0xd8] sm:$0xff]
    %v5537 = vld [vmem:[#allocation6 + $0xe0] sm:$0xff]
    %v5538 = vld [vmem:[#allocation6 + $0xe8] sm:$0xff]
    %v5539 = vld [vmem:[#allocation6 + $0xf0] sm:$0xff]
    %v5540 = vld [vmem:[#allocation6 + $0xf8] sm:$0xff]
    %v5541 = vld [vmem:[#allocation6 + $0x100] sm:$0xff]
    %v5542 = vld [vmem:[#allocation6 + $0x108] sm:$0xff]
    %v5543 = vld [vmem:[#allocation6 + $0x110] sm:$0xff]
    %v5544 = vld [vmem:[#allocation6 + $0x118] sm:$0xff]
    %v5545 = vld [vmem:[#allocation6 + $0x120] sm:$0xff]
    %v5546 = vld [vmem:[#allocation6 + $0x128] sm:$0xff]
    %v5547 = vld [vmem:[#allocation6 + $0x130] sm:$0xff]
    %v5548 = vld [vmem:[#allocation6 + $0x138] sm:$0xff]
    %v5549 = vld [vmem:[#allocation6 + $0x140] sm:$0xff]
    %v5550 = vld [vmem:[#allocation6 + $0x148] sm:$0xff]
    %v5551 = vld [vmem:[#allocation6 + $0x150] sm:$0xff]
    %v5552 = vld [vmem:[#allocation6 + $0x158] sm:$0xff]
    %v5553 = vld [vmem:[#allocation6 + $0x160] sm:$0xff]
    %v5554 = vld [vmem:[#allocation6 + $0x168] sm:$0xff]
    %v5555 = vld [vmem:[#allocation6 + $0x170] sm:$0xff]
    %v5556 = vld [vmem:[#allocation6 + $0x178] sm:$0xff]
    %v5557 = vld [vmem:[%s3] sm:$0xff]
    %v5558 = vld [vmem:[%s3 + $0x8] sm:$0xff]
    %v5559 = vld [vmem:[%s3 + $0x10] sm:$0xff]
    %v5560 = vld [vmem:[%s3 + $0x18] sm:$0xff]
    %v5561 = vld [vmem:[%s3 + $0x20] sm:$0xff]
    %v5562 = vld [vmem:[%s3 + $0x28] sm:$0xff]
    %v5563 = vld [vmem:[%s3 + $0x30] sm:$0xff]
    %v5564 = vld [vmem:[%s3 + $0x38] sm:$0xff]
    %v5565 = vld [vmem:[%s3 + $0x40] sm:$0xff]
    %v5566 = vld [vmem:[%s3 + $0x48] sm:$0xff]
    %v5567 = vld [vmem:[%s3 + $0x50] sm:$0xff]
    %v5568 = vld [vmem:[%s3 + $0x58] sm:$0xff]
    %v5569 = vld [vmem:[%s3 + $0x60] sm:$0xff]
    %v5570 = vld [vmem:[%s3 + $0x68] sm:$0xff]
    %v5571 = vld [vmem:[%s3 + $0x70] sm:$0xff]
    %v5572 = vld [vmem:[%s3 + $0x78] sm:$0xff]
    %v5573 = vld [vmem:[%s3 + $0x80] sm:$0xff]
    %v5574 = vld [vmem:[%s3 + $0x88] sm:$0xff]
    %v5575 = vld [vmem:[%s3 + $0x90] sm:$0xff]
    %v5576 = vld [vmem:[%s3 + $0x98] sm:$0xff]
    %v5577 = vld [vmem:[%s3 + $0xa0] sm:$0xff]
    %v5578 = vld [vmem:[%s3 + $0xa8] sm:$0xff]
    %v5579 = vld [vmem:[%s3 + $0xb0] sm:$0xff]
    %v5580 = vld [vmem:[%s3 + $0xb8] sm:$0xff]
    %v5581 = vld [vmem:[%s3 + $0xc0] sm:$0xff]
    %v5582 = vld [vmem:[%s3 + $0xc8] sm:$0xff]
    %v5583 = vld [vmem:[%s3 + $0xd0] sm:$0xff]
    %v5584 = vld [vmem:[%s3 + $0xd8] sm:$0xff]
    %v5585 = vld [vmem:[%s3 + $0xe0] sm:$0xff]
    %v5586 = vld [vmem:[%s3 + $0xe8] sm:$0xff]
    %v5587 = vld [vmem:[%s3 + $0xf0] sm:$0xff]
    %v5588 = vld [vmem:[%s3 + $0xf8] sm:$0xff]
    %v5589 = vld [vmem:[%s3 + $0x100] sm:$0xff]
    %v5590 = vld [vmem:[%s3 + $0x108] sm:$0xff]
    %v5591 = vld [vmem:[%s3 + $0x110] sm:$0xff]
    %v5592 = vld [vmem:[%s3 + $0x118] sm:$0xff]
    %v5593 = vld [vmem:[%s4] sm:$0x1]
    %v5595 = vlaneseq
    %v5596 = vshrl.u32 %v5595, 7
    %v5597 = vsub.s32 0, %v5596
    %v5598 = vrot.slane %v5593, %v5597
    %v5601 = vsel %vm4206, %v5511, 0
    %v5604 = vsel %vm4206, %v5514, 0
    %v5607 = vsel %vm4206, %v5517, 0
    %v5610 = vsel %vm4206, %v5520, 0
    %v5613 = vsel %vm4206, %v5523, 0
    %v5616 = vsel %vm4206, %v5526, 0
    %v5619 = vsel %vm4206, %v5529, 0
    %v5622 = vsel %vm4206, %v5532, 0
    %v5625 = vsel %vm4206, %v5535, 0
    %v5628 = vsel %vm4206, %v5538, 0
    %v5631 = vsel %vm4206, %v5541, 0
    %v5634 = vsel %vm4206, %v5544, 0
    %v5637 = vsel %vm4206, %v5547, 0
    %v5640 = vsel %vm4206, %v5550, 0
    %v5643 = vsel %vm4206, %v5553, 0
    %v5646 = vsel %vm4206, %v5556, 0
    %5648 = vmatprep.subr.mxu0 0.0
    %5649 = vmatpush1.msra.mxu0 %v5572
    %5650 = vmatprep.subr.mxu0 0.0
    %5651 = vmatpush1.msra.mxu0 %v5571
    %5652 = vmatprep.subr.mxu0 0.0
    %5653 = vmatpush1.msra.mxu0 %v5570
    %5654 = vmatprep.subr.mxu0 0.0
    %5655 = vmatpush1.msra.mxu0 %v5569
    %5656 = vmatprep.subr.mxu0 0.0
    %5657 = vmatpush1.msra.mxu0 %v5568
    %5658 = vmatprep.subr.mxu0 0.0
    %5659 = vmatpush1.msra.mxu0 %v5567
    %5660 = vmatprep.subr.mxu0 0.0
    %5661 = vmatpush1.msra.mxu0 %v5566
    %5662 = vmatprep.subr.mxu0 0.0
    %5663 = vmatpush1.msra.mxu0 %v5565
    %5664 = vmatprep.subr.mxu0 0.0
    %5665 = vmatpush1.msra.mxu0 %v5564
    %5666 = vmatprep.subr.mxu0 0.0
    %5667 = vmatpush1.msra.mxu0 %v5563
    %5668 = vmatprep.subr.mxu0 0.0
    %5669 = vmatpush1.msra.mxu0 %v5562
    %5670 = vmatprep.subr.mxu0 0.0
    %5671 = vmatpush1.msra.mxu0 %v5561
    %5672 = vmatprep.subr.mxu0 0.0
    %5673 = vmatpush1.msra.mxu0 %v5560
    %5674 = vmatprep.subr.mxu0 0.0
    %5675 = vmatpush1.msra.mxu0 %v5559
    %5676 = vmatprep.subr.mxu0 0.0
    %5677 = vmatpush1.msra.mxu0 %v5558
    %5678 = vmatprep.subr.mxu0 0.0
    %5679 = vmatpush1.msra.mxu0 %v5557
    %5680 = vmatprep.subr.mxu0 0.0
    %5681 = vmatpush2.msra.mxu0 %v5588
    %5682 = vmatprep.subr.mxu0 0.0
    %5683 = vmatpush2.msra.mxu0 %v5587
    %5684 = vmatprep.subr.mxu0 0.0
    %5685 = vmatpush2.msra.mxu0 %v5586
    %5686 = vmatprep.subr.mxu0 0.0
    %5687 = vmatpush2.msra.mxu0 %v5585
    %5688 = vmatprep.subr.mxu0 0.0
    %5689 = vmatpush2.msra.mxu0 %v5584
    %5690 = vmatprep.subr.mxu0 0.0
    %5691 = vmatpush2.msra.mxu0 %v5583
    %5692 = vmatprep.subr.mxu0 0.0
    %5693 = vmatpush2.msra.mxu0 %v5582
    %5694 = vmatprep.subr.mxu0 0.0
    %5695 = vmatpush2.msra.mxu0 %v5581
    %5696 = vmatprep.subr.mxu0 0.0
    %5697 = vmatpush2.msra.mxu0 %v5580
    %5698 = vmatprep.subr.mxu0 0.0
    %5699 = vmatpush2.msra.mxu0 %v5579
    %5700 = vmatprep.subr.mxu0 0.0
    %5701 = vmatpush2.msra.mxu0 %v5578
    %5702 = vmatprep.subr.mxu0 0.0
    %5703 = vmatpush2.msra.mxu0 %v5577
    %5704 = vmatprep.subr.mxu0 0.0
    %5705 = vmatpush2.msra.mxu0 %v5576
    %5706 = vmatprep.subr.mxu0 0.0
    %5707 = vmatpush2.msra.mxu0 %v5575
    %5708 = vmatprep.subr.mxu0 0.0
    %5709 = vmatpush2.msra.mxu0 %v5574
    %5710 = vmatprep.subr.mxu0 0.0
    %5711 = vmatpush2.msra.mxu0 %v5573
    %5712 = vmatprep.mubr.f32.mxu0 %v5510
    %5713 = vmatmul.mubr.f32.gmra.mxu0 %v5509
    %v5714 = vpop.f32.mrf.mxu0
    %v5715 = vadd.f32 %v5598, %v5714
    %v5716 = vpop.f32.mrf.mxu0
    %5717 = vmatprep.mubr.f32.mxu0 %v5513
    %5718 = vmatmul.mubr.f32.gmra.mxu0 %v5512
    %v5719 = vpop.f32.mrf.mxu0
    %v5720 = vadd.f32 %v5598, %v5719
    %v5721 = vpop.f32.mrf.mxu0
    %5722 = vmatprep.mubr.f32.mxu0 %v5516
    %5723 = vmatmul.mubr.f32.gmra.mxu0 %v5515
    %v5724 = vpop.f32.mrf.mxu0
    %v5725 = vadd.f32 %v5598, %v5724
    %v5726 = vpop.f32.mrf.mxu0
    %5727 = vmatprep.mubr.f32.mxu0 %v5519
    %5728 = vmatmul.mubr.f32.gmra.mxu0 %v5518
    %v5729 = vpop.f32.mrf.mxu0
    %v5730 = vadd.f32 %v5598, %v5729
    %v5731 = vpop.f32.mrf.mxu0
    %5732 = vmatprep.mubr.f32.mxu0 %v5522
    %5733 = vmatmul.mubr.f32.gmra.mxu0 %v5521
    %v5734 = vpop.f32.mrf.mxu0
    %v5735 = vadd.f32 %v5598, %v5734
    %v5736 = vpop.f32.mrf.mxu0
    %5737 = vmatprep.mubr.f32.mxu0 %v5525
    %5738 = vmatmul.mubr.f32.gmra.mxu0 %v5524
    %v5739 = vpop.f32.mrf.mxu0
    %v5740 = vadd.f32 %v5598, %v5739
    %v5741 = vpop.f32.mrf.mxu0
    %5742 = vmatprep.mubr.f32.mxu0 %v5528
    %5743 = vmatmul.mubr.f32.gmra.mxu0 %v5527
    %v5744 = vpop.f32.mrf.mxu0
    %v5745 = vadd.f32 %v5598, %v5744
    %v5746 = vpop.f32.mrf.mxu0
    %5747 = vmatprep.mubr.f32.mxu0 %v5531
    %5748 = vmatmul.mubr.f32.gmra.mxu0 %v5530
    %v5749 = vpop.f32.mrf.mxu0
    %v5750 = vadd.f32 %v5598, %v5749
    %v5751 = vpop.f32.mrf.mxu0
    %5752 = vmatprep.mubr.f32.mxu0 %v5534
    %5753 = vmatmul.mubr.f32.gmra.mxu0 %v5533
    %v5754 = vpop.f32.mrf.mxu0
    %v5755 = vadd.f32 %v5598, %v5754
    %v5756 = vpop.f32.mrf.mxu0
    %5757 = vmatprep.mubr.f32.mxu0 %v5537
    %5758 = vmatmul.mubr.f32.gmra.mxu0 %v5536
    %v5759 = vpop.f32.mrf.mxu0
    %v5760 = vadd.f32 %v5598, %v5759
    %v5761 = vpop.f32.mrf.mxu0
    %5762 = vmatprep.mubr.f32.mxu0 %v5540
    %5763 = vmatmul.mubr.f32.gmra.mxu0 %v5539
    %v5764 = vpop.f32.mrf.mxu0
    %v5765 = vadd.f32 %v5598, %v5764
    %v5766 = vpop.f32.mrf.mxu0
    %5767 = vmatprep.mubr.f32.mxu0 %v5543
    %5768 = vmatmul.mubr.f32.gmra.mxu0 %v5542
    %v5769 = vpop.f32.mrf.mxu0
    %v5770 = vadd.f32 %v5598, %v5769
    %v5771 = vpop.f32.mrf.mxu0
    %5772 = vmatprep.mubr.f32.mxu0 %v5546
    %5773 = vmatmul.mubr.f32.gmra.mxu0 %v5545
    %v5774 = vpop.f32.mrf.mxu0
    %v5775 = vadd.f32 %v5598, %v5774
    %v5776 = vpop.f32.mrf.mxu0
    %5777 = vmatprep.mubr.f32.mxu0 %v5549
    %5778 = vmatmul.mubr.f32.gmra.mxu0 %v5548
    %v5779 = vpop.f32.mrf.mxu0
    %v5780 = vadd.f32 %v5598, %v5779
    %v5781 = vpop.f32.mrf.mxu0
    %5782 = vmatprep.mubr.f32.mxu0 %v5552
    %5783 = vmatmul.mubr.f32.gmra.mxu0 %v5551
    %v5784 = vpop.f32.mrf.mxu0
    %v5785 = vadd.f32 %v5598, %v5784
    %v5786 = vpop.f32.mrf.mxu0
    %5787 = vmatprep.mubr.f32.mxu0 %v5555
    %5788 = vmatmul.mubr.f32.gmra.mxu0 %v5554
    %v5789 = vpop.f32.mrf.mxu0
    %v5790 = vadd.f32 %v5598, %v5789
    %v5791 = vpop.f32.mrf.mxu0
    %5792 = vdwg.mxu0
    %5793 = vmatprep.subr.mxu0 0.0
    %5794 = vmatpush1.msra.mxu0 0.0
    %5795 = vmatprep.subr.mxu0 0.0
    %5796 = vmatpush1.msra.mxu0 0.0
    %5797 = vmatprep.subr.mxu0 0.0
    %5798 = vmatpush1.msra.mxu0 0.0
    %5799 = vmatprep.subr.mxu0 0.0
    %5800 = vmatpush1.msra.mxu0 0.0
    %5801 = vmatprep.subr.mxu0 0.0
    %5802 = vmatpush1.msra.mxu0 0.0
    %5803 = vmatprep.subr.mxu0 0.0
    %5804 = vmatpush1.msra.mxu0 0.0
    %5805 = vmatprep.subr.mxu0 0.0
    %5806 = vmatpush1.msra.mxu0 0.0
    %5807 = vmatprep.subr.mxu0 0.0
    %5808 = vmatpush1.msra.mxu0 0.0
    %5809 = vmatprep.subr.mxu0 0.0
    %5810 = vmatpush1.msra.mxu0 0.0
    %5811 = vmatprep.subr.mxu0 0.0
    %5812 = vmatpush1.msra.mxu0 0.0
    %5813 = vmatprep.subr.mxu0 0.0
    %5814 = vmatpush1.msra.mxu0 0.0
    %5815 = vmatprep.subr.mxu0 0.0
    %5816 = vmatpush1.msra.mxu0 0.0
    %5817 = vmatprep.subr.mxu0 0.0
    %5818 = vmatpush1.msra.mxu0 %v5592
    %5819 = vmatprep.subr.mxu0 0.0
    %5820 = vmatpush1.msra.mxu0 %v5591
    %5821 = vmatprep.subr.mxu0 0.0
    %5822 = vmatpush1.msra.mxu0 %v5590
    %5823 = vmatprep.subr.mxu0 0.0
    %5824 = vmatpush1.msra.mxu0 %v5589
    %5825 = vmatprep.subr.mxu0 0.0
    %5826 = vmatpush2.msra.mxu0 0.0
    %5827 = vmatprep.subr.mxu0 0.0
    %5828 = vmatpush2.msra.mxu0 0.0
    %5829 = vmatprep.subr.mxu0 0.0
    %5830 = vmatpush2.msra.mxu0 0.0
    %5831 = vmatprep.subr.mxu0 0.0
    %5832 = vmatpush2.msra.mxu0 0.0
    %5833 = vmatprep.subr.mxu0 0.0
    %5834 = vmatpush2.msra.mxu0 0.0
    %5835 = vmatprep.subr.mxu0 0.0
    %5836 = vmatpush2.msra.mxu0 0.0
    %5837 = vmatprep.subr.mxu0 0.0
    %5838 = vmatpush2.msra.mxu0 0.0
    %5839 = vmatprep.subr.mxu0 0.0
    %5840 = vmatpush2.msra.mxu0 0.0
    %5841 = vmatprep.subr.mxu0 0.0
    %5842 = vmatpush2.msra.mxu0 0.0
    %5843 = vmatprep.subr.mxu0 0.0
    %5844 = vmatpush2.msra.mxu0 0.0
    %5845 = vmatprep.subr.mxu0 0.0
    %5846 = vmatpush2.msra.mxu0 0.0
    %5847 = vmatprep.subr.mxu0 0.0
    %5848 = vmatpush2.msra.mxu0 0.0
    %5849 = vmatprep.subr.mxu0 0.0
    %5850 = vmatpush2.msra.mxu0 0.0
    %5851 = vmatprep.subr.mxu0 0.0
    %5852 = vmatpush2.msra.mxu0 0.0
    %5853 = vmatprep.subr.mxu0 0.0
    %5854 = vmatpush2.msra.mxu0 0.0
    %5855 = vmatprep.subr.mxu0 0.0
    %5856 = vmatpush2.msra.mxu0 0.0
    %5857 = vmatprep.mubr.f32.mxu0 0.0
    %5858 = vmatmul.mubr.f32.gmra.mxu0 %v5601
    %v5859 = vpop.f32.mrf.mxu0
    %v5860 = vadd.f32 %v5715, %v5859
    %v5861 = vpop.f32.mrf.mxu0
    %5862 = vmatprep.mubr.f32.mxu0 0.0
    %5863 = vmatmul.mubr.f32.gmra.mxu0 %v5604
    %v5864 = vpop.f32.mrf.mxu0
    %v5865 = vadd.f32 %v5720, %v5864
    %v5866 = vpop.f32.mrf.mxu0
    %5867 = vmatprep.mubr.f32.mxu0 0.0
    %5868 = vmatmul.mubr.f32.gmra.mxu0 %v5607
    %v5869 = vpop.f32.mrf.mxu0
    %v5870 = vadd.f32 %v5725, %v5869
    %v5871 = vpop.f32.mrf.mxu0
    %5872 = vmatprep.mubr.f32.mxu0 0.0
    %5873 = vmatmul.mubr.f32.gmra.mxu0 %v5610
    %v5874 = vpop.f32.mrf.mxu0
    %v5875 = vadd.f32 %v5730, %v5874
    %v5876 = vpop.f32.mrf.mxu0
    %5877 = vmatprep.mubr.f32.mxu0 0.0
    %5878 = vmatmul.mubr.f32.gmra.mxu0 %v5613
    %v5879 = vpop.f32.mrf.mxu0
    %v5880 = vadd.f32 %v5735, %v5879
    %v5881 = vpop.f32.mrf.mxu0
    %5882 = vmatprep.mubr.f32.mxu0 0.0
    %5883 = vmatmul.mubr.f32.gmra.mxu0 %v5616
    %v5884 = vpop.f32.mrf.mxu0
    %v5885 = vadd.f32 %v5740, %v5884
    %v5886 = vpop.f32.mrf.mxu0
    %5887 = vmatprep.mubr.f32.mxu0 0.0
    %5888 = vmatmul.mubr.f32.gmra.mxu0 %v5619
    %v5889 = vpop.f32.mrf.mxu0
    %v5890 = vadd.f32 %v5745, %v5889
    %v5891 = vpop.f32.mrf.mxu0
    %5892 = vmatprep.mubr.f32.mxu0 0.0
    %5893 = vmatmul.mubr.f32.gmra.mxu0 %v5622
    %v5894 = vpop.f32.mrf.mxu0
    %v5895 = vadd.f32 %v5750, %v5894
    %v5896 = vpop.f32.mrf.mxu0
    %5897 = vmatprep.mubr.f32.mxu0 0.0
    %5898 = vmatmul.mubr.f32.gmra.mxu0 %v5625
    %v5899 = vpop.f32.mrf.mxu0
    %v5900 = vadd.f32 %v5755, %v5899
    %v5901 = vpop.f32.mrf.mxu0
    %5902 = vmatprep.mubr.f32.mxu0 0.0
    %5903 = vmatmul.mubr.f32.gmra.mxu0 %v5628
    %v5904 = vpop.f32.mrf.mxu0
    %v5905 = vadd.f32 %v5760, %v5904
    %v5906 = vpop.f32.mrf.mxu0
    %5907 = vmatprep.mubr.f32.mxu0 0.0
    %5908 = vmatmul.mubr.f32.gmra.mxu0 %v5631
    %v5909 = vpop.f32.mrf.mxu0
    %v5910 = vadd.f32 %v5765, %v5909
    %v5911 = vpop.f32.mrf.mxu0
    %5912 = vmatprep.mubr.f32.mxu0 0.0
    %5913 = vmatmul.mubr.f32.gmra.mxu0 %v5634
    %v5914 = vpop.f32.mrf.mxu0
    %v5915 = vadd.f32 %v5770, %v5914
    %v5916 = vpop.f32.mrf.mxu0
    %5917 = vmatprep.mubr.f32.mxu0 0.0
    %5918 = vmatmul.mubr.f32.gmra.mxu0 %v5637
    %v5919 = vpop.f32.mrf.mxu0
    %v5920 = vadd.f32 %v5775, %v5919
    %v5921 = vpop.f32.mrf.mxu0
    %5922 = vmatprep.mubr.f32.mxu0 0.0
    %5923 = vmatmul.mubr.f32.gmra.mxu0 %v5640
    %v5924 = vpop.f32.mrf.mxu0
    %v5925 = vadd.f32 %v5780, %v5924
    %v5926 = vpop.f32.mrf.mxu0
    %5927 = vmatprep.mubr.f32.mxu0 0.0
    %5928 = vmatmul.mubr.f32.gmra.mxu0 %v5643
    %v5929 = vpop.f32.mrf.mxu0
    %v5930 = vadd.f32 %v5785, %v5929
    %v5931 = vpop.f32.mrf.mxu0
    %5932 = vmatprep.mubr.f32.mxu0 0.0
    %5933 = vmatmul.mubr.f32.gmra.mxu0 %v5646
    %v5934 = vpop.f32.mrf.mxu0
    %v5935 = vadd.f32 %v5790, %v5934
    %v5936 = vpop.f32.mrf.mxu0
    %5937 = vdwg.mxu0
    %v5938 = vmax.f32 %v5860, 0.0
    %v5939 = vmax.f32 %v5865, 0.0
    %v5940 = vmax.f32 %v5870, 0.0
    %v5941 = vmax.f32 %v5875, 0.0
    %v5942 = vmax.f32 %v5880, 0.0
    %v5943 = vmax.f32 %v5885, 0.0
    %v5944 = vmax.f32 %v5890, 0.0
    %v5945 = vmax.f32 %v5895, 0.0
    %v5946 = vmax.f32 %v5900, 0.0
    %v5947 = vmax.f32 %v5905, 0.0
    %v5948 = vmax.f32 %v5910, 0.0
    %v5949 = vmax.f32 %v5915, 0.0
    %v5950 = vmax.f32 %v5920, 0.0
    %v5951 = vmax.f32 %v5925, 0.0
    %v5952 = vmax.f32 %v5930, 0.0
    %v5953 = vmax.f32 %v5935, 0.0
    %v5954 = vmax.f32 %v5938, %v5939
    %v5955 = vmax.f32 %v5946, %v5947
    %vm5956 = vcmask 523264
    %5957 = vst.msk [vmem:[#allocation7] sm:$0xff] %vm5956, %v5954
    %5958 = vst.msk [vmem:[#allocation7 + $0x20] sm:$0xff] %vm5956, %v5955
    %v5959 = vmax.f32 %v5940, %v5941
    %v5960 = vmax.f32 %v5948, %v5949
    %s5961 = scalar_lea.vmem [#allocation7], 8
    %5962 = vst.msk [vmem:[%s5961] sm:$0xff] %vm5956, %v5959
    %5963 = vst.msk [vmem:[%s5961 + $0x20] sm:$0xff] %vm5956, %v5960
    %v5964 = vmax.f32 %v5942, %v5943
    %v5965 = vmax.f32 %v5950, %v5951
    %s5966 = scalar_lea.vmem [#allocation7], 16
    %5967 = vst.msk [vmem:[%s5966] sm:$0xff] %vm5956, %v5964
    %5968 = vst.msk [vmem:[%s5966 + $0x20] sm:$0xff] %vm5956, %v5965
    %v5969 = vmax.f32 %v5944, %v5945
    %v5970 = vmax.f32 %v5952, %v5953
    %s5971 = scalar_lea.vmem [#allocation7], 24
    %5972 = vst.msk [vmem:[%s5971] sm:$0xff] %vm5956, %v5969
    %5973 = vst.msk [vmem:[%s5971 + $0x20] sm:$0xff] %vm5956, %v5970
    %v5974 = vld [vmem:[#allocation7] sm:$0x1]
    %v5975 = vld [vmem:[#allocation7 + $0x20] sm:$0x1]
    %v5976 = vld [vmem:[#allocation7 + $0x1] sm:$0x1]
    %v5977 = vld [vmem:[#allocation7 + $0x21] sm:$0x1]
    %v5978 = vmax.f32 %v5974, %v5976
    %v5979 = vmax.f32 %v5975, %v5977
    %v5980 = vpack.c.bf16 %v5978, %v5978
    %v5981 = vpack.c.bf16 %v5979, %v5979
    %v5985 = vunpack.c.l.s4 1966171168
    %v5986 = vunpack.c.0.s8 %v5985
    %v5987 = vlaneseq
    %v5988 = vshrl.u32 %v5987, 7
    %v5989 = vsub.s32 %v5986, %v5988
    %v5990 = vrot.slane %v5980, %v5989
    %v5992 = vunpack.c.l.s4 1966171168
    %v5993 = vunpack.c.0.s8 %v5992
    %v5994 = vlaneseq
    %v5995 = vshrl.u32 %v5994, 7
    %v5996 = vsub.s32 %v5993, %v5995
    %v5997 = vrot.slane %v5990, %v5996
    %v5999 = vunpack.c.l.s4 1966171168
    %v6000 = vunpack.c.0.s8 %v5999
    %v6001 = vlaneseq
    %v6002 = vshrl.u32 %v6001, 7
    %v6003 = vsub.s32 %v6000, %v6002
    %v6004 = vrot.slane %v5981, %v6003
    %v6006 = vunpack.c.l.s4 1966171168
    %v6007 = vunpack.c.0.s8 %v6006
    %v6008 = vlaneseq
    %v6009 = vshrl.u32 %v6008, 7
    %v6010 = vsub.s32 %v6007, %v6009
    %v6011 = vrot.slane %v6004, %v6010
    %v6013 = vunpack.c.l.s4 1935823168
    %v6014 = vunpack.c.0.s8 %v6013
    %v6015 = vlaneseq
    %v6016 = vshrl.u32 %v6015, 7
    %v6017 = vsub.s32 %v6014, %v6016
    %v6018 = vrot.slane %v5997, %v6017
    %v6020 = vunpack.c.l.s4 1935823168
    %v6021 = vunpack.c.0.s8 %v6020
    %v6022 = vlaneseq
    %v6023 = vshrl.u32 %v6022, 7
    %v6024 = vsub.s32 %v6021, %v6023
    %v6025 = vrot.slane %v6018, %v6024
    %v6027 = vunpack.c.l.s4 1935823168
    %v6028 = vunpack.c.0.s8 %v6027
    %v6029 = vlaneseq
    %v6030 = vshrl.u32 %v6029, 7
    %v6031 = vsub.s32 %v6028, %v6030
    %v6032 = vrot.slane %v6011, %v6031
    %v6034 = vunpack.c.l.s4 1935823168
    %v6035 = vunpack.c.0.s8 %v6034
    %v6036 = vlaneseq
    %v6037 = vshrl.u32 %v6036, 7
    %v6038 = vsub.s32 %v6035, %v6037
    %v6039 = vrot.slane %v6032, %v6038
    %v6040 = vunpack.c.l.b16 %v6025
    %v6041 = vunpack.c.l.b16 %v6039
    %v6042 = vrot.slane %v6041, 7
    %vm6043 = vcmask 1041409
    %v6044 = vsel %vm6043, %v6042, %v6040
    %v6045 = vpack.c.b16 %v6044, %v6044
    %v6047 = vunpack.c.l.s4 1966171168
    %v6048 = vunpack.c.0.s8 %v6047
    %v6049 = vlaneseq
    %v6050 = vshrl.u32 %v6049, 7
    %v6051 = vsub.s32 %v6048, %v6050
    %v6052 = vrot.slane %v6045, %v6051
    %v6054 = vunpack.c.l.s4 1966171168
    %v6055 = vunpack.c.0.s8 %v6054
    %v6056 = vlaneseq
    %v6057 = vshrl.u32 %v6056, 7
    %v6058 = vsub.s32 %v6055, %v6057
    %v6059 = vrot.slane %v6052, %v6058
    %vm6061 = vcmask 516096
    %6062 = vst.msk [vmem:[#allocation8] sm:$0x1] %vm6061, %v6059
    %v6063 = vld [vmem:[#allocation7 + $0x2] sm:$0x1]
    %v6064 = vld [vmem:[#allocation7 + $0x22] sm:$0x1]
    %v6065 = vld [vmem:[#allocation7 + $0x3] sm:$0x1]
    %v6066 = vld [vmem:[#allocation7 + $0x23] sm:$0x1]
    %v6067 = vmax.f32 %v6063, %v6065
    %v6068 = vmax.f32 %v6064, %v6066
    %v6069 = vpack.c.bf16 %v6067, %v6067
    %v6070 = vpack.c.bf16 %v6068, %v6068
    %v6074 = vunpack.c.l.s4 1966171168
    %v6075 = vunpack.c.0.s8 %v6074
    %v6076 = vlaneseq
    %v6077 = vshrl.u32 %v6076, 7
    %v6078 = vsub.s32 %v6075, %v6077
    %v6079 = vrot.slane %v6069, %v6078
    %v6081 = vunpack.c.l.s4 1966171168
    %v6082 = vunpack.c.0.s8 %v6081
    %v6083 = vlaneseq
    %v6084 = vshrl.u32 %v6083, 7
    %v6085 = vsub.s32 %v6082, %v6084
    %v6086 = vrot.slane %v6079, %v6085
    %v6088 = vunpack.c.l.s4 1966171168
    %v6089 = vunpack.c.0.s8 %v6088
    %v6090 = vlaneseq
    %v6091 = vshrl.u32 %v6090, 7
    %v6092 = vsub.s32 %v6089, %v6091
    %v6093 = vrot.slane %v6070, %v6092
    %v6095 = vunpack.c.l.s4 1966171168
    %v6096 = vunpack.c.0.s8 %v6095
    %v6097 = vlaneseq
    %v6098 = vshrl.u32 %v6097, 7
    %v6099 = vsub.s32 %v6096, %v6098
    %v6100 = vrot.slane %v6093, %v6099
    %v6102 = vunpack.c.l.s4 1935823168
    %v6103 = vunpack.c.0.s8 %v6102
    %v6104 = vlaneseq
    %v6105 = vshrl.u32 %v6104, 7
    %v6106 = vsub.s32 %v6103, %v6105
    %v6107 = vrot.slane %v6086, %v6106
    %v6109 = vunpack.c.l.s4 1935823168
    %v6110 = vunpack.c.0.s8 %v6109
    %v6111 = vlaneseq
    %v6112 = vshrl.u32 %v6111, 7
    %v6113 = vsub.s32 %v6110, %v6112
    %v6114 = vrot.slane %v6107, %v6113
    %v6116 = vunpack.c.l.s4 1935823168
    %v6117 = vunpack.c.0.s8 %v6116
    %v6118 = vlaneseq
    %v6119 = vshrl.u32 %v6118, 7
    %v6120 = vsub.s32 %v6117, %v6119
    %v6121 = vrot.slane %v6100, %v6120
    %v6123 = vunpack.c.l.s4 1935823168
    %v6124 = vunpack.c.0.s8 %v6123
    %v6125 = vlaneseq
    %v6126 = vshrl.u32 %v6125, 7
    %v6127 = vsub.s32 %v6124, %v6126
    %v6128 = vrot.slane %v6121, %v6127
    %v6129 = vunpack.c.l.b16 %v6114
    %v6130 = vunpack.c.l.b16 %v6128
    %v6131 = vrot.slane %v6130, 7
    %v6132 = vsel %vm6043, %v6131, %v6129
    %v6133 = vpack.c.b16 %v6132, %v6132
    %v6135 = vunpack.c.l.s4 1966171168
    %v6136 = vunpack.c.0.s8 %v6135
    %v6137 = vlaneseq
    %v6138 = vshrl.u32 %v6137, 7
    %v6139 = vsub.s32 %v6136, %v6138
    %v6140 = vrot.slane %v6133, %v6139
    %v6142 = vunpack.c.l.s4 1966171168
    %v6143 = vunpack.c.0.s8 %v6142
    %v6144 = vlaneseq
    %v6145 = vshrl.u32 %v6144, 7
    %v6146 = vsub.s32 %v6143, %v6145
    %v6147 = vrot.slane %v6140, %v6146
    %6148 = vrot.lane.b32.xlu0 %v6147, 64
    %v6149 = vpop.permute.xlu0 %6148
    %vm6151 = vcmask 1040896
    %6152 = vst.msk [vmem:[#allocation8] sm:$0x1] %vm6151, %v6149
    %v6153 = vld [vmem:[#allocation7 + $0x4] sm:$0x1]
    %v6154 = vld [vmem:[#allocation7 + $0x24] sm:$0x1]
    %v6155 = vld [vmem:[#allocation7 + $0x5] sm:$0x1]
    %v6156 = vld [vmem:[#allocation7 + $0x25] sm:$0x1]
    %v6157 = vmax.f32 %v6153, %v6155
    %v6158 = vmax.f32 %v6154, %v6156
    %v6159 = vpack.c.bf16 %v6157, %v6157
    %v6160 = vpack.c.bf16 %v6158, %v6158
    %v6164 = vunpack.c.l.s4 1966171168
    %v6165 = vunpack.c.0.s8 %v6164
    %v6166 = vlaneseq
    %v6167 = vshrl.u32 %v6166, 7
    %v6168 = vsub.s32 %v6165, %v6167
    %v6169 = vrot.slane %v6159, %v6168
    %v6171 = vunpack.c.l.s4 1966171168
    %v6172 = vunpack.c.0.s8 %v6171
    %v6173 = vlaneseq
    %v6174 = vshrl.u32 %v6173, 7
    %v6175 = vsub.s32 %v6172, %v6174
    %v6176 = vrot.slane %v6169, %v6175
    %v6178 = vunpack.c.l.s4 1966171168
    %v6179 = vunpack.c.0.s8 %v6178
    %v6180 = vlaneseq
    %v6181 = vshrl.u32 %v6180, 7
    %v6182 = vsub.s32 %v6179, %v6181
    %v6183 = vrot.slane %v6160, %v6182
    %v6185 = vunpack.c.l.s4 1966171168
    %v6186 = vunpack.c.0.s8 %v6185
    %v6187 = vlaneseq
    %v6188 = vshrl.u32 %v6187, 7
    %v6189 = vsub.s32 %v6186, %v6188
    %v6190 = vrot.slane %v6183, %v6189
    %v6192 = vunpack.c.l.s4 1935823168
    %v6193 = vunpack.c.0.s8 %v6192
    %v6194 = vlaneseq
    %v6195 = vshrl.u32 %v6194, 7
    %v6196 = vsub.s32 %v6193, %v6195
    %v6197 = vrot.slane %v6176, %v6196
    %v6199 = vunpack.c.l.s4 1935823168
    %v6200 = vunpack.c.0.s8 %v6199
    %v6201 = vlaneseq
    %v6202 = vshrl.u32 %v6201, 7
    %v6203 = vsub.s32 %v6200, %v6202
    %v6204 = vrot.slane %v6197, %v6203
    %v6206 = vunpack.c.l.s4 1935823168
    %v6207 = vunpack.c.0.s8 %v6206
    %v6208 = vlaneseq
    %v6209 = vshrl.u32 %v6208, 7
    %v6210 = vsub.s32 %v6207, %v6209
    %v6211 = vrot.slane %v6190, %v6210
    %v6213 = vunpack.c.l.s4 1935823168
    %v6214 = vunpack.c.0.s8 %v6213
    %v6215 = vlaneseq
    %v6216 = vshrl.u32 %v6215, 7
    %v6217 = vsub.s32 %v6214, %v6216
    %v6218 = vrot.slane %v6211, %v6217
    %v6219 = vunpack.c.l.b16 %v6204
    %v6220 = vunpack.c.l.b16 %v6218
    %v6221 = vrot.slane %v6220, 7
    %v6222 = vsel %vm6043, %v6221, %v6219
    %v6223 = vpack.c.b16 %v6222, %v6222
    %v6225 = vunpack.c.l.s4 1966171168
    %v6226 = vunpack.c.0.s8 %v6225
    %v6227 = vlaneseq
    %v6228 = vshrl.u32 %v6227, 7
    %v6229 = vsub.s32 %v6226, %v6228
    %v6230 = vrot.slane %v6223, %v6229
    %v6232 = vunpack.c.l.s4 1966171168
    %v6233 = vunpack.c.0.s8 %v6232
    %v6234 = vlaneseq
    %v6235 = vshrl.u32 %v6234, 7
    %v6236 = vsub.s32 %v6233, %v6235
    %v6237 = vrot.slane %v6230, %v6236
    %6239 = vst.msk [vmem:[#allocation8 + $0x1] sm:$0x1] %vm6061, %v6237
    %v6240 = vld [vmem:[#allocation7 + $0x6] sm:$0x1]
    %v6241 = vld [vmem:[#allocation7 + $0x26] sm:$0x1]
    %v6242 = vld [vmem:[#allocation7 + $0x7] sm:$0x1]
    %v6243 = vld [vmem:[#allocation7 + $0x27] sm:$0x1]
    %v6244 = vmax.f32 %v6240, %v6242
    %v6245 = vmax.f32 %v6241, %v6243
    %v6246 = vpack.c.bf16 %v6244, %v6244
    %v6247 = vpack.c.bf16 %v6245, %v6245
    %v6251 = vunpack.c.l.s4 1966171168
    %v6252 = vunpack.c.0.s8 %v6251
    %v6253 = vlaneseq
    %v6254 = vshrl.u32 %v6253, 7
    %v6255 = vsub.s32 %v6252, %v6254
    %v6256 = vrot.slane %v6246, %v6255
    %v6258 = vunpack.c.l.s4 1966171168
    %v6259 = vunpack.c.0.s8 %v6258
    %v6260 = vlaneseq
    %v6261 = vshrl.u32 %v6260, 7
    %v6262 = vsub.s32 %v6259, %v6261
    %v6263 = vrot.slane %v6256, %v6262
    %v6265 = vunpack.c.l.s4 1966171168
    %v6266 = vunpack.c.0.s8 %v6265
    %v6267 = vlaneseq
    %v6268 = vshrl.u32 %v6267, 7
    %v6269 = vsub.s32 %v6266, %v6268
    %v6270 = vrot.slane %v6247, %v6269
    %v6272 = vunpack.c.l.s4 1966171168
    %v6273 = vunpack.c.0.s8 %v6272
    %v6274 = vlaneseq
    %v6275 = vshrl.u32 %v6274, 7
    %v6276 = vsub.s32 %v6273, %v6275
    %v6277 = vrot.slane %v6270, %v6276
    %v6279 = vunpack.c.l.s4 1935823168
    %v6280 = vunpack.c.0.s8 %v6279
    %v6281 = vlaneseq
    %v6282 = vshrl.u32 %v6281, 7
    %v6283 = vsub.s32 %v6280, %v6282
    %v6284 = vrot.slane %v6263, %v6283
    %v6286 = vunpack.c.l.s4 1935823168
    %v6287 = vunpack.c.0.s8 %v6286
    %v6288 = vlaneseq
    %v6289 = vshrl.u32 %v6288, 7
    %v6290 = vsub.s32 %v6287, %v6289
    %v6291 = vrot.slane %v6284, %v6290
    %v6293 = vunpack.c.l.s4 1935823168
    %v6294 = vunpack.c.0.s8 %v6293
    %v6295 = vlaneseq
    %v6296 = vshrl.u32 %v6295, 7
    %v6297 = vsub.s32 %v6294, %v6296
    %v6298 = vrot.slane %v6277, %v6297
    %v6300 = vunpack.c.l.s4 1935823168
    %v6301 = vunpack.c.0.s8 %v6300
    %v6302 = vlaneseq
    %v6303 = vshrl.u32 %v6302, 7
    %v6304 = vsub.s32 %v6301, %v6303
    %v6305 = vrot.slane %v6298, %v6304
    %v6306 = vunpack.c.l.b16 %v6291
    %v6307 = vunpack.c.l.b16 %v6305
    %v6308 = vrot.slane %v6307, 7
    %v6309 = vsel %vm6043, %v6308, %v6306
    %v6310 = vpack.c.b16 %v6309, %v6309
    %v6312 = vunpack.c.l.s4 1966171168
    %v6313 = vunpack.c.0.s8 %v6312
    %v6314 = vlaneseq
    %v6315 = vshrl.u32 %v6314, 7
    %v6316 = vsub.s32 %v6313, %v6315
    %v6317 = vrot.slane %v6310, %v6316
    %v6319 = vunpack.c.l.s4 1966171168
    %v6320 = vunpack.c.0.s8 %v6319
    %v6321 = vlaneseq
    %v6322 = vshrl.u32 %v6321, 7
    %v6323 = vsub.s32 %v6320, %v6322
    %v6324 = vrot.slane %v6317, %v6323
    %6325 = vrot.lane.b32.xlu0 %v6324, 64
    %v6326 = vpop.permute.xlu0 %6325
    %6328 = vst.msk [vmem:[#allocation8 + $0x1] sm:$0x1] %vm6151, %v6326
    %v6329 = vld [vmem:[%s5961] sm:$0x1]
    %v6330 = vld [vmem:[%s5961 + $0x20] sm:$0x1]
    %v6331 = vld [vmem:[%s5961 + $0x1] sm:$0x1]
    %v6332 = vld [vmem:[%s5961 + $0x21] sm:$0x1]
    %v6333 = vmax.f32 %v6329, %v6331
    %v6334 = vmax.f32 %v6330, %v6332
    %v6335 = vpack.c.bf16 %v6333, %v6333
    %v6336 = vpack.c.bf16 %v6334, %v6334
    %v6340 = vunpack.c.l.s4 1966171168
    %v6341 = vunpack.c.0.s8 %v6340
    %v6342 = vlaneseq
    %v6343 = vshrl.u32 %v6342, 7
    %v6344 = vsub.s32 %v6341, %v6343
    %v6345 = vrot.slane %v6335, %v6344
    %v6347 = vunpack.c.l.s4 1966171168
    %v6348 = vunpack.c.0.s8 %v6347
    %v6349 = vlaneseq
    %v6350 = vshrl.u32 %v6349, 7
    %v6351 = vsub.s32 %v6348, %v6350
    %v6352 = vrot.slane %v6345, %v6351
    %v6354 = vunpack.c.l.s4 1966171168
    %v6355 = vunpack.c.0.s8 %v6354
    %v6356 = vlaneseq
    %v6357 = vshrl.u32 %v6356, 7
    %v6358 = vsub.s32 %v6355, %v6357
    %v6359 = vrot.slane %v6336, %v6358
    %v6361 = vunpack.c.l.s4 1966171168
    %v6362 = vunpack.c.0.s8 %v6361
    %v6363 = vlaneseq
    %v6364 = vshrl.u32 %v6363, 7
    %v6365 = vsub.s32 %v6362, %v6364
    %v6366 = vrot.slane %v6359, %v6365
    %v6368 = vunpack.c.l.s4 1935823168
    %v6369 = vunpack.c.0.s8 %v6368
    %v6370 = vlaneseq
    %v6371 = vshrl.u32 %v6370, 7
    %v6372 = vsub.s32 %v6369, %v6371
    %v6373 = vrot.slane %v6352, %v6372
    %v6375 = vunpack.c.l.s4 1935823168
    %v6376 = vunpack.c.0.s8 %v6375
    %v6377 = vlaneseq
    %v6378 = vshrl.u32 %v6377, 7
    %v6379 = vsub.s32 %v6376, %v6378
    %v6380 = vrot.slane %v6373, %v6379
    %v6382 = vunpack.c.l.s4 1935823168
    %v6383 = vunpack.c.0.s8 %v6382
    %v6384 = vlaneseq
    %v6385 = vshrl.u32 %v6384, 7
    %v6386 = vsub.s32 %v6383, %v6385
    %v6387 = vrot.slane %v6366, %v6386
    %v6389 = vunpack.c.l.s4 1935823168
    %v6390 = vunpack.c.0.s8 %v6389
    %v6391 = vlaneseq
    %v6392 = vshrl.u32 %v6391, 7
    %v6393 = vsub.s32 %v6390, %v6392
    %v6394 = vrot.slane %v6387, %v6393
    %v6395 = vunpack.c.l.b16 %v6380
    %v6396 = vunpack.c.l.b16 %v6394
    %v6397 = vrot.slane %v6396, 7
    %v6398 = vsel %vm6043, %v6397, %v6395
    %v6399 = vpack.c.b16 %v6398, %v6398
    %v6401 = vunpack.c.l.s4 1966171168
    %v6402 = vunpack.c.0.s8 %v6401
    %v6403 = vlaneseq
    %v6404 = vshrl.u32 %v6403, 7
    %v6405 = vsub.s32 %v6402, %v6404
    %v6406 = vrot.slane %v6399, %v6405
    %v6408 = vunpack.c.l.s4 1966171168
    %v6409 = vunpack.c.0.s8 %v6408
    %v6410 = vlaneseq
    %v6411 = vshrl.u32 %v6410, 7
    %v6412 = vsub.s32 %v6409, %v6411
    %v6413 = vrot.slane %v6406, %v6412
    %6415 = vst.msk [vmem:[#allocation8 + $0x2] sm:$0x1] %vm6061, %v6413
    %v6416 = vld [vmem:[%s5961 + $0x2] sm:$0x1]
    %v6417 = vld [vmem:[%s5961 + $0x22] sm:$0x1]
    %v6418 = vld [vmem:[%s5961 + $0x3] sm:$0x1]
    %v6419 = vld [vmem:[%s5961 + $0x23] sm:$0x1]
    %v6420 = vmax.f32 %v6416, %v6418
    %v6421 = vmax.f32 %v6417, %v6419
    %v6422 = vpack.c.bf16 %v6420, %v6420
    %v6423 = vpack.c.bf16 %v6421, %v6421
    %v6427 = vunpack.c.l.s4 1966171168
    %v6428 = vunpack.c.0.s8 %v6427
    %v6429 = vlaneseq
    %v6430 = vshrl.u32 %v6429, 7
    %v6431 = vsub.s32 %v6428, %v6430
    %v6432 = vrot.slane %v6422, %v6431
    %v6434 = vunpack.c.l.s4 1966171168
    %v6435 = vunpack.c.0.s8 %v6434
    %v6436 = vlaneseq
    %v6437 = vshrl.u32 %v6436, 7
    %v6438 = vsub.s32 %v6435, %v6437
    %v6439 = vrot.slane %v6432, %v6438
    %v6441 = vunpack.c.l.s4 1966171168
    %v6442 = vunpack.c.0.s8 %v6441
    %v6443 = vlaneseq
    %v6444 = vshrl.u32 %v6443, 7
    %v6445 = vsub.s32 %v6442, %v6444
    %v6446 = vrot.slane %v6423, %v6445
    %v6448 = vunpack.c.l.s4 1966171168
    %v6449 = vunpack.c.0.s8 %v6448
    %v6450 = vlaneseq
    %v6451 = vshrl.u32 %v6450, 7
    %v6452 = vsub.s32 %v6449, %v6451
    %v6453 = vrot.slane %v6446, %v6452
    %v6455 = vunpack.c.l.s4 1935823168
    %v6456 = vunpack.c.0.s8 %v6455
    %v6457 = vlaneseq
    %v6458 = vshrl.u32 %v6457, 7
    %v6459 = vsub.s32 %v6456, %v6458
    %v6460 = vrot.slane %v6439, %v6459
    %v6462 = vunpack.c.l.s4 1935823168
    %v6463 = vunpack.c.0.s8 %v6462
    %v6464 = vlaneseq
    %v6465 = vshrl.u32 %v6464, 7
    %v6466 = vsub.s32 %v6463, %v6465
    %v6467 = vrot.slane %v6460, %v6466
    %v6469 = vunpack.c.l.s4 1935823168
    %v6470 = vunpack.c.0.s8 %v6469
    %v6471 = vlaneseq
    %v6472 = vshrl.u32 %v6471, 7
    %v6473 = vsub.s32 %v6470, %v6472
    %v6474 = vrot.slane %v6453, %v6473
    %v6476 = vunpack.c.l.s4 1935823168
    %v6477 = vunpack.c.0.s8 %v6476
    %v6478 = vlaneseq
    %v6479 = vshrl.u32 %v6478, 7
    %v6480 = vsub.s32 %v6477, %v6479
    %v6481 = vrot.slane %v6474, %v6480
    %v6482 = vunpack.c.l.b16 %v6467
    %v6483 = vunpack.c.l.b16 %v6481
    %v6484 = vrot.slane %v6483, 7
    %v6485 = vsel %vm6043, %v6484, %v6482
    %v6486 = vpack.c.b16 %v6485, %v6485
    %v6488 = vunpack.c.l.s4 1966171168
    %v6489 = vunpack.c.0.s8 %v6488
    %v6490 = vlaneseq
    %v6491 = vshrl.u32 %v6490, 7
    %v6492 = vsub.s32 %v6489, %v6491
    %v6493 = vrot.slane %v6486, %v6492
    %v6495 = vunpack.c.l.s4 1966171168
    %v6496 = vunpack.c.0.s8 %v6495
    %v6497 = vlaneseq
    %v6498 = vshrl.u32 %v6497, 7
    %v6499 = vsub.s32 %v6496, %v6498
    %v6500 = vrot.slane %v6493, %v6499
    %6501 = vrot.lane.b32.xlu0 %v6500, 64
    %v6502 = vpop.permute.xlu0 %6501
    %6504 = vst.msk [vmem:[#allocation8 + $0x2] sm:$0x1] %vm6151, %v6502
    %v6505 = vld [vmem:[%s5961 + $0x4] sm:$0x1]
    %v6506 = vld [vmem:[%s5961 + $0x24] sm:$0x1]
    %v6507 = vld [vmem:[%s5961 + $0x5] sm:$0x1]
    %v6508 = vld [vmem:[%s5961 + $0x25] sm:$0x1]
    %v6509 = vmax.f32 %v6505, %v6507
    %v6510 = vmax.f32 %v6506, %v6508
    %v6511 = vpack.c.bf16 %v6509, %v6509
    %v6512 = vpack.c.bf16 %v6510, %v6510
    %v6516 = vunpack.c.l.s4 1966171168
    %v6517 = vunpack.c.0.s8 %v6516
    %v6518 = vlaneseq
    %v6519 = vshrl.u32 %v6518, 7
    %v6520 = vsub.s32 %v6517, %v6519
    %v6521 = vrot.slane %v6511, %v6520
    %v6523 = vunpack.c.l.s4 1966171168
    %v6524 = vunpack.c.0.s8 %v6523
    %v6525 = vlaneseq
    %v6526 = vshrl.u32 %v6525, 7
    %v6527 = vsub.s32 %v6524, %v6526
    %v6528 = vrot.slane %v6521, %v6527
    %v6530 = vunpack.c.l.s4 1966171168
    %v6531 = vunpack.c.0.s8 %v6530
    %v6532 = vlaneseq
    %v6533 = vshrl.u32 %v6532, 7
    %v6534 = vsub.s32 %v6531, %v6533
    %v6535 = vrot.slane %v6512, %v6534
    %v6537 = vunpack.c.l.s4 1966171168
    %v6538 = vunpack.c.0.s8 %v6537
    %v6539 = vlaneseq
    %v6540 = vshrl.u32 %v6539, 7
    %v6541 = vsub.s32 %v6538, %v6540
    %v6542 = vrot.slane %v6535, %v6541
    %v6544 = vunpack.c.l.s4 1935823168
    %v6545 = vunpack.c.0.s8 %v6544
    %v6546 = vlaneseq
    %v6547 = vshrl.u32 %v6546, 7
    %v6548 = vsub.s32 %v6545, %v6547
    %v6549 = vrot.slane %v6528, %v6548
    %v6551 = vunpack.c.l.s4 1935823168
    %v6552 = vunpack.c.0.s8 %v6551
    %v6553 = vlaneseq
    %v6554 = vshrl.u32 %v6553, 7
    %v6555 = vsub.s32 %v6552, %v6554
    %v6556 = vrot.slane %v6549, %v6555
    %v6558 = vunpack.c.l.s4 1935823168
    %v6559 = vunpack.c.0.s8 %v6558
    %v6560 = vlaneseq
    %v6561 = vshrl.u32 %v6560, 7
    %v6562 = vsub.s32 %v6559, %v6561
    %v6563 = vrot.slane %v6542, %v6562
    %v6565 = vunpack.c.l.s4 1935823168
    %v6566 = vunpack.c.0.s8 %v6565
    %v6567 = vlaneseq
    %v6568 = vshrl.u32 %v6567, 7
    %v6569 = vsub.s32 %v6566, %v6568
    %v6570 = vrot.slane %v6563, %v6569
    %v6571 = vunpack.c.l.b16 %v6556
    %v6572 = vunpack.c.l.b16 %v6570
    %v6573 = vrot.slane %v6572, 7
    %v6574 = vsel %vm6043, %v6573, %v6571
    %v6575 = vpack.c.b16 %v6574, %v6574
    %v6577 = vunpack.c.l.s4 1966171168
    %v6578 = vunpack.c.0.s8 %v6577
    %v6579 = vlaneseq
    %v6580 = vshrl.u32 %v6579, 7
    %v6581 = vsub.s32 %v6578, %v6580
    %v6582 = vrot.slane %v6575, %v6581
    %v6584 = vunpack.c.l.s4 1966171168
    %v6585 = vunpack.c.0.s8 %v6584
    %v6586 = vlaneseq
    %v6587 = vshrl.u32 %v6586, 7
    %v6588 = vsub.s32 %v6585, %v6587
    %v6589 = vrot.slane %v6582, %v6588
    %6591 = vst.msk [vmem:[#allocation8 + $0x3] sm:$0x1] %vm6061, %v6589
    %v6592 = vld [vmem:[%s5961 + $0x6] sm:$0x1]
    %v6593 = vld [vmem:[%s5961 + $0x26] sm:$0x1]
    %v6594 = vld [vmem:[%s5961 + $0x7] sm:$0x1]
    %v6595 = vld [vmem:[%s5961 + $0x27] sm:$0x1]
    %v6596 = vmax.f32 %v6592, %v6594
    %v6597 = vmax.f32 %v6593, %v6595
    %v6598 = vpack.c.bf16 %v6596, %v6596
    %v6599 = vpack.c.bf16 %v6597, %v6597
    %v6603 = vunpack.c.l.s4 1966171168
    %v6604 = vunpack.c.0.s8 %v6603
    %v6605 = vlaneseq
    %v6606 = vshrl.u32 %v6605, 7
    %v6607 = vsub.s32 %v6604, %v6606
    %v6608 = vrot.slane %v6598, %v6607
    %v6610 = vunpack.c.l.s4 1966171168
    %v6611 = vunpack.c.0.s8 %v6610
    %v6612 = vlaneseq
    %v6613 = vshrl.u32 %v6612, 7
    %v6614 = vsub.s32 %v6611, %v6613
    %v6615 = vrot.slane %v6608, %v6614
    %v6617 = vunpack.c.l.s4 1966171168
    %v6618 = vunpack.c.0.s8 %v6617
    %v6619 = vlaneseq
    %v6620 = vshrl.u32 %v6619, 7
    %v6621 = vsub.s32 %v6618, %v6620
    %v6622 = vrot.slane %v6599, %v6621
    %v6624 = vunpack.c.l.s4 1966171168
    %v6625 = vunpack.c.0.s8 %v6624
    %v6626 = vlaneseq
    %v6627 = vshrl.u32 %v6626, 7
    %v6628 = vsub.s32 %v6625, %v6627
    %v6629 = vrot.slane %v6622, %v6628
    %v6631 = vunpack.c.l.s4 1935823168
    %v6632 = vunpack.c.0.s8 %v6631
    %v6633 = vlaneseq
    %v6634 = vshrl.u32 %v6633, 7
    %v6635 = vsub.s32 %v6632, %v6634
    %v6636 = vrot.slane %v6615, %v6635
    %v6638 = vunpack.c.l.s4 1935823168
    %v6639 = vunpack.c.0.s8 %v6638
    %v6640 = vlaneseq
    %v6641 = vshrl.u32 %v6640, 7
    %v6642 = vsub.s32 %v6639, %v6641
    %v6643 = vrot.slane %v6636, %v6642
    %v6645 = vunpack.c.l.s4 1935823168
    %v6646 = vunpack.c.0.s8 %v6645
    %v6647 = vlaneseq
    %v6648 = vshrl.u32 %v6647, 7
    %v6649 = vsub.s32 %v6646, %v6648
    %v6650 = vrot.slane %v6629, %v6649
    %v6652 = vunpack.c.l.s4 1935823168
    %v6653 = vunpack.c.0.s8 %v6652
    %v6654 = vlaneseq
    %v6655 = vshrl.u32 %v6654, 7
    %v6656 = vsub.s32 %v6653, %v6655
    %v6657 = vrot.slane %v6650, %v6656
    %v6658 = vunpack.c.l.b16 %v6643
    %v6659 = vunpack.c.l.b16 %v6657
    %v6660 = vrot.slane %v6659, 7
    %v6661 = vsel %vm6043, %v6660, %v6658
    %v6662 = vpack.c.b16 %v6661, %v6661
    %v6664 = vunpack.c.l.s4 1966171168
    %v6665 = vunpack.c.0.s8 %v6664
    %v6666 = vlaneseq
    %v6667 = vshrl.u32 %v6666, 7
    %v6668 = vsub.s32 %v6665, %v6667
    %v6669 = vrot.slane %v6662, %v6668
    %v6671 = vunpack.c.l.s4 1966171168
    %v6672 = vunpack.c.0.s8 %v6671
    %v6673 = vlaneseq
    %v6674 = vshrl.u32 %v6673, 7
    %v6675 = vsub.s32 %v6672, %v6674
    %v6676 = vrot.slane %v6669, %v6675
    %6677 = vrot.lane.b32.xlu0 %v6676, 64
    %v6678 = vpop.permute.xlu0 %6677
    %6680 = vst.msk [vmem:[#allocation8 + $0x3] sm:$0x1] %vm6151, %v6678
    %v6681 = vld [vmem:[%s5966] sm:$0x1]
    %v6682 = vld [vmem:[%s5966 + $0x20] sm:$0x1]
    %v6683 = vld [vmem:[%s5966 + $0x1] sm:$0x1]
    %v6684 = vld [vmem:[%s5966 + $0x21] sm:$0x1]
    %v6685 = vmax.f32 %v6681, %v6683
    %v6686 = vmax.f32 %v6682, %v6684
    %v6687 = vpack.c.bf16 %v6685, %v6685
    %v6688 = vpack.c.bf16 %v6686, %v6686
    %v6692 = vunpack.c.l.s4 1966171168
    %v6693 = vunpack.c.0.s8 %v6692
    %v6694 = vlaneseq
    %v6695 = vshrl.u32 %v6694, 7
    %v6696 = vsub.s32 %v6693, %v6695
    %v6697 = vrot.slane %v6687, %v6696
    %v6699 = vunpack.c.l.s4 1966171168
    %v6700 = vunpack.c.0.s8 %v6699
    %v6701 = vlaneseq
    %v6702 = vshrl.u32 %v6701, 7
    %v6703 = vsub.s32 %v6700, %v6702
    %v6704 = vrot.slane %v6697, %v6703
    %v6706 = vunpack.c.l.s4 1966171168
    %v6707 = vunpack.c.0.s8 %v6706
    %v6708 = vlaneseq
    %v6709 = vshrl.u32 %v6708, 7
    %v6710 = vsub.s32 %v6707, %v6709
    %v6711 = vrot.slane %v6688, %v6710
    %v6713 = vunpack.c.l.s4 1966171168
    %v6714 = vunpack.c.0.s8 %v6713
    %v6715 = vlaneseq
    %v6716 = vshrl.u32 %v6715, 7
    %v6717 = vsub.s32 %v6714, %v6716
    %v6718 = vrot.slane %v6711, %v6717
    %v6720 = vunpack.c.l.s4 1935823168
    %v6721 = vunpack.c.0.s8 %v6720
    %v6722 = vlaneseq
    %v6723 = vshrl.u32 %v6722, 7
    %v6724 = vsub.s32 %v6721, %v6723
    %v6725 = vrot.slane %v6704, %v6724
    %v6727 = vunpack.c.l.s4 1935823168
    %v6728 = vunpack.c.0.s8 %v6727
    %v6729 = vlaneseq
    %v6730 = vshrl.u32 %v6729, 7
    %v6731 = vsub.s32 %v6728, %v6730
    %v6732 = vrot.slane %v6725, %v6731
    %v6734 = vunpack.c.l.s4 1935823168
    %v6735 = vunpack.c.0.s8 %v6734
    %v6736 = vlaneseq
    %v6737 = vshrl.u32 %v6736, 7
    %v6738 = vsub.s32 %v6735, %v6737
    %v6739 = vrot.slane %v6718, %v6738
    %v6741 = vunpack.c.l.s4 1935823168
    %v6742 = vunpack.c.0.s8 %v6741
    %v6743 = vlaneseq
    %v6744 = vshrl.u32 %v6743, 7
    %v6745 = vsub.s32 %v6742, %v6744
    %v6746 = vrot.slane %v6739, %v6745
    %v6747 = vunpack.c.l.b16 %v6732
    %v6748 = vunpack.c.l.b16 %v6746
    %v6749 = vrot.slane %v6748, 7
    %v6750 = vsel %vm6043, %v6749, %v6747
    %v6751 = vpack.c.b16 %v6750, %v6750
    %v6753 = vunpack.c.l.s4 1966171168
    %v6754 = vunpack.c.0.s8 %v6753
    %v6755 = vlaneseq
    %v6756 = vshrl.u32 %v6755, 7
    %v6757 = vsub.s32 %v6754, %v6756
    %v6758 = vrot.slane %v6751, %v6757
    %v6760 = vunpack.c.l.s4 1966171168
    %v6761 = vunpack.c.0.s8 %v6760
    %v6762 = vlaneseq
    %v6763 = vshrl.u32 %v6762, 7
    %v6764 = vsub.s32 %v6761, %v6763
    %v6765 = vrot.slane %v6758, %v6764
    %6767 = vst.msk [vmem:[#allocation8 + $0x4] sm:$0x1] %vm6061, %v6765
    %v6768 = vld [vmem:[%s5966 + $0x2] sm:$0x1]
    %v6769 = vld [vmem:[%s5966 + $0x22] sm:$0x1]
    %v6770 = vld [vmem:[%s5966 + $0x3] sm:$0x1]
    %v6771 = vld [vmem:[%s5966 + $0x23] sm:$0x1]
    %v6772 = vmax.f32 %v6768, %v6770
    %v6773 = vmax.f32 %v6769, %v6771
    %v6774 = vpack.c.bf16 %v6772, %v6772
    %v6775 = vpack.c.bf16 %v6773, %v6773
    %v6779 = vunpack.c.l.s4 1966171168
    %v6780 = vunpack.c.0.s8 %v6779
    %v6781 = vlaneseq
    %v6782 = vshrl.u32 %v6781, 7
    %v6783 = vsub.s32 %v6780, %v6782
    %v6784 = vrot.slane %v6774, %v6783
    %v6786 = vunpack.c.l.s4 1966171168
    %v6787 = vunpack.c.0.s8 %v6786
    %v6788 = vlaneseq
    %v6789 = vshrl.u32 %v6788, 7
    %v6790 = vsub.s32 %v6787, %v6789
    %v6791 = vrot.slane %v6784, %v6790
    %v6793 = vunpack.c.l.s4 1966171168
    %v6794 = vunpack.c.0.s8 %v6793
    %v6795 = vlaneseq
    %v6796 = vshrl.u32 %v6795, 7
    %v6797 = vsub.s32 %v6794, %v6796
    %v6798 = vrot.slane %v6775, %v6797
    %v6800 = vunpack.c.l.s4 1966171168
    %v6801 = vunpack.c.0.s8 %v6800
    %v6802 = vlaneseq
    %v6803 = vshrl.u32 %v6802, 7
    %v6804 = vsub.s32 %v6801, %v6803
    %v6805 = vrot.slane %v6798, %v6804
    %v6807 = vunpack.c.l.s4 1935823168
    %v6808 = vunpack.c.0.s8 %v6807
    %v6809 = vlaneseq
    %v6810 = vshrl.u32 %v6809, 7
    %v6811 = vsub.s32 %v6808, %v6810
    %v6812 = vrot.slane %v6791, %v6811
    %v6814 = vunpack.c.l.s4 1935823168
    %v6815 = vunpack.c.0.s8 %v6814
    %v6816 = vlaneseq
    %v6817 = vshrl.u32 %v6816, 7
    %v6818 = vsub.s32 %v6815, %v6817
    %v6819 = vrot.slane %v6812, %v6818
    %v6821 = vunpack.c.l.s4 1935823168
    %v6822 = vunpack.c.0.s8 %v6821
    %v6823 = vlaneseq
    %v6824 = vshrl.u32 %v6823, 7
    %v6825 = vsub.s32 %v6822, %v6824
    %v6826 = vrot.slane %v6805, %v6825
    %v6828 = vunpack.c.l.s4 1935823168
    %v6829 = vunpack.c.0.s8 %v6828
    %v6830 = vlaneseq
    %v6831 = vshrl.u32 %v6830, 7
    %v6832 = vsub.s32 %v6829, %v6831
    %v6833 = vrot.slane %v6826, %v6832
    %v6834 = vunpack.c.l.b16 %v6819
    %v6835 = vunpack.c.l.b16 %v6833
    %v6836 = vrot.slane %v6835, 7
    %v6837 = vsel %vm6043, %v6836, %v6834
    %v6838 = vpack.c.b16 %v6837, %v6837
    %v6840 = vunpack.c.l.s4 1966171168
    %v6841 = vunpack.c.0.s8 %v6840
    %v6842 = vlaneseq
    %v6843 = vshrl.u32 %v6842, 7
    %v6844 = vsub.s32 %v6841, %v6843
    %v6845 = vrot.slane %v6838, %v6844
    %v6847 = vunpack.c.l.s4 1966171168
    %v6848 = vunpack.c.0.s8 %v6847
    %v6849 = vlaneseq
    %v6850 = vshrl.u32 %v6849, 7
    %v6851 = vsub.s32 %v6848, %v6850
    %v6852 = vrot.slane %v6845, %v6851
    %6853 = vrot.lane.b32.xlu0 %v6852, 64
    %v6854 = vpop.permute.xlu0 %6853
    %6856 = vst.msk [vmem:[#allocation8 + $0x4] sm:$0x1] %vm6151, %v6854
    %v6857 = vld [vmem:[%s5966 + $0x4] sm:$0x1]
    %v6858 = vld [vmem:[%s5966 + $0x24] sm:$0x1]
    %v6859 = vld [vmem:[%s5966 + $0x5] sm:$0x1]
    %v6860 = vld [vmem:[%s5966 + $0x25] sm:$0x1]
    %v6861 = vmax.f32 %v6857, %v6859
    %v6862 = vmax.f32 %v6858, %v6860
    %v6863 = vpack.c.bf16 %v6861, %v6861
    %v6864 = vpack.c.bf16 %v6862, %v6862
    %v6868 = vunpack.c.l.s4 1966171168
    %v6869 = vunpack.c.0.s8 %v6868
    %v6870 = vlaneseq
    %v6871 = vshrl.u32 %v6870, 7
    %v6872 = vsub.s32 %v6869, %v6871
    %v6873 = vrot.slane %v6863, %v6872
    %v6875 = vunpack.c.l.s4 1966171168
    %v6876 = vunpack.c.0.s8 %v6875
    %v6877 = vlaneseq
    %v6878 = vshrl.u32 %v6877, 7
    %v6879 = vsub.s32 %v6876, %v6878
    %v6880 = vrot.slane %v6873, %v6879
    %v6882 = vunpack.c.l.s4 1966171168
    %v6883 = vunpack.c.0.s8 %v6882
    %v6884 = vlaneseq
    %v6885 = vshrl.u32 %v6884, 7
    %v6886 = vsub.s32 %v6883, %v6885
    %v6887 = vrot.slane %v6864, %v6886
    %v6889 = vunpack.c.l.s4 1966171168
    %v6890 = vunpack.c.0.s8 %v6889
    %v6891 = vlaneseq
    %v6892 = vshrl.u32 %v6891, 7
    %v6893 = vsub.s32 %v6890, %v6892
    %v6894 = vrot.slane %v6887, %v6893
    %v6896 = vunpack.c.l.s4 1935823168
    %v6897 = vunpack.c.0.s8 %v6896
    %v6898 = vlaneseq
    %v6899 = vshrl.u32 %v6898, 7
    %v6900 = vsub.s32 %v6897, %v6899
    %v6901 = vrot.slane %v6880, %v6900
    %v6903 = vunpack.c.l.s4 1935823168
    %v6904 = vunpack.c.0.s8 %v6903
    %v6905 = vlaneseq
    %v6906 = vshrl.u32 %v6905, 7
    %v6907 = vsub.s32 %v6904, %v6906
    %v6908 = vrot.slane %v6901, %v6907
    %v6910 = vunpack.c.l.s4 1935823168
    %v6911 = vunpack.c.0.s8 %v6910
    %v6912 = vlaneseq
    %v6913 = vshrl.u32 %v6912, 7
    %v6914 = vsub.s32 %v6911, %v6913
    %v6915 = vrot.slane %v6894, %v6914
    %v6917 = vunpack.c.l.s4 1935823168
    %v6918 = vunpack.c.0.s8 %v6917
    %v6919 = vlaneseq
    %v6920 = vshrl.u32 %v6919, 7
    %v6921 = vsub.s32 %v6918, %v6920
    %v6922 = vrot.slane %v6915, %v6921
    %v6923 = vunpack.c.l.b16 %v6908
    %v6924 = vunpack.c.l.b16 %v6922
    %v6925 = vrot.slane %v6924, 7
    %v6926 = vsel %vm6043, %v6925, %v6923
    %v6927 = vpack.c.b16 %v6926, %v6926
    %v6929 = vunpack.c.l.s4 1966171168
    %v6930 = vunpack.c.0.s8 %v6929
    %v6931 = vlaneseq
    %v6932 = vshrl.u32 %v6931, 7
    %v6933 = vsub.s32 %v6930, %v6932
    %v6934 = vrot.slane %v6927, %v6933
    %v6936 = vunpack.c.l.s4 1966171168
    %v6937 = vunpack.c.0.s8 %v6936
    %v6938 = vlaneseq
    %v6939 = vshrl.u32 %v6938, 7
    %v6940 = vsub.s32 %v6937, %v6939
    %v6941 = vrot.slane %v6934, %v6940
    %6943 = vst.msk [vmem:[#allocation8 + $0x5] sm:$0x1] %vm6061, %v6941
    %v6944 = vld [vmem:[%s5966 + $0x6] sm:$0x1]
    %v6945 = vld [vmem:[%s5966 + $0x26] sm:$0x1]
    %v6946 = vld [vmem:[%s5966 + $0x7] sm:$0x1]
    %v6947 = vld [vmem:[%s5966 + $0x27] sm:$0x1]
    %v6948 = vmax.f32 %v6944, %v6946
    %v6949 = vmax.f32 %v6945, %v6947
    %v6950 = vpack.c.bf16 %v6948, %v6948
    %v6951 = vpack.c.bf16 %v6949, %v6949
    %v6955 = vunpack.c.l.s4 1966171168
    %v6956 = vunpack.c.0.s8 %v6955
    %v6957 = vlaneseq
    %v6958 = vshrl.u32 %v6957, 7
    %v6959 = vsub.s32 %v6956, %v6958
    %v6960 = vrot.slane %v6950, %v6959
    %v6962 = vunpack.c.l.s4 1966171168
    %v6963 = vunpack.c.0.s8 %v6962
    %v6964 = vlaneseq
    %v6965 = vshrl.u32 %v6964, 7
    %v6966 = vsub.s32 %v6963, %v6965
    %v6967 = vrot.slane %v6960, %v6966
    %v6969 = vunpack.c.l.s4 1966171168
    %v6970 = vunpack.c.0.s8 %v6969
    %v6971 = vlaneseq
    %v6972 = vshrl.u32 %v6971, 7
    %v6973 = vsub.s32 %v6970, %v6972
    %v6974 = vrot.slane %v6951, %v6973
    %v6976 = vunpack.c.l.s4 1966171168
    %v6977 = vunpack.c.0.s8 %v6976
    %v6978 = vlaneseq
    %v6979 = vshrl.u32 %v6978, 7
    %v6980 = vsub.s32 %v6977, %v6979
    %v6981 = vrot.slane %v6974, %v6980
    %v6983 = vunpack.c.l.s4 1935823168
    %v6984 = vunpack.c.0.s8 %v6983
    %v6985 = vlaneseq
    %v6986 = vshrl.u32 %v6985, 7
    %v6987 = vsub.s32 %v6984, %v6986
    %v6988 = vrot.slane %v6967, %v6987
    %v6990 = vunpack.c.l.s4 1935823168
    %v6991 = vunpack.c.0.s8 %v6990
    %v6992 = vlaneseq
    %v6993 = vshrl.u32 %v6992, 7
    %v6994 = vsub.s32 %v6991, %v6993
    %v6995 = vrot.slane %v6988, %v6994
    %v6997 = vunpack.c.l.s4 1935823168
    %v6998 = vunpack.c.0.s8 %v6997
    %v6999 = vlaneseq
    %v7000 = vshrl.u32 %v6999, 7
    %v7001 = vsub.s32 %v6998, %v7000
    %v7002 = vrot.slane %v6981, %v7001
    %v7004 = vunpack.c.l.s4 1935823168
    %v7005 = vunpack.c.0.s8 %v7004
    %v7006 = vlaneseq
    %v7007 = vshrl.u32 %v7006, 7
    %v7008 = vsub.s32 %v7005, %v7007
    %v7009 = vrot.slane %v7002, %v7008
    %v7010 = vunpack.c.l.b16 %v6995
    %v7011 = vunpack.c.l.b16 %v7009
    %v7012 = vrot.slane %v7011, 7
    %v7013 = vsel %vm6043, %v7012, %v7010
    %v7014 = vpack.c.b16 %v7013, %v7013
    %v7016 = vunpack.c.l.s4 1966171168
    %v7017 = vunpack.c.0.s8 %v7016
    %v7018 = vlaneseq
    %v7019 = vshrl.u32 %v7018, 7
    %v7020 = vsub.s32 %v7017, %v7019
    %v7021 = vrot.slane %v7014, %v7020
    %v7023 = vunpack.c.l.s4 1966171168
    %v7024 = vunpack.c.0.s8 %v7023
    %v7025 = vlaneseq
    %v7026 = vshrl.u32 %v7025, 7
    %v7027 = vsub.s32 %v7024, %v7026
    %v7028 = vrot.slane %v7021, %v7027
    %7029 = vrot.lane.b32.xlu0 %v7028, 64
    %v7030 = vpop.permute.xlu0 %7029
    %7032 = vst.msk [vmem:[#allocation8 + $0x5] sm:$0x1] %vm6151, %v7030
    %v7033 = vld [vmem:[%s5971] sm:$0x1]
    %v7034 = vld [vmem:[%s5971 + $0x20] sm:$0x1]
    %v7035 = vld [vmem:[%s5971 + $0x1] sm:$0x1]
    %v7036 = vld [vmem:[%s5971 + $0x21] sm:$0x1]
    %v7037 = vmax.f32 %v7033, %v7035
    %v7038 = vmax.f32 %v7034, %v7036
    %v7039 = vpack.c.bf16 %v7037, %v7037
    %v7040 = vpack.c.bf16 %v7038, %v7038
    %v7044 = vunpack.c.l.s4 1966171168
    %v7045 = vunpack.c.0.s8 %v7044
    %v7046 = vlaneseq
    %v7047 = vshrl.u32 %v7046, 7
    %v7048 = vsub.s32 %v7045, %v7047
    %v7049 = vrot.slane %v7039, %v7048
    %v7051 = vunpack.c.l.s4 1966171168
    %v7052 = vunpack.c.0.s8 %v7051
    %v7053 = vlaneseq
    %v7054 = vshrl.u32 %v7053, 7
    %v7055 = vsub.s32 %v7052, %v7054
    %v7056 = vrot.slane %v7049, %v7055
    %v7058 = vunpack.c.l.s4 1966171168
    %v7059 = vunpack.c.0.s8 %v7058
    %v7060 = vlaneseq
    %v7061 = vshrl.u32 %v7060, 7
    %v7062 = vsub.s32 %v7059, %v7061
    %v7063 = vrot.slane %v7040, %v7062
    %v7065 = vunpack.c.l.s4 1966171168
    %v7066 = vunpack.c.0.s8 %v7065
    %v7067 = vlaneseq
    %v7068 = vshrl.u32 %v7067, 7
    %v7069 = vsub.s32 %v7066, %v7068
    %v7070 = vrot.slane %v7063, %v7069
    %v7072 = vunpack.c.l.s4 1935823168
    %v7073 = vunpack.c.0.s8 %v7072
    %v7074 = vlaneseq
    %v7075 = vshrl.u32 %v7074, 7
    %v7076 = vsub.s32 %v7073, %v7075
    %v7077 = vrot.slane %v7056, %v7076
    %v7079 = vunpack.c.l.s4 1935823168
    %v7080 = vunpack.c.0.s8 %v7079
    %v7081 = vlaneseq
    %v7082 = vshrl.u32 %v7081, 7
    %v7083 = vsub.s32 %v7080, %v7082
    %v7084 = vrot.slane %v7077, %v7083
    %v7086 = vunpack.c.l.s4 1935823168
    %v7087 = vunpack.c.0.s8 %v7086
    %v7088 = vlaneseq
    %v7089 = vshrl.u32 %v7088, 7
    %v7090 = vsub.s32 %v7087, %v7089
    %v7091 = vrot.slane %v7070, %v7090
    %v7093 = vunpack.c.l.s4 1935823168
    %v7094 = vunpack.c.0.s8 %v7093
    %v7095 = vlaneseq
    %v7096 = vshrl.u32 %v7095, 7
    %v7097 = vsub.s32 %v7094, %v7096
    %v7098 = vrot.slane %v7091, %v7097
    %v7099 = vunpack.c.l.b16 %v7084
    %v7100 = vunpack.c.l.b16 %v7098
    %v7101 = vrot.slane %v7100, 7
    %v7102 = vsel %vm6043, %v7101, %v7099
    %v7103 = vpack.c.b16 %v7102, %v7102
    %v7105 = vunpack.c.l.s4 1966171168
    %v7106 = vunpack.c.0.s8 %v7105
    %v7107 = vlaneseq
    %v7108 = vshrl.u32 %v7107, 7
    %v7109 = vsub.s32 %v7106, %v7108
    %v7110 = vrot.slane %v7103, %v7109
    %v7112 = vunpack.c.l.s4 1966171168
    %v7113 = vunpack.c.0.s8 %v7112
    %v7114 = vlaneseq
    %v7115 = vshrl.u32 %v7114, 7
    %v7116 = vsub.s32 %v7113, %v7115
    %v7117 = vrot.slane %v7110, %v7116
    %7119 = vst.msk [vmem:[#allocation8 + $0x6] sm:$0x1] %vm6061, %v7117
    %v7120 = vld [vmem:[%s5971 + $0x2] sm:$0x1]
    %v7121 = vld [vmem:[%s5971 + $0x22] sm:$0x1]
    %v7122 = vld [vmem:[%s5971 + $0x3] sm:$0x1]
    %v7123 = vld [vmem:[%s5971 + $0x23] sm:$0x1]
    %v7124 = vmax.f32 %v7120, %v7122
    %v7125 = vmax.f32 %v7121, %v7123
    %v7126 = vpack.c.bf16 %v7124, %v7124
    %v7127 = vpack.c.bf16 %v7125, %v7125
    %v7131 = vunpack.c.l.s4 1966171168
    %v7132 = vunpack.c.0.s8 %v7131
    %v7133 = vlaneseq
    %v7134 = vshrl.u32 %v7133, 7
    %v7135 = vsub.s32 %v7132, %v7134
    %v7136 = vrot.slane %v7126, %v7135
    %v7138 = vunpack.c.l.s4 1966171168
    %v7139 = vunpack.c.0.s8 %v7138
    %v7140 = vlaneseq
    %v7141 = vshrl.u32 %v7140, 7
    %v7142 = vsub.s32 %v7139, %v7141
    %v7143 = vrot.slane %v7136, %v7142
    %v7145 = vunpack.c.l.s4 1966171168
    %v7146 = vunpack.c.0.s8 %v7145
    %v7147 = vlaneseq
    %v7148 = vshrl.u32 %v7147, 7
    %v7149 = vsub.s32 %v7146, %v7148
    %v7150 = vrot.slane %v7127, %v7149
    %v7152 = vunpack.c.l.s4 1966171168
    %v7153 = vunpack.c.0.s8 %v7152
    %v7154 = vlaneseq
    %v7155 = vshrl.u32 %v7154, 7
    %v7156 = vsub.s32 %v7153, %v7155
    %v7157 = vrot.slane %v7150, %v7156
    %v7159 = vunpack.c.l.s4 1935823168
    %v7160 = vunpack.c.0.s8 %v7159
    %v7161 = vlaneseq
    %v7162 = vshrl.u32 %v7161, 7
    %v7163 = vsub.s32 %v7160, %v7162
    %v7164 = vrot.slane %v7143, %v7163
    %v7166 = vunpack.c.l.s4 1935823168
    %v7167 = vunpack.c.0.s8 %v7166
    %v7168 = vlaneseq
    %v7169 = vshrl.u32 %v7168, 7
    %v7170 = vsub.s32 %v7167, %v7169
    %v7171 = vrot.slane %v7164, %v7170
    %v7173 = vunpack.c.l.s4 1935823168
    %v7174 = vunpack.c.0.s8 %v7173
    %v7175 = vlaneseq
    %v7176 = vshrl.u32 %v7175, 7
    %v7177 = vsub.s32 %v7174, %v7176
    %v7178 = vrot.slane %v7157, %v7177
    %v7180 = vunpack.c.l.s4 1935823168
    %v7181 = vunpack.c.0.s8 %v7180
    %v7182 = vlaneseq
    %v7183 = vshrl.u32 %v7182, 7
    %v7184 = vsub.s32 %v7181, %v7183
    %v7185 = vrot.slane %v7178, %v7184
    %v7186 = vunpack.c.l.b16 %v7171
    %v7187 = vunpack.c.l.b16 %v7185
    %v7188 = vrot.slane %v7187, 7
    %v7189 = vsel %vm6043, %v7188, %v7186
    %v7190 = vpack.c.b16 %v7189, %v7189
    %v7192 = vunpack.c.l.s4 1966171168
    %v7193 = vunpack.c.0.s8 %v7192
    %v7194 = vlaneseq
    %v7195 = vshrl.u32 %v7194, 7
    %v7196 = vsub.s32 %v7193, %v7195
    %v7197 = vrot.slane %v7190, %v7196
    %v7199 = vunpack.c.l.s4 1966171168
    %v7200 = vunpack.c.0.s8 %v7199
    %v7201 = vlaneseq
    %v7202 = vshrl.u32 %v7201, 7
    %v7203 = vsub.s32 %v7200, %v7202
    %v7204 = vrot.slane %v7197, %v7203
    %7205 = vrot.lane.b32.xlu0 %v7204, 64
    %v7206 = vpop.permute.xlu0 %7205
    %7208 = vst.msk [vmem:[#allocation8 + $0x6] sm:$0x1] %vm6151, %v7206
    %v7209 = vld [vmem:[%s5971 + $0x4] sm:$0x1]
    %v7210 = vld [vmem:[%s5971 + $0x24] sm:$0x1]
    %v7211 = vld [vmem:[%s5971 + $0x5] sm:$0x1]
    %v7212 = vld [vmem:[%s5971 + $0x25] sm:$0x1]
    %v7213 = vmax.f32 %v7209, %v7211
    %v7214 = vmax.f32 %v7210, %v7212
    %v7215 = vpack.c.bf16 %v7213, %v7213
    %v7216 = vpack.c.bf16 %v7214, %v7214
    %v7220 = vunpack.c.l.s4 1966171168
    %v7221 = vunpack.c.0.s8 %v7220
    %v7222 = vlaneseq
    %v7223 = vshrl.u32 %v7222, 7
    %v7224 = vsub.s32 %v7221, %v7223
    %v7225 = vrot.slane %v7215, %v7224
    %v7227 = vunpack.c.l.s4 1966171168
    %v7228 = vunpack.c.0.s8 %v7227
    %v7229 = vlaneseq
    %v7230 = vshrl.u32 %v7229, 7
    %v7231 = vsub.s32 %v7228, %v7230
    %v7232 = vrot.slane %v7225, %v7231
    %v7234 = vunpack.c.l.s4 1966171168
    %v7235 = vunpack.c.0.s8 %v7234
    %v7236 = vlaneseq
    %v7237 = vshrl.u32 %v7236, 7
    %v7238 = vsub.s32 %v7235, %v7237
    %v7239 = vrot.slane %v7216, %v7238
    %v7241 = vunpack.c.l.s4 1966171168
    %v7242 = vunpack.c.0.s8 %v7241
    %v7243 = vlaneseq
    %v7244 = vshrl.u32 %v7243, 7
    %v7245 = vsub.s32 %v7242, %v7244
    %v7246 = vrot.slane %v7239, %v7245
    %v7248 = vunpack.c.l.s4 1935823168
    %v7249 = vunpack.c.0.s8 %v7248
    %v7250 = vlaneseq
    %v7251 = vshrl.u32 %v7250, 7
    %v7252 = vsub.s32 %v7249, %v7251
    %v7253 = vrot.slane %v7232, %v7252
    %v7255 = vunpack.c.l.s4 1935823168
    %v7256 = vunpack.c.0.s8 %v7255
    %v7257 = vlaneseq
    %v7258 = vshrl.u32 %v7257, 7
    %v7259 = vsub.s32 %v7256, %v7258
    %v7260 = vrot.slane %v7253, %v7259
    %v7262 = vunpack.c.l.s4 1935823168
    %v7263 = vunpack.c.0.s8 %v7262
    %v7264 = vlaneseq
    %v7265 = vshrl.u32 %v7264, 7
    %v7266 = vsub.s32 %v7263, %v7265
    %v7267 = vrot.slane %v7246, %v7266
    %v7269 = vunpack.c.l.s4 1935823168
    %v7270 = vunpack.c.0.s8 %v7269
    %v7271 = vlaneseq
    %v7272 = vshrl.u32 %v7271, 7
    %v7273 = vsub.s32 %v7270, %v7272
    %v7274 = vrot.slane %v7267, %v7273
    %v7275 = vunpack.c.l.b16 %v7260
    %v7276 = vunpack.c.l.b16 %v7274
    %v7277 = vrot.slane %v7276, 7
    %v7278 = vsel %vm6043, %v7277, %v7275
    %v7279 = vpack.c.b16 %v7278, %v7278
    %v7281 = vunpack.c.l.s4 1966171168
    %v7282 = vunpack.c.0.s8 %v7281
    %v7283 = vlaneseq
    %v7284 = vshrl.u32 %v7283, 7
    %v7285 = vsub.s32 %v7282, %v7284
    %v7286 = vrot.slane %v7279, %v7285
    %v7288 = vunpack.c.l.s4 1966171168
    %v7289 = vunpack.c.0.s8 %v7288
    %v7290 = vlaneseq
    %v7291 = vshrl.u32 %v7290, 7
    %v7292 = vsub.s32 %v7289, %v7291
    %v7293 = vrot.slane %v7286, %v7292
    %7295 = vst.msk [vmem:[#allocation8 + $0x7] sm:$0x1] %vm6061, %v7293
    %v7296 = vld [vmem:[%s5971 + $0x6] sm:$0x1]
    %v7297 = vld [vmem:[%s5971 + $0x26] sm:$0x1]
    %v7298 = vld [vmem:[%s5971 + $0x7] sm:$0x1]
    %v7299 = vld [vmem:[%s5971 + $0x27] sm:$0x1]
    %v7300 = vmax.f32 %v7296, %v7298
    %v7301 = vmax.f32 %v7297, %v7299
    %v7302 = vpack.c.bf16 %v7300, %v7300
    %v7303 = vpack.c.bf16 %v7301, %v7301
    %v7307 = vunpack.c.l.s4 1966171168
    %v7308 = vunpack.c.0.s8 %v7307
    %v7309 = vlaneseq
    %v7310 = vshrl.u32 %v7309, 7
    %v7311 = vsub.s32 %v7308, %v7310
    %v7312 = vrot.slane %v7302, %v7311
    %v7314 = vunpack.c.l.s4 1966171168
    %v7315 = vunpack.c.0.s8 %v7314
    %v7316 = vlaneseq
    %v7317 = vshrl.u32 %v7316, 7
    %v7318 = vsub.s32 %v7315, %v7317
    %v7319 = vrot.slane %v7312, %v7318
    %v7321 = vunpack.c.l.s4 1966171168
    %v7322 = vunpack.c.0.s8 %v7321
    %v7323 = vlaneseq
    %v7324 = vshrl.u32 %v7323, 7
    %v7325 = vsub.s32 %v7322, %v7324
    %v7326 = vrot.slane %v7303, %v7325
    %v7328 = vunpack.c.l.s4 1966171168
    %v7329 = vunpack.c.0.s8 %v7328
    %v7330 = vlaneseq
    %v7331 = vshrl.u32 %v7330, 7
    %v7332 = vsub.s32 %v7329, %v7331
    %v7333 = vrot.slane %v7326, %v7332
    %v7335 = vunpack.c.l.s4 1935823168
    %v7336 = vunpack.c.0.s8 %v7335
    %v7337 = vlaneseq
    %v7338 = vshrl.u32 %v7337, 7
    %v7339 = vsub.s32 %v7336, %v7338
    %v7340 = vrot.slane %v7319, %v7339
    %v7342 = vunpack.c.l.s4 1935823168
    %v7343 = vunpack.c.0.s8 %v7342
    %v7344 = vlaneseq
    %v7345 = vshrl.u32 %v7344, 7
    %v7346 = vsub.s32 %v7343, %v7345
    %v7347 = vrot.slane %v7340, %v7346
    %v7349 = vunpack.c.l.s4 1935823168
    %v7350 = vunpack.c.0.s8 %v7349
    %v7351 = vlaneseq
    %v7352 = vshrl.u32 %v7351, 7
    %v7353 = vsub.s32 %v7350, %v7352
    %v7354 = vrot.slane %v7333, %v7353
    %v7356 = vunpack.c.l.s4 1935823168
    %v7357 = vunpack.c.0.s8 %v7356
    %v7358 = vlaneseq
    %v7359 = vshrl.u32 %v7358, 7
    %v7360 = vsub.s32 %v7357, %v7359
    %v7361 = vrot.slane %v7354, %v7360
    %v7362 = vunpack.c.l.b16 %v7347
    %v7363 = vunpack.c.l.b16 %v7361
    %v7364 = vrot.slane %v7363, 7
    %v7365 = vsel %vm6043, %v7364, %v7362
    %v7366 = vpack.c.b16 %v7365, %v7365
    %v7368 = vunpack.c.l.s4 1966171168
    %v7369 = vunpack.c.0.s8 %v7368
    %v7370 = vlaneseq
    %v7371 = vshrl.u32 %v7370, 7
    %v7372 = vsub.s32 %v7369, %v7371
    %v7373 = vrot.slane %v7366, %v7372
    %v7375 = vunpack.c.l.s4 1966171168
    %v7376 = vunpack.c.0.s8 %v7375
    %v7377 = vlaneseq
    %v7378 = vshrl.u32 %v7377, 7
    %v7379 = vsub.s32 %v7376, %v7378
    %v7380 = vrot.slane %v7373, %v7379
    %7381 = vrot.lane.b32.xlu0 %v7380, 64
    %v7382 = vpop.permute.xlu0 %7381
    %7384 = vst.msk [vmem:[#allocation8 + $0x7] sm:$0x1] %vm6151, %v7382
    %v7385 = vld [vmem:[#allocation8] sm:$0xff]
    %v7386 = vld [vmem:[%s5] sm:$0xff]
    %v7387 = vld [vmem:[%s5 + $0x8] sm:$0xff]
    %v7388 = vld [vmem:[%s5 + $0x10] sm:$0xff]
    %v7389 = vld [vmem:[%s5 + $0x18] sm:$0xff]
    %v7390 = vld [vmem:[%s5 + $0x20] sm:$0xff]
    %v7391 = vld [vmem:[%s5 + $0x28] sm:$0xff]
    %v7392 = vld [vmem:[%s5 + $0x30] sm:$0xff]
    %v7393 = vld [vmem:[%s5 + $0x38] sm:$0xff]
    %v7394 = vld [vmem:[%s5 + $0x40] sm:$0xff]
    %v7395 = vld [vmem:[%s5 + $0x48] sm:$0xff]
    %v7396 = vld [vmem:[%s5 + $0x50] sm:$0xff]
    %v7397 = vld [vmem:[%s5 + $0x58] sm:$0xff]
    %v7398 = vld [vmem:[%s5 + $0x60] sm:$0xff]
    %v7399 = vld [vmem:[%s5 + $0x68] sm:$0xff]
    %v7400 = vld [vmem:[%s5 + $0x70] sm:$0xff]
    %v7401 = vld [vmem:[%s5 + $0x78] sm:$0xff]
    %v7402 = vld [vmem:[%s5 + $0x80] sm:$0xff]
    %v7403 = vld [vmem:[%s5 + $0x88] sm:$0xff]
    %v7404 = vld [vmem:[%s5 + $0x90] sm:$0xff]
    %v7405 = vld [vmem:[%s5 + $0x98] sm:$0xff]
    %v7406 = vld [vmem:[%s5 + $0xa0] sm:$0xff]
    %v7407 = vld [vmem:[%s5 + $0xa8] sm:$0xff]
    %v7408 = vld [vmem:[%s5 + $0xb0] sm:$0xff]
    %v7409 = vld [vmem:[%s5 + $0xb8] sm:$0xff]
    %v7410 = vld [vmem:[%s5 + $0xc0] sm:$0xff]
    %v7411 = vld [vmem:[%s5 + $0xc8] sm:$0xff]
    %v7412 = vld [vmem:[%s5 + $0xd0] sm:$0xff]
    %v7413 = vld [vmem:[%s5 + $0xd8] sm:$0xff]
    %v7414 = vld [vmem:[%s5 + $0xe0] sm:$0xff]
    %v7415 = vld [vmem:[%s5 + $0xe8] sm:$0xff]
    %v7416 = vld [vmem:[%s5 + $0xf0] sm:$0xff]
    %v7417 = vld [vmem:[%s5 + $0xf8] sm:$0xff]
    %v7418 = vld [vmem:[%s5 + $0x100] sm:$0xff]
    %v7419 = vld [vmem:[%s5 + $0x108] sm:$0xff]
    %v7420 = vld [vmem:[%s5 + $0x110] sm:$0xff]
    %v7421 = vld [vmem:[%s5 + $0x118] sm:$0xff]
    %v7422 = vld [vmem:[%s5 + $0x120] sm:$0xff]
    %v7423 = vld [vmem:[%s5 + $0x128] sm:$0xff]
    %v7424 = vld [vmem:[%s5 + $0x130] sm:$0xff]
    %v7425 = vld [vmem:[%s5 + $0x138] sm:$0xff]
    %v7426 = vld [vmem:[%s5 + $0x140] sm:$0xff]
    %v7427 = vld [vmem:[%s5 + $0x148] sm:$0xff]
    %v7428 = vld [vmem:[%s5 + $0x150] sm:$0xff]
    %v7429 = vld [vmem:[%s5 + $0x158] sm:$0xff]
    %v7430 = vld [vmem:[%s5 + $0x160] sm:$0xff]
    %v7431 = vld [vmem:[%s5 + $0x168] sm:$0xff]
    %v7432 = vld [vmem:[%s5 + $0x170] sm:$0xff]
    %v7433 = vld [vmem:[%s5 + $0x178] sm:$0xff]
    %v7434 = vld [vmem:[%s5 + $0x180] sm:$0xff]
    %v7435 = vld [vmem:[%s5 + $0x188] sm:$0xff]
    %v7436 = vld [vmem:[%s5 + $0x190] sm:$0xff]
    %v7437 = vld [vmem:[%s5 + $0x198] sm:$0xff]
    %v7438 = vld [vmem:[%s5 + $0x1a0] sm:$0xff]
    %v7439 = vld [vmem:[%s5 + $0x1a8] sm:$0xff]
    %v7440 = vld [vmem:[%s5 + $0x1b0] sm:$0xff]
    %v7441 = vld [vmem:[%s5 + $0x1b8] sm:$0xff]
    %v7442 = vld [vmem:[%s5 + $0x1c0] sm:$0xff]
    %v7443 = vld [vmem:[%s5 + $0x1c8] sm:$0xff]
    %v7444 = vld [vmem:[%s5 + $0x1d0] sm:$0xff]
    %v7445 = vld [vmem:[%s5 + $0x1d8] sm:$0xff]
    %v7446 = vld [vmem:[%s5 + $0x1e0] sm:$0xff]
    %v7447 = vld [vmem:[%s5 + $0x1e8] sm:$0xff]
    %v7448 = vld [vmem:[%s5 + $0x1f0] sm:$0xff]
    %v7449 = vld [vmem:[%s5 + $0x1f8] sm:$0xff]
    %v7450 = vld [vmem:[%s5 + $0x200] sm:$0xff]
    %v7451 = vld [vmem:[%s5 + $0x208] sm:$0xff]
    %v7452 = vld [vmem:[%s5 + $0x210] sm:$0xff]
    %v7453 = vld [vmem:[%s5 + $0x218] sm:$0xff]
    %v7454 = vld [vmem:[%s5 + $0x220] sm:$0xff]
    %v7455 = vld [vmem:[%s5 + $0x228] sm:$0xff]
    %v7456 = vld [vmem:[%s5 + $0x230] sm:$0xff]
    %v7457 = vld [vmem:[%s5 + $0x238] sm:$0xff]
    %v7458 = vld [vmem:[%s5 + $0x240] sm:$0xff]
    %v7459 = vld [vmem:[%s5 + $0x248] sm:$0xff]
    %v7460 = vld [vmem:[%s5 + $0x250] sm:$0xff]
    %v7461 = vld [vmem:[%s5 + $0x258] sm:$0xff]
    %v7462 = vld [vmem:[%s5 + $0x260] sm:$0xff]
    %v7463 = vld [vmem:[%s5 + $0x268] sm:$0xff]
    %v7464 = vld [vmem:[%s5 + $0x270] sm:$0xff]
    %v7465 = vld [vmem:[%s5 + $0x278] sm:$0xff]
    %v7466 = vld [vmem:[%s5 + $0x280] sm:$0xff]
    %v7467 = vld [vmem:[%s5 + $0x288] sm:$0xff]
    %v7468 = vld [vmem:[%s5 + $0x290] sm:$0xff]
    %v7469 = vld [vmem:[%s5 + $0x298] sm:$0xff]
    %v7470 = vld [vmem:[%s5 + $0x2a0] sm:$0xff]
    %v7471 = vld [vmem:[%s5 + $0x2a8] sm:$0xff]
    %v7472 = vld [vmem:[%s5 + $0x2b0] sm:$0xff]
    %v7473 = vld [vmem:[%s5 + $0x2b8] sm:$0xff]
    %v7474 = vld [vmem:[%s5 + $0x2c0] sm:$0xff]
    %v7475 = vld [vmem:[%s5 + $0x2c8] sm:$0xff]
    %v7476 = vld [vmem:[%s5 + $0x2d0] sm:$0xff]
    %v7477 = vld [vmem:[%s5 + $0x2d8] sm:$0xff]
    %v7478 = vld [vmem:[%s5 + $0x2e0] sm:$0xff]
    %v7479 = vld [vmem:[%s5 + $0x2e8] sm:$0xff]
    %v7480 = vld [vmem:[%s5 + $0x2f0] sm:$0xff]
    %v7481 = vld [vmem:[%s5 + $0x2f8] sm:$0xff]
    %v7482 = vld [vmem:[%s5 + $0x300] sm:$0xff]
    %v7483 = vld [vmem:[%s5 + $0x308] sm:$0xff]
    %v7484 = vld [vmem:[%s5 + $0x310] sm:$0xff]
    %v7485 = vld [vmem:[%s5 + $0x318] sm:$0xff]
    %v7486 = vld [vmem:[%s5 + $0x320] sm:$0xff]
    %v7487 = vld [vmem:[%s5 + $0x328] sm:$0xff]
    %v7488 = vld [vmem:[%s5 + $0x330] sm:$0xff]
    %v7489 = vld [vmem:[%s5 + $0x338] sm:$0xff]
    %v7490 = vld [vmem:[%s5 + $0x340] sm:$0xff]
    %v7491 = vld [vmem:[%s5 + $0x348] sm:$0xff]
    %v7492 = vld [vmem:[%s5 + $0x350] sm:$0xff]
    %v7493 = vld [vmem:[%s5 + $0x358] sm:$0xff]
    %v7494 = vld [vmem:[%s5 + $0x360] sm:$0xff]
    %v7495 = vld [vmem:[%s5 + $0x368] sm:$0xff]
    %v7496 = vld [vmem:[%s5 + $0x370] sm:$0xff]
    %v7497 = vld [vmem:[%s5 + $0x378] sm:$0xff]
    %v7498 = vld [vmem:[%s5 + $0x380] sm:$0xff]
    %v7499 = vld [vmem:[%s5 + $0x388] sm:$0xff]
    %v7500 = vld [vmem:[%s5 + $0x390] sm:$0xff]
    %v7501 = vld [vmem:[%s5 + $0x398] sm:$0xff]
    %v7502 = vld [vmem:[%s5 + $0x3a0] sm:$0xff]
    %v7503 = vld [vmem:[%s5 + $0x3a8] sm:$0xff]
    %v7504 = vld [vmem:[%s5 + $0x3b0] sm:$0xff]
    %v7505 = vld [vmem:[%s5 + $0x3b8] sm:$0xff]
    %v7506 = vld [vmem:[%s5 + $0x3c0] sm:$0xff]
    %v7507 = vld [vmem:[%s5 + $0x3c8] sm:$0xff]
    %v7508 = vld [vmem:[%s5 + $0x3d0] sm:$0xff]
    %v7509 = vld [vmem:[%s5 + $0x3d8] sm:$0xff]
    %v7510 = vld [vmem:[%s5 + $0x3e0] sm:$0xff]
    %v7511 = vld [vmem:[%s5 + $0x3e8] sm:$0xff]
    %v7512 = vld [vmem:[%s5 + $0x3f0] sm:$0xff]
    %v7513 = vld [vmem:[%s5 + $0x3f8] sm:$0xff]
    %v7514 = vld [vmem:[%s5 + $0x400] sm:$0xff]
    %v7515 = vld [vmem:[%s5 + $0x408] sm:$0xff]
    %v7516 = vld [vmem:[%s5 + $0x410] sm:$0xff]
    %v7517 = vld [vmem:[%s5 + $0x418] sm:$0xff]
    %v7518 = vld [vmem:[%s5 + $0x420] sm:$0xff]
    %v7519 = vld [vmem:[%s5 + $0x428] sm:$0xff]
    %v7520 = vld [vmem:[%s5 + $0x430] sm:$0xff]
    %v7521 = vld [vmem:[%s5 + $0x438] sm:$0xff]
    %v7522 = vld [vmem:[%s5 + $0x440] sm:$0xff]
    %v7523 = vld [vmem:[%s5 + $0x448] sm:$0xff]
    %v7524 = vld [vmem:[%s5 + $0x450] sm:$0xff]
    %v7525 = vld [vmem:[%s5 + $0x458] sm:$0xff]
    %v7526 = vld [vmem:[%s5 + $0x460] sm:$0xff]
    %v7527 = vld [vmem:[%s5 + $0x468] sm:$0xff]
    %v7528 = vld [vmem:[%s5 + $0x470] sm:$0xff]
    %v7529 = vld [vmem:[%s5 + $0x478] sm:$0xff]
    %v7530 = vld [vmem:[%s5 + $0x480] sm:$0xff]
    %v7531 = vld [vmem:[%s5 + $0x488] sm:$0xff]
    %v7532 = vld [vmem:[%s5 + $0x490] sm:$0xff]
    %v7533 = vld [vmem:[%s5 + $0x498] sm:$0xff]
    %v7534 = vld [vmem:[%s5 + $0x4a0] sm:$0xff]
    %v7535 = vld [vmem:[%s5 + $0x4a8] sm:$0xff]
    %v7536 = vld [vmem:[%s5 + $0x4b0] sm:$0xff]
    %v7537 = vld [vmem:[%s5 + $0x4b8] sm:$0xff]
    %v7538 = vld [vmem:[%s5 + $0x4c0] sm:$0xff]
    %v7539 = vld [vmem:[%s5 + $0x4c8] sm:$0xff]
    %v7540 = vld [vmem:[%s5 + $0x4d0] sm:$0xff]
    %v7541 = vld [vmem:[%s5 + $0x4d8] sm:$0xff]
    %v7542 = vld [vmem:[%s5 + $0x4e0] sm:$0xff]
    %v7543 = vld [vmem:[%s5 + $0x4e8] sm:$0xff]
    %v7544 = vld [vmem:[%s5 + $0x4f0] sm:$0xff]
    %v7545 = vld [vmem:[%s5 + $0x4f8] sm:$0xff]
    %v7546 = vld [vmem:[%s5 + $0x500] sm:$0xff]
    %v7547 = vld [vmem:[%s5 + $0x508] sm:$0xff]
    %v7548 = vld [vmem:[%s5 + $0x510] sm:$0xff]
    %v7549 = vld [vmem:[%s5 + $0x518] sm:$0xff]
    %v7550 = vld [vmem:[%s5 + $0x520] sm:$0xff]
    %v7551 = vld [vmem:[%s5 + $0x528] sm:$0xff]
    %v7552 = vld [vmem:[%s5 + $0x530] sm:$0xff]
    %v7553 = vld [vmem:[%s5 + $0x538] sm:$0xff]
    %v7554 = vld [vmem:[%s5 + $0x540] sm:$0xff]
    %v7555 = vld [vmem:[%s5 + $0x548] sm:$0xff]
    %v7556 = vld [vmem:[%s5 + $0x550] sm:$0xff]
    %v7557 = vld [vmem:[%s5 + $0x558] sm:$0xff]
    %v7558 = vld [vmem:[%s5 + $0x560] sm:$0xff]
    %v7559 = vld [vmem:[%s5 + $0x568] sm:$0xff]
    %v7560 = vld [vmem:[%s5 + $0x570] sm:$0xff]
    %v7561 = vld [vmem:[%s5 + $0x578] sm:$0xff]
    %v7562 = vld [vmem:[%s5 + $0x580] sm:$0xff]
    %v7563 = vld [vmem:[%s5 + $0x588] sm:$0xff]
    %v7564 = vld [vmem:[%s5 + $0x590] sm:$0xff]
    %v7565 = vld [vmem:[%s5 + $0x598] sm:$0xff]
    %v7566 = vld [vmem:[%s5 + $0x5a0] sm:$0xff]
    %v7567 = vld [vmem:[%s5 + $0x5a8] sm:$0xff]
    %v7568 = vld [vmem:[%s5 + $0x5b0] sm:$0xff]
    %v7569 = vld [vmem:[%s5 + $0x5b8] sm:$0xff]
    %v7570 = vld [vmem:[%s5 + $0x5c0] sm:$0xff]
    %v7571 = vld [vmem:[%s5 + $0x5c8] sm:$0xff]
    %v7572 = vld [vmem:[%s5 + $0x5d0] sm:$0xff]
    %v7573 = vld [vmem:[%s5 + $0x5d8] sm:$0xff]
    %v7574 = vld [vmem:[%s5 + $0x5e0] sm:$0xff]
    %v7575 = vld [vmem:[%s5 + $0x5e8] sm:$0xff]
    %v7576 = vld [vmem:[%s5 + $0x5f0] sm:$0xff]
    %v7577 = vld [vmem:[%s5 + $0x5f8] sm:$0xff]
    %v7578 = vld [vmem:[%s5 + $0x600] sm:$0xff]
    %v7579 = vld [vmem:[%s5 + $0x608] sm:$0xff]
    %v7580 = vld [vmem:[%s5 + $0x610] sm:$0xff]
    %v7581 = vld [vmem:[%s5 + $0x618] sm:$0xff]
    %v7582 = vld [vmem:[%s5 + $0x620] sm:$0xff]
    %v7583 = vld [vmem:[%s5 + $0x628] sm:$0xff]
    %v7584 = vld [vmem:[%s5 + $0x630] sm:$0xff]
    %v7585 = vld [vmem:[%s5 + $0x638] sm:$0xff]
    %v7586 = vld [vmem:[%s5 + $0x640] sm:$0xff]
    %v7587 = vld [vmem:[%s5 + $0x648] sm:$0xff]
    %v7588 = vld [vmem:[%s5 + $0x650] sm:$0xff]
    %v7589 = vld [vmem:[%s5 + $0x658] sm:$0xff]
    %v7590 = vld [vmem:[%s5 + $0x660] sm:$0xff]
    %v7591 = vld [vmem:[%s5 + $0x668] sm:$0xff]
    %v7592 = vld [vmem:[%s5 + $0x670] sm:$0xff]
    %v7593 = vld [vmem:[%s5 + $0x678] sm:$0xff]
    %v7594 = vld [vmem:[%s5 + $0x680] sm:$0xff]
    %v7595 = vld [vmem:[%s5 + $0x688] sm:$0xff]
    %v7596 = vld [vmem:[%s5 + $0x690] sm:$0xff]
    %v7597 = vld [vmem:[%s5 + $0x698] sm:$0xff]
    %v7598 = vld [vmem:[%s5 + $0x6a0] sm:$0xff]
    %v7599 = vld [vmem:[%s5 + $0x6a8] sm:$0xff]
    %v7600 = vld [vmem:[%s5 + $0x6b0] sm:$0xff]
    %v7601 = vld [vmem:[%s5 + $0x6b8] sm:$0xff]
    %v7602 = vld [vmem:[%s5 + $0x6c0] sm:$0xff]
    %v7603 = vld [vmem:[%s5 + $0x6c8] sm:$0xff]
    %v7604 = vld [vmem:[%s5 + $0x6d0] sm:$0xff]
    %v7605 = vld [vmem:[%s5 + $0x6d8] sm:$0xff]
    %v7606 = vld [vmem:[%s5 + $0x6e0] sm:$0xff]
    %v7607 = vld [vmem:[%s5 + $0x6e8] sm:$0xff]
    %v7608 = vld [vmem:[%s5 + $0x6f0] sm:$0xff]
    %v7609 = vld [vmem:[%s5 + $0x6f8] sm:$0xff]
    %v7610 = vld [vmem:[%s5 + $0x700] sm:$0xff]
    %v7611 = vld [vmem:[%s5 + $0x708] sm:$0xff]
    %v7612 = vld [vmem:[%s5 + $0x710] sm:$0xff]
    %v7613 = vld [vmem:[%s5 + $0x718] sm:$0xff]
    %v7614 = vld [vmem:[%s5 + $0x720] sm:$0xff]
    %v7615 = vld [vmem:[%s5 + $0x728] sm:$0xff]
    %v7616 = vld [vmem:[%s5 + $0x730] sm:$0xff]
    %v7617 = vld [vmem:[%s5 + $0x738] sm:$0xff]
    %v7618 = vld [vmem:[%s5 + $0x740] sm:$0xff]
    %v7619 = vld [vmem:[%s5 + $0x748] sm:$0xff]
    %v7620 = vld [vmem:[%s5 + $0x750] sm:$0xff]
    %v7621 = vld [vmem:[%s5 + $0x758] sm:$0xff]
    %v7622 = vld [vmem:[%s5 + $0x760] sm:$0xff]
    %v7623 = vld [vmem:[%s5 + $0x768] sm:$0xff]
    %v7624 = vld [vmem:[%s5 + $0x770] sm:$0xff]
    %v7625 = vld [vmem:[%s5 + $0x778] sm:$0xff]
    %v7626 = vld [vmem:[%s5 + $0x780] sm:$0xff]
    %v7627 = vld [vmem:[%s5 + $0x788] sm:$0xff]
    %v7628 = vld [vmem:[%s5 + $0x790] sm:$0xff]
    %v7629 = vld [vmem:[%s5 + $0x798] sm:$0xff]
    %v7630 = vld [vmem:[%s5 + $0x7a0] sm:$0xff]
    %v7631 = vld [vmem:[%s5 + $0x7a8] sm:$0xff]
    %v7632 = vld [vmem:[%s5 + $0x7b0] sm:$0xff]
    %v7633 = vld [vmem:[%s5 + $0x7b8] sm:$0xff]
    %v7634 = vld [vmem:[%s5 + $0x7c0] sm:$0xff]
    %v7635 = vld [vmem:[%s5 + $0x7c8] sm:$0xff]
    %v7636 = vld [vmem:[%s5 + $0x7d0] sm:$0xff]
    %v7637 = vld [vmem:[%s5 + $0x7d8] sm:$0xff]
    %v7638 = vld [vmem:[%s5 + $0x7e0] sm:$0xff]
    %v7639 = vld [vmem:[%s5 + $0x7e8] sm:$0xff]
    %v7640 = vld [vmem:[%s5 + $0x7f0] sm:$0xff]
    %v7641 = vld [vmem:[%s5 + $0x7f8] sm:$0xff]
    %v7642 = vld [vmem:[%s6] sm:$0xf]
    %v7644 = vlaneseq
    %v7645 = vshrl.u32 %v7644, 7
    %v7646 = vsub.s32 0, %v7645
    %v7647 = vrot.slane %v7642, %v7646
    %v7648 = vlaneseq
    %v7649 = vshrl.u32 %v7648, 7
    %v7650 = vsub.s32 1, %v7649
    %v7651 = vrot.slane %v7642, %v7650
    %v7652 = vlaneseq
    %v7653 = vshrl.u32 %v7652, 7
    %v7654 = vsub.s32 2, %v7653
    %v7655 = vrot.slane %v7642, %v7654
    %v7656 = vlaneseq
    %v7657 = vshrl.u32 %v7656, 7
    %v7658 = vsub.s32 3, %v7657
    %v7659 = vrot.slane %v7642, %v7658
    %v7665 = vcombine.high %v7385, %v7385
    %v7667 = vunpack.c.l.s4 1966171168
    %v7668 = vunpack.c.0.s8 %v7667
    %v7669 = vlaneseq
    %v7670 = vshrl.u32 %v7669, 7
    %v7671 = vsub.s32 %v7668, %v7670
    %v7672 = vrot.slane %v7385, %v7671
    %v7674 = vunpack.c.l.s4 1966171168
    %v7675 = vunpack.c.0.s8 %v7674
    %v7676 = vlaneseq
    %v7677 = vshrl.u32 %v7676, 7
    %v7678 = vsub.s32 %v7675, %v7677
    %v7679 = vrot.slane %v7665, %v7678
    %v7680 = vcombine.high %v7672, %v7672
    %v7681 = vcombine.high %v7679, %v7679
    %v7683 = vunpack.c.l.s4 1966171168
    %v7684 = vunpack.c.0.s8 %v7683
    %v7685 = vlaneseq
    %v7686 = vshrl.u32 %v7685, 7
    %v7687 = vsub.s32 %v7684, %v7686
    %v7688 = vrot.slane %v7672, %v7687
    %v7690 = vunpack.c.l.s4 1966171168
    %v7691 = vunpack.c.0.s8 %v7690
    %v7692 = vlaneseq
    %v7693 = vshrl.u32 %v7692, 7
    %v7694 = vsub.s32 %v7691, %v7693
    %v7695 = vrot.slane %v7679, %v7694
    %v7697 = vunpack.c.l.s4 1966171168
    %v7698 = vunpack.c.0.s8 %v7697
    %v7699 = vlaneseq
    %v7700 = vshrl.u32 %v7699, 7
    %v7701 = vsub.s32 %v7698, %v7700
    %v7702 = vrot.slane %v7680, %v7701
    %v7704 = vunpack.c.l.s4 1966171168
    %v7705 = vunpack.c.0.s8 %v7704
    %v7706 = vlaneseq
    %v7707 = vshrl.u32 %v7706, 7
    %v7708 = vsub.s32 %v7705, %v7707
    %v7709 = vrot.slane %v7681, %v7708
    %v7710 = vcombine.high %v7688, %v7688
    %v7711 = vcombine.high %v7695, %v7695
    %v7712 = vcombine.high %v7702, %v7702
    %v7713 = vcombine.high %v7709, %v7709
    %v7978 = vunpack.c.l.b16 %v7386
    %v7979 = vunpack.c.h.b16 %v7386
    %v7980 = vunpack.c.l.b16 %v7387
    %v7981 = vunpack.c.h.b16 %v7387
    %v7982 = vunpack.c.l.b16 %v7388
    %v7983 = vunpack.c.h.b16 %v7388
    %v7984 = vunpack.c.l.b16 %v7389
    %v7985 = vunpack.c.h.b16 %v7389
    %v7986 = vunpack.c.l.b16 %v7390
    %v7987 = vunpack.c.h.b16 %v7390
    %v7988 = vunpack.c.l.b16 %v7391
    %v7989 = vunpack.c.h.b16 %v7391
    %v7990 = vunpack.c.l.b16 %v7392
    %v7991 = vunpack.c.h.b16 %v7392
    %v7992 = vunpack.c.l.b16 %v7393
    %v7993 = vunpack.c.h.b16 %v7393
    %v7994 = vunpack.c.l.b16 %v7394
    %v7995 = vunpack.c.h.b16 %v7394
    %v7996 = vunpack.c.l.b16 %v7395
    %v7997 = vunpack.c.h.b16 %v7395
    %v7998 = vunpack.c.l.b16 %v7396
    %v7999 = vunpack.c.h.b16 %v7396
    %v8000 = vunpack.c.l.b16 %v7397
    %v8001 = vunpack.c.h.b16 %v7397
    %v8002 = vunpack.c.l.b16 %v7398
    %v8003 = vunpack.c.h.b16 %v7398
    %v8004 = vunpack.c.l.b16 %v7399
    %v8005 = vunpack.c.h.b16 %v7399
    %v8006 = vunpack.c.l.b16 %v7400
    %v8007 = vunpack.c.h.b16 %v7400
    %v8008 = vunpack.c.l.b16 %v7401
    %v8009 = vunpack.c.h.b16 %v7401
    %v8010 = vunpack.c.l.b16 %v7402
    %v8011 = vunpack.c.h.b16 %v7402
    %v8012 = vunpack.c.l.b16 %v7403
    %v8013 = vunpack.c.h.b16 %v7403
    %v8014 = vunpack.c.l.b16 %v7404
    %v8015 = vunpack.c.h.b16 %v7404
    %v8016 = vunpack.c.l.b16 %v7405
    %v8017 = vunpack.c.h.b16 %v7405
    %v8018 = vunpack.c.l.b16 %v7406
    %v8019 = vunpack.c.h.b16 %v7406
    %v8020 = vunpack.c.l.b16 %v7407
    %v8021 = vunpack.c.h.b16 %v7407
    %v8022 = vunpack.c.l.b16 %v7408
    %v8023 = vunpack.c.h.b16 %v7408
    %v8024 = vunpack.c.l.b16 %v7409
    %v8025 = vunpack.c.h.b16 %v7409
    %v8026 = vunpack.c.l.b16 %v7410
    %v8027 = vunpack.c.h.b16 %v7410
    %v8028 = vunpack.c.l.b16 %v7411
    %v8029 = vunpack.c.h.b16 %v7411
    %v8030 = vunpack.c.l.b16 %v7412
    %v8031 = vunpack.c.h.b16 %v7412
    %v8032 = vunpack.c.l.b16 %v7413
    %v8033 = vunpack.c.h.b16 %v7413
    %v8034 = vunpack.c.l.b16 %v7414
    %v8035 = vunpack.c.h.b16 %v7414
    %v8036 = vunpack.c.l.b16 %v7415
    %v8037 = vunpack.c.h.b16 %v7415
    %v8038 = vunpack.c.l.b16 %v7416
    %v8039 = vunpack.c.h.b16 %v7416
    %v8040 = vunpack.c.l.b16 %v7417
    %v8041 = vunpack.c.h.b16 %v7417
    %v8042 = vunpack.c.l.b16 %v7418
    %v8043 = vunpack.c.h.b16 %v7418
    %v8044 = vunpack.c.l.b16 %v7419
    %v8045 = vunpack.c.h.b16 %v7419
    %v8046 = vunpack.c.l.b16 %v7420
    %v8047 = vunpack.c.h.b16 %v7420
    %v8048 = vunpack.c.l.b16 %v7421
    %v8049 = vunpack.c.h.b16 %v7421
    %v8050 = vunpack.c.l.b16 %v7422
    %v8051 = vunpack.c.h.b16 %v7422
    %v8052 = vunpack.c.l.b16 %v7423
    %v8053 = vunpack.c.h.b16 %v7423
    %v8054 = vunpack.c.l.b16 %v7424
    %v8055 = vunpack.c.h.b16 %v7424
    %v8056 = vunpack.c.l.b16 %v7425
    %v8057 = vunpack.c.h.b16 %v7425
    %v8058 = vunpack.c.l.b16 %v7426
    %v8059 = vunpack.c.h.b16 %v7426
    %v8060 = vunpack.c.l.b16 %v7427
    %v8061 = vunpack.c.h.b16 %v7427
    %v8062 = vunpack.c.l.b16 %v7428
    %v8063 = vunpack.c.h.b16 %v7428
    %v8064 = vunpack.c.l.b16 %v7429
    %v8065 = vunpack.c.h.b16 %v7429
    %v8066 = vunpack.c.l.b16 %v7430
    %v8067 = vunpack.c.h.b16 %v7430
    %v8068 = vunpack.c.l.b16 %v7431
    %v8069 = vunpack.c.h.b16 %v7431
    %v8070 = vunpack.c.l.b16 %v7432
    %v8071 = vunpack.c.h.b16 %v7432
    %v8072 = vunpack.c.l.b16 %v7433
    %v8073 = vunpack.c.h.b16 %v7433
    %v8074 = vunpack.c.l.b16 %v7434
    %v8075 = vunpack.c.h.b16 %v7434
    %v8076 = vunpack.c.l.b16 %v7435
    %v8077 = vunpack.c.h.b16 %v7435
    %v8078 = vunpack.c.l.b16 %v7436
    %v8079 = vunpack.c.h.b16 %v7436
    %v8080 = vunpack.c.l.b16 %v7437
    %v8081 = vunpack.c.h.b16 %v7437
    %v8082 = vunpack.c.l.b16 %v7438
    %v8083 = vunpack.c.h.b16 %v7438
    %v8084 = vunpack.c.l.b16 %v7439
    %v8085 = vunpack.c.h.b16 %v7439
    %v8086 = vunpack.c.l.b16 %v7440
    %v8087 = vunpack.c.h.b16 %v7440
    %v8088 = vunpack.c.l.b16 %v7441
    %v8089 = vunpack.c.h.b16 %v7441
    %v8090 = vunpack.c.l.b16 %v7442
    %v8091 = vunpack.c.h.b16 %v7442
    %v8092 = vunpack.c.l.b16 %v7443
    %v8093 = vunpack.c.h.b16 %v7443
    %v8094 = vunpack.c.l.b16 %v7444
    %v8095 = vunpack.c.h.b16 %v7444
    %v8096 = vunpack.c.l.b16 %v7445
    %v8097 = vunpack.c.h.b16 %v7445
    %v8098 = vunpack.c.l.b16 %v7446
    %v8099 = vunpack.c.h.b16 %v7446
    %v8100 = vunpack.c.l.b16 %v7447
    %v8101 = vunpack.c.h.b16 %v7447
    %v8102 = vunpack.c.l.b16 %v7448
    %v8103 = vunpack.c.h.b16 %v7448
    %v8104 = vunpack.c.l.b16 %v7449
    %v8105 = vunpack.c.h.b16 %v7449
    %v8106 = vunpack.c.l.b16 %v7450
    %v8107 = vunpack.c.h.b16 %v7450
    %v8108 = vunpack.c.l.b16 %v7451
    %v8109 = vunpack.c.h.b16 %v7451
    %v8110 = vunpack.c.l.b16 %v7452
    %v8111 = vunpack.c.h.b16 %v7452
    %v8112 = vunpack.c.l.b16 %v7453
    %v8113 = vunpack.c.h.b16 %v7453
    %v8114 = vunpack.c.l.b16 %v7454
    %v8115 = vunpack.c.h.b16 %v7454
    %v8116 = vunpack.c.l.b16 %v7455
    %v8117 = vunpack.c.h.b16 %v7455
    %v8118 = vunpack.c.l.b16 %v7456
    %v8119 = vunpack.c.h.b16 %v7456
    %v8120 = vunpack.c.l.b16 %v7457
    %v8121 = vunpack.c.h.b16 %v7457
    %v8122 = vunpack.c.l.b16 %v7458
    %v8123 = vunpack.c.h.b16 %v7458
    %v8124 = vunpack.c.l.b16 %v7459
    %v8125 = vunpack.c.h.b16 %v7459
    %v8126 = vunpack.c.l.b16 %v7460
    %v8127 = vunpack.c.h.b16 %v7460
    %v8128 = vunpack.c.l.b16 %v7461
    %v8129 = vunpack.c.h.b16 %v7461
    %v8130 = vunpack.c.l.b16 %v7462
    %v8131 = vunpack.c.h.b16 %v7462
    %v8132 = vunpack.c.l.b16 %v7463
    %v8133 = vunpack.c.h.b16 %v7463
    %v8134 = vunpack.c.l.b16 %v7464
    %v8135 = vunpack.c.h.b16 %v7464
    %v8136 = vunpack.c.l.b16 %v7465
    %v8137 = vunpack.c.h.b16 %v7465
    %v8138 = vunpack.c.l.b16 %v7466
    %v8139 = vunpack.c.h.b16 %v7466
    %v8140 = vunpack.c.l.b16 %v7467
    %v8141 = vunpack.c.h.b16 %v7467
    %v8142 = vunpack.c.l.b16 %v7468
    %v8143 = vunpack.c.h.b16 %v7468
    %v8144 = vunpack.c.l.b16 %v7469
    %v8145 = vunpack.c.h.b16 %v7469
    %v8146 = vunpack.c.l.b16 %v7470
    %v8147 = vunpack.c.h.b16 %v7470
    %v8148 = vunpack.c.l.b16 %v7471
    %v8149 = vunpack.c.h.b16 %v7471
    %v8150 = vunpack.c.l.b16 %v7472
    %v8151 = vunpack.c.h.b16 %v7472
    %v8152 = vunpack.c.l.b16 %v7473
    %v8153 = vunpack.c.h.b16 %v7473
    %v8154 = vunpack.c.l.b16 %v7474
    %v8155 = vunpack.c.h.b16 %v7474
    %v8156 = vunpack.c.l.b16 %v7475
    %v8157 = vunpack.c.h.b16 %v7475
    %v8158 = vunpack.c.l.b16 %v7476
    %v8159 = vunpack.c.h.b16 %v7476
    %v8160 = vunpack.c.l.b16 %v7477
    %v8161 = vunpack.c.h.b16 %v7477
    %v8162 = vunpack.c.l.b16 %v7478
    %v8163 = vunpack.c.h.b16 %v7478
    %v8164 = vunpack.c.l.b16 %v7479
    %v8165 = vunpack.c.h.b16 %v7479
    %v8166 = vunpack.c.l.b16 %v7480
    %v8167 = vunpack.c.h.b16 %v7480
    %v8168 = vunpack.c.l.b16 %v7481
    %v8169 = vunpack.c.h.b16 %v7481
    %v8170 = vunpack.c.l.b16 %v7482
    %v8171 = vunpack.c.h.b16 %v7482
    %v8172 = vunpack.c.l.b16 %v7483
    %v8173 = vunpack.c.h.b16 %v7483
    %v8174 = vunpack.c.l.b16 %v7484
    %v8175 = vunpack.c.h.b16 %v7484
    %v8176 = vunpack.c.l.b16 %v7485
    %v8177 = vunpack.c.h.b16 %v7485
    %v8178 = vunpack.c.l.b16 %v7486
    %v8179 = vunpack.c.h.b16 %v7486
    %v8180 = vunpack.c.l.b16 %v7487
    %v8181 = vunpack.c.h.b16 %v7487
    %v8182 = vunpack.c.l.b16 %v7488
    %v8183 = vunpack.c.h.b16 %v7488
    %v8184 = vunpack.c.l.b16 %v7489
    %v8185 = vunpack.c.h.b16 %v7489
    %v8186 = vunpack.c.l.b16 %v7490
    %v8187 = vunpack.c.h.b16 %v7490
    %v8188 = vunpack.c.l.b16 %v7491
    %v8189 = vunpack.c.h.b16 %v7491
    %v8190 = vunpack.c.l.b16 %v7492
    %v8191 = vunpack.c.h.b16 %v7492
    %v8192 = vunpack.c.l.b16 %v7493
    %v8193 = vunpack.c.h.b16 %v7493
    %v8194 = vunpack.c.l.b16 %v7494
    %v8195 = vunpack.c.h.b16 %v7494
    %v8196 = vunpack.c.l.b16 %v7495
    %v8197 = vunpack.c.h.b16 %v7495
    %v8198 = vunpack.c.l.b16 %v7496
    %v8199 = vunpack.c.h.b16 %v7496
    %v8200 = vunpack.c.l.b16 %v7497
    %v8201 = vunpack.c.h.b16 %v7497
    %v8202 = vunpack.c.l.b16 %v7498
    %v8203 = vunpack.c.h.b16 %v7498
    %v8204 = vunpack.c.l.b16 %v7499
    %v8205 = vunpack.c.h.b16 %v7499
    %v8206 = vunpack.c.l.b16 %v7500
    %v8207 = vunpack.c.h.b16 %v7500
    %v8208 = vunpack.c.l.b16 %v7501
    %v8209 = vunpack.c.h.b16 %v7501
    %v8210 = vunpack.c.l.b16 %v7502
    %v8211 = vunpack.c.h.b16 %v7502
    %v8212 = vunpack.c.l.b16 %v7503
    %v8213 = vunpack.c.h.b16 %v7503
    %v8214 = vunpack.c.l.b16 %v7504
    %v8215 = vunpack.c.h.b16 %v7504
    %v8216 = vunpack.c.l.b16 %v7505
    %v8217 = vunpack.c.h.b16 %v7505
    %v8218 = vunpack.c.l.b16 %v7506
    %v8219 = vunpack.c.h.b16 %v7506
    %v8220 = vunpack.c.l.b16 %v7507
    %v8221 = vunpack.c.h.b16 %v7507
    %v8222 = vunpack.c.l.b16 %v7508
    %v8223 = vunpack.c.h.b16 %v7508
    %v8224 = vunpack.c.l.b16 %v7509
    %v8225 = vunpack.c.h.b16 %v7509
    %v8226 = vunpack.c.l.b16 %v7510
    %v8227 = vunpack.c.h.b16 %v7510
    %v8228 = vunpack.c.l.b16 %v7511
    %v8229 = vunpack.c.h.b16 %v7511
    %v8230 = vunpack.c.l.b16 %v7512
    %v8231 = vunpack.c.h.b16 %v7512
    %v8232 = vunpack.c.l.b16 %v7513
    %v8233 = vunpack.c.h.b16 %v7513
    %v8234 = vunpack.c.l.b16 %v7514
    %v8235 = vunpack.c.h.b16 %v7514
    %v8236 = vunpack.c.l.b16 %v7515
    %v8237 = vunpack.c.h.b16 %v7515
    %v8238 = vunpack.c.l.b16 %v7516
    %v8239 = vunpack.c.h.b16 %v7516
    %v8240 = vunpack.c.l.b16 %v7517
    %v8241 = vunpack.c.h.b16 %v7517
    %v8242 = vunpack.c.l.b16 %v7518
    %v8243 = vunpack.c.h.b16 %v7518
    %v8244 = vunpack.c.l.b16 %v7519
    %v8245 = vunpack.c.h.b16 %v7519
    %v8246 = vunpack.c.l.b16 %v7520
    %v8247 = vunpack.c.h.b16 %v7520
    %v8248 = vunpack.c.l.b16 %v7521
    %v8249 = vunpack.c.h.b16 %v7521
    %v8250 = vunpack.c.l.b16 %v7522
    %v8251 = vunpack.c.h.b16 %v7522
    %v8252 = vunpack.c.l.b16 %v7523
    %v8253 = vunpack.c.h.b16 %v7523
    %v8254 = vunpack.c.l.b16 %v7524
    %v8255 = vunpack.c.h.b16 %v7524
    %v8256 = vunpack.c.l.b16 %v7525
    %v8257 = vunpack.c.h.b16 %v7525
    %v8258 = vunpack.c.l.b16 %v7526
    %v8259 = vunpack.c.h.b16 %v7526
    %v8260 = vunpack.c.l.b16 %v7527
    %v8261 = vunpack.c.h.b16 %v7527
    %v8262 = vunpack.c.l.b16 %v7528
    %v8263 = vunpack.c.h.b16 %v7528
    %v8264 = vunpack.c.l.b16 %v7529
    %v8265 = vunpack.c.h.b16 %v7529
    %v8266 = vunpack.c.l.b16 %v7530
    %v8267 = vunpack.c.h.b16 %v7530
    %v8268 = vunpack.c.l.b16 %v7531
    %v8269 = vunpack.c.h.b16 %v7531
    %v8270 = vunpack.c.l.b16 %v7532
    %v8271 = vunpack.c.h.b16 %v7532
    %v8272 = vunpack.c.l.b16 %v7533
    %v8273 = vunpack.c.h.b16 %v7533
    %v8274 = vunpack.c.l.b16 %v7534
    %v8275 = vunpack.c.h.b16 %v7534
    %v8276 = vunpack.c.l.b16 %v7535
    %v8277 = vunpack.c.h.b16 %v7535
    %v8278 = vunpack.c.l.b16 %v7536
    %v8279 = vunpack.c.h.b16 %v7536
    %v8280 = vunpack.c.l.b16 %v7537
    %v8281 = vunpack.c.h.b16 %v7537
    %v8282 = vunpack.c.l.b16 %v7538
    %v8283 = vunpack.c.h.b16 %v7538
    %v8284 = vunpack.c.l.b16 %v7539
    %v8285 = vunpack.c.h.b16 %v7539
    %v8286 = vunpack.c.l.b16 %v7540
    %v8287 = vunpack.c.h.b16 %v7540
    %v8288 = vunpack.c.l.b16 %v7541
    %v8289 = vunpack.c.h.b16 %v7541
    %v8290 = vunpack.c.l.b16 %v7542
    %v8291 = vunpack.c.h.b16 %v7542
    %v8292 = vunpack.c.l.b16 %v7543
    %v8293 = vunpack.c.h.b16 %v7543
    %v8294 = vunpack.c.l.b16 %v7544
    %v8295 = vunpack.c.h.b16 %v7544
    %v8296 = vunpack.c.l.b16 %v7545
    %v8297 = vunpack.c.h.b16 %v7545
    %v8298 = vunpack.c.l.b16 %v7546
    %v8299 = vunpack.c.h.b16 %v7546
    %v8300 = vunpack.c.l.b16 %v7547
    %v8301 = vunpack.c.h.b16 %v7547
    %v8302 = vunpack.c.l.b16 %v7548
    %v8303 = vunpack.c.h.b16 %v7548
    %v8304 = vunpack.c.l.b16 %v7549
    %v8305 = vunpack.c.h.b16 %v7549
    %v8306 = vunpack.c.l.b16 %v7550
    %v8307 = vunpack.c.h.b16 %v7550
    %v8308 = vunpack.c.l.b16 %v7551
    %v8309 = vunpack.c.h.b16 %v7551
    %v8310 = vunpack.c.l.b16 %v7552
    %v8311 = vunpack.c.h.b16 %v7552
    %v8312 = vunpack.c.l.b16 %v7553
    %v8313 = vunpack.c.h.b16 %v7553
    %v8314 = vunpack.c.l.b16 %v7554
    %v8315 = vunpack.c.h.b16 %v7554
    %v8316 = vunpack.c.l.b16 %v7555
    %v8317 = vunpack.c.h.b16 %v7555
    %v8318 = vunpack.c.l.b16 %v7556
    %v8319 = vunpack.c.h.b16 %v7556
    %v8320 = vunpack.c.l.b16 %v7557
    %v8321 = vunpack.c.h.b16 %v7557
    %v8322 = vunpack.c.l.b16 %v7558
    %v8323 = vunpack.c.h.b16 %v7558
    %v8324 = vunpack.c.l.b16 %v7559
    %v8325 = vunpack.c.h.b16 %v7559
    %v8326 = vunpack.c.l.b16 %v7560
    %v8327 = vunpack.c.h.b16 %v7560
    %v8328 = vunpack.c.l.b16 %v7561
    %v8329 = vunpack.c.h.b16 %v7561
    %v8330 = vunpack.c.l.b16 %v7562
    %v8331 = vunpack.c.h.b16 %v7562
    %v8332 = vunpack.c.l.b16 %v7563
    %v8333 = vunpack.c.h.b16 %v7563
    %v8334 = vunpack.c.l.b16 %v7564
    %v8335 = vunpack.c.h.b16 %v7564
    %v8336 = vunpack.c.l.b16 %v7565
    %v8337 = vunpack.c.h.b16 %v7565
    %v8338 = vunpack.c.l.b16 %v7566
    %v8339 = vunpack.c.h.b16 %v7566
    %v8340 = vunpack.c.l.b16 %v7567
    %v8341 = vunpack.c.h.b16 %v7567
    %v8342 = vunpack.c.l.b16 %v7568
    %v8343 = vunpack.c.h.b16 %v7568
    %v8344 = vunpack.c.l.b16 %v7569
    %v8345 = vunpack.c.h.b16 %v7569
    %v8346 = vunpack.c.l.b16 %v7570
    %v8347 = vunpack.c.h.b16 %v7570
    %v8348 = vunpack.c.l.b16 %v7571
    %v8349 = vunpack.c.h.b16 %v7571
    %v8350 = vunpack.c.l.b16 %v7572
    %v8351 = vunpack.c.h.b16 %v7572
    %v8352 = vunpack.c.l.b16 %v7573
    %v8353 = vunpack.c.h.b16 %v7573
    %v8354 = vunpack.c.l.b16 %v7574
    %v8355 = vunpack.c.h.b16 %v7574
    %v8356 = vunpack.c.l.b16 %v7575
    %v8357 = vunpack.c.h.b16 %v7575
    %v8358 = vunpack.c.l.b16 %v7576
    %v8359 = vunpack.c.h.b16 %v7576
    %v8360 = vunpack.c.l.b16 %v7577
    %v8361 = vunpack.c.h.b16 %v7577
    %v8362 = vunpack.c.l.b16 %v7578
    %v8363 = vunpack.c.h.b16 %v7578
    %v8364 = vunpack.c.l.b16 %v7579
    %v8365 = vunpack.c.h.b16 %v7579
    %v8366 = vunpack.c.l.b16 %v7580
    %v8367 = vunpack.c.h.b16 %v7580
    %v8368 = vunpack.c.l.b16 %v7581
    %v8369 = vunpack.c.h.b16 %v7581
    %v8370 = vunpack.c.l.b16 %v7582
    %v8371 = vunpack.c.h.b16 %v7582
    %v8372 = vunpack.c.l.b16 %v7583
    %v8373 = vunpack.c.h.b16 %v7583
    %v8374 = vunpack.c.l.b16 %v7584
    %v8375 = vunpack.c.h.b16 %v7584
    %v8376 = vunpack.c.l.b16 %v7585
    %v8377 = vunpack.c.h.b16 %v7585
    %v8378 = vunpack.c.l.b16 %v7586
    %v8379 = vunpack.c.h.b16 %v7586
    %v8380 = vunpack.c.l.b16 %v7587
    %v8381 = vunpack.c.h.b16 %v7587
    %v8382 = vunpack.c.l.b16 %v7588
    %v8383 = vunpack.c.h.b16 %v7588
    %v8384 = vunpack.c.l.b16 %v7589
    %v8385 = vunpack.c.h.b16 %v7589
    %v8386 = vunpack.c.l.b16 %v7590
    %v8387 = vunpack.c.h.b16 %v7590
    %v8388 = vunpack.c.l.b16 %v7591
    %v8389 = vunpack.c.h.b16 %v7591
    %v8390 = vunpack.c.l.b16 %v7592
    %v8391 = vunpack.c.h.b16 %v7592
    %v8392 = vunpack.c.l.b16 %v7593
    %v8393 = vunpack.c.h.b16 %v7593
    %v8394 = vunpack.c.l.b16 %v7594
    %v8395 = vunpack.c.h.b16 %v7594
    %v8396 = vunpack.c.l.b16 %v7595
    %v8397 = vunpack.c.h.b16 %v7595
    %v8398 = vunpack.c.l.b16 %v7596
    %v8399 = vunpack.c.h.b16 %v7596
    %v8400 = vunpack.c.l.b16 %v7597
    %v8401 = vunpack.c.h.b16 %v7597
    %v8402 = vunpack.c.l.b16 %v7598
    %v8403 = vunpack.c.h.b16 %v7598
    %v8404 = vunpack.c.l.b16 %v7599
    %v8405 = vunpack.c.h.b16 %v7599
    %v8406 = vunpack.c.l.b16 %v7600
    %v8407 = vunpack.c.h.b16 %v7600
    %v8408 = vunpack.c.l.b16 %v7601
    %v8409 = vunpack.c.h.b16 %v7601
    %v8410 = vunpack.c.l.b16 %v7602
    %v8411 = vunpack.c.h.b16 %v7602
    %v8412 = vunpack.c.l.b16 %v7603
    %v8413 = vunpack.c.h.b16 %v7603
    %v8414 = vunpack.c.l.b16 %v7604
    %v8415 = vunpack.c.h.b16 %v7604
    %v8416 = vunpack.c.l.b16 %v7605
    %v8417 = vunpack.c.h.b16 %v7605
    %v8418 = vunpack.c.l.b16 %v7606
    %v8419 = vunpack.c.h.b16 %v7606
    %v8420 = vunpack.c.l.b16 %v7607
    %v8421 = vunpack.c.h.b16 %v7607
    %v8422 = vunpack.c.l.b16 %v7608
    %v8423 = vunpack.c.h.b16 %v7608
    %v8424 = vunpack.c.l.b16 %v7609
    %v8425 = vunpack.c.h.b16 %v7609
    %v8426 = vunpack.c.l.b16 %v7610
    %v8427 = vunpack.c.h.b16 %v7610
    %v8428 = vunpack.c.l.b16 %v7611
    %v8429 = vunpack.c.h.b16 %v7611
    %v8430 = vunpack.c.l.b16 %v7612
    %v8431 = vunpack.c.h.b16 %v7612
    %v8432 = vunpack.c.l.b16 %v7613
    %v8433 = vunpack.c.h.b16 %v7613
    %v8434 = vunpack.c.l.b16 %v7614
    %v8435 = vunpack.c.h.b16 %v7614
    %v8436 = vunpack.c.l.b16 %v7615
    %v8437 = vunpack.c.h.b16 %v7615
    %v8438 = vunpack.c.l.b16 %v7616
    %v8439 = vunpack.c.h.b16 %v7616
    %v8440 = vunpack.c.l.b16 %v7617
    %v8441 = vunpack.c.h.b16 %v7617
    %v8442 = vunpack.c.l.b16 %v7618
    %v8443 = vunpack.c.h.b16 %v7618
    %v8444 = vunpack.c.l.b16 %v7619
    %v8445 = vunpack.c.h.b16 %v7619
    %v8446 = vunpack.c.l.b16 %v7620
    %v8447 = vunpack.c.h.b16 %v7620
    %v8448 = vunpack.c.l.b16 %v7621
    %v8449 = vunpack.c.h.b16 %v7621
    %v8450 = vunpack.c.l.b16 %v7622
    %v8451 = vunpack.c.h.b16 %v7622
    %v8452 = vunpack.c.l.b16 %v7623
    %v8453 = vunpack.c.h.b16 %v7623
    %v8454 = vunpack.c.l.b16 %v7624
    %v8455 = vunpack.c.h.b16 %v7624
    %v8456 = vunpack.c.l.b16 %v7625
    %v8457 = vunpack.c.h.b16 %v7625
    %v8458 = vunpack.c.l.b16 %v7626
    %v8459 = vunpack.c.h.b16 %v7626
    %v8460 = vunpack.c.l.b16 %v7627
    %v8461 = vunpack.c.h.b16 %v7627
    %v8462 = vunpack.c.l.b16 %v7628
    %v8463 = vunpack.c.h.b16 %v7628
    %v8464 = vunpack.c.l.b16 %v7629
    %v8465 = vunpack.c.h.b16 %v7629
    %v8466 = vunpack.c.l.b16 %v7630
    %v8467 = vunpack.c.h.b16 %v7630
    %v8468 = vunpack.c.l.b16 %v7631
    %v8469 = vunpack.c.h.b16 %v7631
    %v8470 = vunpack.c.l.b16 %v7632
    %v8471 = vunpack.c.h.b16 %v7632
    %v8472 = vunpack.c.l.b16 %v7633
    %v8473 = vunpack.c.h.b16 %v7633
    %v8474 = vunpack.c.l.b16 %v7634
    %v8475 = vunpack.c.h.b16 %v7634
    %v8476 = vunpack.c.l.b16 %v7635
    %v8477 = vunpack.c.h.b16 %v7635
    %v8478 = vunpack.c.l.b16 %v7636
    %v8479 = vunpack.c.h.b16 %v7636
    %v8480 = vunpack.c.l.b16 %v7637
    %v8481 = vunpack.c.h.b16 %v7637
    %v8482 = vunpack.c.l.b16 %v7638
    %v8483 = vunpack.c.h.b16 %v7638
    %v8484 = vunpack.c.l.b16 %v7639
    %v8485 = vunpack.c.h.b16 %v7639
    %v8486 = vunpack.c.l.b16 %v7640
    %v8487 = vunpack.c.h.b16 %v7640
    %v8488 = vunpack.c.l.b16 %v7641
    %v8489 = vunpack.c.h.b16 %v7641
    %v8490 = vpack.c.b16 %v7982, %v7978
    %v8491 = vpack.c.b16 %v7983, %v7979
    %v8492 = vpack.c.b16 %v7984, %v7980
    %v8493 = vpack.c.b16 %v7985, %v7981
    %v8494 = vpack.c.b16 %v7990, %v7986
    %v8495 = vpack.c.b16 %v7991, %v7987
    %v8496 = vpack.c.b16 %v7992, %v7988
    %v8497 = vpack.c.b16 %v7993, %v7989
    %v8498 = vpack.c.b16 %v7998, %v7994
    %v8499 = vpack.c.b16 %v7999, %v7995
    %v8500 = vpack.c.b16 %v8000, %v7996
    %v8501 = vpack.c.b16 %v8001, %v7997
    %v8502 = vpack.c.b16 %v8006, %v8002
    %v8503 = vpack.c.b16 %v8007, %v8003
    %v8504 = vpack.c.b16 %v8008, %v8004
    %v8505 = vpack.c.b16 %v8009, %v8005
    %v8506 = vpack.c.b16 %v8014, %v8010
    %v8507 = vpack.c.b16 %v8015, %v8011
    %v8508 = vpack.c.b16 %v8016, %v8012
    %v8509 = vpack.c.b16 %v8017, %v8013
    %v8510 = vpack.c.b16 %v8022, %v8018
    %v8511 = vpack.c.b16 %v8023, %v8019
    %v8512 = vpack.c.b16 %v8024, %v8020
    %v8513 = vpack.c.b16 %v8025, %v8021
    %v8514 = vpack.c.b16 %v8030, %v8026
    %v8515 = vpack.c.b16 %v8031, %v8027
    %v8516 = vpack.c.b16 %v8032, %v8028
    %v8517 = vpack.c.b16 %v8033, %v8029
    %v8518 = vpack.c.b16 %v8038, %v8034
    %v8519 = vpack.c.b16 %v8039, %v8035
    %v8520 = vpack.c.b16 %v8040, %v8036
    %v8521 = vpack.c.b16 %v8041, %v8037
    %v8522 = vpack.c.b16 %v8046, %v8042
    %v8523 = vpack.c.b16 %v8047, %v8043
    %v8524 = vpack.c.b16 %v8048, %v8044
    %v8525 = vpack.c.b16 %v8049, %v8045
    %v8526 = vpack.c.b16 %v8054, %v8050
    %v8527 = vpack.c.b16 %v8055, %v8051
    %v8528 = vpack.c.b16 %v8056, %v8052
    %v8529 = vpack.c.b16 %v8057, %v8053
    %v8530 = vpack.c.b16 %v8062, %v8058
    %v8531 = vpack.c.b16 %v8063, %v8059
    %v8532 = vpack.c.b16 %v8064, %v8060
    %v8533 = vpack.c.b16 %v8065, %v8061
    %v8534 = vpack.c.b16 %v8070, %v8066
    %v8535 = vpack.c.b16 %v8071, %v8067
    %v8536 = vpack.c.b16 %v8072, %v8068
    %v8537 = vpack.c.b16 %v8073, %v8069
    %v8538 = vpack.c.b16 %v8078, %v8074
    %v8539 = vpack.c.b16 %v8079, %v8075
    %v8540 = vpack.c.b16 %v8080, %v8076
    %v8541 = vpack.c.b16 %v8081, %v8077
    %v8542 = vpack.c.b16 %v8086, %v8082
    %v8543 = vpack.c.b16 %v8087, %v8083
    %v8544 = vpack.c.b16 %v8088, %v8084
    %v8545 = vpack.c.b16 %v8089, %v8085
    %v8546 = vpack.c.b16 %v8094, %v8090
    %v8547 = vpack.c.b16 %v8095, %v8091
    %v8548 = vpack.c.b16 %v8096, %v8092
    %v8549 = vpack.c.b16 %v8097, %v8093
    %v8550 = vpack.c.b16 %v8102, %v8098
    %v8551 = vpack.c.b16 %v8103, %v8099
    %v8552 = vpack.c.b16 %v8104, %v8100
    %v8553 = vpack.c.b16 %v8105, %v8101
    %v8554 = vpack.c.b16 %v8110, %v8106
    %v8555 = vpack.c.b16 %v8111, %v8107
    %v8556 = vpack.c.b16 %v8112, %v8108
    %v8557 = vpack.c.b16 %v8113, %v8109
    %v8558 = vpack.c.b16 %v8118, %v8114
    %v8559 = vpack.c.b16 %v8119, %v8115
    %v8560 = vpack.c.b16 %v8120, %v8116
    %v8561 = vpack.c.b16 %v8121, %v8117
    %v8562 = vpack.c.b16 %v8126, %v8122
    %v8563 = vpack.c.b16 %v8127, %v8123
    %v8564 = vpack.c.b16 %v8128, %v8124
    %v8565 = vpack.c.b16 %v8129, %v8125
    %v8566 = vpack.c.b16 %v8134, %v8130
    %v8567 = vpack.c.b16 %v8135, %v8131
    %v8568 = vpack.c.b16 %v8136, %v8132
    %v8569 = vpack.c.b16 %v8137, %v8133
    %v8570 = vpack.c.b16 %v8142, %v8138
    %v8571 = vpack.c.b16 %v8143, %v8139
    %v8572 = vpack.c.b16 %v8144, %v8140
    %v8573 = vpack.c.b16 %v8145, %v8141
    %v8574 = vpack.c.b16 %v8150, %v8146
    %v8575 = vpack.c.b16 %v8151, %v8147
    %v8576 = vpack.c.b16 %v8152, %v8148
    %v8577 = vpack.c.b16 %v8153, %v8149
    %v8578 = vpack.c.b16 %v8158, %v8154
    %v8579 = vpack.c.b16 %v8159, %v8155
    %v8580 = vpack.c.b16 %v8160, %v8156
    %v8581 = vpack.c.b16 %v8161, %v8157
    %v8582 = vpack.c.b16 %v8166, %v8162
    %v8583 = vpack.c.b16 %v8167, %v8163
    %v8584 = vpack.c.b16 %v8168, %v8164
    %v8585 = vpack.c.b16 %v8169, %v8165
    %v8586 = vpack.c.b16 %v8174, %v8170
    %v8587 = vpack.c.b16 %v8175, %v8171
    %v8588 = vpack.c.b16 %v8176, %v8172
    %v8589 = vpack.c.b16 %v8177, %v8173
    %v8590 = vpack.c.b16 %v8182, %v8178
    %v8591 = vpack.c.b16 %v8183, %v8179
    %v8592 = vpack.c.b16 %v8184, %v8180
    %v8593 = vpack.c.b16 %v8185, %v8181
    %v8594 = vpack.c.b16 %v8190, %v8186
    %v8595 = vpack.c.b16 %v8191, %v8187
    %v8596 = vpack.c.b16 %v8192, %v8188
    %v8597 = vpack.c.b16 %v8193, %v8189
    %v8598 = vpack.c.b16 %v8198, %v8194
    %v8599 = vpack.c.b16 %v8199, %v8195
    %v8600 = vpack.c.b16 %v8200, %v8196
    %v8601 = vpack.c.b16 %v8201, %v8197
    %v8602 = vpack.c.b16 %v8206, %v8202
    %v8603 = vpack.c.b16 %v8207, %v8203
    %v8604 = vpack.c.b16 %v8208, %v8204
    %v8605 = vpack.c.b16 %v8209, %v8205
    %v8606 = vpack.c.b16 %v8214, %v8210
    %v8607 = vpack.c.b16 %v8215, %v8211
    %v8608 = vpack.c.b16 %v8216, %v8212
    %v8609 = vpack.c.b16 %v8217, %v8213
    %v8610 = vpack.c.b16 %v8222, %v8218
    %v8611 = vpack.c.b16 %v8223, %v8219
    %v8612 = vpack.c.b16 %v8224, %v8220
    %v8613 = vpack.c.b16 %v8225, %v8221
    %v8614 = vpack.c.b16 %v8230, %v8226
    %v8615 = vpack.c.b16 %v8231, %v8227
    %v8616 = vpack.c.b16 %v8232, %v8228
    %v8617 = vpack.c.b16 %v8233, %v8229
    %v8618 = vpack.c.b16 %v8238, %v8234
    %v8619 = vpack.c.b16 %v8239, %v8235
    %v8620 = vpack.c.b16 %v8240, %v8236
    %v8621 = vpack.c.b16 %v8241, %v8237
    %v8622 = vpack.c.b16 %v8246, %v8242
    %v8623 = vpack.c.b16 %v8247, %v8243
    %v8624 = vpack.c.b16 %v8248, %v8244
    %v8625 = vpack.c.b16 %v8249, %v8245
    %v8626 = vpack.c.b16 %v8254, %v8250
    %v8627 = vpack.c.b16 %v8255, %v8251
    %v8628 = vpack.c.b16 %v8256, %v8252
    %v8629 = vpack.c.b16 %v8257, %v8253
    %v8630 = vpack.c.b16 %v8262, %v8258
    %v8631 = vpack.c.b16 %v8263, %v8259
    %v8632 = vpack.c.b16 %v8264, %v8260
    %v8633 = vpack.c.b16 %v8265, %v8261
    %v8634 = vpack.c.b16 %v8270, %v8266
    %v8635 = vpack.c.b16 %v8271, %v8267
    %v8636 = vpack.c.b16 %v8272, %v8268
    %v8637 = vpack.c.b16 %v8273, %v8269
    %v8638 = vpack.c.b16 %v8278, %v8274
    %v8639 = vpack.c.b16 %v8279, %v8275
    %v8640 = vpack.c.b16 %v8280, %v8276
    %v8641 = vpack.c.b16 %v8281, %v8277
    %v8642 = vpack.c.b16 %v8286, %v8282
    %v8643 = vpack.c.b16 %v8287, %v8283
    %v8644 = vpack.c.b16 %v8288, %v8284
    %v8645 = vpack.c.b16 %v8289, %v8285
    %v8646 = vpack.c.b16 %v8294, %v8290
    %v8647 = vpack.c.b16 %v8295, %v8291
    %v8648 = vpack.c.b16 %v8296, %v8292
    %v8649 = vpack.c.b16 %v8297, %v8293
    %v8650 = vpack.c.b16 %v8302, %v8298
    %v8651 = vpack.c.b16 %v8303, %v8299
    %v8652 = vpack.c.b16 %v8304, %v8300
    %v8653 = vpack.c.b16 %v8305, %v8301
    %v8654 = vpack.c.b16 %v8310, %v8306
    %v8655 = vpack.c.b16 %v8311, %v8307
    %v8656 = vpack.c.b16 %v8312, %v8308
    %v8657 = vpack.c.b16 %v8313, %v8309
    %v8658 = vpack.c.b16 %v8318, %v8314
    %v8659 = vpack.c.b16 %v8319, %v8315
    %v8660 = vpack.c.b16 %v8320, %v8316
    %v8661 = vpack.c.b16 %v8321, %v8317
    %v8662 = vpack.c.b16 %v8326, %v8322
    %v8663 = vpack.c.b16 %v8327, %v8323
    %v8664 = vpack.c.b16 %v8328, %v8324
    %v8665 = vpack.c.b16 %v8329, %v8325
    %v8666 = vpack.c.b16 %v8334, %v8330
    %v8667 = vpack.c.b16 %v8335, %v8331
    %v8668 = vpack.c.b16 %v8336, %v8332
    %v8669 = vpack.c.b16 %v8337, %v8333
    %v8670 = vpack.c.b16 %v8342, %v8338
    %v8671 = vpack.c.b16 %v8343, %v8339
    %v8672 = vpack.c.b16 %v8344, %v8340
    %v8673 = vpack.c.b16 %v8345, %v8341
    %v8674 = vpack.c.b16 %v8350, %v8346
    %v8675 = vpack.c.b16 %v8351, %v8347
    %v8676 = vpack.c.b16 %v8352, %v8348
    %v8677 = vpack.c.b16 %v8353, %v8349
    %v8678 = vpack.c.b16 %v8358, %v8354
    %v8679 = vpack.c.b16 %v8359, %v8355
    %v8680 = vpack.c.b16 %v8360, %v8356
    %v8681 = vpack.c.b16 %v8361, %v8357
    %v8682 = vpack.c.b16 %v8366, %v8362
    %v8683 = vpack.c.b16 %v8367, %v8363
    %v8684 = vpack.c.b16 %v8368, %v8364
    %v8685 = vpack.c.b16 %v8369, %v8365
    %v8686 = vpack.c.b16 %v8374, %v8370
    %v8687 = vpack.c.b16 %v8375, %v8371
    %v8688 = vpack.c.b16 %v8376, %v8372
    %v8689 = vpack.c.b16 %v8377, %v8373
    %v8690 = vpack.c.b16 %v8382, %v8378
    %v8691 = vpack.c.b16 %v8383, %v8379
    %v8692 = vpack.c.b16 %v8384, %v8380
    %v8693 = vpack.c.b16 %v8385, %v8381
    %v8694 = vpack.c.b16 %v8390, %v8386
    %v8695 = vpack.c.b16 %v8391, %v8387
    %v8696 = vpack.c.b16 %v8392, %v8388
    %v8697 = vpack.c.b16 %v8393, %v8389
    %v8698 = vpack.c.b16 %v8398, %v8394
    %v8699 = vpack.c.b16 %v8399, %v8395
    %v8700 = vpack.c.b16 %v8400, %v8396
    %v8701 = vpack.c.b16 %v8401, %v8397
    %v8702 = vpack.c.b16 %v8406, %v8402
    %v8703 = vpack.c.b16 %v8407, %v8403
    %v8704 = vpack.c.b16 %v8408, %v8404
    %v8705 = vpack.c.b16 %v8409, %v8405
    %v8706 = vpack.c.b16 %v8414, %v8410
    %v8707 = vpack.c.b16 %v8415, %v8411
    %v8708 = vpack.c.b16 %v8416, %v8412
    %v8709 = vpack.c.b16 %v8417, %v8413
    %v8710 = vpack.c.b16 %v8422, %v8418
    %v8711 = vpack.c.b16 %v8423, %v8419
    %v8712 = vpack.c.b16 %v8424, %v8420
    %v8713 = vpack.c.b16 %v8425, %v8421
    %v8714 = vpack.c.b16 %v8430, %v8426
    %v8715 = vpack.c.b16 %v8431, %v8427
    %v8716 = vpack.c.b16 %v8432, %v8428
    %v8717 = vpack.c.b16 %v8433, %v8429
    %v8718 = vpack.c.b16 %v8438, %v8434
    %v8719 = vpack.c.b16 %v8439, %v8435
    %v8720 = vpack.c.b16 %v8440, %v8436
    %v8721 = vpack.c.b16 %v8441, %v8437
    %v8722 = vpack.c.b16 %v8446, %v8442
    %v8723 = vpack.c.b16 %v8447, %v8443
    %v8724 = vpack.c.b16 %v8448, %v8444
    %v8725 = vpack.c.b16 %v8449, %v8445
    %v8726 = vpack.c.b16 %v8454, %v8450
    %v8727 = vpack.c.b16 %v8455, %v8451
    %v8728 = vpack.c.b16 %v8456, %v8452
    %v8729 = vpack.c.b16 %v8457, %v8453
    %v8730 = vpack.c.b16 %v8462, %v8458
    %v8731 = vpack.c.b16 %v8463, %v8459
    %v8732 = vpack.c.b16 %v8464, %v8460
    %v8733 = vpack.c.b16 %v8465, %v8461
    %v8734 = vpack.c.b16 %v8470, %v8466
    %v8735 = vpack.c.b16 %v8471, %v8467
    %v8736 = vpack.c.b16 %v8472, %v8468
    %v8737 = vpack.c.b16 %v8473, %v8469
    %v8738 = vpack.c.b16 %v8478, %v8474
    %v8739 = vpack.c.b16 %v8479, %v8475
    %v8740 = vpack.c.b16 %v8480, %v8476
    %v8741 = vpack.c.b16 %v8481, %v8477
    %v8742 = vpack.c.b16 %v8486, %v8482
    %v8743 = vpack.c.b16 %v8487, %v8483
    %v8744 = vpack.c.b16 %v8488, %v8484
    %v8745 = vpack.c.b16 %v8489, %v8485
    %9002 = vmatprep.subr.bf16.mxu0 %v8519
    %9003 = vmatpush1.bf16.msra.mxu0 %v8518
    %9004 = vmatprep.subr.bf16.mxu0 %v8515
    %9005 = vmatpush1.bf16.msra.mxu0 %v8514
    %9006 = vmatprep.subr.bf16.mxu0 %v8511
    %9007 = vmatpush1.bf16.msra.mxu0 %v8510
    %9008 = vmatprep.subr.bf16.mxu0 %v8507
    %9009 = vmatpush1.bf16.msra.mxu0 %v8506
    %9010 = vmatprep.subr.bf16.mxu0 %v8503
    %9011 = vmatpush1.bf16.msra.mxu0 %v8502
    %9012 = vmatprep.subr.bf16.mxu0 %v8499
    %9013 = vmatpush1.bf16.msra.mxu0 %v8498
    %9014 = vmatprep.subr.bf16.mxu0 %v8495
    %9015 = vmatpush1.bf16.msra.mxu0 %v8494
    %9016 = vmatprep.subr.bf16.mxu0 %v8491
    %9017 = vmatpush1.bf16.msra.mxu0 %v8490
    %9018 = vmatprep.subr.bf16.mxu0 %v8551
    %9019 = vmatpush2.bf16.msra.mxu0 %v8550
    %9020 = vmatprep.subr.bf16.mxu0 %v8547
    %9021 = vmatpush2.bf16.msra.mxu0 %v8546
    %9022 = vmatprep.subr.bf16.mxu0 %v8543
    %9023 = vmatpush2.bf16.msra.mxu0 %v8542
    %9024 = vmatprep.subr.bf16.mxu0 %v8539
    %9025 = vmatpush2.bf16.msra.mxu0 %v8538
    %9026 = vmatprep.subr.bf16.mxu0 %v8535
    %9027 = vmatpush2.bf16.msra.mxu0 %v8534
    %9028 = vmatprep.subr.bf16.mxu0 %v8531
    %9029 = vmatpush2.bf16.msra.mxu0 %v8530
    %9030 = vmatprep.subr.bf16.mxu0 %v8527
    %9031 = vmatpush2.bf16.msra.mxu0 %v8526
    %9032 = vmatprep.subr.bf16.mxu0 %v8523
    %9033 = vmatpush2.bf16.msra.mxu0 %v8522
    %9034 = vmatprep.mubr.bf16.mxu0 %v7702
    %9035 = vmatmul.mubr.bf16.gmra.mxu0 %v7688
    %v9036 = vpop.f32.mrf.mxu0
    %v9037 = vadd.f32 %v7647, %v9036
    %v9038 = vpop.f32.mrf.mxu0
    %v9039 = vadd.f32 %v7651, %v9038
    %v9040 = vpop.f32.mrf.mxu0
    %v9041 = vpop.f32.mrf.mxu0
    %9042 = vdwg.mxu0
    %9043 = vmatprep.subr.bf16.mxu0 %v8583
    %9044 = vmatpush1.bf16.msra.mxu0 %v8582
    %9045 = vmatprep.subr.bf16.mxu0 %v8579
    %9046 = vmatpush1.bf16.msra.mxu0 %v8578
    %9047 = vmatprep.subr.bf16.mxu0 %v8575
    %9048 = vmatpush1.bf16.msra.mxu0 %v8574
    %9049 = vmatprep.subr.bf16.mxu0 %v8571
    %9050 = vmatpush1.bf16.msra.mxu0 %v8570
    %9051 = vmatprep.subr.bf16.mxu0 %v8567
    %9052 = vmatpush1.bf16.msra.mxu0 %v8566
    %9053 = vmatprep.subr.bf16.mxu0 %v8563
    %9054 = vmatpush1.bf16.msra.mxu0 %v8562
    %9055 = vmatprep.subr.bf16.mxu0 %v8559
    %9056 = vmatpush1.bf16.msra.mxu0 %v8558
    %9057 = vmatprep.subr.bf16.mxu0 %v8555
    %9058 = vmatpush1.bf16.msra.mxu0 %v8554
    %9059 = vmatprep.subr.bf16.mxu0 %v8615
    %9060 = vmatpush2.bf16.msra.mxu0 %v8614
    %9061 = vmatprep.subr.bf16.mxu0 %v8611
    %9062 = vmatpush2.bf16.msra.mxu0 %v8610
    %9063 = vmatprep.subr.bf16.mxu0 %v8607
    %9064 = vmatpush2.bf16.msra.mxu0 %v8606
    %9065 = vmatprep.subr.bf16.mxu0 %v8603
    %9066 = vmatpush2.bf16.msra.mxu0 %v8602
    %9067 = vmatprep.subr.bf16.mxu0 %v8599
    %9068 = vmatpush2.bf16.msra.mxu0 %v8598
    %9069 = vmatprep.subr.bf16.mxu0 %v8595
    %9070 = vmatpush2.bf16.msra.mxu0 %v8594
    %9071 = vmatprep.subr.bf16.mxu0 %v8591
    %9072 = vmatpush2.bf16.msra.mxu0 %v8590
    %9073 = vmatprep.subr.bf16.mxu0 %v8587
    %9074 = vmatpush2.bf16.msra.mxu0 %v8586
    %9075 = vmatprep.mubr.bf16.mxu0 %v7712
    %9076 = vmatmul.mubr.bf16.gmra.mxu0 %v7710
    %v9077 = vpop.f32.mrf.mxu0
    %v9078 = vadd.f32 %v9037, %v9077
    %v9079 = vpop.f32.mrf.mxu0
    %v9080 = vadd.f32 %v9039, %v9079
    %v9081 = vpop.f32.mrf.mxu0
    %v9082 = vpop.f32.mrf.mxu0
    %9083 = vdwg.mxu0
    %9084 = vmatprep.subr.bf16.mxu0 %v8647
    %9085 = vmatpush1.bf16.msra.mxu0 %v8646
    %9086 = vmatprep.subr.bf16.mxu0 %v8643
    %9087 = vmatpush1.bf16.msra.mxu0 %v8642
    %9088 = vmatprep.subr.bf16.mxu0 %v8639
    %9089 = vmatpush1.bf16.msra.mxu0 %v8638
    %9090 = vmatprep.subr.bf16.mxu0 %v8635
    %9091 = vmatpush1.bf16.msra.mxu0 %v8634
    %9092 = vmatprep.subr.bf16.mxu0 %v8631
    %9093 = vmatpush1.bf16.msra.mxu0 %v8630
    %9094 = vmatprep.subr.bf16.mxu0 %v8627
    %9095 = vmatpush1.bf16.msra.mxu0 %v8626
    %9096 = vmatprep.subr.bf16.mxu0 %v8623
    %9097 = vmatpush1.bf16.msra.mxu0 %v8622
    %9098 = vmatprep.subr.bf16.mxu0 %v8619
    %9099 = vmatpush1.bf16.msra.mxu0 %v8618
    %9100 = vmatprep.subr.bf16.mxu0 %v8679
    %9101 = vmatpush2.bf16.msra.mxu0 %v8678
    %9102 = vmatprep.subr.bf16.mxu0 %v8675
    %9103 = vmatpush2.bf16.msra.mxu0 %v8674
    %9104 = vmatprep.subr.bf16.mxu0 %v8671
    %9105 = vmatpush2.bf16.msra.mxu0 %v8670
    %9106 = vmatprep.subr.bf16.mxu0 %v8667
    %9107 = vmatpush2.bf16.msra.mxu0 %v8666
    %9108 = vmatprep.subr.bf16.mxu0 %v8663
    %9109 = vmatpush2.bf16.msra.mxu0 %v8662
    %9110 = vmatprep.subr.bf16.mxu0 %v8659
    %9111 = vmatpush2.bf16.msra.mxu0 %v8658
    %9112 = vmatprep.subr.bf16.mxu0 %v8655
    %9113 = vmatpush2.bf16.msra.mxu0 %v8654
    %9114 = vmatprep.subr.bf16.mxu0 %v8651
    %9115 = vmatpush2.bf16.msra.mxu0 %v8650
    %9116 = vmatprep.mubr.bf16.mxu0 %v7709
    %9117 = vmatmul.mubr.bf16.gmra.mxu0 %v7695
    %v9118 = vpop.f32.mrf.mxu0
    %v9119 = vadd.f32 %v9078, %v9118
    %v9120 = vpop.f32.mrf.mxu0
    %v9121 = vadd.f32 %v9080, %v9120
    %v9122 = vpop.f32.mrf.mxu0
    %v9123 = vpop.f32.mrf.mxu0
    %9124 = vdwg.mxu0
    %9125 = vmatprep.subr.bf16.mxu0 %v8711
    %9126 = vmatpush1.bf16.msra.mxu0 %v8710
    %9127 = vmatprep.subr.bf16.mxu0 %v8707
    %9128 = vmatpush1.bf16.msra.mxu0 %v8706
    %9129 = vmatprep.subr.bf16.mxu0 %v8703
    %9130 = vmatpush1.bf16.msra.mxu0 %v8702
    %9131 = vmatprep.subr.bf16.mxu0 %v8699
    %9132 = vmatpush1.bf16.msra.mxu0 %v8698
    %9133 = vmatprep.subr.bf16.mxu0 %v8695
    %9134 = vmatpush1.bf16.msra.mxu0 %v8694
    %9135 = vmatprep.subr.bf16.mxu0 %v8691
    %9136 = vmatpush1.bf16.msra.mxu0 %v8690
    %9137 = vmatprep.subr.bf16.mxu0 %v8687
    %9138 = vmatpush1.bf16.msra.mxu0 %v8686
    %9139 = vmatprep.subr.bf16.mxu0 %v8683
    %9140 = vmatpush1.bf16.msra.mxu0 %v8682
    %9141 = vmatprep.subr.bf16.mxu0 %v8743
    %9142 = vmatpush2.bf16.msra.mxu0 %v8742
    %9143 = vmatprep.subr.bf16.mxu0 %v8739
    %9144 = vmatpush2.bf16.msra.mxu0 %v8738
    %9145 = vmatprep.subr.bf16.mxu0 %v8735
    %9146 = vmatpush2.bf16.msra.mxu0 %v8734
    %9147 = vmatprep.subr.bf16.mxu0 %v8731
    %9148 = vmatpush2.bf16.msra.mxu0 %v8730
    %9149 = vmatprep.subr.bf16.mxu0 %v8727
    %9150 = vmatpush2.bf16.msra.mxu0 %v8726
    %9151 = vmatprep.subr.bf16.mxu0 %v8723
    %9152 = vmatpush2.bf16.msra.mxu0 %v8722
    %9153 = vmatprep.subr.bf16.mxu0 %v8719
    %9154 = vmatpush2.bf16.msra.mxu0 %v8718
    %9155 = vmatprep.subr.bf16.mxu0 %v8715
    %9156 = vmatpush2.bf16.msra.mxu0 %v8714
    %9157 = vmatprep.mubr.bf16.mxu0 %v7713
    %9158 = vmatmul.mubr.bf16.gmra.mxu0 %v7711
    %v9159 = vpop.f32.mrf.mxu0
    %v9160 = vadd.f32 %v9119, %v9159
    %v9161 = vpop.f32.mrf.mxu0
    %v9162 = vadd.f32 %v9121, %v9161
    %v9163 = vpop.f32.mrf.mxu0
    %v9164 = vpop.f32.mrf.mxu0
    %9165 = vdwg.mxu0
    %9166 = vmatprep.subr.bf16.mxu0 %v8521
    %9167 = vmatpush1.bf16.msra.mxu0 %v8520
    %9168 = vmatprep.subr.bf16.mxu0 %v8517
    %9169 = vmatpush1.bf16.msra.mxu0 %v8516
    %9170 = vmatprep.subr.bf16.mxu0 %v8513
    %9171 = vmatpush1.bf16.msra.mxu0 %v8512
    %9172 = vmatprep.subr.bf16.mxu0 %v8509
    %9173 = vmatpush1.bf16.msra.mxu0 %v8508
    %9174 = vmatprep.subr.bf16.mxu0 %v8505
    %9175 = vmatpush1.bf16.msra.mxu0 %v8504
    %9176 = vmatprep.subr.bf16.mxu0 %v8501
    %9177 = vmatpush1.bf16.msra.mxu0 %v8500
    %9178 = vmatprep.subr.bf16.mxu0 %v8497
    %9179 = vmatpush1.bf16.msra.mxu0 %v8496
    %9180 = vmatprep.subr.bf16.mxu0 %v8493
    %9181 = vmatpush1.bf16.msra.mxu0 %v8492
    %9182 = vmatprep.subr.bf16.mxu0 %v8553
    %9183 = vmatpush2.bf16.msra.mxu0 %v8552
    %9184 = vmatprep.subr.bf16.mxu0 %v8549
    %9185 = vmatpush2.bf16.msra.mxu0 %v8548
    %9186 = vmatprep.subr.bf16.mxu0 %v8545
    %9187 = vmatpush2.bf16.msra.mxu0 %v8544
    %9188 = vmatprep.subr.bf16.mxu0 %v8541
    %9189 = vmatpush2.bf16.msra.mxu0 %v8540
    %9190 = vmatprep.subr.bf16.mxu0 %v8537
    %9191 = vmatpush2.bf16.msra.mxu0 %v8536
    %9192 = vmatprep.subr.bf16.mxu0 %v8533
    %9193 = vmatpush2.bf16.msra.mxu0 %v8532
    %9194 = vmatprep.subr.bf16.mxu0 %v8529
    %9195 = vmatpush2.bf16.msra.mxu0 %v8528
    %9196 = vmatprep.subr.bf16.mxu0 %v8525
    %9197 = vmatpush2.bf16.msra.mxu0 %v8524
    %9198 = vmatprep.mubr.bf16.mxu0 %v7702
    %9199 = vmatmul.mubr.bf16.gmra.mxu0 %v7688
    %v9200 = vpop.f32.mrf.mxu0
    %v9201 = vadd.f32 %v7655, %v9200
    %v9202 = vpop.f32.mrf.mxu0
    %v9203 = vadd.f32 %v7659, %v9202
    %v9204 = vpop.f32.mrf.mxu0
    %v9205 = vpop.f32.mrf.mxu0
    %9206 = vdwg.mxu0
    %9207 = vmatprep.subr.bf16.mxu0 %v8585
    %9208 = vmatpush1.bf16.msra.mxu0 %v8584
    %9209 = vmatprep.subr.bf16.mxu0 %v8581
    %9210 = vmatpush1.bf16.msra.mxu0 %v8580
    %9211 = vmatprep.subr.bf16.mxu0 %v8577
    %9212 = vmatpush1.bf16.msra.mxu0 %v8576
    %9213 = vmatprep.subr.bf16.mxu0 %v8573
    %9214 = vmatpush1.bf16.msra.mxu0 %v8572
    %9215 = vmatprep.subr.bf16.mxu0 %v8569
    %9216 = vmatpush1.bf16.msra.mxu0 %v8568
    %9217 = vmatprep.subr.bf16.mxu0 %v8565
    %9218 = vmatpush1.bf16.msra.mxu0 %v8564
    %9219 = vmatprep.subr.bf16.mxu0 %v8561
    %9220 = vmatpush1.bf16.msra.mxu0 %v8560
    %9221 = vmatprep.subr.bf16.mxu0 %v8557
    %9222 = vmatpush1.bf16.msra.mxu0 %v8556
    %9223 = vmatprep.subr.bf16.mxu0 %v8617
    %9224 = vmatpush2.bf16.msra.mxu0 %v8616
    %9225 = vmatprep.subr.bf16.mxu0 %v8613
    %9226 = vmatpush2.bf16.msra.mxu0 %v8612
    %9227 = vmatprep.subr.bf16.mxu0 %v8609
    %9228 = vmatpush2.bf16.msra.mxu0 %v8608
    %9229 = vmatprep.subr.bf16.mxu0 %v8605
    %9230 = vmatpush2.bf16.msra.mxu0 %v8604
    %9231 = vmatprep.subr.bf16.mxu0 %v8601
    %9232 = vmatpush2.bf16.msra.mxu0 %v8600
    %9233 = vmatprep.subr.bf16.mxu0 %v8597
    %9234 = vmatpush2.bf16.msra.mxu0 %v8596
    %9235 = vmatprep.subr.bf16.mxu0 %v8593
    %9236 = vmatpush2.bf16.msra.mxu0 %v8592
    %9237 = vmatprep.subr.bf16.mxu0 %v8589
    %9238 = vmatpush2.bf16.msra.mxu0 %v8588
    %9239 = vmatprep.mubr.bf16.mxu0 %v7712
    %9240 = vmatmul.mubr.bf16.gmra.mxu0 %v7710
    %v9241 = vpop.f32.mrf.mxu0
    %v9242 = vadd.f32 %v9201, %v9241
    %v9243 = vpop.f32.mrf.mxu0
    %v9244 = vadd.f32 %v9203, %v9243
    %v9245 = vpop.f32.mrf.mxu0
    %v9246 = vpop.f32.mrf.mxu0
    %9247 = vdwg.mxu0
    %9248 = vmatprep.subr.bf16.mxu0 %v8649
    %9249 = vmatpush1.bf16.msra.mxu0 %v8648
    %9250 = vmatprep.subr.bf16.mxu0 %v8645
    %9251 = vmatpush1.bf16.msra.mxu0 %v8644
    %9252 = vmatprep.subr.bf16.mxu0 %v8641
    %9253 = vmatpush1.bf16.msra.mxu0 %v8640
    %9254 = vmatprep.subr.bf16.mxu0 %v8637
    %9255 = vmatpush1.bf16.msra.mxu0 %v8636
    %9256 = vmatprep.subr.bf16.mxu0 %v8633
    %9257 = vmatpush1.bf16.msra.mxu0 %v8632
    %9258 = vmatprep.subr.bf16.mxu0 %v8629
    %9259 = vmatpush1.bf16.msra.mxu0 %v8628
    %9260 = vmatprep.subr.bf16.mxu0 %v8625
    %9261 = vmatpush1.bf16.msra.mxu0 %v8624
    %9262 = vmatprep.subr.bf16.mxu0 %v8621
    %9263 = vmatpush1.bf16.msra.mxu0 %v8620
    %9264 = vmatprep.subr.bf16.mxu0 %v8681
    %9265 = vmatpush2.bf16.msra.mxu0 %v8680
    %9266 = vmatprep.subr.bf16.mxu0 %v8677
    %9267 = vmatpush2.bf16.msra.mxu0 %v8676
    %9268 = vmatprep.subr.bf16.mxu0 %v8673
    %9269 = vmatpush2.bf16.msra.mxu0 %v8672
    %9270 = vmatprep.subr.bf16.mxu0 %v8669
    %9271 = vmatpush2.bf16.msra.mxu0 %v8668
    %9272 = vmatprep.subr.bf16.mxu0 %v8665
    %9273 = vmatpush2.bf16.msra.mxu0 %v8664
    %9274 = vmatprep.subr.bf16.mxu0 %v8661
    %9275 = vmatpush2.bf16.msra.mxu0 %v8660
    %9276 = vmatprep.subr.bf16.mxu0 %v8657
    %9277 = vmatpush2.bf16.msra.mxu0 %v8656
    %9278 = vmatprep.subr.bf16.mxu0 %v8653
    %9279 = vmatpush2.bf16.msra.mxu0 %v8652
    %9280 = vmatprep.mubr.bf16.mxu0 %v7709
    %9281 = vmatmul.mubr.bf16.gmra.mxu0 %v7695
    %v9282 = vpop.f32.mrf.mxu0
    %v9283 = vadd.f32 %v9242, %v9282
    %v9284 = vpop.f32.mrf.mxu0
    %v9285 = vadd.f32 %v9244, %v9284
    %v9286 = vpop.f32.mrf.mxu0
    %v9287 = vpop.f32.mrf.mxu0
    %9288 = vdwg.mxu0
    %9289 = vmatprep.subr.bf16.mxu0 %v8713
    %9290 = vmatpush1.bf16.msra.mxu0 %v8712
    %9291 = vmatprep.subr.bf16.mxu0 %v8709
    %9292 = vmatpush1.bf16.msra.mxu0 %v8708
    %9293 = vmatprep.subr.bf16.mxu0 %v8705
    %9294 = vmatpush1.bf16.msra.mxu0 %v8704
    %9295 = vmatprep.subr.bf16.mxu0 %v8701
    %9296 = vmatpush1.bf16.msra.mxu0 %v8700
    %9297 = vmatprep.subr.bf16.mxu0 %v8697
    %9298 = vmatpush1.bf16.msra.mxu0 %v8696
    %9299 = vmatprep.subr.bf16.mxu0 %v8693
    %9300 = vmatpush1.bf16.msra.mxu0 %v8692
    %9301 = vmatprep.subr.bf16.mxu0 %v8689
    %9302 = vmatpush1.bf16.msra.mxu0 %v8688
    %9303 = vmatprep.subr.bf16.mxu0 %v8685
    %9304 = vmatpush1.bf16.msra.mxu0 %v8684
    %9305 = vmatprep.subr.bf16.mxu0 %v8745
    %9306 = vmatpush2.bf16.msra.mxu0 %v8744
    %9307 = vmatprep.subr.bf16.mxu0 %v8741
    %9308 = vmatpush2.bf16.msra.mxu0 %v8740
    %9309 = vmatprep.subr.bf16.mxu0 %v8737
    %9310 = vmatpush2.bf16.msra.mxu0 %v8736
    %9311 = vmatprep.subr.bf16.mxu0 %v8733
    %9312 = vmatpush2.bf16.msra.mxu0 %v8732
    %9313 = vmatprep.subr.bf16.mxu0 %v8729
    %9314 = vmatpush2.bf16.msra.mxu0 %v8728
    %9315 = vmatprep.subr.bf16.mxu0 %v8725
    %9316 = vmatpush2.bf16.msra.mxu0 %v8724
    %9317 = vmatprep.subr.bf16.mxu0 %v8721
    %9318 = vmatpush2.bf16.msra.mxu0 %v8720
    %9319 = vmatprep.subr.bf16.mxu0 %v8717
    %9320 = vmatpush2.bf16.msra.mxu0 %v8716
    %9321 = vmatprep.mubr.bf16.mxu0 %v7713
    %9322 = vmatmul.mubr.bf16.gmra.mxu0 %v7711
    %v9323 = vpop.f32.mrf.mxu0
    %v9324 = vadd.f32 %v9283, %v9323
    %v9325 = vpop.f32.mrf.mxu0
    %v9326 = vadd.f32 %v9285, %v9325
    %v9327 = vpop.f32.mrf.mxu0
    %v9328 = vpop.f32.mrf.mxu0
    %9329 = vdwg.mxu0
    %v9330 = vmax.f32 %v9160, 0.0
    %v9331 = vmax.f32 %v9162, 0.0
    %v9332 = vmax.f32 %v9324, 0.0
    %v9333 = vmax.f32 %v9326, 0.0
    %v9334 = vld [vmem:[%s7] sm:$0xff]
    %v9335 = vld [vmem:[%s7 + $0x8] sm:$0xff]
    %v9336 = vld [vmem:[%s7 + $0x10] sm:$0xff]
    %v9337 = vld [vmem:[%s7 + $0x18] sm:$0xff]
    %v9338 = vld [vmem:[%s7 + $0x20] sm:$0xff]
    %v9339 = vld [vmem:[%s7 + $0x28] sm:$0xff]
    %v9340 = vld [vmem:[%s7 + $0x30] sm:$0xff]
    %v9341 = vld [vmem:[%s7 + $0x38] sm:$0xff]
    %v9342 = vld [vmem:[%s7 + $0x40] sm:$0xff]
    %v9343 = vld [vmem:[%s7 + $0x48] sm:$0xff]
    %v9344 = vld [vmem:[%s7 + $0x50] sm:$0xff]
    %v9345 = vld [vmem:[%s7 + $0x58] sm:$0xff]
    %v9346 = vld [vmem:[%s7 + $0x60] sm:$0xff]
    %v9347 = vld [vmem:[%s7 + $0x68] sm:$0xff]
    %v9348 = vld [vmem:[%s7 + $0x70] sm:$0xff]
    %v9349 = vld [vmem:[%s7 + $0x78] sm:$0xff]
    %v9350 = vld [vmem:[%s7 + $0x80] sm:$0xff]
    %v9351 = vld [vmem:[%s7 + $0x88] sm:$0xff]
    %v9352 = vld [vmem:[%s7 + $0x90] sm:$0xff]
    %v9353 = vld [vmem:[%s7 + $0x98] sm:$0xff]
    %v9354 = vld [vmem:[%s7 + $0xa0] sm:$0xff]
    %v9355 = vld [vmem:[%s7 + $0xa8] sm:$0xff]
    %v9356 = vld [vmem:[%s7 + $0xb0] sm:$0xff]
    %v9357 = vld [vmem:[%s7 + $0xb8] sm:$0xff]
    %v9358 = vld [vmem:[%s7 + $0xc0] sm:$0xff]
    %v9359 = vld [vmem:[%s7 + $0xc8] sm:$0xff]
    %v9360 = vld [vmem:[%s7 + $0xd0] sm:$0xff]
    %v9361 = vld [vmem:[%s7 + $0xd8] sm:$0xff]
    %v9362 = vld [vmem:[%s7 + $0xe0] sm:$0xff]
    %v9363 = vld [vmem:[%s7 + $0xe8] sm:$0xff]
    %v9364 = vld [vmem:[%s7 + $0xf0] sm:$0xff]
    %v9365 = vld [vmem:[%s7 + $0xf8] sm:$0xff]
    %v9366 = vld [vmem:[%s7 + $0x100] sm:$0xff]
    %v9367 = vld [vmem:[%s7 + $0x108] sm:$0xff]
    %v9368 = vld [vmem:[%s7 + $0x110] sm:$0xff]
    %v9369 = vld [vmem:[%s7 + $0x118] sm:$0xff]
    %v9370 = vld [vmem:[%s7 + $0x120] sm:$0xff]
    %v9371 = vld [vmem:[%s7 + $0x128] sm:$0xff]
    %v9372 = vld [vmem:[%s7 + $0x130] sm:$0xff]
    %v9373 = vld [vmem:[%s7 + $0x138] sm:$0xff]
    %v9374 = vld [vmem:[%s7 + $0x140] sm:$0xff]
    %v9375 = vld [vmem:[%s7 + $0x148] sm:$0xff]
    %v9376 = vld [vmem:[%s7 + $0x150] sm:$0xff]
    %v9377 = vld [vmem:[%s7 + $0x158] sm:$0xff]
    %v9378 = vld [vmem:[%s7 + $0x160] sm:$0xff]
    %v9379 = vld [vmem:[%s7 + $0x168] sm:$0xff]
    %v9380 = vld [vmem:[%s7 + $0x170] sm:$0xff]
    %v9381 = vld [vmem:[%s7 + $0x178] sm:$0xff]
    %v9382 = vld [vmem:[%s7 + $0x180] sm:$0xff]
    %v9383 = vld [vmem:[%s7 + $0x188] sm:$0xff]
    %v9384 = vld [vmem:[%s7 + $0x190] sm:$0xff]
    %v9385 = vld [vmem:[%s7 + $0x198] sm:$0xff]
    %v9386 = vld [vmem:[%s7 + $0x1a0] sm:$0xff]
    %v9387 = vld [vmem:[%s7 + $0x1a8] sm:$0xff]
    %v9388 = vld [vmem:[%s7 + $0x1b0] sm:$0xff]
    %v9389 = vld [vmem:[%s7 + $0x1b8] sm:$0xff]
    %v9390 = vld [vmem:[%s7 + $0x1c0] sm:$0xff]
    %v9391 = vld [vmem:[%s7 + $0x1c8] sm:$0xff]
    %v9392 = vld [vmem:[%s7 + $0x1d0] sm:$0xff]
    %v9393 = vld [vmem:[%s7 + $0x1d8] sm:$0xff]
    %v9394 = vld [vmem:[%s7 + $0x1e0] sm:$0xff]
    %v9395 = vld [vmem:[%s7 + $0x1e8] sm:$0xff]
    %v9396 = vld [vmem:[%s7 + $0x1f0] sm:$0xff]
    %v9397 = vld [vmem:[%s7 + $0x1f8] sm:$0xff]
    %v9398 = vld [vmem:[%s8] sm:$0x1]
    %v9400 = vlaneseq
    %v9401 = vshrl.u32 %v9400, 7
    %v9402 = vsub.s32 0, %v9401
    %v9403 = vrot.slane %v9398, %v9402
    %9405 = vmatprep.subr.mxu0 0.0
    %9406 = vmatpush1.msra.mxu0 %v9349
    %9407 = vmatprep.subr.mxu0 0.0
    %9408 = vmatpush1.msra.mxu0 %v9348
    %9409 = vmatprep.subr.mxu0 0.0
    %9410 = vmatpush1.msra.mxu0 %v9347
    %9411 = vmatprep.subr.mxu0 0.0
    %9412 = vmatpush1.msra.mxu0 %v9346
    %9413 = vmatprep.subr.mxu0 0.0
    %9414 = vmatpush1.msra.mxu0 %v9345
    %9415 = vmatprep.subr.mxu0 0.0
    %9416 = vmatpush1.msra.mxu0 %v9344
    %9417 = vmatprep.subr.mxu0 0.0
    %9418 = vmatpush1.msra.mxu0 %v9343
    %9419 = vmatprep.subr.mxu0 0.0
    %9420 = vmatpush1.msra.mxu0 %v9342
    %9421 = vmatprep.subr.mxu0 0.0
    %9422 = vmatpush1.msra.mxu0 %v9341
    %9423 = vmatprep.subr.mxu0 0.0
    %9424 = vmatpush1.msra.mxu0 %v9340
    %9425 = vmatprep.subr.mxu0 0.0
    %9426 = vmatpush1.msra.mxu0 %v9339
    %9427 = vmatprep.subr.mxu0 0.0
    %9428 = vmatpush1.msra.mxu0 %v9338
    %9429 = vmatprep.subr.mxu0 0.0
    %9430 = vmatpush1.msra.mxu0 %v9337
    %9431 = vmatprep.subr.mxu0 0.0
    %9432 = vmatpush1.msra.mxu0 %v9336
    %9433 = vmatprep.subr.mxu0 0.0
    %9434 = vmatpush1.msra.mxu0 %v9335
    %9435 = vmatprep.subr.mxu0 0.0
    %9436 = vmatpush1.msra.mxu0 %v9334
    %9437 = vmatprep.subr.mxu0 0.0
    %9438 = vmatpush2.msra.mxu0 %v9365
    %9439 = vmatprep.subr.mxu0 0.0
    %9440 = vmatpush2.msra.mxu0 %v9364
    %9441 = vmatprep.subr.mxu0 0.0
    %9442 = vmatpush2.msra.mxu0 %v9363
    %9443 = vmatprep.subr.mxu0 0.0
    %9444 = vmatpush2.msra.mxu0 %v9362
    %9445 = vmatprep.subr.mxu0 0.0
    %9446 = vmatpush2.msra.mxu0 %v9361
    %9447 = vmatprep.subr.mxu0 0.0
    %9448 = vmatpush2.msra.mxu0 %v9360
    %9449 = vmatprep.subr.mxu0 0.0
    %9450 = vmatpush2.msra.mxu0 %v9359
    %9451 = vmatprep.subr.mxu0 0.0
    %9452 = vmatpush2.msra.mxu0 %v9358
    %9453 = vmatprep.subr.mxu0 0.0
    %9454 = vmatpush2.msra.mxu0 %v9357
    %9455 = vmatprep.subr.mxu0 0.0
    %9456 = vmatpush2.msra.mxu0 %v9356
    %9457 = vmatprep.subr.mxu0 0.0
    %9458 = vmatpush2.msra.mxu0 %v9355
    %9459 = vmatprep.subr.mxu0 0.0
    %9460 = vmatpush2.msra.mxu0 %v9354
    %9461 = vmatprep.subr.mxu0 0.0
    %9462 = vmatpush2.msra.mxu0 %v9353
    %9463 = vmatprep.subr.mxu0 0.0
    %9464 = vmatpush2.msra.mxu0 %v9352
    %9465 = vmatprep.subr.mxu0 0.0
    %9466 = vmatpush2.msra.mxu0 %v9351
    %9467 = vmatprep.subr.mxu0 0.0
    %9468 = vmatpush2.msra.mxu0 %v9350
    %9469 = vmatprep.mubr.f32.mxu0 %v9331
    %9470 = vmatmul.mubr.f32.gmra.mxu0 %v9330
    %v9471 = vpop.f32.mrf.mxu0
    %v9472 = vadd.f32 %v9403, %v9471
    %v9473 = vpop.f32.mrf.mxu0
    %9474 = vdwg.mxu0
    %9475 = vmatprep.subr.mxu0 0.0
    %9476 = vmatpush1.msra.mxu0 %v9381
    %9477 = vmatprep.subr.mxu0 0.0
    %9478 = vmatpush1.msra.mxu0 %v9380
    %9479 = vmatprep.subr.mxu0 0.0
    %9480 = vmatpush1.msra.mxu0 %v9379
    %9481 = vmatprep.subr.mxu0 0.0
    %9482 = vmatpush1.msra.mxu0 %v9378
    %9483 = vmatprep.subr.mxu0 0.0
    %9484 = vmatpush1.msra.mxu0 %v9377
    %9485 = vmatprep.subr.mxu0 0.0
    %9486 = vmatpush1.msra.mxu0 %v9376
    %9487 = vmatprep.subr.mxu0 0.0
    %9488 = vmatpush1.msra.mxu0 %v9375
    %9489 = vmatprep.subr.mxu0 0.0
    %9490 = vmatpush1.msra.mxu0 %v9374
    %9491 = vmatprep.subr.mxu0 0.0
    %9492 = vmatpush1.msra.mxu0 %v9373
    %9493 = vmatprep.subr.mxu0 0.0
    %9494 = vmatpush1.msra.mxu0 %v9372
    %9495 = vmatprep.subr.mxu0 0.0
    %9496 = vmatpush1.msra.mxu0 %v9371
    %9497 = vmatprep.subr.mxu0 0.0
    %9498 = vmatpush1.msra.mxu0 %v9370
    %9499 = vmatprep.subr.mxu0 0.0
    %9500 = vmatpush1.msra.mxu0 %v9369
    %9501 = vmatprep.subr.mxu0 0.0
    %9502 = vmatpush1.msra.mxu0 %v9368
    %9503 = vmatprep.subr.mxu0 0.0
    %9504 = vmatpush1.msra.mxu0 %v9367
    %9505 = vmatprep.subr.mxu0 0.0
    %9506 = vmatpush1.msra.mxu0 %v9366
    %9507 = vmatprep.subr.mxu0 0.0
    %9508 = vmatpush2.msra.mxu0 %v9397
    %9509 = vmatprep.subr.mxu0 0.0
    %9510 = vmatpush2.msra.mxu0 %v9396
    %9511 = vmatprep.subr.mxu0 0.0
    %9512 = vmatpush2.msra.mxu0 %v9395
    %9513 = vmatprep.subr.mxu0 0.0
    %9514 = vmatpush2.msra.mxu0 %v9394
    %9515 = vmatprep.subr.mxu0 0.0
    %9516 = vmatpush2.msra.mxu0 %v9393
    %9517 = vmatprep.subr.mxu0 0.0
    %9518 = vmatpush2.msra.mxu0 %v9392
    %9519 = vmatprep.subr.mxu0 0.0
    %9520 = vmatpush2.msra.mxu0 %v9391
    %9521 = vmatprep.subr.mxu0 0.0
    %9522 = vmatpush2.msra.mxu0 %v9390
    %9523 = vmatprep.subr.mxu0 0.0
    %9524 = vmatpush2.msra.mxu0 %v9389
    %9525 = vmatprep.subr.mxu0 0.0
    %9526 = vmatpush2.msra.mxu0 %v9388
    %9527 = vmatprep.subr.mxu0 0.0
    %9528 = vmatpush2.msra.mxu0 %v9387
    %9529 = vmatprep.subr.mxu0 0.0
    %9530 = vmatpush2.msra.mxu0 %v9386
    %9531 = vmatprep.subr.mxu0 0.0
    %9532 = vmatpush2.msra.mxu0 %v9385
    %9533 = vmatprep.subr.mxu0 0.0
    %9534 = vmatpush2.msra.mxu0 %v9384
    %9535 = vmatprep.subr.mxu0 0.0
    %9536 = vmatpush2.msra.mxu0 %v9383
    %9537 = vmatprep.subr.mxu0 0.0
    %9538 = vmatpush2.msra.mxu0 %v9382
    %9539 = vmatprep.mubr.f32.mxu0 %v9333
    %9540 = vmatmul.mubr.f32.gmra.mxu0 %v9332
    %v9541 = vpop.f32.mrf.mxu0
    %v9542 = vadd.f32 %v9472, %v9541
    %v9543 = vpop.f32.mrf.mxu0
    %9544 = vdwg.mxu0
    %vm9545 = vcmask 33792
    %9546 = vst.msk [vmem:[#allocation9] sm:$0x3] %vm9545, %v9542
    %v9547 = vmul.f32 %v9542, 1.442695
    %v9548 = vpow.pop %v9547
    %9550 = vrot.lane.b32.xlu0 %v9548, 123
    %v9551 = vpop.permute.xlu0 %9550
    %9553 = vst.msk [vmem:[#allocation11] sm:$0x3] %vm9545, %v9551
    // Predicated region
    $region38: #{reinforce_forward.1} parent=1 // pred_check
      _
    $region39: #{reinforce_forward.1} parent=1 // pred_check_branch
      %9555 = sbr.rel (0) target = $region41
    $region40: #{reinforce_forward.1} parent=1 // pred_region
      %s9557 = ssub.s32 32, 32
      %9558 = vsyncadd [#allocation10], %s9557
      %s9560 = sshll.u32 [#allocation9], 4
      %s9561 = int_to_ptr.vmem [resolvable:$true] %s9560
      %9563 = dma.vmem_to_hbm [thread:$0]  %s9561, 32, %s9, [#allocation10]
    $region41: #{reinforce_forward.1} parent=1 // pred_fallthru
      _
    // Predicated region
    $region42: #{reinforce_forward.1} parent=1 // pred_check
      _
    $region43: #{reinforce_forward.1} parent=1 // pred_check_branch
      %9565 = sbr.rel (0) target = $region45
    $region44: #{reinforce_forward.1} parent=1 // pred_region
      %s9567 = ssub.s32 32, 32
      %9568 = vsyncadd [#allocation12], %s9567
      %s9570 = sshll.u32 [#allocation11], 4
      %s9571 = int_to_ptr.vmem [resolvable:$true] %s9570
      %9573 = dma.vmem_to_hbm [thread:$0]  %s9571, 32, %s10, [#allocation12]
    $region45: #{reinforce_forward.1} parent=1 // pred_fallthru
      _
    // Predicated region
    $region46: #{reinforce_forward.1} parent=1 // pred_check
      _
    $region47: #{reinforce_forward.1} parent=1 // pred_check_branch
      %9575 = sbr.rel (0) target = $region49
    $region48: #{reinforce_forward.1} parent=1 // pred_region
      %9576 = dma.done [#allocation10], 32
    $region49: #{reinforce_forward.1} parent=1 // pred_fallthru
      _
    // Predicated region
    $region50: #{reinforce_forward.1} parent=1 // pred_check
      _
    $region51: #{reinforce_forward.1} parent=1 // pred_check_branch
      %9578 = sbr.rel (0) target = $region53
    $region52: #{reinforce_forward.1} parent=1 // pred_region
      %9579 = dma.done [#allocation12], 32
    $region53: #{reinforce_forward.1} parent=1 // pred_fallthru
      _
    %9580 = vsyncpa [#allocation10], 1
    %9581 = vsyncpa [#allocation12], 1

</llo_original>
